<compile_context>
chip_gen: v6e
topology: v6e:2x2x1
jax: 0.10.0
libtpu: 0.0.40
codegen_flags: <defaults>
</compile_context>

<pallas_src>
import functools

import jax
import jax.numpy as jnp
import numpy as np
from jax import lax
from jax.experimental import pallas as pl
from jax.experimental.pallas import tpu as pltpu

_NOUT_HEAD = 128  # lane-dense padded output width for the fused loc+conf head


# ----------------------------------------------------------------------------
# Pallas kernels
# ----------------------------------------------------------------------------
def _conv3x3_kernel(x_ref, w_ref, b_ref, o_ref, *, wp, hpwp, negative_slope):
    """Fused 3x3 SAME conv + bias (+ leaky-ReLU), one batch element per step.

    x_ref : (nrows, Cin)  flattened zero-padded image rows (raster order over
                          the (H+2, W+2) grid, plus 2*wp+2 trailing zero rows
                          so every shifted slice stays in-bounds).
    w_ref : (9, Cin, Nout) bf16 weights, tap-major (dy*3+dx).
    b_ref : (1, Nout)      f32 bias.
    o_ref : (hpwp, Nout)   conv output over the *padded* grid; the valid
                           (H, W) interior is sliced out by the caller.
    """
    nout = o_ref.shape[-1]
    acc = jnp.zeros((hpwp, nout), jnp.float32)
    # im2col fused in VMEM: 9 shifted row-slices, accumulated on the MXU in f32.
    for dy in range(3):
        for dx in range(3):
            xs = x_ref[pl.ds(dy * wp + dx, hpwp), :].astype(jnp.bfloat16)
            acc = acc + jnp.dot(xs, w_ref[dy * 3 + dx],
                                preferred_element_type=jnp.float32)
    acc = acc + b_ref[...]
    if negative_slope is not None:
        acc = jnp.where(acc > 0, acc, negative_slope * acc)
    o_ref[...] = acc.astype(o_ref.dtype)


def _dual_1x1_kernel(a_ref, s_ref, wa_ref, ws_ref, b_ref, o_ref, *,
                     negative_slope):
    """leaky(concat([a, s], -1) @ W + b) as two accumulated matmuls."""
    acc = jnp.dot(a_ref[...].astype(jnp.bfloat16), wa_ref[...],
                  preferred_element_type=jnp.float32)
    acc = acc + jnp.dot(s_ref[...].astype(jnp.bfloat16), ws_ref[...],
                        preferred_element_type=jnp.float32)
    acc = acc + b_ref[...]
    acc = jnp.where(acc > 0, acc, negative_slope * acc)
    o_ref[...] = acc.astype(o_ref.dtype)


# ----------------------------------------------------------------------------
# Pallas wrappers
# ----------------------------------------------------------------------------
def conv3x3_pallas(x_nhwc, w9, b, *, negative_slope):
    """Stride-1 SAME 3x3 conv; im2col, bias and activation all inside the kernel."""
    B, H, W, cin = x_nhwc.shape
    hp, wp = H + 2, W + 2
    hpwp = hp * wp
    nrows = hpwp + 2 * wp + 2          # trailing zero rows keep slices in-bounds
    nout = w9.shape[-1]

    xp = jnp.pad(x_nhwc, ((0, 0), (1, 1), (1, 1), (0, 0))).reshape(B, hpwp, cin)
    xp = jnp.pad(xp, ((0, 0), (0, nrows - hpwp), (0, 0)))

    out = pl.pallas_call(
        functools.partial(_conv3x3_kernel, wp=wp, hpwp=hpwp,
                          negative_slope=negative_slope),
        out_shape=jax.ShapeDtypeStruct((B, hpwp, nout), jnp.float32),
        grid=(B,),
        in_specs=[
            pl.BlockSpec((None, nrows, cin), lambda i: (i, 0, 0)),  # per-batch rows
            pl.BlockSpec((9, cin, nout), lambda i: (0, 0, 0)),      # resident weights
            pl.BlockSpec((1, nout), lambda i: (0, 0)),              # bias
        ],
        out_specs=pl.BlockSpec((None, hpwp, nout), lambda i: (i, 0, 0)),
        compiler_params=pltpu.CompilerParams(dimension_semantics=("parallel",)),
    )(xp, w9, b.reshape(1, nout))
    # Valid interior of the padded-grid output.
    return out.reshape(B, hp, wp, nout)[:, :H, :W, :]


def dual_1x1_pallas(x_nhwc, skip_nhwc, w_x, w_skip, b, *, negative_slope):
    """1x1 conv over channel-concat(x, skip) without materializing the concat."""
    B, H, W, ca = x_nhwc.shape
    cs = skip_nhwc.shape[-1]
    nout = w_x.shape[-1]
    m = B * H * W
    a2 = x_nhwc.reshape(m, ca)
    s2 = skip_nhwc.reshape(m, cs)
    out = pl.pallas_call(
        functools.partial(_dual_1x1_kernel, negative_slope=negative_slope),
        out_shape=jax.ShapeDtypeStruct((m, nout), jnp.float32),
        grid=(1,),
        in_specs=[
            pl.BlockSpec((m, ca), lambda i: (0, 0)),
            pl.BlockSpec((m, cs), lambda i: (0, 0)),
            pl.BlockSpec((ca, nout), lambda i: (0, 0)),
            pl.BlockSpec((cs, nout), lambda i: (0, 0)),
            pl.BlockSpec((1, nout), lambda i: (0, 0)),
        ],
        out_specs=pl.BlockSpec((m, nout), lambda i: (0, 0)),
        compiler_params=pltpu.CompilerParams(dimension_semantics=("arbitrary",)),
    )(a2, s2, w_x, w_skip, b.reshape(1, nout))
    return out.reshape(B, H, W, nout)


# ----------------------------------------------------------------------------
# Plain-JAX glue / reference helpers
# ----------------------------------------------------------------------------
def _maxpool2x2(x):
    B, H, W, C = x.shape
    assert H % 2 == 0 and W % 2 == 0, "maxpool2x2 requires even spatial dims"
    # TODO(synk): could be fused as an epilogue of the preceding conv kernel;
    # left as a tiny XLA op (feature maps are a few KiB here).
    return jnp.max(x.reshape(B, H // 2, 2, W // 2, 2, C), axis=(2, 4))


def _conv_ref(x, w_hwio, b, *, negative_slope=None):
    """Pure-JAX reference conv (correctness check only)."""
    y = lax.conv_general_dilated(x, w_hwio.astype(jnp.float32), (1, 1), "SAME",
                                 dimension_numbers=("NHWC", "HWIO", "NHWC"))
    y = y + b
    if negative_slope is not None:
        y = jnp.where(y > 0, y, negative_slope * y)
    return y


def _conv_params(key, kh, kw, cin, cout):
    kw_, kb_ = jax.random.split(key)
    fan_in = kh * kw * cin
    w = (jax.random.normal(kw_, (kh, kw, cin, cout), jnp.float32)
         / np.sqrt(fan_in)).astype(jnp.bfloat16)        # bf16 weights for the MXU
    b = 0.01 * jax.random.normal(kb_, (cout,), jnp.float32)
    return {"w_hwio": w, "b": b}


# ----------------------------------------------------------------------------
# YOLO module
# ----------------------------------------------------------------------------
class YOLOPallas:
    def __init__(self, key, num_classes=6, num_anchors=3):
        self.num_classes = num_classes
        self.num_anchors = num_anchors
        keys = iter(jax.random.split(key, 32))

        # --- base ---
        base_cfg = [("conv", 3, 8), ("pool",), ("conv", 8, 16), ("pool",),
                    ("conv", 16, 32)]
        self.base = []
        for spec in base_cfg:
            if spec[0] == "conv":
                p = _conv_params(next(keys), 3, 3, spec[1], spec[2])
                p["kind"] = "conv"
                p["w9"] = p["w_hwio"].reshape(9, spec[1], spec[2])
                self.base.append(p)
            else:
                self.base.append({"kind": "pool"})

        # --- extras (route blocks taking (x, cat[feature_layer[k]])) ---
        def make_extra(kind, c_x, c_skip, cout):
            p = _conv_params(next(keys), 1, 1, c_x + c_skip, cout)
            p["kind"] = kind
            p["w_x"] = p["w_hwio"][0, 0, :c_x, :]
            p["w_skip"] = p["w_hwio"][0, 0, c_x:, :]
            return p

        self.extras = [
            make_extra("concat_conv", 32, 32, 32),
            make_extra("upsample_concat_conv", 32, 16, 24),
        ]
        src_channels = [32, 24]

        # --- heads (kept as separate loc/conf params; packed for the kernel) ---
        self.loc = [_conv_params(next(keys), 3, 3, c, num_anchors * 4)
                    for c in src_channels]
        self.conf = [_conv_params(next(keys), 3, 3, c, num_anchors * num_classes)
                     for c in src_channels]
        self.head_packed = []
        for l, c, cin in zip(self.loc, self.conf, src_channels):
            n_loc = num_anchors * 4
            n_conf = num_anchors * num_classes
            w_cat = jnp.concatenate([l["w_hwio"], c["w_hwio"]], axis=-1)
            w9 = w_cat.reshape(9, cin, n_loc + n_conf)
            w9 = jnp.pad(w9, ((0, 0), (0, 0), (0, _NOUT_HEAD - (n_loc + n_conf))))
            b_cat = jnp.pad(jnp.concatenate([l["b"], c["b"]]),
                            (0, _NOUT_HEAD - (n_loc + n_conf)))
            self.head_packed.append({"w9": w9.astype(jnp.bfloat16), "b": b_cat,
                                     "n_loc": n_loc, "n_conf": n_conf})

        # mirror the PyTorch __init__ bookkeeping exactly
        feature_layer = [[[4], [2]], [[num_anchors], [num_anchors]]]
        self.feature_layer = [f for feature in feature_layer[0] for f in feature]
        self.feature_index = []
        s = -1
        for feature in feature_layer[0]:
            s += len(feature)
            self.feature_index.append(s)

    # ----------------------------- Pallas path ------------------------------
    def forward(self, x_nchw, phase="eval"):
        # TODO(synk): torch.cuda.synchronize()/perf_counter timing side-outputs
        # and the distill_teacher/distill_student taps (layers 12/16/23/28)
        # have no equivalent in this 5-layer synthetic base.
        x = jnp.transpose(x_nchw, (0, 2, 3, 1)).astype(jnp.float32)
        cat, sources = {}, []
        for k, layer in enumerate(self.base):
            if layer["kind"] == "conv":
                x = conv3x3_pallas(x, layer["w9"], layer["b"], negative_slope=0.1)
            else:
                x = _maxpool2x2(x)
            if k in self.feature_layer:
                cat[k] = x

        for k, extra in enumerate(self.extras):
            skip = cat[self.feature_layer[k]]
            if extra["kind"] == "upsample_concat_conv":
                # TODO(synk): nearest-2x could be folded into the kernel's row
                # indexing; it is a <16 KiB XLA op here so left as glue.
                x = jnp.repeat(jnp.repeat(x, 2, axis=1), 2, axis=2)
            x = dual_1x1_pallas(x, skip, extra["w_x"], extra["w_skip"],
                                extra["b"], negative_slope=0.1)
            if k in self.feature_index:
                sources.append(x)

        if phase == "feature":
            return sources

        loc, conf = [], []
        for src, head in zip(sources, self.head_packed):
            B = src.shape[0]
            # One lane-dense (N=128) matmul per source covering loc+conf.
            fused = conv3x3_pallas(src, head["w9"], head["b"],
                                   negative_slope=None)
            loc.append(fused[..., :head["n_loc"]].reshape(B, -1))
            conf.append(fused[..., head["n_loc"]:head["n_loc"] + head["n_conf"]]
                        .reshape(B, -1))
        loc = jnp.concatenate(loc, axis=1)
        conf = jnp.concatenate(conf, axis=1)

        if phase == "eval":
            # (B*num_priors, num_classes) softmax left to XLA (review: a Pallas
            # call on a (480, 6) operand is pure overhead).
            return (loc.reshape(loc.shape[0], -1, 4),
                    jax.nn.softmax(conf.reshape(-1, self.num_classes), axis=-1))
        return (loc.reshape(loc.shape[0], -1, 4),
                conf.reshape(conf.shape[0], -1, self.num_classes))

    # --------------------------- pure-JAX reference -------------------------
    def forward_reference(self, x_nchw, phase="eval"):
        x = jnp.transpose(x_nchw, (0, 2, 3, 1)).astype(jnp.float32)
        cat, sources, loc, conf = {}, [], [], []
        for k, layer in enumerate(self.base):
            if layer["kind"] == "conv":
                x = _conv_ref(x, layer["w_hwio"], layer["b"], negative_slope=0.1)
            else:
                x = _maxpool2x2(x)
            if k in self.feature_layer:
                cat[k] = x
        for k, extra in enumerate(self.extras):
            skip = cat[self.feature_layer[k]]
            if extra["kind"] == "upsample_concat_conv":
                x = jnp.repeat(jnp.repeat(x, 2, axis=1), 2, axis=2)
            x = _conv_ref(jnp.concatenate([x, skip], axis=-1),
                          extra["w_hwio"], extra["b"], negative_slope=0.1)
            if k in self.feature_index:
                sources.append(x)
        if phase == "feature":
            return sources
        for src, l, c in zip(sources, self.loc, self.conf):
            loc.append(_conv_ref(src, l["w_hwio"], l["b"]).reshape(src.shape[0], -1))
            conf.append(_conv_ref(src, c["w_hwio"], c["b"]).reshape(src.shape[0], -1))
        loc = jnp.concatenate(loc, axis=1)
        conf = jnp.concatenate(conf, axis=1)
        if phase == "eval":
            return (loc.reshape(loc.shape[0], -1, 4),
                    jax.nn.softmax(conf.reshape(-1, self.num_classes), axis=-1))
        return (loc.reshape(loc.shape[0], -1, 4),
                conf.reshape(conf.shape[0], -1, self.num_classes))


# ----------------------------------------------------------------------------
if __name__ == "__main__":
    key = jax.random.PRNGKey(0)
    pkey, xkey = jax.random.split(key)
    model = YOLOPallas(pkey, num_classes=6, num_anchors=3)

    # PyTorch-style NCHW input (small: batch=2, 3 channels, 16x16)
    x = jax.random.normal(xkey, (2, 3, 16, 16), jnp.float32)

    loc_out, conf_out = jax.block_until_ready(jax.jit(model.forward)(x))

    # num_priors = 3 * (4*4 + 8*8) = 240
    assert loc_out.shape == (2, 240, 4), loc_out.shape
    assert conf_out.shape == (2 * 240, 6), conf_out.shape

    # sanity check against a pure-JAX reference of the same network
    loc_ref, conf_ref = model.forward_reference(x)
    assert np.allclose(np.asarray(loc_out), np.asarray(loc_ref),
                       rtol=5e-2, atol=5e-2)
    assert np.allclose(np.asarray(conf_out), np.asarray(conf_ref),
                       rtol=5e-2, atol=5e-2)

    print("KERNEL_OK")
</pallas_src>

<mosaic_0001>
module attributes {stable_mosaic.version = 11 : i64} {
  func.func @_conv3x3_kernel(%arg0: i32, %arg1: memref<1x362x3xf32, #tpu.memory_space<vmem>>, %arg2: memref<9x3x8xbf16, #tpu.memory_space<vmem>>, %arg3: memref<1x8xf32, #tpu.memory_space<vmem>>, %arg4: memref<1x324x8xf32, #tpu.memory_space<vmem>>) attributes {dimension_semantics = [#tpu.dimension_semantics<parallel>], iteration_bounds = array<i64: 2>, scalar_prefetch = 0 : i64, scratch_operands = 0 : i64, tpu.core_type = #tpu.core_type<tc>, window_params = [{transform_indices = @transform_0, window_bounds = array<i64: 1, 362, 3>}, {pipeline_mode = #tpu.pipeline_mode<synchronous>, transform_indices = @transform_1, window_bounds = array<i64: 9, 3, 8>}, {pipeline_mode = #tpu.pipeline_mode<synchronous>, transform_indices = @transform_2, window_bounds = array<i64: 1, 8>}, {transform_indices = @transform_3, window_bounds = array<i64: 1, 324, 8>}]} {
    %cst = arith.constant 0.000000e+00 : f32
    %0 = vector.broadcast %cst : f32 to vector<324x8xf32>
    %c0 = arith.constant 0 : index
    %c0_0 = arith.constant 0 : index
    %c0_1 = arith.constant 0 : index
    %1 = vector.load %arg1[%c0, %c0_0, %c0_1] : memref<1x362x3xf32, #tpu.memory_space<vmem>>, vector<1x324x3xf32>
    %2 = vector.shape_cast %1 : vector<1x324x3xf32> to vector<324x3xf32>
    %3 = arith.truncf %2 : vector<324x3xf32> to vector<324x3xbf16>
    %c0_2 = arith.constant 0 : index
    %c0_3 = arith.constant 0 : index
    %c0_4 = arith.constant 0 : index
    %4 = vector.load %arg2[%c0_2, %c0_3, %c0_4] : memref<9x3x8xbf16, #tpu.memory_space<vmem>>, vector<1x3x8xbf16>
    %5 = vector.shape_cast %4 : vector<1x3x8xbf16> to vector<3x8xbf16>
    %cst_5 = arith.constant dense<0.000000e+00> : vector<324x8xf32>
    %6 = tpu.matmul %3, %5, %cst_5 {dimension_numbers = #tpu.dot_dimension_numbers<[1], [0], [0], [1], [0, 0, 1, 1], [], []>} : vector<324x3xbf16>, vector<3x8xbf16>, vector<324x8xf32> -> vector<324x8xf32>
    %7 = arith.addf %0, %6 : vector<324x8xf32>
    %c0_6 = arith.constant 0 : index
    %c1 = arith.constant 1 : index
    %c0_7 = arith.constant 0 : index
    %8 = vector.load %arg1[%c0_6, %c1, %c0_7] : memref<1x362x3xf32, #tpu.memory_space<vmem>>, vector<1x324x3xf32>
    %9 = vector.shape_cast %8 : vector<1x324x3xf32> to vector<324x3xf32>
    %10 = arith.truncf %9 : vector<324x3xf32> to vector<324x3xbf16>
    %c1_8 = arith.constant 1 : index
    %c0_9 = arith.constant 0 : index
    %c0_10 = arith.constant 0 : index
    %11 = vector.load %arg2[%c1_8, %c0_9, %c0_10] : memref<9x3x8xbf16, #tpu.memory_space<vmem>>, vector<1x3x8xbf16>
    %12 = vector.shape_cast %11 : vector<1x3x8xbf16> to vector<3x8xbf16>
    %cst_11 = arith.constant dense<0.000000e+00> : vector<324x8xf32>
    %13 = tpu.matmul %10, %12, %cst_11 {dimension_numbers = #tpu.dot_dimension_numbers<[1], [0], [0], [1], [0, 0, 1, 1], [], []>} : vector<324x3xbf16>, vector<3x8xbf16>, vector<324x8xf32> -> vector<324x8xf32>
    %14 = arith.addf %7, %13 : vector<324x8xf32>
    %c0_12 = arith.constant 0 : index
    %c2 = arith.constant 2 : index
    %c0_13 = arith.constant 0 : index
    %15 = vector.load %arg1[%c0_12, %c2, %c0_13] : memref<1x362x3xf32, #tpu.memory_space<vmem>>, vector<1x324x3xf32>
    %16 = vector.shape_cast %15 : vector<1x324x3xf32> to vector<324x3xf32>
    %17 = arith.truncf %16 : vector<324x3xf32> to vector<324x3xbf16>
    %c2_14 = arith.constant 2 : index
    %c0_15 = arith.constant 0 : index
    %c0_16 = arith.constant 0 : index
    %18 = vector.load %arg2[%c2_14, %c0_15, %c0_16] : memref<9x3x8xbf16, #tpu.memory_space<vmem>>, vector<1x3x8xbf16>
    %19 = vector.shape_cast %18 : vector<1x3x8xbf16> to vector<3x8xbf16>
    %cst_17 = arith.constant dense<0.000000e+00> : vector<324x8xf32>
    %20 = tpu.matmul %17, %19, %cst_17 {dimension_numbers = #tpu.dot_dimension_numbers<[1], [0], [0], [1], [0, 0, 1, 1], [], []>} : vector<324x3xbf16>, vector<3x8xbf16>, vector<324x8xf32> -> vector<324x8xf32>
    %21 = arith.addf %14, %20 : vector<324x8xf32>
    %c0_18 = arith.constant 0 : index
    %c18 = arith.constant 18 : index
    %c0_19 = arith.constant 0 : index
    %22 = vector.load %arg1[%c0_18, %c18, %c0_19] : memref<1x362x3xf32, #tpu.memory_space<vmem>>, vector<1x324x3xf32>
    %23 = vector.shape_cast %22 : vector<1x324x3xf32> to vector<324x3xf32>
    %24 = arith.truncf %23 : vector<324x3xf32> to vector<324x3xbf16>
    %c3 = arith.constant 3 : index
    %c0_20 = arith.constant 0 : index
    %c0_21 = arith.constant 0 : index
    %25 = vector.load %arg2[%c3, %c0_20, %c0_21] : memref<9x3x8xbf16, #tpu.memory_space<vmem>>, vector<1x3x8xbf16>
    %26 = vector.shape_cast %25 : vector<1x3x8xbf16> to vector<3x8xbf16>
    %cst_22 = arith.constant dense<0.000000e+00> : vector<324x8xf32>
    %27 = tpu.matmul %24, %26, %cst_22 {dimension_numbers = #tpu.dot_dimension_numbers<[1], [0], [0], [1], [0, 0, 1, 1], [], []>} : vector<324x3xbf16>, vector<3x8xbf16>, vector<324x8xf32> -> vector<324x8xf32>
    %28 = arith.addf %21, %27 : vector<324x8xf32>
    %c0_23 = arith.constant 0 : index
    %c19 = arith.constant 19 : index
    %c0_24 = arith.constant 0 : index
    %29 = vector.load %arg1[%c0_23, %c19, %c0_24] : memref<1x362x3xf32, #tpu.memory_space<vmem>>, vector<1x324x3xf32>
    %30 = vector.shape_cast %29 : vector<1x324x3xf32> to vector<324x3xf32>
    %31 = arith.truncf %30 : vector<324x3xf32> to vector<324x3xbf16>
    %c4 = arith.constant 4 : index
    %c0_25 = arith.constant 0 : index
    %c0_26 = arith.constant 0 : index
    %32 = vector.load %arg2[%c4, %c0_25, %c0_26] : memref<9x3x8xbf16, #tpu.memory_space<vmem>>, vector<1x3x8xbf16>
    %33 = vector.shape_cast %32 : vector<1x3x8xbf16> to vector<3x8xbf16>
    %cst_27 = arith.constant dense<0.000000e+00> : vector<324x8xf32>
    %34 = tpu.matmul %31, %33, %cst_27 {dimension_numbers = #tpu.dot_dimension_numbers<[1], [0], [0], [1], [0, 0, 1, 1], [], []>} : vector<324x3xbf16>, vector<3x8xbf16>, vector<324x8xf32> -> vector<324x8xf32>
    %35 = arith.addf %28, %34 : vector<324x8xf32>
    %c0_28 = arith.constant 0 : index
    %c20 = arith.constant 20 : index
    %c0_29 = arith.constant 0 : index
    %36 = vector.load %arg1[%c0_28, %c20, %c0_29] : memref<1x362x3xf32, #tpu.memory_space<vmem>>, vector<1x324x3xf32>
    %37 = vector.shape_cast %36 : vector<1x324x3xf32> to vector<324x3xf32>
    %38 = arith.truncf %37 : vector<324x3xf32> to vector<324x3xbf16>
    %c5 = arith.constant 5 : index
    %c0_30 = arith.constant 0 : index
    %c0_31 = arith.constant 0 : index
    %39 = vector.load %arg2[%c5, %c0_30, %c0_31] : memref<9x3x8xbf16, #tpu.memory_space<vmem>>, vector<1x3x8xbf16>
    %40 = vector.shape_cast %39 : vector<1x3x8xbf16> to vector<3x8xbf16>
    %cst_32 = arith.constant dense<0.000000e+00> : vector<324x8xf32>
    %41 = tpu.matmul %38, %40, %cst_32 {dimension_numbers = #tpu.dot_dimension_numbers<[1], [0], [0], [1], [0, 0, 1, 1], [], []>} : vector<324x3xbf16>, vector<3x8xbf16>, vector<324x8xf32> -> vector<324x8xf32>
    %42 = arith.addf %35, %41 : vector<324x8xf32>
    %c0_33 = arith.constant 0 : index
    %c36 = arith.constant 36 : index
    %c0_34 = arith.constant 0 : index
    %43 = vector.load %arg1[%c0_33, %c36, %c0_34] : memref<1x362x3xf32, #tpu.memory_space<vmem>>, vector<1x324x3xf32>
    %44 = vector.shape_cast %43 : vector<1x324x3xf32> to vector<324x3xf32>
    %45 = arith.truncf %44 : vector<324x3xf32> to vector<324x3xbf16>
    %c6 = arith.constant 6 : index
    %c0_35 = arith.constant 0 : index
    %c0_36 = arith.constant 0 : index
    %46 = vector.load %arg2[%c6, %c0_35, %c0_36] : memref<9x3x8xbf16, #tpu.memory_space<vmem>>, vector<1x3x8xbf16>
    %47 = vector.shape_cast %46 : vector<1x3x8xbf16> to vector<3x8xbf16>
    %cst_37 = arith.constant dense<0.000000e+00> : vector<324x8xf32>
    %48 = tpu.matmul %45, %47, %cst_37 {dimension_numbers = #tpu.dot_dimension_numbers<[1], [0], [0], [1], [0, 0, 1, 1], [], []>} : vector<324x3xbf16>, vector<3x8xbf16>, vector<324x8xf32> -> vector<324x8xf32>
    %49 = arith.addf %42, %48 : vector<324x8xf32>
    %c0_38 = arith.constant 0 : index
    %c37 = arith.constant 37 : index
    %c0_39 = arith.constant 0 : index
    %50 = vector.load %arg1[%c0_38, %c37, %c0_39] : memref<1x362x3xf32, #tpu.memory_space<vmem>>, vector<1x324x3xf32>
    %51 = vector.shape_cast %50 : vector<1x324x3xf32> to vector<324x3xf32>
    %52 = arith.truncf %51 : vector<324x3xf32> to vector<324x3xbf16>
    %c7 = arith.constant 7 : index
    %c0_40 = arith.constant 0 : index
    %c0_41 = arith.constant 0 : index
    %53 = vector.load %arg2[%c7, %c0_40, %c0_41] : memref<9x3x8xbf16, #tpu.memory_space<vmem>>, vector<1x3x8xbf16>
    %54 = vector.shape_cast %53 : vector<1x3x8xbf16> to vector<3x8xbf16>
    %cst_42 = arith.constant dense<0.000000e+00> : vector<324x8xf32>
    %55 = tpu.matmul %52, %54, %cst_42 {dimension_numbers = #tpu.dot_dimension_numbers<[1], [0], [0], [1], [0, 0, 1, 1], [], []>} : vector<324x3xbf16>, vector<3x8xbf16>, vector<324x8xf32> -> vector<324x8xf32>
    %56 = arith.addf %49, %55 : vector<324x8xf32>
    %c0_43 = arith.constant 0 : index
    %c38 = arith.constant 38 : index
    %c0_44 = arith.constant 0 : index
    %57 = vector.load %arg1[%c0_43, %c38, %c0_44] : memref<1x362x3xf32, #tpu.memory_space<vmem>>, vector<1x324x3xf32>
    %58 = vector.shape_cast %57 : vector<1x324x3xf32> to vector<324x3xf32>
    %59 = arith.truncf %58 : vector<324x3xf32> to vector<324x3xbf16>
    %c8 = arith.constant 8 : index
    %c0_45 = arith.constant 0 : index
    %c0_46 = arith.constant 0 : index
    %60 = vector.load %arg2[%c8, %c0_45, %c0_46] : memref<9x3x8xbf16, #tpu.memory_space<vmem>>, vector<1x3x8xbf16>
    %61 = vector.shape_cast %60 : vector<1x3x8xbf16> to vector<3x8xbf16>
    %cst_47 = arith.constant dense<0.000000e+00> : vector<324x8xf32>
    %62 = tpu.matmul %59, %61, %cst_47 {dimension_numbers = #tpu.dot_dimension_numbers<[1], [0], [0], [1], [0, 0, 1, 1], [], []>} : vector<324x3xbf16>, vector<3x8xbf16>, vector<324x8xf32> -> vector<324x8xf32>
    %63 = arith.addf %56, %62 : vector<324x8xf32>
    %c0_48 = arith.constant 0 : index
    %c0_49 = arith.constant 0 : index
    %64 = vector.load %arg3[%c0_48, %c0_49] : memref<1x8xf32, #tpu.memory_space<vmem>>, vector<1x8xf32>
    %65 = vector.broadcast %64 : vector<1x8xf32> to vector<324x8xf32>
    %66 = arith.addf %63, %65 : vector<324x8xf32>
    %cst_50 = arith.constant 0.000000e+00 : f32
    %67 = vector.broadcast %cst_50 : f32 to vector<324x8xf32>
    %68 = arith.cmpf ogt, %66, %67 : vector<324x8xf32>
    %cst_51 = arith.constant 1.000000e-01 : f32
    %69 = vector.broadcast %cst_51 : f32 to vector<324x8xf32>
    %70 = arith.mulf %69, %66 : vector<324x8xf32>
    %71 = arith.select %68, %66, %70 : vector<324x8xi1>, vector<324x8xf32>
    %c0_52 = arith.constant 0 : index
    %c0_53 = arith.constant 0 : index
    %c0_54 = arith.constant 0 : index
    %72 = vector.load %arg4[%c0_52, %c0_53, %c0_54] : memref<1x324x8xf32, #tpu.memory_space<vmem>>, vector<1x324x8xf32>
    %73 = vector.shape_cast %72 : vector<1x324x8xf32> to vector<324x8xf32>
    %74 = vector.shape_cast %71 : vector<324x8xf32> to vector<1x324x8xf32>
    tpu.vector_store %arg4[%c0_52, %c0_53, %c0_54], %74 {strides = array<i32>} : memref<1x324x8xf32, #tpu.memory_space<vmem>>, vector<1x324x8xf32>,
    return
  }
  func.func @transform_0(%arg0: i32) -> (i32, i32, i32) {
    %c0_i32 = arith.constant 0 : i32
    %c0_i32_0 = arith.constant 0 : i32
    %c0_i32_1 = arith.constant 0 : i32
    return %arg0, %c0_i32, %c0_i32_0 : i32, i32, i32
  }
  func.func @transform_1(%arg0: i32) -> (i32, i32, i32) {
    %c0_i32 = arith.constant 0 : i32
    %c0_i32_0 = arith.constant 0 : i32
    %c0_i32_1 = arith.constant 0 : i32
    %c0_i32_2 = arith.constant 0 : i32
    return %c0_i32, %c0_i32_0, %c0_i32_1 : i32, i32, i32
  }
  func.func @transform_2(%arg0: i32) -> (i32, i32) {
    %c0_i32 = arith.constant 0 : i32
    %c0_i32_0 = arith.constant 0 : i32
    %c0_i32_1 = arith.constant 0 : i32
    return %c0_i32, %c0_i32_0 : i32, i32
  }
  func.func @transform_3(%arg0: i32) -> (i32, i32, i32) {
    %c0_i32 = arith.constant 0 : i32
    %c0_i32_0 = arith.constant 0 : i32
    %c0_i32_1 = arith.constant 0 : i32
    return %arg0, %c0_i32, %c0_i32_0 : i32, i32, i32
  }
}

module attributes {stable_mosaic.version = 11 : i64} {
  func.func @_conv3x3_kernel(%arg0: i32, %arg1: memref<1x122x8xf32, #tpu.memory_space<vmem>>, %arg2: memref<9x8x16xbf16, #tpu.memory_space<vmem>>, %arg3: memref<1x16xf32, #tpu.memory_space<vmem>>, %arg4: memref<1x100x16xf32, #tpu.memory_space<vmem>>) attributes {dimension_semantics = [#tpu.dimension_semantics<parallel>], iteration_bounds = array<i64: 2>, scalar_prefetch = 0 : i64, scratch_operands = 0 : i64, tpu.core_type = #tpu.core_type<tc>, window_params = [{transform_indices = @transform_0, window_bounds = array<i64: 1, 122, 8>}, {pipeline_mode = #tpu.pipeline_mode<synchronous>, transform_indices = @transform_1, window_bounds = array<i64: 9, 8, 16>}, {pipeline_mode = #tpu.pipeline_mode<synchronous>, transform_indices = @transform_2, window_bounds = array<i64: 1, 16>}, {transform_indices = @transform_3, window_bounds = array<i64: 1, 100, 16>}]} {
    %cst = arith.constant 0.000000e+00 : f32
    %0 = vector.broadcast %cst : f32 to vector<100x16xf32>
    %c0 = arith.constant 0 : index
    %c0_0 = arith.constant 0 : index
    %c0_1 = arith.constant 0 : index
    %1 = vector.load %arg1[%c0, %c0_0, %c0_1] : memref<1x122x8xf32, #tpu.memory_space<vmem>>, vector<1x100x8xf32>
    %2 = vector.shape_cast %1 : vector<1x100x8xf32> to vector<100x8xf32>
    %3 = arith.truncf %2 : vector<100x8xf32> to vector<100x8xbf16>
    %c0_2 = arith.constant 0 : index
    %c0_3 = arith.constant 0 : index
    %c0_4 = arith.constant 0 : index
    %4 = vector.load %arg2[%c0_2, %c0_3, %c0_4] : memref<9x8x16xbf16, #tpu.memory_space<vmem>>, vector<1x8x16xbf16>
    %5 = vector.shape_cast %4 : vector<1x8x16xbf16> to vector<8x16xbf16>
    %cst_5 = arith.constant dense<0.000000e+00> : vector<100x16xf32>
    %6 = tpu.matmul %3, %5, %cst_5 {dimension_numbers = #tpu.dot_dimension_numbers<[1], [0], [0], [1], [0, 0, 1, 1], [], []>} : vector<100x8xbf16>, vector<8x16xbf16>, vector<100x16xf32> -> vector<100x16xf32>
    %7 = arith.addf %0, %6 : vector<100x16xf32>
    %c0_6 = arith.constant 0 : index
    %c1 = arith.constant 1 : index
    %c0_7 = arith.constant 0 : index
    %8 = vector.load %arg1[%c0_6, %c1, %c0_7] : memref<1x122x8xf32, #tpu.memory_space<vmem>>, vector<1x100x8xf32>
    %9 = vector.shape_cast %8 : vector<1x100x8xf32> to vector<100x8xf32>
    %10 = arith.truncf %9 : vector<100x8xf32> to vector<100x8xbf16>
    %c1_8 = arith.constant 1 : index
    %c0_9 = arith.constant 0 : index
    %c0_10 = arith.constant 0 : index
    %11 = vector.load %arg2[%c1_8, %c0_9, %c0_10] : memref<9x8x16xbf16, #tpu.memory_space<vmem>>, vector<1x8x16xbf16>
    %12 = vector.shape_cast %11 : vector<1x8x16xbf16> to vector<8x16xbf16>
    %cst_11 = arith.constant dense<0.000000e+00> : vector<100x16xf32>
    %13 = tpu.matmul %10, %12, %cst_11 {dimension_numbers = #tpu.dot_dimension_numbers<[1], [0], [0], [1], [0, 0, 1, 1], [], []>} : vector<100x8xbf16>, vector<8x16xbf16>, vector<100x16xf32> -> vector<100x16xf32>
    %14 = arith.addf %7, %13 : vector<100x16xf32>
    %c0_12 = arith.constant 0 : index
    %c2 = arith.constant 2 : index
    %c0_13 = arith.constant 0 : index
    %15 = vector.load %arg1[%c0_12, %c2, %c0_13] : memref<1x122x8xf32, #tpu.memory_space<vmem>>, vector<1x100x8xf32>
    %16 = vector.shape_cast %15 : vector<1x100x8xf32> to vector<100x8xf32>
    %17 = arith.truncf %16 : vector<100x8xf32> to vector<100x8xbf16>
    %c2_14 = arith.constant 2 : index
    %c0_15 = arith.constant 0 : index
    %c0_16 = arith.constant 0 : index
    %18 = vector.load %arg2[%c2_14, %c0_15, %c0_16] : memref<9x8x16xbf16, #tpu.memory_space<vmem>>, vector<1x8x16xbf16>
    %19 = vector.shape_cast %18 : vector<1x8x16xbf16> to vector<8x16xbf16>
    %cst_17 = arith.constant dense<0.000000e+00> : vector<100x16xf32>
    %20 = tpu.matmul %17, %19, %cst_17 {dimension_numbers = #tpu.dot_dimension_numbers<[1], [0], [0], [1], [0, 0, 1, 1], [], []>} : vector<100x8xbf16>, vector<8x16xbf16>, vector<100x16xf32> -> vector<100x16xf32>
    %21 = arith.addf %14, %20 : vector<100x16xf32>
    %c0_18 = arith.constant 0 : index
    %c10 = arith.constant 10 : index
    %c0_19 = arith.constant 0 : index
    %22 = vector.load %arg1[%c0_18, %c10, %c0_19] : memref<1x122x8xf32, #tpu.memory_space<vmem>>, vector<1x100x8xf32>
    %23 = vector.shape_cast %22 : vector<1x100x8xf32> to vector<100x8xf32>
    %24 = arith.truncf %23 : vector<100x8xf32> to vector<100x8xbf16>
    %c3 = arith.constant 3 : index
    %c0_20 = arith.constant 0 : index
    %c0_21 = arith.constant 0 : index
    %25 = vector.load %arg2[%c3, %c0_20, %c0_21] : memref<9x8x16xbf16, #tpu.memory_space<vmem>>, vector<1x8x16xbf16>
    %26 = vector.shape_cast %25 : vector<1x8x16xbf16> to vector<8x16xbf16>
    %cst_22 = arith.constant dense<0.000000e+00> : vector<100x16xf32>
    %27 = tpu.matmul %24, %26, %cst_22 {dimension_numbers = #tpu.dot_dimension_numbers<[1], [0], [0], [1], [0, 0, 1, 1], [], []>} : vector<100x8xbf16>, vector<8x16xbf16>, vector<100x16xf32> -> vector<100x16xf32>
    %28 = arith.addf %21, %27 : vector<100x16xf32>
    %c0_23 = arith.constant 0 : index
    %c11 = arith.constant 11 : index
    %c0_24 = arith.constant 0 : index
    %29 = vector.load %arg1[%c0_23, %c11, %c0_24] : memref<1x122x8xf32, #tpu.memory_space<vmem>>, vector<1x100x8xf32>
    %30 = vector.shape_cast %29 : vector<1x100x8xf32> to vector<100x8xf32>
    %31 = arith.truncf %30 : vector<100x8xf32> to vector<100x8xbf16>
    %c4 = arith.constant 4 : index
    %c0_25 = arith.constant 0 : index
    %c0_26 = arith.constant 0 : index
    %32 = vector.load %arg2[%c4, %c0_25, %c0_26] : memref<9x8x16xbf16, #tpu.memory_space<vmem>>, vector<1x8x16xbf16>
    %33 = vector.shape_cast %32 : vector<1x8x16xbf16> to vector<8x16xbf16>
    %cst_27 = arith.constant dense<0.000000e+00> : vector<100x16xf32>
    %34 = tpu.matmul %31, %33, %cst_27 {dimension_numbers = #tpu.dot_dimension_numbers<[1], [0], [0], [1], [0, 0, 1, 1], [], []>} : vector<100x8xbf16>, vector<8x16xbf16>, vector<100x16xf32> -> vector<100x16xf32>
    %35 = arith.addf %28, %34 : vector<100x16xf32>
    %c0_28 = arith.constant 0 : index
    %c12 = arith.constant 12 : index
    %c0_29 = arith.constant 0 : index
    %36 = vector.load %arg1[%c0_28, %c12, %c0_29] : memref<1x122x8xf32, #tpu.memory_space<vmem>>, vector<1x100x8xf32>
    %37 = vector.shape_cast %36 : vector<1x100x8xf32> to vector<100x8xf32>
    %38 = arith.truncf %37 : vector<100x8xf32> to vector<100x8xbf16>
    %c5 = arith.constant 5 : index
    %c0_30 = arith.constant 0 : index
    %c0_31 = arith.constant 0 : index
    %39 = vector.load %arg2[%c5, %c0_30, %c0_31] : memref<9x8x16xbf16, #tpu.memory_space<vmem>>, vector<1x8x16xbf16>
    %40 = vector.shape_cast %39 : vector<1x8x16xbf16> to vector<8x16xbf16>
    %cst_32 = arith.constant dense<0.000000e+00> : vector<100x16xf32>
    %41 = tpu.matmul %38, %40, %cst_32 {dimension_numbers = #tpu.dot_dimension_numbers<[1], [0], [0], [1], [0, 0, 1, 1], [], []>} : vector<100x8xbf16>, vector<8x16xbf16>, vector<100x16xf32> -> vector<100x16xf32>
    %42 = arith.addf %35, %41 : vector<100x16xf32>
    %c0_33 = arith.constant 0 : index
    %c20 = arith.constant 20 : index
    %c0_34 = arith.constant 0 : index
    %43 = vector.load %arg1[%c0_33, %c20, %c0_34] : memref<1x122x8xf32, #tpu.memory_space<vmem>>, vector<1x100x8xf32>
    %44 = vector.shape_cast %43 : vector<1x100x8xf32> to vector<100x8xf32>
    %45 = arith.truncf %44 : vector<100x8xf32> to vector<100x8xbf16>
    %c6 = arith.constant 6 : index
    %c0_35 = arith.constant 0 : index
    %c0_36 = arith.constant 0 : index
    %46 = vector.load %arg2[%c6, %c0_35, %c0_36] : memref<9x8x16xbf16, #tpu.memory_space<vmem>>, vector<1x8x16xbf16>
    %47 = vector.shape_cast %46 : vector<1x8x16xbf16> to vector<8x16xbf16>
    %cst_37 = arith.constant dense<0.000000e+00> : vector<100x16xf32>
    %48 = tpu.matmul %45, %47, %cst_37 {dimension_numbers = #tpu.dot_dimension_numbers<[1], [0], [0], [1], [0, 0, 1, 1], [], []>} : vector<100x8xbf16>, vector<8x16xbf16>, vector<100x16xf32> -> vector<100x16xf32>
    %49 = arith.addf %42, %48 : vector<100x16xf32>
    %c0_38 = arith.constant 0 : index
    %c21 = arith.constant 21 : index
    %c0_39 = arith.constant 0 : index
    %50 = vector.load %arg1[%c0_38, %c21, %c0_39] : memref<1x122x8xf32, #tpu.memory_space<vmem>>, vector<1x100x8xf32>
    %51 = vector.shape_cast %50 : vector<1x100x8xf32> to vector<100x8xf32>
    %52 = arith.truncf %51 : vector<100x8xf32> to vector<100x8xbf16>
    %c7 = arith.constant 7 : index
    %c0_40 = arith.constant 0 : index
    %c0_41 = arith.constant 0 : index
    %53 = vector.load %arg2[%c7, %c0_40, %c0_41] : memref<9x8x16xbf16, #tpu.memory_space<vmem>>, vector<1x8x16xbf16>
    %54 = vector.shape_cast %53 : vector<1x8x16xbf16> to vector<8x16xbf16>
    %cst_42 = arith.constant dense<0.000000e+00> : vector<100x16xf32>
    %55 = tpu.matmul %52, %54, %cst_42 {dimension_numbers = #tpu.dot_dimension_numbers<[1], [0], [0], [1], [0, 0, 1, 1], [], []>} : vector<100x8xbf16>, vector<8x16xbf16>, vector<100x16xf32> -> vector<100x16xf32>
    %56 = arith.addf %49, %55 : vector<100x16xf32>
    %c0_43 = arith.constant 0 : index
    %c22 = arith.constant 22 : index
    %c0_44 = arith.constant 0 : index
    %57 = vector.load %arg1[%c0_43, %c22, %c0_44] : memref<1x122x8xf32, #tpu.memory_space<vmem>>, vector<1x100x8xf32>
    %58 = vector.shape_cast %57 : vector<1x100x8xf32> to vector<100x8xf32>
    %59 = arith.truncf %58 : vector<100x8xf32> to vector<100x8xbf16>
    %c8 = arith.constant 8 : index
    %c0_45 = arith.constant 0 : index
    %c0_46 = arith.constant 0 : index
    %60 = vector.load %arg2[%c8, %c0_45, %c0_46] : memref<9x8x16xbf16, #tpu.memory_space<vmem>>, vector<1x8x16xbf16>
    %61 = vector.shape_cast %60 : vector<1x8x16xbf16> to vector<8x16xbf16>
    %cst_47 = arith.constant dense<0.000000e+00> : vector<100x16xf32>
    %62 = tpu.matmul %59, %61, %cst_47 {dimension_numbers = #tpu.dot_dimension_numbers<[1], [0], [0], [1], [0, 0, 1, 1], [], []>} : vector<100x8xbf16>, vector<8x16xbf16>, vector<100x16xf32> -> vector<100x16xf32>
    %63 = arith.addf %56, %62 : vector<100x16xf32>
    %c0_48 = arith.constant 0 : index
    %c0_49 = arith.constant 0 : index
    %64 = vector.load %arg3[%c0_48, %c0_49] : memref<1x16xf32, #tpu.memory_space<vmem>>, vector<1x16xf32>
    %65 = vector.broadcast %64 : vector<1x16xf32> to vector<100x16xf32>
    %66 = arith.addf %63, %65 : vector<100x16xf32>
    %cst_50 = arith.constant 0.000000e+00 : f32
    %67 = vector.broadcast %cst_50 : f32 to vector<100x16xf32>
    %68 = arith.cmpf ogt, %66, %67 : vector<100x16xf32>
    %cst_51 = arith.constant 1.000000e-01 : f32
    %69 = vector.broadcast %cst_51 : f32 to vector<100x16xf32>
    %70 = arith.mulf %69, %66 : vector<100x16xf32>
    %71 = arith.select %68, %66, %70 : vector<100x16xi1>, vector<100x16xf32>
    %c0_52 = arith.constant 0 : index
    %c0_53 = arith.constant 0 : index
    %c0_54 = arith.constant 0 : index
    %72 = vector.load %arg4[%c0_52, %c0_53, %c0_54] : memref<1x100x16xf32, #tpu.memory_space<vmem>>, vector<1x100x16xf32>
    %73 = vector.shape_cast %72 : vector<1x100x16xf32> to vector<100x16xf32>
    %74 = vector.shape_cast %71 : vector<100x16xf32> to vector<1x100x16xf32>
    tpu.vector_store %arg4[%c0_52, %c0_53, %c0_54], %74 {strides = array<i32>} : memref<1x100x16xf32, #tpu.memory_space<vmem>>, vector<1x100x16xf32>,
    return
  }
  func.func @transform_0(%arg0: i32) -> (i32, i32, i32) {
    %c0_i32 = arith.constant 0 : i32
    %c0_i32_0 = arith.constant 0 : i32
    %c0_i32_1 = arith.constant 0 : i32
    return %arg0, %c0_i32, %c0_i32_0 : i32, i32, i32
  }
  func.func @transform_1(%arg0: i32) -> (i32, i32, i32) {
    %c0_i32 = arith.constant 0 : i32
    %c0_i32_0 = arith.constant 0 : i32
    %c0_i32_1 = arith.constant 0 : i32
    %c0_i32_2 = arith.constant 0 : i32
    return %c0_i32, %c0_i32_0, %c0_i32_1 : i32, i32, i32
  }
  func.func @transform_2(%arg0: i32) -> (i32, i32) {
    %c0_i32 = arith.constant 0 : i32
    %c0_i32_0 = arith.constant 0 : i32
    %c0_i32_1 = arith.constant 0 : i32
    return %c0_i32, %c0_i32_0 : i32, i32
  }
  func.func @transform_3(%arg0: i32) -> (i32, i32, i32) {
    %c0_i32 = arith.constant 0 : i32
    %c0_i32_0 = arith.constant 0 : i32
    %c0_i32_1 = arith.constant 0 : i32
    return %arg0, %c0_i32, %c0_i32_0 : i32, i32, i32
  }
}

module attributes {stable_mosaic.version = 11 : i64} {
  func.func @_conv3x3_kernel(%arg0: i32, %arg1: memref<1x50x16xf32, #tpu.memory_space<vmem>>, %arg2: memref<9x16x32xbf16, #tpu.memory_space<vmem>>, %arg3: memref<1x32xf32, #tpu.memory_space<vmem>>, %arg4: memref<1x36x32xf32, #tpu.memory_space<vmem>>) attributes {dimension_semantics = [#tpu.dimension_semantics<parallel>], iteration_bounds = array<i64: 2>, scalar_prefetch = 0 : i64, scratch_operands = 0 : i64, tpu.core_type = #tpu.core_type<tc>, window_params = [{transform_indices = @transform_0, window_bounds = array<i64: 1, 50, 16>}, {pipeline_mode = #tpu.pipeline_mode<synchronous>, transform_indices = @transform_1, window_bounds = array<i64: 9, 16, 32>}, {pipeline_mode = #tpu.pipeline_mode<synchronous>, transform_indices = @transform_2, window_bounds = array<i64: 1, 32>}, {transform_indices = @transform_3, window_bounds = array<i64: 1, 36, 32>}]} {
    %cst = arith.constant 0.000000e+00 : f32
    %0 = vector.broadcast %cst : f32 to vector<36x32xf32>
    %c0 = arith.constant 0 : index
    %c0_0 = arith.constant 0 : index
    %c0_1 = arith.constant 0 : index
    %1 = vector.load %arg1[%c0, %c0_0, %c0_1] : memref<1x50x16xf32, #tpu.memory_space<vmem>>, vector<1x36x16xf32>
    %2 = vector.shape_cast %1 : vector<1x36x16xf32> to vector<36x16xf32>
    %3 = arith.truncf %2 : vector<36x16xf32> to vector<36x16xbf16>
    %c0_2 = arith.constant 0 : index
    %c0_3 = arith.constant 0 : index
    %c0_4 = arith.constant 0 : index
    %4 = vector.load %arg2[%c0_2, %c0_3, %c0_4] : memref<9x16x32xbf16, #tpu.memory_space<vmem>>, vector<1x16x32xbf16>
    %5 = vector.shape_cast %4 : vector<1x16x32xbf16> to vector<16x32xbf16>
    %cst_5 = arith.constant dense<0.000000e+00> : vector<36x32xf32>
    %6 = tpu.matmul %3, %5, %cst_5 {dimension_numbers = #tpu.dot_dimension_numbers<[1], [0], [0], [1], [0, 0, 1, 1], [], []>} : vector<36x16xbf16>, vector<16x32xbf16>, vector<36x32xf32> -> vector<36x32xf32>
    %7 = arith.addf %0, %6 : vector<36x32xf32>
    %c0_6 = arith.constant 0 : index
    %c1 = arith.constant 1 : index
    %c0_7 = arith.constant 0 : index
    %8 = vector.load %arg1[%c0_6, %c1, %c0_7] : memref<1x50x16xf32, #tpu.memory_space<vmem>>, vector<1x36x16xf32>
    %9 = vector.shape_cast %8 : vector<1x36x16xf32> to vector<36x16xf32>
    %10 = arith.truncf %9 : vector<36x16xf32> to vector<36x16xbf16>
    %c1_8 = arith.constant 1 : index
    %c0_9 = arith.constant 0 : index
    %c0_10 = arith.constant 0 : index
    %11 = vector.load %arg2[%c1_8, %c0_9, %c0_10] : memref<9x16x32xbf16, #tpu.memory_space<vmem>>, vector<1x16x32xbf16>
    %12 = vector.shape_cast %11 : vector<1x16x32xbf16> to vector<16x32xbf16>
    %cst_11 = arith.constant dense<0.000000e+00> : vector<36x32xf32>
    %13 = tpu.matmul %10, %12, %cst_11 {dimension_numbers = #tpu.dot_dimension_numbers<[1], [0], [0], [1], [0, 0, 1, 1], [], []>} : vector<36x16xbf16>, vector<16x32xbf16>, vector<36x32xf32> -> vector<36x32xf32>
    %14 = arith.addf %7, %13 : vector<36x32xf32>
    %c0_12 = arith.constant 0 : index
    %c2 = arith.constant 2 : index
    %c0_13 = arith.constant 0 : index
    %15 = vector.load %arg1[%c0_12, %c2, %c0_13] : memref<1x50x16xf32, #tpu.memory_space<vmem>>, vector<1x36x16xf32>
    %16 = vector.shape_cast %15 : vector<1x36x16xf32> to vector<36x16xf32>
    %17 = arith.truncf %16 : vector<36x16xf32> to vector<36x16xbf16>
    %c2_14 = arith.constant 2 : index
    %c0_15 = arith.constant 0 : index
    %c0_16 = arith.constant 0 : index
    %18 = vector.load %arg2[%c2_14, %c0_15, %c0_16] : memref<9x16x32xbf16, #tpu.memory_space<vmem>>, vector<1x16x32xbf16>
    %19 = vector.shape_cast %18 : vector<1x16x32xbf16> to vector<16x32xbf16>
    %cst_17 = arith.constant dense<0.000000e+00> : vector<36x32xf32>
    %20 = tpu.matmul %17, %19, %cst_17 {dimension_numbers = #tpu.dot_dimension_numbers<[1], [0], [0], [1], [0, 0, 1, 1], [], []>} : vector<36x16xbf16>, vector<16x32xbf16>, vector<36x32xf32> -> vector<36x32xf32>
    %21 = arith.addf %14, %20 : vector<36x32xf32>
    %c0_18 = arith.constant 0 : index
    %c6 = arith.constant 6 : index
    %c0_19 = arith.constant 0 : index
    %22 = vector.load %arg1[%c0_18, %c6, %c0_19] : memref<1x50x16xf32, #tpu.memory_space<vmem>>, vector<1x36x16xf32>
    %23 = vector.shape_cast %22 : vector<1x36x16xf32> to vector<36x16xf32>
    %24 = arith.truncf %23 : vector<36x16xf32> to vector<36x16xbf16>
    %c3 = arith.constant 3 : index
    %c0_20 = arith.constant 0 : index
    %c0_21 = arith.constant 0 : index
    %25 = vector.load %arg2[%c3, %c0_20, %c0_21] : memref<9x16x32xbf16, #tpu.memory_space<vmem>>, vector<1x16x32xbf16>
    %26 = vector.shape_cast %25 : vector<1x16x32xbf16> to vector<16x32xbf16>
    %cst_22 = arith.constant dense<0.000000e+00> : vector<36x32xf32>
    %27 = tpu.matmul %24, %26, %cst_22 {dimension_numbers = #tpu.dot_dimension_numbers<[1], [0], [0], [1], [0, 0, 1, 1], [], []>} : vector<36x16xbf16>, vector<16x32xbf16>, vector<36x32xf32> -> vector<36x32xf32>
    %28 = arith.addf %21, %27 : vector<36x32xf32>
    %c0_23 = arith.constant 0 : index
    %c7 = arith.constant 7 : index
    %c0_24 = arith.constant 0 : index
    %29 = vector.load %arg1[%c0_23, %c7, %c0_24] : memref<1x50x16xf32, #tpu.memory_space<vmem>>, vector<1x36x16xf32>
    %30 = vector.shape_cast %29 : vector<1x36x16xf32> to vector<36x16xf32>
    %31 = arith.truncf %30 : vector<36x16xf32> to vector<36x16xbf16>
    %c4 = arith.constant 4 : index
    %c0_25 = arith.constant 0 : index
    %c0_26 = arith.constant 0 : index
    %32 = vector.load %arg2[%c4, %c0_25, %c0_26] : memref<9x16x32xbf16, #tpu.memory_space<vmem>>, vector<1x16x32xbf16>
    %33 = vector.shape_cast %32 : vector<1x16x32xbf16> to vector<16x32xbf16>
    %cst_27 = arith.constant dense<0.000000e+00> : vector<36x32xf32>
    %34 = tpu.matmul %31, %33, %cst_27 {dimension_numbers = #tpu.dot_dimension_numbers<[1], [0], [0], [1], [0, 0, 1, 1], [], []>} : vector<36x16xbf16>, vector<16x32xbf16>, vector<36x32xf32> -> vector<36x32xf32>
    %35 = arith.addf %28, %34 : vector<36x32xf32>
    %c0_28 = arith.constant 0 : index
    %c8 = arith.constant 8 : index
    %c0_29 = arith.constant 0 : index
    %36 = vector.load %arg1[%c0_28, %c8, %c0_29] : memref<1x50x16xf32, #tpu.memory_space<vmem>>, vector<1x36x16xf32>
    %37 = vector.shape_cast %36 : vector<1x36x16xf32> to vector<36x16xf32>
    %38 = arith.truncf %37 : vector<36x16xf32> to vector<36x16xbf16>
    %c5 = arith.constant 5 : index
    %c0_30 = arith.constant 0 : index
    %c0_31 = arith.constant 0 : index
    %39 = vector.load %arg2[%c5, %c0_30, %c0_31] : memref<9x16x32xbf16, #tpu.memory_space<vmem>>, vector<1x16x32xbf16>
    %40 = vector.shape_cast %39 : vector<1x16x32xbf16> to vector<16x32xbf16>
    %cst_32 = arith.constant dense<0.000000e+00> : vector<36x32xf32>
    %41 = tpu.matmul %38, %40, %cst_32 {dimension_numbers = #tpu.dot_dimension_numbers<[1], [0], [0], [1], [0, 0, 1, 1], [], []>} : vector<36x16xbf16>, vector<16x32xbf16>, vector<36x32xf32> -> vector<36x32xf32>
    %42 = arith.addf %35, %41 : vector<36x32xf32>
    %c0_33 = arith.constant 0 : index
    %c12 = arith.constant 12 : index
    %c0_34 = arith.constant 0 : index
    %43 = vector.load %arg1[%c0_33, %c12, %c0_34] : memref<1x50x16xf32, #tpu.memory_space<vmem>>, vector<1x36x16xf32>
    %44 = vector.shape_cast %43 : vector<1x36x16xf32> to vector<36x16xf32>
    %45 = arith.truncf %44 : vector<36x16xf32> to vector<36x16xbf16>
    %c6_35 = arith.constant 6 : index
    %c0_36 = arith.constant 0 : index
    %c0_37 = arith.constant 0 : index
    %46 = vector.load %arg2[%c6_35, %c0_36, %c0_37] : memref<9x16x32xbf16, #tpu.memory_space<vmem>>, vector<1x16x32xbf16>
    %47 = vector.shape_cast %46 : vector<1x16x32xbf16> to vector<16x32xbf16>
    %cst_38 = arith.constant dense<0.000000e+00> : vector<36x32xf32>
    %48 = tpu.matmul %45, %47, %cst_38 {dimension_numbers = #tpu.dot_dimension_numbers<[1], [0], [0], [1], [0, 0, 1, 1], [], []>} : vector<36x16xbf16>, vector<16x32xbf16>, vector<36x32xf32> -> vector<36x32xf32>
    %49 = arith.addf %42, %48 : vector<36x32xf32>
    %c0_39 = arith.constant 0 : index
    %c13 = arith.constant 13 : index
    %c0_40 = arith.constant 0 : index
    %50 = vector.load %arg1[%c0_39, %c13, %c0_40] : memref<1x50x16xf32, #tpu.memory_space<vmem>>, vector<1x36x16xf32>
    %51 = vector.shape_cast %50 : vector<1x36x16xf32> to vector<36x16xf32>
    %52 = arith.truncf %51 : vector<36x16xf32> to vector<36x16xbf16>
    %c7_41 = arith.constant 7 : index
    %c0_42 = arith.constant 0 : index
    %c0_43 = arith.constant 0 : index
    %53 = vector.load %arg2[%c7_41, %c0_42, %c0_43] : memref<9x16x32xbf16, #tpu.memory_space<vmem>>, vector<1x16x32xbf16>
    %54 = vector.shape_cast %53 : vector<1x16x32xbf16> to vector<16x32xbf16>
    %cst_44 = arith.constant dense<0.000000e+00> : vector<36x32xf32>
    %55 = tpu.matmul %52, %54, %cst_44 {dimension_numbers = #tpu.dot_dimension_numbers<[1], [0], [0], [1], [0, 0, 1, 1], [], []>} : vector<36x16xbf16>, vector<16x32xbf16>, vector<36x32xf32> -> vector<36x32xf32>
    %56 = arith.addf %49, %55 : vector<36x32xf32>
    %c0_45 = arith.constant 0 : index
    %c14 = arith.constant 14 : index
    %c0_46 = arith.constant 0 : index
    %57 = vector.load %arg1[%c0_45, %c14, %c0_46] : memref<1x50x16xf32, #tpu.memory_space<vmem>>, vector<1x36x16xf32>
    %58 = vector.shape_cast %57 : vector<1x36x16xf32> to vector<36x16xf32>
    %59 = arith.truncf %58 : vector<36x16xf32> to vector<36x16xbf16>
    %c8_47 = arith.constant 8 : index
    %c0_48 = arith.constant 0 : index
    %c0_49 = arith.constant 0 : index
    %60 = vector.load %arg2[%c8_47, %c0_48, %c0_49] : memref<9x16x32xbf16, #tpu.memory_space<vmem>>, vector<1x16x32xbf16>
    %61 = vector.shape_cast %60 : vector<1x16x32xbf16> to vector<16x32xbf16>
    %cst_50 = arith.constant dense<0.000000e+00> : vector<36x32xf32>
    %62 = tpu.matmul %59, %61, %cst_50 {dimension_numbers = #tpu.dot_dimension_numbers<[1], [0], [0], [1], [0, 0, 1, 1], [], []>} : vector<36x16xbf16>, vector<16x32xbf16>, vector<36x32xf32> -> vector<36x32xf32>
    %63 = arith.addf %56, %62 : vector<36x32xf32>
    %c0_51 = arith.constant 0 : index
    %c0_52 = arith.constant 0 : index
    %64 = vector.load %arg3[%c0_51, %c0_52] : memref<1x32xf32, #tpu.memory_space<vmem>>, vector<1x32xf32>
    %65 = vector.broadcast %64 : vector<1x32xf32> to vector<36x32xf32>
    %66 = arith.addf %63, %65 : vector<36x32xf32>
    %cst_53 = arith.constant 0.000000e+00 : f32
    %67 = vector.broadcast %cst_53 : f32 to vector<36x32xf32>
    %68 = arith.cmpf ogt, %66, %67 : vector<36x32xf32>
    %cst_54 = arith.constant 1.000000e-01 : f32
    %69 = vector.broadcast %cst_54 : f32 to vector<36x32xf32>
    %70 = arith.mulf %69, %66 : vector<36x32xf32>
    %71 = arith.select %68, %66, %70 : vector<36x32xi1>, vector<36x32xf32>
    %c0_55 = arith.constant 0 : index
    %c0_56 = arith.constant 0 : index
    %c0_57 = arith.constant 0 : index
    %72 = vector.load %arg4[%c0_55, %c0_56, %c0_57] : memref<1x36x32xf32, #tpu.memory_space<vmem>>, vector<1x36x32xf32>
    %73 = vector.shape_cast %72 : vector<1x36x32xf32> to vector<36x32xf32>
    %74 = vector.shape_cast %71 : vector<36x32xf32> to vector<1x36x32xf32>
    tpu.vector_store %arg4[%c0_55, %c0_56, %c0_57], %74 {strides = array<i32>} : memref<1x36x32xf32, #tpu.memory_space<vmem>>, vector<1x36x32xf32>,
    return
  }
  func.func @transform_0(%arg0: i32) -> (i32, i32, i32) {
    %c0_i32 = arith.constant 0 : i32
    %c0_i32_0 = arith.constant 0 : i32
    %c0_i32_1 = arith.constant 0 : i32
    return %arg0, %c0_i32, %c0_i32_0 : i32, i32, i32
  }
  func.func @transform_1(%arg0: i32) -> (i32, i32, i32) {
    %c0_i32 = arith.constant 0 : i32
    %c0_i32_0 = arith.constant 0 : i32
    %c0_i32_1 = arith.constant 0 : i32
    %c0_i32_2 = arith.constant 0 : i32
    return %c0_i32, %c0_i32_0, %c0_i32_1 : i32, i32, i32
  }
  func.func @transform_2(%arg0: i32) -> (i32, i32) {
    %c0_i32 = arith.constant 0 : i32
    %c0_i32_0 = arith.constant 0 : i32
    %c0_i32_1 = arith.constant 0 : i32
    return %c0_i32, %c0_i32_0 : i32, i32
  }
  func.func @transform_3(%arg0: i32) -> (i32, i32, i32) {
    %c0_i32 = arith.constant 0 : i32
    %c0_i32_0 = arith.constant 0 : i32
    %c0_i32_1 = arith.constant 0 : i32
    return %arg0, %c0_i32, %c0_i32_0 : i32, i32, i32
  }
}

module attributes {stable_mosaic.version = 11 : i64} {
  func.func @_dual_1x1_kernel(%arg0: i32, %arg1: memref<32x32xf32, #tpu.memory_space<vmem>>, %arg2: memref<32x32xf32, #tpu.memory_space<vmem>>, %arg3: memref<32x32xbf16, #tpu.memory_space<vmem>>, %arg4: memref<32x32xbf16, #tpu.memory_space<vmem>>, %arg5: memref<1x32xf32, #tpu.memory_space<vmem>>, %arg6: memref<32x32xf32, #tpu.memory_space<vmem>>) attributes {dimension_semantics = [#tpu.dimension_semantics<arbitrary>], iteration_bounds = array<i64: 1>, scalar_prefetch = 0 : i64, scratch_operands = 0 : i64, tpu.core_type = #tpu.core_type<tc>, window_params = [{pipeline_mode = #tpu.pipeline_mode<synchronous>, transform_indices = @transform_0, window_bounds = array<i64: 32, 32>}, {pipeline_mode = #tpu.pipeline_mode<synchronous>, transform_indices = @transform_1, window_bounds = array<i64: 32, 32>}, {pipeline_mode = #tpu.pipeline_mode<synchronous>, transform_indices = @transform_2, window_bounds = array<i64: 32, 32>}, {pipeline_mode = #tpu.pipeline_mode<synchronous>, transform_indices = @transform_3, window_bounds = array<i64: 32, 32>}, {pipeline_mode = #tpu.pipeline_mode<synchronous>, transform_indices = @transform_4, window_bounds = array<i64: 1, 32>}, {pipeline_mode = #tpu.pipeline_mode<synchronous>, transform_indices = @transform_5, window_bounds = array<i64: 32, 32>}]} {
    %c0 = arith.constant 0 : index
    %c0_0 = arith.constant 0 : index
    %0 = vector.load %arg1[%c0, %c0_0] : memref<32x32xf32, #tpu.memory_space<vmem>>, vector<32x32xf32>
    %1 = arith.truncf %0 : vector<32x32xf32> to vector<32x32xbf16>
    %c0_1 = arith.constant 0 : index
    %c0_2 = arith.constant 0 : index
    %2 = vector.load %arg3[%c0_1, %c0_2] : memref<32x32xbf16, #tpu.memory_space<vmem>>, vector<32x32xbf16>
    %cst = arith.constant dense<0.000000e+00> : vector<32x32xf32>
    %3 = tpu.matmul %1, %2, %cst {dimension_numbers = #tpu.dot_dimension_numbers<[1], [0], [0], [1], [0, 0, 1, 1], [], []>} : vector<32x32xbf16>, vector<32x32xbf16>, vector<32x32xf32> -> vector<32x32xf32>
    %c0_3 = arith.constant 0 : index
    %c0_4 = arith.constant 0 : index
    %4 = vector.load %arg2[%c0_3, %c0_4] : memref<32x32xf32, #tpu.memory_space<vmem>>, vector<32x32xf32>
    %5 = arith.truncf %4 : vector<32x32xf32> to vector<32x32xbf16>
    %c0_5 = arith.constant 0 : index
    %c0_6 = arith.constant 0 : index
    %6 = vector.load %arg4[%c0_5, %c0_6] : memref<32x32xbf16, #tpu.memory_space<vmem>>, vector<32x32xbf16>
    %cst_7 = arith.constant dense<0.000000e+00> : vector<32x32xf32>
    %7 = tpu.matmul %5, %6, %cst_7 {dimension_numbers = #tpu.dot_dimension_numbers<[1], [0], [0], [1], [0, 0, 1, 1], [], []>} : vector<32x32xbf16>, vector<32x32xbf16>, vector<32x32xf32> -> vector<32x32xf32>
    %8 = arith.addf %3, %7 : vector<32x32xf32>
    %c0_8 = arith.constant 0 : index
    %c0_9 = arith.constant 0 : index
    %9 = vector.load %arg5[%c0_8, %c0_9] : memref<1x32xf32, #tpu.memory_space<vmem>>, vector<1x32xf32>
    %10 = vector.broadcast %9 : vector<1x32xf32> to vector<32x32xf32>
    %11 = arith.addf %8, %10 : vector<32x32xf32>
    %cst_10 = arith.constant 0.000000e+00 : f32
    %12 = vector.broadcast %cst_10 : f32 to vector<32x32xf32>
    %13 = arith.cmpf ogt, %11, %12 : vector<32x32xf32>
    %cst_11 = arith.constant 1.000000e-01 : f32
    %14 = vector.broadcast %cst_11 : f32 to vector<32x32xf32>
    %15 = arith.mulf %14, %11 : vector<32x32xf32>
    %16 = arith.select %13, %11, %15 : vector<32x32xi1>, vector<32x32xf32>
    %c0_12 = arith.constant 0 : index
    %c0_13 = arith.constant 0 : index
    %17 = vector.load %arg6[%c0_12, %c0_13] : memref<32x32xf32, #tpu.memory_space<vmem>>, vector<32x32xf32>
    tpu.vector_store %arg6[%c0_12, %c0_13], %16 {strides = array<i32>} : memref<32x32xf32, #tpu.memory_space<vmem>>, vector<32x32xf32>,
    return
  }
  func.func @transform_0(%arg0: i32) -> (i32, i32) {
    %c0_i32 = arith.constant 0 : i32
    %c0_i32_0 = arith.constant 0 : i32
    %c0_i32_1 = arith.constant 0 : i32
    return %c0_i32, %c0_i32_0 : i32, i32
  }
  func.func @transform_1(%arg0: i32) -> (i32, i32) {
    %c0_i32 = arith.constant 0 : i32
    %c0_i32_0 = arith.constant 0 : i32
    %c0_i32_1 = arith.constant 0 : i32
    return %c0_i32, %c0_i32_0 : i32, i32
  }
  func.func @transform_2(%arg0: i32) -> (i32, i32) {
    %c0_i32 = arith.constant 0 : i32
    %c0_i32_0 = arith.constant 0 : i32
    %c0_i32_1 = arith.constant 0 : i32
    return %c0_i32, %c0_i32_0 : i32, i32
  }
  func.func @transform_3(%arg0: i32) -> (i32, i32) {
    %c0_i32 = arith.constant 0 : i32
    %c0_i32_0 = arith.constant 0 : i32
    %c0_i32_1 = arith.constant 0 : i32
    return %c0_i32, %c0_i32_0 : i32, i32
  }
  func.func @transform_4(%arg0: i32) -> (i32, i32) {
    %c0_i32 = arith.constant 0 : i32
    %c0_i32_0 = arith.constant 0 : i32
    %c0_i32_1 = arith.constant 0 : i32
    return %c0_i32, %c0_i32_0 : i32, i32
  }
  func.func @transform_5(%arg0: i32) -> (i32, i32) {
    %c0_i32 = arith.constant 0 : i32
    %c0_i32_0 = arith.constant 0 : i32
    %c0_i32_1 = arith.constant 0 : i32
    return %c0_i32, %c0_i32_0 : i32, i32
  }
}

module attributes {stable_mosaic.version = 11 : i64} {
  func.func @_conv3x3_kernel(%arg0: i32, %arg1: memref<1x50x32xf32, #tpu.memory_space<vmem>>, %arg2: memref<9x32x128xbf16, #tpu.memory_space<vmem>>, %arg3: memref<1x128xf32, #tpu.memory_space<vmem>>, %arg4: memref<1x36x128xf32, #tpu.memory_space<vmem>>) attributes {dimension_semantics = [#tpu.dimension_semantics<parallel>], iteration_bounds = array<i64: 2>, scalar_prefetch = 0 : i64, scratch_operands = 0 : i64, tpu.core_type = #tpu.core_type<tc>, window_params = [{transform_indices = @transform_0, window_bounds = array<i64: 1, 50, 32>}, {pipeline_mode = #tpu.pipeline_mode<synchronous>, transform_indices = @transform_1, window_bounds = array<i64: 9, 32, 128>}, {pipeline_mode = #tpu.pipeline_mode<synchronous>, transform_indices = @transform_2, window_bounds = array<i64: 1, 128>}, {transform_indices = @transform_3, window_bounds = array<i64: 1, 36, 128>}]} {
    %cst = arith.constant 0.000000e+00 : f32
    %0 = vector.broadcast %cst : f32 to vector<36x128xf32>
    %c0 = arith.constant 0 : index
    %c0_0 = arith.constant 0 : index
    %c0_1 = arith.constant 0 : index
    %1 = vector.load %arg1[%c0, %c0_0, %c0_1] : memref<1x50x32xf32, #tpu.memory_space<vmem>>, vector<1x36x32xf32>
    %2 = vector.shape_cast %1 : vector<1x36x32xf32> to vector<36x32xf32>
    %3 = arith.truncf %2 : vector<36x32xf32> to vector<36x32xbf16>
    %c0_2 = arith.constant 0 : index
    %c0_3 = arith.constant 0 : index
    %c0_4 = arith.constant 0 : index
    %4 = vector.load %arg2[%c0_2, %c0_3, %c0_4] : memref<9x32x128xbf16, #tpu.memory_space<vmem>>, vector<1x32x128xbf16>
    %5 = vector.shape_cast %4 : vector<1x32x128xbf16> to vector<32x128xbf16>
    %cst_5 = arith.constant dense<0.000000e+00> : vector<36x128xf32>
    %6 = tpu.matmul %3, %5, %cst_5 {dimension_numbers = #tpu.dot_dimension_numbers<[1], [0], [0], [1], [0, 0, 1, 1], [], []>} : vector<36x32xbf16>, vector<32x128xbf16>, vector<36x128xf32> -> vector<36x128xf32>
    %7 = arith.addf %0, %6 : vector<36x128xf32>
    %c0_6 = arith.constant 0 : index
    %c1 = arith.constant 1 : index
    %c0_7 = arith.constant 0 : index
    %8 = vector.load %arg1[%c0_6, %c1, %c0_7] : memref<1x50x32xf32, #tpu.memory_space<vmem>>, vector<1x36x32xf32>
    %9 = vector.shape_cast %8 : vector<1x36x32xf32> to vector<36x32xf32>
    %10 = arith.truncf %9 : vector<36x32xf32> to vector<36x32xbf16>
    %c1_8 = arith.constant 1 : index
    %c0_9 = arith.constant 0 : index
    %c0_10 = arith.constant 0 : index
    %11 = vector.load %arg2[%c1_8, %c0_9, %c0_10] : memref<9x32x128xbf16, #tpu.memory_space<vmem>>, vector<1x32x128xbf16>
    %12 = vector.shape_cast %11 : vector<1x32x128xbf16> to vector<32x128xbf16>
    %cst_11 = arith.constant dense<0.000000e+00> : vector<36x128xf32>
    %13 = tpu.matmul %10, %12, %cst_11 {dimension_numbers = #tpu.dot_dimension_numbers<[1], [0], [0], [1], [0, 0, 1, 1], [], []>} : vector<36x32xbf16>, vector<32x128xbf16>, vector<36x128xf32> -> vector<36x128xf32>
    %14 = arith.addf %7, %13 : vector<36x128xf32>
    %c0_12 = arith.constant 0 : index
    %c2 = arith.constant 2 : index
    %c0_13 = arith.constant 0 : index
    %15 = vector.load %arg1[%c0_12, %c2, %c0_13] : memref<1x50x32xf32, #tpu.memory_space<vmem>>, vector<1x36x32xf32>
    %16 = vector.shape_cast %15 : vector<1x36x32xf32> to vector<36x32xf32>
    %17 = arith.truncf %16 : vector<36x32xf32> to vector<36x32xbf16>
    %c2_14 = arith.constant 2 : index
    %c0_15 = arith.constant 0 : index
    %c0_16 = arith.constant 0 : index
    %18 = vector.load %arg2[%c2_14, %c0_15, %c0_16] : memref<9x32x128xbf16, #tpu.memory_space<vmem>>, vector<1x32x128xbf16>
    %19 = vector.shape_cast %18 : vector<1x32x128xbf16> to vector<32x128xbf16>
    %cst_17 = arith.constant dense<0.000000e+00> : vector<36x128xf32>
    %20 = tpu.matmul %17, %19, %cst_17 {dimension_numbers = #tpu.dot_dimension_numbers<[1], [0], [0], [1], [0, 0, 1, 1], [], []>} : vector<36x32xbf16>, vector<32x128xbf16>, vector<36x128xf32> -> vector<36x128xf32>
    %21 = arith.addf %14, %20 : vector<36x128xf32>
    %c0_18 = arith.constant 0 : index
    %c6 = arith.constant 6 : index
    %c0_19 = arith.constant 0 : index
    %22 = vector.load %arg1[%c0_18, %c6, %c0_19] : memref<1x50x32xf32, #tpu.memory_space<vmem>>, vector<1x36x32xf32>
    %23 = vector.shape_cast %22 : vector<1x36x32xf32> to vector<36x32xf32>
    %24 = arith.truncf %23 : vector<36x32xf32> to vector<36x32xbf16>
    %c3 = arith.constant 3 : index
    %c0_20 = arith.constant 0 : index
    %c0_21 = arith.constant 0 : index
    %25 = vector.load %arg2[%c3, %c0_20, %c0_21] : memref<9x32x128xbf16, #tpu.memory_space<vmem>>, vector<1x32x128xbf16>
    %26 = vector.shape_cast %25 : vector<1x32x128xbf16> to vector<32x128xbf16>
    %cst_22 = arith.constant dense<0.000000e+00> : vector<36x128xf32>
    %27 = tpu.matmul %24, %26, %cst_22 {dimension_numbers = #tpu.dot_dimension_numbers<[1], [0], [0], [1], [0, 0, 1, 1], [], []>} : vector<36x32xbf16>, vector<32x128xbf16>, vector<36x128xf32> -> vector<36x128xf32>
    %28 = arith.addf %21, %27 : vector<36x128xf32>
    %c0_23 = arith.constant 0 : index
    %c7 = arith.constant 7 : index
    %c0_24 = arith.constant 0 : index
    %29 = vector.load %arg1[%c0_23, %c7, %c0_24] : memref<1x50x32xf32, #tpu.memory_space<vmem>>, vector<1x36x32xf32>
    %30 = vector.shape_cast %29 : vector<1x36x32xf32> to vector<36x32xf32>
    %31 = arith.truncf %30 : vector<36x32xf32> to vector<36x32xbf16>
    %c4 = arith.constant 4 : index
    %c0_25 = arith.constant 0 : index
    %c0_26 = arith.constant 0 : index
    %32 = vector.load %arg2[%c4, %c0_25, %c0_26] : memref<9x32x128xbf16, #tpu.memory_space<vmem>>, vector<1x32x128xbf16>
    %33 = vector.shape_cast %32 : vector<1x32x128xbf16> to vector<32x128xbf16>
    %cst_27 = arith.constant dense<0.000000e+00> : vector<36x128xf32>
    %34 = tpu.matmul %31, %33, %cst_27 {dimension_numbers = #tpu.dot_dimension_numbers<[1], [0], [0], [1], [0, 0, 1, 1], [], []>} : vector<36x32xbf16>, vector<32x128xbf16>, vector<36x128xf32> -> vector<36x128xf32>
    %35 = arith.addf %28, %34 : vector<36x128xf32>
    %c0_28 = arith.constant 0 : index
    %c8 = arith.constant 8 : index
    %c0_29 = arith.constant 0 : index
    %36 = vector.load %arg1[%c0_28, %c8, %c0_29] : memref<1x50x32xf32, #tpu.memory_space<vmem>>, vector<1x36x32xf32>
    %37 = vector.shape_cast %36 : vector<1x36x32xf32> to vector<36x32xf32>
    %38 = arith.truncf %37 : vector<36x32xf32> to vector<36x32xbf16>
    %c5 = arith.constant 5 : index
    %c0_30 = arith.constant 0 : index
    %c0_31 = arith.constant 0 : index
    %39 = vector.load %arg2[%c5, %c0_30, %c0_31] : memref<9x32x128xbf16, #tpu.memory_space<vmem>>, vector<1x32x128xbf16>
    %40 = vector.shape_cast %39 : vector<1x32x128xbf16> to vector<32x128xbf16>
    %cst_32 = arith.constant dense<0.000000e+00> : vector<36x128xf32>
    %41 = tpu.matmul %38, %40, %cst_32 {dimension_numbers = #tpu.dot_dimension_numbers<[1], [0], [0], [1], [0, 0, 1, 1], [], []>} : vector<36x32xbf16>, vector<32x128xbf16>, vector<36x128xf32> -> vector<36x128xf32>
    %42 = arith.addf %35, %41 : vector<36x128xf32>
    %c0_33 = arith.constant 0 : index
    %c12 = arith.constant 12 : index
    %c0_34 = arith.constant 0 : index
    %43 = vector.load %arg1[%c0_33, %c12, %c0_34] : memref<1x50x32xf32, #tpu.memory_space<vmem>>, vector<1x36x32xf32>
    %44 = vector.shape_cast %43 : vector<1x36x32xf32> to vector<36x32xf32>
    %45 = arith.truncf %44 : vector<36x32xf32> to vector<36x32xbf16>
    %c6_35 = arith.constant 6 : index
    %c0_36 = arith.constant 0 : index
    %c0_37 = arith.constant 0 : index
    %46 = vector.load %arg2[%c6_35, %c0_36, %c0_37] : memref<9x32x128xbf16, #tpu.memory_space<vmem>>, vector<1x32x128xbf16>
    %47 = vector.shape_cast %46 : vector<1x32x128xbf16> to vector<32x128xbf16>
    %cst_38 = arith.constant dense<0.000000e+00> : vector<36x128xf32>
    %48 = tpu.matmul %45, %47, %cst_38 {dimension_numbers = #tpu.dot_dimension_numbers<[1], [0], [0], [1], [0, 0, 1, 1], [], []>} : vector<36x32xbf16>, vector<32x128xbf16>, vector<36x128xf32> -> vector<36x128xf32>
    %49 = arith.addf %42, %48 : vector<36x128xf32>
    %c0_39 = arith.constant 0 : index
    %c13 = arith.constant 13 : index
    %c0_40 = arith.constant 0 : index
    %50 = vector.load %arg1[%c0_39, %c13, %c0_40] : memref<1x50x32xf32, #tpu.memory_space<vmem>>, vector<1x36x32xf32>
    %51 = vector.shape_cast %50 : vector<1x36x32xf32> to vector<36x32xf32>
    %52 = arith.truncf %51 : vector<36x32xf32> to vector<36x32xbf16>
    %c7_41 = arith.constant 7 : index
    %c0_42 = arith.constant 0 : index
    %c0_43 = arith.constant 0 : index
    %53 = vector.load %arg2[%c7_41, %c0_42, %c0_43] : memref<9x32x128xbf16, #tpu.memory_space<vmem>>, vector<1x32x128xbf16>
    %54 = vector.shape_cast %53 : vector<1x32x128xbf16> to vector<32x128xbf16>
    %cst_44 = arith.constant dense<0.000000e+00> : vector<36x128xf32>
    %55 = tpu.matmul %52, %54, %cst_44 {dimension_numbers = #tpu.dot_dimension_numbers<[1], [0], [0], [1], [0, 0, 1, 1], [], []>} : vector<36x32xbf16>, vector<32x128xbf16>, vector<36x128xf32> -> vector<36x128xf32>
    %56 = arith.addf %49, %55 : vector<36x128xf32>
    %c0_45 = arith.constant 0 : index
    %c14 = arith.constant 14 : index
    %c0_46 = arith.constant 0 : index
    %57 = vector.load %arg1[%c0_45, %c14, %c0_46] : memref<1x50x32xf32, #tpu.memory_space<vmem>>, vector<1x36x32xf32>
    %58 = vector.shape_cast %57 : vector<1x36x32xf32> to vector<36x32xf32>
    %59 = arith.truncf %58 : vector<36x32xf32> to vector<36x32xbf16>
    %c8_47 = arith.constant 8 : index
    %c0_48 = arith.constant 0 : index
    %c0_49 = arith.constant 0 : index
    %60 = vector.load %arg2[%c8_47, %c0_48, %c0_49] : memref<9x32x128xbf16, #tpu.memory_space<vmem>>, vector<1x32x128xbf16>
    %61 = vector.shape_cast %60 : vector<1x32x128xbf16> to vector<32x128xbf16>
    %cst_50 = arith.constant dense<0.000000e+00> : vector<36x128xf32>
    %62 = tpu.matmul %59, %61, %cst_50 {dimension_numbers = #tpu.dot_dimension_numbers<[1], [0], [0], [1], [0, 0, 1, 1], [], []>} : vector<36x32xbf16>, vector<32x128xbf16>, vector<36x128xf32> -> vector<36x128xf32>
    %63 = arith.addf %56, %62 : vector<36x128xf32>
    %c0_51 = arith.constant 0 : index
    %c0_52 = arith.constant 0 : index
    %64 = vector.load %arg3[%c0_51, %c0_52] : memref<1x128xf32, #tpu.memory_space<vmem>>, vector<1x128xf32>
    %65 = vector.broadcast %64 : vector<1x128xf32> to vector<36x128xf32>
    %66 = arith.addf %63, %65 : vector<36x128xf32>
    %c0_53 = arith.constant 0 : index
    %c0_54 = arith.constant 0 : index
    %c0_55 = arith.constant 0 : index
    %67 = vector.load %arg4[%c0_53, %c0_54, %c0_55] : memref<1x36x128xf32, #tpu.memory_space<vmem>>, vector<1x36x128xf32>
    %68 = vector.shape_cast %67 : vector<1x36x128xf32> to vector<36x128xf32>
    %69 = vector.shape_cast %66 : vector<36x128xf32> to vector<1x36x128xf32>
    tpu.vector_store %arg4[%c0_53, %c0_54, %c0_55], %69 {strides = array<i32>} : memref<1x36x128xf32, #tpu.memory_space<vmem>>, vector<1x36x128xf32>,
    return
  }
  func.func @transform_0(%arg0: i32) -> (i32, i32, i32) {
    %c0_i32 = arith.constant 0 : i32
    %c0_i32_0 = arith.constant 0 : i32
    %c0_i32_1 = arith.constant 0 : i32
    return %arg0, %c0_i32, %c0_i32_0 : i32, i32, i32
  }
  func.func @transform_1(%arg0: i32) -> (i32, i32, i32) {
    %c0_i32 = arith.constant 0 : i32
    %c0_i32_0 = arith.constant 0 : i32
    %c0_i32_1 = arith.constant 0 : i32
    %c0_i32_2 = arith.constant 0 : i32
    return %c0_i32, %c0_i32_0, %c0_i32_1 : i32, i32, i32
  }
  func.func @transform_2(%arg0: i32) -> (i32, i32) {
    %c0_i32 = arith.constant 0 : i32
    %c0_i32_0 = arith.constant 0 : i32
    %c0_i32_1 = arith.constant 0 : i32
    return %c0_i32, %c0_i32_0 : i32, i32
  }
  func.func @transform_3(%arg0: i32) -> (i32, i32, i32) {
    %c0_i32 = arith.constant 0 : i32
    %c0_i32_0 = arith.constant 0 : i32
    %c0_i32_1 = arith.constant 0 : i32
    return %arg0, %c0_i32, %c0_i32_0 : i32, i32, i32
  }
}

module attributes {stable_mosaic.version = 11 : i64} {
  func.func @_dual_1x1_kernel(%arg0: i32, %arg1: memref<128x32xf32, #tpu.memory_space<vmem>>, %arg2: memref<128x16xf32, #tpu.memory_space<vmem>>, %arg3: memref<32x24xbf16, #tpu.memory_space<vmem>>, %arg4: memref<16x24xbf16, #tpu.memory_space<vmem>>, %arg5: memref<1x24xf32, #tpu.memory_space<vmem>>, %arg6: memref<128x24xf32, #tpu.memory_space<vmem>>) attributes {dimension_semantics = [#tpu.dimension_semantics<arbitrary>], iteration_bounds = array<i64: 1>, scalar_prefetch = 0 : i64, scratch_operands = 0 : i64, tpu.core_type = #tpu.core_type<tc>, window_params = [{pipeline_mode = #tpu.pipeline_mode<synchronous>, transform_indices = @transform_0, window_bounds = array<i64: 128, 32>}, {pipeline_mode = #tpu.pipeline_mode<synchronous>, transform_indices = @transform_1, window_bounds = array<i64: 128, 16>}, {pipeline_mode = #tpu.pipeline_mode<synchronous>, transform_indices = @transform_2, window_bounds = array<i64: 32, 24>}, {pipeline_mode = #tpu.pipeline_mode<synchronous>, transform_indices = @transform_3, window_bounds = array<i64: 16, 24>}, {pipeline_mode = #tpu.pipeline_mode<synchronous>, transform_indices = @transform_4, window_bounds = array<i64: 1, 24>}, {pipeline_mode = #tpu.pipeline_mode<synchronous>, transform_indices = @transform_5, window_bounds = array<i64: 128, 24>}]} {
    %c0 = arith.constant 0 : index
    %c0_0 = arith.constant 0 : index
    %0 = vector.load %arg1[%c0, %c0_0] : memref<128x32xf32, #tpu.memory_space<vmem>>, vector<128x32xf32>
    %1 = arith.truncf %0 : vector<128x32xf32> to vector<128x32xbf16>
    %c0_1 = arith.constant 0 : index
    %c0_2 = arith.constant 0 : index
    %2 = vector.load %arg3[%c0_1, %c0_2] : memref<32x24xbf16, #tpu.memory_space<vmem>>, vector<32x24xbf16>
    %cst = arith.constant dense<0.000000e+00> : vector<128x24xf32>
    %3 = tpu.matmul %1, %2, %cst {dimension_numbers = #tpu.dot_dimension_numbers<[1], [0], [0], [1], [0, 0, 1, 1], [], []>} : vector<128x32xbf16>, vector<32x24xbf16>, vector<128x24xf32> -> vector<128x24xf32>
    %c0_3 = arith.constant 0 : index
    %c0_4 = arith.constant 0 : index
    %4 = vector.load %arg2[%c0_3, %c0_4] : memref<128x16xf32, #tpu.memory_space<vmem>>, vector<128x16xf32>
    %5 = arith.truncf %4 : vector<128x16xf32> to vector<128x16xbf16>
    %c0_5 = arith.constant 0 : index
    %c0_6 = arith.constant 0 : index
    %6 = vector.load %arg4[%c0_5, %c0_6] : memref<16x24xbf16, #tpu.memory_space<vmem>>, vector<16x24xbf16>
    %cst_7 = arith.constant dense<0.000000e+00> : vector<128x24xf32>
    %7 = tpu.matmul %5, %6, %cst_7 {dimension_numbers = #tpu.dot_dimension_numbers<[1], [0], [0], [1], [0, 0, 1, 1], [], []>} : vector<128x16xbf16>, vector<16x24xbf16>, vector<128x24xf32> -> vector<128x24xf32>
    %8 = arith.addf %3, %7 : vector<128x24xf32>
    %c0_8 = arith.constant 0 : index
    %c0_9 = arith.constant 0 : index
    %9 = vector.load %arg5[%c0_8, %c0_9] : memref<1x24xf32, #tpu.memory_space<vmem>>, vector<1x24xf32>
    %10 = vector.broadcast %9 : vector<1x24xf32> to vector<128x24xf32>
    %11 = arith.addf %8, %10 : vector<128x24xf32>
    %cst_10 = arith.constant 0.000000e+00 : f32
    %12 = vector.broadcast %cst_10 : f32 to vector<128x24xf32>
    %13 = arith.cmpf ogt, %11, %12 : vector<128x24xf32>
    %cst_11 = arith.constant 1.000000e-01 : f32
    %14 = vector.broadcast %cst_11 : f32 to vector<128x24xf32>
    %15 = arith.mulf %14, %11 : vector<128x24xf32>
    %16 = arith.select %13, %11, %15 : vector<128x24xi1>, vector<128x24xf32>
    %c0_12 = arith.constant 0 : index
    %c0_13 = arith.constant 0 : index
    %17 = vector.load %arg6[%c0_12, %c0_13] : memref<128x24xf32, #tpu.memory_space<vmem>>, vector<128x24xf32>
    tpu.vector_store %arg6[%c0_12, %c0_13], %16 {strides = array<i32>} : memref<128x24xf32, #tpu.memory_space<vmem>>, vector<128x24xf32>,
    return
  }
  func.func @transform_0(%arg0: i32) -> (i32, i32) {
    %c0_i32 = arith.constant 0 : i32
    %c0_i32_0 = arith.constant 0 : i32
    %c0_i32_1 = arith.constant 0 : i32
    return %c0_i32, %c0_i32_0 : i32, i32
  }
  func.func @transform_1(%arg0: i32) -> (i32, i32) {
    %c0_i32 = arith.constant 0 : i32
    %c0_i32_0 = arith.constant 0 : i32
    %c0_i32_1 = arith.constant 0 : i32
    return %c0_i32, %c0_i32_0 : i32, i32
  }
  func.func @transform_2(%arg0: i32) -> (i32, i32) {
    %c0_i32 = arith.constant 0 : i32
    %c0_i32_0 = arith.constant 0 : i32
    %c0_i32_1 = arith.constant 0 : i32
    return %c0_i32, %c0_i32_0 : i32, i32
  }
  func.func @transform_3(%arg0: i32) -> (i32, i32) {
    %c0_i32 = arith.constant 0 : i32
    %c0_i32_0 = arith.constant 0 : i32
    %c0_i32_1 = arith.constant 0 : i32
    return %c0_i32, %c0_i32_0 : i32, i32
  }
  func.func @transform_4(%arg0: i32) -> (i32, i32) {
    %c0_i32 = arith.constant 0 : i32
    %c0_i32_0 = arith.constant 0 : i32
    %c0_i32_1 = arith.constant 0 : i32
    return %c0_i32, %c0_i32_0 : i32, i32
  }
  func.func @transform_5(%arg0: i32) -> (i32, i32) {
    %c0_i32 = arith.constant 0 : i32
    %c0_i32_0 = arith.constant 0 : i32
    %c0_i32_1 = arith.constant 0 : i32
    return %c0_i32, %c0_i32_0 : i32, i32
  }
}

module attributes {stable_mosaic.version = 11 : i64} {
  func.func @_conv3x3_kernel(%arg0: i32, %arg1: memref<1x122x24xf32, #tpu.memory_space<vmem>>, %arg2: memref<9x24x128xbf16, #tpu.memory_space<vmem>>, %arg3: memref<1x128xf32, #tpu.memory_space<vmem>>, %arg4: memref<1x100x128xf32, #tpu.memory_space<vmem>>) attributes {dimension_semantics = [#tpu.dimension_semantics<parallel>], iteration_bounds = array<i64: 2>, scalar_prefetch = 0 : i64, scratch_operands = 0 : i64, tpu.core_type = #tpu.core_type<tc>, window_params = [{transform_indices = @transform_0, window_bounds = array<i64: 1, 122, 24>}, {pipeline_mode = #tpu.pipeline_mode<synchronous>, transform_indices = @transform_1, window_bounds = array<i64: 9, 24, 128>}, {pipeline_mode = #tpu.pipeline_mode<synchronous>, transform_indices = @transform_2, window_bounds = array<i64: 1, 128>}, {transform_indices = @transform_3, window_bounds = array<i64: 1, 100, 128>}]} {
    %cst = arith.constant 0.000000e+00 : f32
    %0 = vector.broadcast %cst : f32 to vector<100x128xf32>
    %c0 = arith.constant 0 : index
    %c0_0 = arith.constant 0 : index
    %c0_1 = arith.constant 0 : index
    %1 = vector.load %arg1[%c0, %c0_0, %c0_1] : memref<1x122x24xf32, #tpu.memory_space<vmem>>, vector<1x100x24xf32>
    %2 = vector.shape_cast %1 : vector<1x100x24xf32> to vector<100x24xf32>
    %3 = arith.truncf %2 : vector<100x24xf32> to vector<100x24xbf16>
    %c0_2 = arith.constant 0 : index
    %c0_3 = arith.constant 0 : index
    %c0_4 = arith.constant 0 : index
    %4 = vector.load %arg2[%c0_2, %c0_3, %c0_4] : memref<9x24x128xbf16, #tpu.memory_space<vmem>>, vector<1x24x128xbf16>
    %5 = vector.shape_cast %4 : vector<1x24x128xbf16> to vector<24x128xbf16>
    %cst_5 = arith.constant dense<0.000000e+00> : vector<100x128xf32>
    %6 = tpu.matmul %3, %5, %cst_5 {dimension_numbers = #tpu.dot_dimension_numbers<[1], [0], [0], [1], [0, 0, 1, 1], [], []>} : vector<100x24xbf16>, vector<24x128xbf16>, vector<100x128xf32> -> vector<100x128xf32>
    %7 = arith.addf %0, %6 : vector<100x128xf32>
    %c0_6 = arith.constant 0 : index
    %c1 = arith.constant 1 : index
    %c0_7 = arith.constant 0 : index
    %8 = vector.load %arg1[%c0_6, %c1, %c0_7] : memref<1x122x24xf32, #tpu.memory_space<vmem>>, vector<1x100x24xf32>
    %9 = vector.shape_cast %8 : vector<1x100x24xf32> to vector<100x24xf32>
    %10 = arith.truncf %9 : vector<100x24xf32> to vector<100x24xbf16>
    %c1_8 = arith.constant 1 : index
    %c0_9 = arith.constant 0 : index
    %c0_10 = arith.constant 0 : index
    %11 = vector.load %arg2[%c1_8, %c0_9, %c0_10] : memref<9x24x128xbf16, #tpu.memory_space<vmem>>, vector<1x24x128xbf16>
    %12 = vector.shape_cast %11 : vector<1x24x128xbf16> to vector<24x128xbf16>
    %cst_11 = arith.constant dense<0.000000e+00> : vector<100x128xf32>
    %13 = tpu.matmul %10, %12, %cst_11 {dimension_numbers = #tpu.dot_dimension_numbers<[1], [0], [0], [1], [0, 0, 1, 1], [], []>} : vector<100x24xbf16>, vector<24x128xbf16>, vector<100x128xf32> -> vector<100x128xf32>
    %14 = arith.addf %7, %13 : vector<100x128xf32>
    %c0_12 = arith.constant 0 : index
    %c2 = arith.constant 2 : index
    %c0_13 = arith.constant 0 : index
    %15 = vector.load %arg1[%c0_12, %c2, %c0_13] : memref<1x122x24xf32, #tpu.memory_space<vmem>>, vector<1x100x24xf32>
    %16 = vector.shape_cast %15 : vector<1x100x24xf32> to vector<100x24xf32>
    %17 = arith.truncf %16 : vector<100x24xf32> to vector<100x24xbf16>
    %c2_14 = arith.constant 2 : index
    %c0_15 = arith.constant 0 : index
    %c0_16 = arith.constant 0 : index
    %18 = vector.load %arg2[%c2_14, %c0_15, %c0_16] : memref<9x24x128xbf16, #tpu.memory_space<vmem>>, vector<1x24x128xbf16>
    %19 = vector.shape_cast %18 : vector<1x24x128xbf16> to vector<24x128xbf16>
    %cst_17 = arith.constant dense<0.000000e+00> : vector<100x128xf32>
    %20 = tpu.matmul %17, %19, %cst_17 {dimension_numbers = #tpu.dot_dimension_numbers<[1], [0], [0], [1], [0, 0, 1, 1], [], []>} : vector<100x24xbf16>, vector<24x128xbf16>, vector<100x128xf32> -> vector<100x128xf32>
    %21 = arith.addf %14, %20 : vector<100x128xf32>
    %c0_18 = arith.constant 0 : index
    %c10 = arith.constant 10 : index
    %c0_19 = arith.constant 0 : index
    %22 = vector.load %arg1[%c0_18, %c10, %c0_19] : memref<1x122x24xf32, #tpu.memory_space<vmem>>, vector<1x100x24xf32>
    %23 = vector.shape_cast %22 : vector<1x100x24xf32> to vector<100x24xf32>
    %24 = arith.truncf %23 : vector<100x24xf32> to vector<100x24xbf16>
    %c3 = arith.constant 3 : index
    %c0_20 = arith.constant 0 : index
    %c0_21 = arith.constant 0 : index
    %25 = vector.load %arg2[%c3, %c0_20, %c0_21] : memref<9x24x128xbf16, #tpu.memory_space<vmem>>, vector<1x24x128xbf16>
    %26 = vector.shape_cast %25 : vector<1x24x128xbf16> to vector<24x128xbf16>
    %cst_22 = arith.constant dense<0.000000e+00> : vector<100x128xf32>
    %27 = tpu.matmul %24, %26, %cst_22 {dimension_numbers = #tpu.dot_dimension_numbers<[1], [0], [0], [1], [0, 0, 1, 1], [], []>} : vector<100x24xbf16>, vector<24x128xbf16>, vector<100x128xf32> -> vector<100x128xf32>
    %28 = arith.addf %21, %27 : vector<100x128xf32>
    %c0_23 = arith.constant 0 : index
    %c11 = arith.constant 11 : index
    %c0_24 = arith.constant 0 : index
    %29 = vector.load %arg1[%c0_23, %c11, %c0_24] : memref<1x122x24xf32, #tpu.memory_space<vmem>>, vector<1x100x24xf32>
    %30 = vector.shape_cast %29 : vector<1x100x24xf32> to vector<100x24xf32>
    %31 = arith.truncf %30 : vector<100x24xf32> to vector<100x24xbf16>
    %c4 = arith.constant 4 : index
    %c0_25 = arith.constant 0 : index
    %c0_26 = arith.constant 0 : index
    %32 = vector.load %arg2[%c4, %c0_25, %c0_26] : memref<9x24x128xbf16, #tpu.memory_space<vmem>>, vector<1x24x128xbf16>
    %33 = vector.shape_cast %32 : vector<1x24x128xbf16> to vector<24x128xbf16>
    %cst_27 = arith.constant dense<0.000000e+00> : vector<100x128xf32>
    %34 = tpu.matmul %31, %33, %cst_27 {dimension_numbers = #tpu.dot_dimension_numbers<[1], [0], [0], [1], [0, 0, 1, 1], [], []>} : vector<100x24xbf16>, vector<24x128xbf16>, vector<100x128xf32> -> vector<100x128xf32>
    %35 = arith.addf %28, %34 : vector<100x128xf32>
    %c0_28 = arith.constant 0 : index
    %c12 = arith.constant 12 : index
    %c0_29 = arith.constant 0 : index
    %36 = vector.load %arg1[%c0_28, %c12, %c0_29] : memref<1x122x24xf32, #tpu.memory_space<vmem>>, vector<1x100x24xf32>
    %37 = vector.shape_cast %36 : vector<1x100x24xf32> to vector<100x24xf32>
    %38 = arith.truncf %37 : vector<100x24xf32> to vector<100x24xbf16>
    %c5 = arith.constant 5 : index
    %c0_30 = arith.constant 0 : index
    %c0_31 = arith.constant 0 : index
    %39 = vector.load %arg2[%c5, %c0_30, %c0_31] : memref<9x24x128xbf16, #tpu.memory_space<vmem>>, vector<1x24x128xbf16>
    %40 = vector.shape_cast %39 : vector<1x24x128xbf16> to vector<24x128xbf16>
    %cst_32 = arith.constant dense<0.000000e+00> : vector<100x128xf32>
    %41 = tpu.matmul %38, %40, %cst_32 {dimension_numbers = #tpu.dot_dimension_numbers<[1], [0], [0], [1], [0, 0, 1, 1], [], []>} : vector<100x24xbf16>, vector<24x128xbf16>, vector<100x128xf32> -> vector<100x128xf32>
    %42 = arith.addf %35, %41 : vector<100x128xf32>
    %c0_33 = arith.constant 0 : index
    %c20 = arith.constant 20 : index
    %c0_34 = arith.constant 0 : index
    %43 = vector.load %arg1[%c0_33, %c20, %c0_34] : memref<1x122x24xf32, #tpu.memory_space<vmem>>, vector<1x100x24xf32>
    %44 = vector.shape_cast %43 : vector<1x100x24xf32> to vector<100x24xf32>
    %45 = arith.truncf %44 : vector<100x24xf32> to vector<100x24xbf16>
    %c6 = arith.constant 6 : index
    %c0_35 = arith.constant 0 : index
    %c0_36 = arith.constant 0 : index
    %46 = vector.load %arg2[%c6, %c0_35, %c0_36] : memref<9x24x128xbf16, #tpu.memory_space<vmem>>, vector<1x24x128xbf16>
    %47 = vector.shape_cast %46 : vector<1x24x128xbf16> to vector<24x128xbf16>
    %cst_37 = arith.constant dense<0.000000e+00> : vector<100x128xf32>
    %48 = tpu.matmul %45, %47, %cst_37 {dimension_numbers = #tpu.dot_dimension_numbers<[1], [0], [0], [1], [0, 0, 1, 1], [], []>} : vector<100x24xbf16>, vector<24x128xbf16>, vector<100x128xf32> -> vector<100x128xf32>
    %49 = arith.addf %42, %48 : vector<100x128xf32>
    %c0_38 = arith.constant 0 : index
    %c21 = arith.constant 21 : index
    %c0_39 = arith.constant 0 : index
    %50 = vector.load %arg1[%c0_38, %c21, %c0_39] : memref<1x122x24xf32, #tpu.memory_space<vmem>>, vector<1x100x24xf32>
    %51 = vector.shape_cast %50 : vector<1x100x24xf32> to vector<100x24xf32>
    %52 = arith.truncf %51 : vector<100x24xf32> to vector<100x24xbf16>
    %c7 = arith.constant 7 : index
    %c0_40 = arith.constant 0 : index
    %c0_41 = arith.constant 0 : index
    %53 = vector.load %arg2[%c7, %c0_40, %c0_41] : memref<9x24x128xbf16, #tpu.memory_space<vmem>>, vector<1x24x128xbf16>
    %54 = vector.shape_cast %53 : vector<1x24x128xbf16> to vector<24x128xbf16>
    %cst_42 = arith.constant dense<0.000000e+00> : vector<100x128xf32>
    %55 = tpu.matmul %52, %54, %cst_42 {dimension_numbers = #tpu.dot_dimension_numbers<[1], [0], [0], [1], [0, 0, 1, 1], [], []>} : vector<100x24xbf16>, vector<24x128xbf16>, vector<100x128xf32> -> vector<100x128xf32>
    %56 = arith.addf %49, %55 : vector<100x128xf32>
    %c0_43 = arith.constant 0 : index
    %c22 = arith.constant 22 : index
    %c0_44 = arith.constant 0 : index
    %57 = vector.load %arg1[%c0_43, %c22, %c0_44] : memref<1x122x24xf32, #tpu.memory_space<vmem>>, vector<1x100x24xf32>
    %58 = vector.shape_cast %57 : vector<1x100x24xf32> to vector<100x24xf32>
    %59 = arith.truncf %58 : vector<100x24xf32> to vector<100x24xbf16>
    %c8 = arith.constant 8 : index
    %c0_45 = arith.constant 0 : index
    %c0_46 = arith.constant 0 : index
    %60 = vector.load %arg2[%c8, %c0_45, %c0_46] : memref<9x24x128xbf16, #tpu.memory_space<vmem>>, vector<1x24x128xbf16>
    %61 = vector.shape_cast %60 : vector<1x24x128xbf16> to vector<24x128xbf16>
    %cst_47 = arith.constant dense<0.000000e+00> : vector<100x128xf32>
    %62 = tpu.matmul %59, %61, %cst_47 {dimension_numbers = #tpu.dot_dimension_numbers<[1], [0], [0], [1], [0, 0, 1, 1], [], []>} : vector<100x24xbf16>, vector<24x128xbf16>, vector<100x128xf32> -> vector<100x128xf32>
    %63 = arith.addf %56, %62 : vector<100x128xf32>
    %c0_48 = arith.constant 0 : index
    %c0_49 = arith.constant 0 : index
    %64 = vector.load %arg3[%c0_48, %c0_49] : memref<1x128xf32, #tpu.memory_space<vmem>>, vector<1x128xf32>
    %65 = vector.broadcast %64 : vector<1x128xf32> to vector<100x128xf32>
    %66 = arith.addf %63, %65 : vector<100x128xf32>
    %c0_50 = arith.constant 0 : index
    %c0_51 = arith.constant 0 : index
    %c0_52 = arith.constant 0 : index
    %67 = vector.load %arg4[%c0_50, %c0_51, %c0_52] : memref<1x100x128xf32, #tpu.memory_space<vmem>>, vector<1x100x128xf32>
    %68 = vector.shape_cast %67 : vector<1x100x128xf32> to vector<100x128xf32>
    %69 = vector.shape_cast %66 : vector<100x128xf32> to vector<1x100x128xf32>
    tpu.vector_store %arg4[%c0_50, %c0_51, %c0_52], %69 {strides = array<i32>} : memref<1x100x128xf32, #tpu.memory_space<vmem>>, vector<1x100x128xf32>,
    return
  }
  func.func @transform_0(%arg0: i32) -> (i32, i32, i32) {
    %c0_i32 = arith.constant 0 : i32
    %c0_i32_0 = arith.constant 0 : i32
    %c0_i32_1 = arith.constant 0 : i32
    return %arg0, %c0_i32, %c0_i32_0 : i32, i32, i32
  }
  func.func @transform_1(%arg0: i32) -> (i32, i32, i32) {
    %c0_i32 = arith.constant 0 : i32
    %c0_i32_0 = arith.constant 0 : i32
    %c0_i32_1 = arith.constant 0 : i32
    %c0_i32_2 = arith.constant 0 : i32
    return %c0_i32, %c0_i32_0, %c0_i32_1 : i32, i32, i32
  }
  func.func @transform_2(%arg0: i32) -> (i32, i32) {
    %c0_i32 = arith.constant 0 : i32
    %c0_i32_0 = arith.constant 0 : i32
    %c0_i32_1 = arith.constant 0 : i32
    return %c0_i32, %c0_i32_0 : i32, i32
  }
  func.func @transform_3(%arg0: i32) -> (i32, i32, i32) {
    %c0_i32 = arith.constant 0 : i32
    %c0_i32_0 = arith.constant 0 : i32
    %c0_i32_1 = arith.constant 0 : i32
    return %arg0, %c0_i32, %c0_i32_0 : i32, i32, i32
  }
}

</mosaic_0001>

<llo_original>
// kernel: forward.8
$region0: #{forward.8}
  #allocation0 [shape = 'u32[]', space=smem, size = 0x4, offset = 0x4, fixed_abs, tag = 'smem constant byte address 0x4 - core index']
  #allocation1 [shape = 'u32[144,128]{1,0:T(1,128)}', space=vmem, size = 0x12000, scoped, tag = 'internal scratch']
  %s0 = inlined_call_operand.vmem [shape: f32[2,122,8], index: 0, kind: input, shape index: {}]
  %s1 = inlined_call_operand.vmem [shape: bf16[9,8,16], index: 1, kind: input, shape index: {}]
  %s2 = inlined_call_operand.vmem [shape: f32[1,16], index: 2, kind: input, shape index: {}]
  %s3 = inlined_call_operand.vmem [shape: f32[2,100,16], index: 3, kind: output, shape index: {}]
  %s4 = sld [smem:[#allocation0]]
  $region45: #{forward.8} parent=0
    _
  %s6 = ssub.s32 1, %s4
  %s7 = scalar_select 0, %s6, %s4
  loop: start=0, step=1, limit=4
  $region2: #{forward.8} parent=0 // loop_pre_header
    _
  $region3: #{forward.8} parent=0 // loop_header
    %s9 = sphi 0, %s13
    %p10 = scmp.ge.s32.totalorder %s9, 4
    %s19 = sphi 0, %s21
    %s22 = sphi 0, %s19
    %s23 = sphi 0, %s22
    %s39 = sphi 0, %s23
    %s43 = sphi 0, %s43
    %s45 = sphi 0, %s43
    %s46 = sphi 0, %s45
    %s60 = sphi 0, %s46
    %s64 = sphi 0, %s64
    %s66 = sphi 0, %s64
    %s67 = sphi 0, %s66
    %s81 = sphi 0, %s67
    %s87 = sphi 0, %s89
    %s90 = sphi 0, %s87
    %s91 = sphi 0, %s90
    %s107 = sphi 0, %s91
  $region4: #{forward.8} parent=0 // loop_header_branch
    %12 = sbr.rel (%p10) target = $region8
  $region5: #{forward.8} parent=0 // loop_body
    %s14 = ssub.s32 %s9, 1
    %s15 = ssub.s32 %s9, 2
    %s16 = sadd.s32 %s9, 1
    %s17 = ssub.s32 %s9, %s16
    %p18 = scmp.eq.s32.totalorder %s17, 0
    %s20 = sadd.s32 %s19, 1
    %s21 = scalar_select %p18, %s19, %s20
    %p24 = pneg %p18
    %p25 = scmp.eq.s32.totalorder %s9, 1
    %p26 = por %p24, %p25
    %p27 = scmp.ne.s32.totalorder %s19, %s22
    %p28 = scmp.eq.s32.totalorder %s9, 0
    %p29 = por %p27, %p28
    %p30 = scmp.ne.s32.totalorder %s19, %s22
    %p31 = scmp.eq.s32.totalorder %s14, 1
    %p32 = por %p30, %p31
    %p33 = scmp.ne.s32.totalorder %s22, %s23
    %p34 = scmp.eq.s32.totalorder %s14, 0
    %p35 = por %p33, %p34
    %p36 = scmp.ne.s32.totalorder %s22, %s23
    %p37 = scmp.eq.s32.totalorder %s15, 1
    %p38 = por %p36, %p37
    %p40 = scmp.ne.s32.totalorder %s23, %s39
    %p41 = scmp.eq.s32.totalorder %s15, 0
    %p42 = por %p40, %p41
    %s44 = sadd.s32 %s43, 1
    %p47 = scmp.eq.s32.totalorder %s9, 1
    %p48 = scmp.ne.s32.totalorder %s43, %s45
    %p49 = scmp.eq.s32.totalorder %s9, 0
    %p50 = por %p48, %p49
    %p51 = scmp.ne.s32.totalorder %s43, %s45
    %p52 = scmp.eq.s32.totalorder %s14, 1
    %p53 = por %p51, %p52
    %p54 = scmp.ne.s32.totalorder %s45, %s46
    %p55 = scmp.eq.s32.totalorder %s14, 0
    %p56 = por %p54, %p55
    %p57 = scmp.ne.s32.totalorder %s45, %s46
    %p58 = scmp.eq.s32.totalorder %s15, 1
    %p59 = por %p57, %p58
    %p61 = scmp.ne.s32.totalorder %s46, %s60
    %p62 = scmp.eq.s32.totalorder %s15, 0
    %p63 = por %p61, %p62
    %s65 = sadd.s32 %s64, 1
    %p68 = scmp.eq.s32.totalorder %s9, 1
    %p69 = scmp.ne.s32.totalorder %s64, %s66
    %p70 = scmp.eq.s32.totalorder %s9, 0
    %p71 = por %p69, %p70
    %p72 = scmp.ne.s32.totalorder %s64, %s66
    %p73 = scmp.eq.s32.totalorder %s14, 1
    %p74 = por %p72, %p73
    %p75 = scmp.ne.s32.totalorder %s66, %s67
    %p76 = scmp.eq.s32.totalorder %s14, 0
    %p77 = por %p75, %p76
    %p78 = scmp.ne.s32.totalorder %s66, %s67
    %p79 = scmp.eq.s32.totalorder %s15, 1
    %p80 = por %p78, %p79
    %p82 = scmp.ne.s32.totalorder %s67, %s81
    %p83 = scmp.eq.s32.totalorder %s15, 0
    %p84 = por %p82, %p83
    %s85 = ssub.s32 %s9, %s16
    %p86 = scmp.eq.s32.totalorder %s85, 0
    %s88 = sadd.s32 %s87, 1
    %s89 = scalar_select %p86, %s87, %s88
    %p92 = pneg %p86
    %p93 = scmp.eq.s32.totalorder %s9, 1
    %p94 = por %p92, %p93
    %p95 = scmp.ne.s32.totalorder %s87, %s90
    %p96 = scmp.eq.s32.totalorder %s9, 0
    %p97 = por %p95, %p96
    %p98 = scmp.ne.s32.totalorder %s87, %s90
    %p99 = scmp.eq.s32.totalorder %s14, 1
    %p100 = por %p98, %p99
    %p101 = scmp.ne.s32.totalorder %s90, %s91
    %p102 = scmp.eq.s32.totalorder %s14, 0
    %p103 = por %p101, %p102
    %p104 = scmp.ne.s32.totalorder %s90, %s91
    %p105 = scmp.eq.s32.totalorder %s15, 1
    %p106 = por %p104, %p105
    %p108 = scmp.ne.s32.totalorder %s91, %s107
    %p109 = scmp.eq.s32.totalorder %s15, 0
    %p110 = por %p108, %p109
    %p111 = scmp.le.s32.totalorder 1, %s9
    %p112 = scmp.lt.s32.totalorder %s9, 3
    %p113 = pnand %p111, %p112
    %p114 = pneg %p113
    // Predicated region
    $region9: #{forward.8} parent=5 // pred_check
      _
    $region10: #{forward.8} parent=5 // pred_check_branch
      %116 = sbr.rel (%p113) target = $region12
    $region11: #{forward.8} parent=5 // pred_region
      %s117 = ssub.s32 %s9, 1
      // Predicated region
      $region13: #{forward.8} parent=11 // pred_check
        %p118 = pneg %p56
      $region14: #{forward.8} parent=11 // pred_check_branch
        %120 = sbr.rel (%p118) target = $region16
      $region15: #{forward.8} parent=11 // pred_region
        _
      $region16: #{forward.8} parent=11 // pred_fallthru
        _
      // Predicated region
      $region17: #{forward.8} parent=11 // pred_check
        %p121 = pneg %p77
      $region18: #{forward.8} parent=11 // pred_check_branch
        %123 = sbr.rel (%p121) target = $region20
      $region19: #{forward.8} parent=11 // pred_region
        _
      $region20: #{forward.8} parent=11 // pred_fallthru
        _
    $region12: #{forward.8} parent=5 // pred_fallthru
      _
    %p124 = scmp.lt.s32.totalorder %s9, 2
    // Predicated region
    $region21: #{forward.8} parent=5 // pred_check
      %p125 = pneg %p124
    $region22: #{forward.8} parent=5 // pred_check_branch
      %127 = sbr.rel (%p125) target = $region24
    $region23: #{forward.8} parent=5 // pred_region
      // Predicated region
      $region25: #{forward.8} parent=23 // pred_check
        %p128 = pneg %p29
      $region26: #{forward.8} parent=23 // pred_check_branch
        %130 = sbr.rel (%p128) target = $region28
      $region27: #{forward.8} parent=23 // pred_region
        %p131 = scmp.lt.s32.totalorder %s9, 1
        %s132 = scalar_select %p131, %s9, 1
        %s133 = smul.addr %s132, 16
        %s134 = smul.addr %s133, 8
        %s135 = scalar_lea.vmem %s0, %s134
      $region28: #{forward.8} parent=23 // pred_fallthru
        _
    $region24: #{forward.8} parent=5 // pred_fallthru
      _
    %p136 = scmp.le.s32.totalorder 1, %s9
    %p137 = scmp.lt.s32.totalorder %s9, 3
    %p138 = pnand %p136, %p137
    %p139 = pneg %p138
    // Predicated region
    $region29: #{forward.8} parent=5 // pred_check
      _
    $region30: #{forward.8} parent=5 // pred_check_branch
      %141 = sbr.rel (%p138) target = $region32
    $region31: #{forward.8} parent=5 // pred_region
      %s142 = ssub.s32 %s9, 1
      %p143 = scmp.lt.s32.totalorder %s14, 1
      %s144 = scalar_select %p143, %s14, 1
      %s145 = smul.addr %s144, 16
      %s146 = smul.addr %s145, 8
      %s147 = scalar_lea.vmem %s0, %s146
      %p148 = pneg %p35
      %p149 = pneg %p32
      %p150 = pneg %p56
      %p151 = pneg %p53
      %p152 = pneg %p77
      %p153 = pneg %p74
      %p154 = pneg %p103
      %p155 = pneg %p100
      %p156 = scmp.lt.s32.totalorder %s14, 1
      %s157 = scalar_select %p156, %s14, 1
      %s158 = smul.addr %s157, 13
      %s159 = smul.addr %s158, 8
      %s160 = scalar_lea.vmem %s3, %s159
      %p161 = scmp.lt.s32.totalorder %s14, 1
      %s162 = scalar_select %p161, %s14, 1
      %s163 = smul.addr %s162, 16
      %s164 = smul.addr %s163, 8
      %s165 = scalar_lea.vmem %s0, %s164
      %p166 = scmp.lt.s32.totalorder %s14, 1
      %s167 = scalar_select %p166, %s14, 1
      %s168 = smul.addr %s167, 13
      %s169 = smul.addr %s168, 8
      %s170 = scalar_lea.vmem %s3, %s169
      %v172 = vld [vmem:[%s165] sm:$0xff]
      %v173 = vld [vmem:[%s165 + $0x8] sm:$0xff]
      %v174 = vld [vmem:[%s165 + $0x10] sm:$0xff]
      %v175 = vld [vmem:[%s165 + $0x18] sm:$0xff]
      %v176 = vld [vmem:[%s165 + $0x20] sm:$0xff]
      %v177 = vld [vmem:[%s165 + $0x28] sm:$0xff]
      %v178 = vld [vmem:[%s165 + $0x30] sm:$0xff]
      %v179 = vld [vmem:[%s165 + $0x38] sm:$0xff]
      %v180 = vld [vmem:[%s165 + $0x40] sm:$0xff]
      %v181 = vld [vmem:[%s165 + $0x48] sm:$0xff]
      %v182 = vld [vmem:[%s165 + $0x50] sm:$0xff]
      %v183 = vld [vmem:[%s165 + $0x58] sm:$0xff]
      %v184 = vld [vmem:[%s165 + $0x60] sm:$0xf]
      %v185 = vpack.c.bf16 %v173, %v172
      %v186 = vpack.c.bf16 %v175, %v174
      %v187 = vpack.c.bf16 %v177, %v176
      %v188 = vpack.c.bf16 %v179, %v178
      %v189 = vpack.c.bf16 %v181, %v180
      %v190 = vpack.c.bf16 %v183, %v182
      %v191 = vpack.c.bf16 %v184, %v184
      %v192 = vld [vmem:[%s1] sm:$0xf]
      %v193 = vld [vmem:[%s165 + $0x1] sm:$0xff]
      %v194 = vld [vmem:[%s165 + $0x9] sm:$0xff]
      %v195 = vld [vmem:[%s165 + $0x11] sm:$0xff]
      %v196 = vld [vmem:[%s165 + $0x19] sm:$0xff]
      %v197 = vld [vmem:[%s165 + $0x21] sm:$0xff]
      %v198 = vld [vmem:[%s165 + $0x29] sm:$0xff]
      %v199 = vld [vmem:[%s165 + $0x31] sm:$0xff]
      %v200 = vld [vmem:[%s165 + $0x39] sm:$0xff]
      %v201 = vld [vmem:[%s165 + $0x41] sm:$0xff]
      %v202 = vld [vmem:[%s165 + $0x49] sm:$0xff]
      %v203 = vld [vmem:[%s165 + $0x51] sm:$0xff]
      %v204 = vld [vmem:[%s165 + $0x59] sm:$0xff]
      %v205 = vld [vmem:[%s165 + $0x61] sm:$0xf]
      %v206 = vpack.c.bf16 %v194, %v193
      %v207 = vpack.c.bf16 %v196, %v195
      %v208 = vpack.c.bf16 %v198, %v197
      %v209 = vpack.c.bf16 %v200, %v199
      %v210 = vpack.c.bf16 %v202, %v201
      %v211 = vpack.c.bf16 %v204, %v203
      %v212 = vpack.c.bf16 %v205, %v205
      %s213 = scalar_lea.vmem %s1, 4
      %v214 = vld [vmem:[%s213] sm:$0xf]
      %vm215 = vcmask 64512
      %v217 = vsel %vm215, %v206, 0
      %v220 = vsel %vm215, %v207, 0
      %v223 = vsel %vm215, %v208, 0
      %v226 = vsel %vm215, %v209, 0
      %v229 = vsel %vm215, %v210, 0
      %v232 = vsel %vm215, %v211, 0
      %v235 = vsel %vm215, %v212, 0
      %vm237 = vcmask 1043456
      %v239 = vsel %vm237, %v214, 0
      %241 = vmatprep.subr.bf16.mxu0 0
      %242 = vmatpush1.bf16.msra.mxu0 0
      %243 = vmatprep.subr.bf16.mxu0 0
      %244 = vmatpush1.bf16.msra.mxu0 0
      %245 = vmatprep.subr.bf16.mxu0 0
      %246 = vmatpush1.bf16.msra.mxu0 0
      %247 = vmatprep.subr.bf16.mxu0 0
      %248 = vmatpush1.bf16.msra.mxu0 0
      %249 = vmatprep.subr.bf16.mxu0 0
      %250 = vmatpush1.bf16.msra.mxu0 0
      %251 = vmatprep.subr.bf16.mxu0 0
      %252 = vmatpush1.bf16.msra.mxu0 0
      %253 = vmatprep.subr.bf16.mxu0 0
      %254 = vmatpush1.bf16.msra.mxu0 0
      %255 = vmatprep.subr.bf16.mxu0 0
      %256 = vmatpush1.bf16.msra.mxu0 %v239
      %257 = vmatprep.subr.bf16.mxu0 0
      %258 = vmatpush2.bf16.msra.mxu0 0
      %259 = vmatprep.subr.bf16.mxu0 0
      %260 = vmatpush2.bf16.msra.mxu0 0
      %261 = vmatprep.subr.bf16.mxu0 0
      %262 = vmatpush2.bf16.msra.mxu0 0
      %263 = vmatprep.subr.bf16.mxu0 0
      %264 = vmatpush2.bf16.msra.mxu0 0
      %265 = vmatprep.subr.bf16.mxu0 0
      %266 = vmatpush2.bf16.msra.mxu0 0
      %267 = vmatprep.subr.bf16.mxu0 0
      %268 = vmatpush2.bf16.msra.mxu0 0
      %269 = vmatprep.subr.bf16.mxu0 0
      %270 = vmatpush2.bf16.msra.mxu0 0
      %271 = vmatprep.subr.bf16.mxu0 0
      %272 = vmatpush2.bf16.msra.mxu0 0
      %273 = vmatprep.mubr.bf16.mxu0 0
      %274 = vmatmul.mubr.bf16.gmra.mxu0 %v217
      %v275 = vpop.f32.mrf.mxu0
      %v276 = vadd.f32 0.0, %v275
      %v277 = vpop.f32.mrf.mxu0
      %v278 = vpop.f32.mrf.mxu0
      %v279 = vadd.f32 0.0, %v278
      %v280 = vpop.f32.mrf.mxu0
      %281 = vmatprep.mubr.bf16.mxu0 0
      %282 = vmatmul.mubr.bf16.gmra.mxu0 %v220
      %v283 = vpop.f32.mrf.mxu0
      %v284 = vadd.f32 0.0, %v283
      %v285 = vpop.f32.mrf.mxu0
      %v286 = vpop.f32.mrf.mxu0
      %v287 = vadd.f32 0.0, %v286
      %v288 = vpop.f32.mrf.mxu0
      %289 = vmatprep.mubr.bf16.mxu0 0
      %290 = vmatmul.mubr.bf16.gmra.mxu0 %v223
      %v291 = vpop.f32.mrf.mxu0
      %v292 = vadd.f32 0.0, %v291
      %v293 = vpop.f32.mrf.mxu0
      %v294 = vpop.f32.mrf.mxu0
      %v295 = vadd.f32 0.0, %v294
      %v296 = vpop.f32.mrf.mxu0
      %297 = vmatprep.mubr.bf16.mxu0 0
      %298 = vmatmul.mubr.bf16.gmra.mxu0 %v226
      %v299 = vpop.f32.mrf.mxu0
      %v300 = vadd.f32 0.0, %v299
      %v301 = vpop.f32.mrf.mxu0
      %v302 = vpop.f32.mrf.mxu0
      %v303 = vadd.f32 0.0, %v302
      %v304 = vpop.f32.mrf.mxu0
      %305 = vmatprep.mubr.bf16.mxu0 0
      %306 = vmatmul.mubr.bf16.gmra.mxu0 %v229
      %v307 = vpop.f32.mrf.mxu0
      %v308 = vadd.f32 0.0, %v307
      %v309 = vpop.f32.mrf.mxu0
      %v310 = vpop.f32.mrf.mxu0
      %v311 = vadd.f32 0.0, %v310
      %v312 = vpop.f32.mrf.mxu0
      %313 = vmatprep.mubr.bf16.mxu0 0
      %314 = vmatmul.mubr.bf16.gmra.mxu0 %v232
      %v315 = vpop.f32.mrf.mxu0
      %v316 = vadd.f32 0.0, %v315
      %v317 = vpop.f32.mrf.mxu0
      %v318 = vpop.f32.mrf.mxu0
      %v319 = vadd.f32 0.0, %v318
      %v320 = vpop.f32.mrf.mxu0
      %321 = vmatprep.mubr.bf16.mxu0 0
      %322 = vmatmul.mubr.bf16.gmra.mxu0 %v235
      %v323 = vpop.f32.mrf.mxu0
      %v324 = vadd.f32 0.0, %v323
      %v325 = vpop.f32.mrf.mxu0
      %v326 = vpop.f32.mrf.mxu0
      %v327 = vpop.f32.mrf.mxu0
      %328 = vdwg.mxu0
      %v330 = vsel %vm215, %v185, 0
      %v333 = vsel %vm215, %v186, 0
      %v336 = vsel %vm215, %v187, 0
      %v339 = vsel %vm215, %v188, 0
      %v342 = vsel %vm215, %v189, 0
      %v345 = vsel %vm215, %v190, 0
      %v348 = vsel %vm215, %v191, 0
      %v351 = vsel %vm237, %v192, 0
      %353 = vmatprep.subr.bf16.mxu0 0
      %354 = vmatpush1.bf16.msra.mxu0 0
      %355 = vmatprep.subr.bf16.mxu0 0
      %356 = vmatpush1.bf16.msra.mxu0 0
      %357 = vmatprep.subr.bf16.mxu0 0
      %358 = vmatpush1.bf16.msra.mxu0 0
      %359 = vmatprep.subr.bf16.mxu0 0
      %360 = vmatpush1.bf16.msra.mxu0 0
      %361 = vmatprep.subr.bf16.mxu0 0
      %362 = vmatpush1.bf16.msra.mxu0 0
      %363 = vmatprep.subr.bf16.mxu0 0
      %364 = vmatpush1.bf16.msra.mxu0 0
      %365 = vmatprep.subr.bf16.mxu0 0
      %366 = vmatpush1.bf16.msra.mxu0 0
      %367 = vmatprep.subr.bf16.mxu0 0
      %368 = vmatpush1.bf16.msra.mxu0 %v351
      %369 = vmatprep.subr.bf16.mxu0 0
      %370 = vmatpush2.bf16.msra.mxu0 0
      %371 = vmatprep.subr.bf16.mxu0 0
      %372 = vmatpush2.bf16.msra.mxu0 0
      %373 = vmatprep.subr.bf16.mxu0 0
      %374 = vmatpush2.bf16.msra.mxu0 0
      %375 = vmatprep.subr.bf16.mxu0 0
      %376 = vmatpush2.bf16.msra.mxu0 0
      %377 = vmatprep.subr.bf16.mxu0 0
      %378 = vmatpush2.bf16.msra.mxu0 0
      %379 = vmatprep.subr.bf16.mxu0 0
      %380 = vmatpush2.bf16.msra.mxu0 0
      %381 = vmatprep.subr.bf16.mxu0 0
      %382 = vmatpush2.bf16.msra.mxu0 0
      %383 = vmatprep.subr.bf16.mxu0 0
      %384 = vmatpush2.bf16.msra.mxu0 0
      %385 = vmatprep.mubr.bf16.mxu0 0
      %386 = vmatmul.mubr.bf16.gmra.mxu0 %v330
      %v387 = vpop.f32.mrf.mxu0
      %v388 = vadd.f32 %v276, %v387
      %v389 = vpop.f32.mrf.mxu0
      %v390 = vpop.f32.mrf.mxu0
      %v391 = vadd.f32 %v279, %v390
      %v392 = vpop.f32.mrf.mxu0
      %393 = vmatprep.mubr.bf16.mxu0 0
      %394 = vmatmul.mubr.bf16.gmra.mxu0 %v333
      %v395 = vpop.f32.mrf.mxu0
      %v396 = vadd.f32 %v284, %v395
      %v397 = vpop.f32.mrf.mxu0
      %v398 = vpop.f32.mrf.mxu0
      %v399 = vadd.f32 %v287, %v398
      %v400 = vpop.f32.mrf.mxu0
      %401 = vmatprep.mubr.bf16.mxu0 0
      %402 = vmatmul.mubr.bf16.gmra.mxu0 %v336
      %v403 = vpop.f32.mrf.mxu0
      %v404 = vadd.f32 %v292, %v403
      %v405 = vpop.f32.mrf.mxu0
      %v406 = vpop.f32.mrf.mxu0
      %v407 = vadd.f32 %v295, %v406
      %v408 = vpop.f32.mrf.mxu0
      %409 = vmatprep.mubr.bf16.mxu0 0
      %410 = vmatmul.mubr.bf16.gmra.mxu0 %v339
      %v411 = vpop.f32.mrf.mxu0
      %v412 = vadd.f32 %v300, %v411
      %v413 = vpop.f32.mrf.mxu0
      %v414 = vpop.f32.mrf.mxu0
      %v415 = vadd.f32 %v303, %v414
      %v416 = vpop.f32.mrf.mxu0
      %417 = vmatprep.mubr.bf16.mxu0 0
      %418 = vmatmul.mubr.bf16.gmra.mxu0 %v342
      %v419 = vpop.f32.mrf.mxu0
      %v420 = vadd.f32 %v308, %v419
      %v421 = vpop.f32.mrf.mxu0
      %v422 = vpop.f32.mrf.mxu0
      %v423 = vadd.f32 %v311, %v422
      %v424 = vpop.f32.mrf.mxu0
      %425 = vmatprep.mubr.bf16.mxu0 0
      %426 = vmatmul.mubr.bf16.gmra.mxu0 %v345
      %v427 = vpop.f32.mrf.mxu0
      %v428 = vadd.f32 %v316, %v427
      %v429 = vpop.f32.mrf.mxu0
      %v430 = vpop.f32.mrf.mxu0
      %v431 = vadd.f32 %v319, %v430
      %v432 = vpop.f32.mrf.mxu0
      %433 = vmatprep.mubr.bf16.mxu0 0
      %434 = vmatmul.mubr.bf16.gmra.mxu0 %v348
      %v435 = vpop.f32.mrf.mxu0
      %v436 = vadd.f32 %v324, %v435
      %v437 = vpop.f32.mrf.mxu0
      %v438 = vpop.f32.mrf.mxu0
      %v439 = vpop.f32.mrf.mxu0
      %440 = vdwg.mxu0
      %v441 = vld [vmem:[%s165 + $0x2] sm:$0xff]
      %v442 = vld [vmem:[%s165 + $0xa] sm:$0xff]
      %v443 = vld [vmem:[%s165 + $0x12] sm:$0xff]
      %v444 = vld [vmem:[%s165 + $0x1a] sm:$0xff]
      %v445 = vld [vmem:[%s165 + $0x22] sm:$0xff]
      %v446 = vld [vmem:[%s165 + $0x2a] sm:$0xff]
      %v447 = vld [vmem:[%s165 + $0x32] sm:$0xff]
      %v448 = vld [vmem:[%s165 + $0x3a] sm:$0xff]
      %v449 = vld [vmem:[%s165 + $0x42] sm:$0xff]
      %v450 = vld [vmem:[%s165 + $0x4a] sm:$0xff]
      %v451 = vld [vmem:[%s165 + $0x52] sm:$0xff]
      %v452 = vld [vmem:[%s165 + $0x5a] sm:$0xff]
      %v453 = vld [vmem:[%s165 + $0x62] sm:$0xf]
      %v454 = vpack.c.bf16 %v442, %v441
      %v455 = vpack.c.bf16 %v444, %v443
      %v456 = vpack.c.bf16 %v446, %v445
      %v457 = vpack.c.bf16 %v448, %v447
      %v458 = vpack.c.bf16 %v450, %v449
      %v459 = vpack.c.bf16 %v452, %v451
      %v460 = vpack.c.bf16 %v453, %v453
      %s461 = scalar_lea.vmem %s1, 8
      %v462 = vld [vmem:[%s461] sm:$0xf]
      %v464 = vsel %vm215, %v454, 0
      %v467 = vsel %vm215, %v455, 0
      %v470 = vsel %vm215, %v456, 0
      %v473 = vsel %vm215, %v457, 0
      %v476 = vsel %vm215, %v458, 0
      %v479 = vsel %vm215, %v459, 0
      %v482 = vsel %vm215, %v460, 0
      %v485 = vsel %vm237, %v462, 0
      %487 = vmatprep.subr.bf16.mxu0 0
      %488 = vmatpush1.bf16.msra.mxu0 0
      %489 = vmatprep.subr.bf16.mxu0 0
      %490 = vmatpush1.bf16.msra.mxu0 0
      %491 = vmatprep.subr.bf16.mxu0 0
      %492 = vmatpush1.bf16.msra.mxu0 0
      %493 = vmatprep.subr.bf16.mxu0 0
      %494 = vmatpush1.bf16.msra.mxu0 0
      %495 = vmatprep.subr.bf16.mxu0 0
      %496 = vmatpush1.bf16.msra.mxu0 0
      %497 = vmatprep.subr.bf16.mxu0 0
      %498 = vmatpush1.bf16.msra.mxu0 0
      %499 = vmatprep.subr.bf16.mxu0 0
      %500 = vmatpush1.bf16.msra.mxu0 0
      %501 = vmatprep.subr.bf16.mxu0 0
      %502 = vmatpush1.bf16.msra.mxu0 %v485
      %503 = vmatprep.subr.bf16.mxu0 0
      %504 = vmatpush2.bf16.msra.mxu0 0
      %505 = vmatprep.subr.bf16.mxu0 0
      %506 = vmatpush2.bf16.msra.mxu0 0
      %507 = vmatprep.subr.bf16.mxu0 0
      %508 = vmatpush2.bf16.msra.mxu0 0
      %509 = vmatprep.subr.bf16.mxu0 0
      %510 = vmatpush2.bf16.msra.mxu0 0
      %511 = vmatprep.subr.bf16.mxu0 0
      %512 = vmatpush2.bf16.msra.mxu0 0
      %513 = vmatprep.subr.bf16.mxu0 0
      %514 = vmatpush2.bf16.msra.mxu0 0
      %515 = vmatprep.subr.bf16.mxu0 0
      %516 = vmatpush2.bf16.msra.mxu0 0
      %517 = vmatprep.subr.bf16.mxu0 0
      %518 = vmatpush2.bf16.msra.mxu0 0
      %519 = vmatprep.mubr.bf16.mxu0 0
      %520 = vmatmul.mubr.bf16.gmra.mxu0 %v464
      %v521 = vpop.f32.mrf.mxu0
      %v522 = vadd.f32 0.0, %v521
      %v523 = vpop.f32.mrf.mxu0
      %v524 = vpop.f32.mrf.mxu0
      %v525 = vadd.f32 0.0, %v524
      %v526 = vpop.f32.mrf.mxu0
      %527 = vmatprep.mubr.bf16.mxu0 0
      %528 = vmatmul.mubr.bf16.gmra.mxu0 %v467
      %v529 = vpop.f32.mrf.mxu0
      %v530 = vadd.f32 0.0, %v529
      %v531 = vpop.f32.mrf.mxu0
      %v532 = vpop.f32.mrf.mxu0
      %v533 = vadd.f32 0.0, %v532
      %v534 = vpop.f32.mrf.mxu0
      %535 = vmatprep.mubr.bf16.mxu0 0
      %536 = vmatmul.mubr.bf16.gmra.mxu0 %v470
      %v537 = vpop.f32.mrf.mxu0
      %v538 = vadd.f32 0.0, %v537
      %v539 = vpop.f32.mrf.mxu0
      %v540 = vpop.f32.mrf.mxu0
      %v541 = vadd.f32 0.0, %v540
      %v542 = vpop.f32.mrf.mxu0
      %543 = vmatprep.mubr.bf16.mxu0 0
      %544 = vmatmul.mubr.bf16.gmra.mxu0 %v473
      %v545 = vpop.f32.mrf.mxu0
      %v546 = vadd.f32 0.0, %v545
      %v547 = vpop.f32.mrf.mxu0
      %v548 = vpop.f32.mrf.mxu0
      %v549 = vadd.f32 0.0, %v548
      %v550 = vpop.f32.mrf.mxu0
      %551 = vmatprep.mubr.bf16.mxu0 0
      %552 = vmatmul.mubr.bf16.gmra.mxu0 %v476
      %v553 = vpop.f32.mrf.mxu0
      %v554 = vadd.f32 0.0, %v553
      %v555 = vpop.f32.mrf.mxu0
      %v556 = vpop.f32.mrf.mxu0
      %v557 = vadd.f32 0.0, %v556
      %v558 = vpop.f32.mrf.mxu0
      %559 = vmatprep.mubr.bf16.mxu0 0
      %560 = vmatmul.mubr.bf16.gmra.mxu0 %v479
      %v561 = vpop.f32.mrf.mxu0
      %v562 = vadd.f32 0.0, %v561
      %v563 = vpop.f32.mrf.mxu0
      %v564 = vpop.f32.mrf.mxu0
      %v565 = vadd.f32 0.0, %v564
      %v566 = vpop.f32.mrf.mxu0
      %567 = vmatprep.mubr.bf16.mxu0 0
      %568 = vmatmul.mubr.bf16.gmra.mxu0 %v482
      %v569 = vpop.f32.mrf.mxu0
      %v570 = vadd.f32 0.0, %v569
      %v571 = vpop.f32.mrf.mxu0
      %v572 = vpop.f32.mrf.mxu0
      %v573 = vpop.f32.mrf.mxu0
      %574 = vdwg.mxu0
      %v575 = vadd.f32 %v388, %v522
      %v576 = vadd.f32 %v391, %v525
      %v577 = vadd.f32 %v396, %v530
      %v578 = vadd.f32 %v399, %v533
      %v579 = vadd.f32 %v404, %v538
      %v580 = vadd.f32 %v407, %v541
      %v581 = vadd.f32 %v412, %v546
      %v582 = vadd.f32 %v415, %v549
      %v583 = vadd.f32 %v420, %v554
      %v584 = vadd.f32 %v423, %v557
      %v585 = vadd.f32 %v428, %v562
      %v586 = vadd.f32 %v431, %v565
      %v587 = vadd.f32 %v436, %v570
      %v588 = vld [vmem:[%s165 + $0xa] sm:$0xff]
      %v589 = vld [vmem:[%s165 + $0x12] sm:$0xff]
      %v590 = vld [vmem:[%s165 + $0x1a] sm:$0xff]
      %v591 = vld [vmem:[%s165 + $0x22] sm:$0xff]
      %v592 = vld [vmem:[%s165 + $0x2a] sm:$0xff]
      %v593 = vld [vmem:[%s165 + $0x32] sm:$0xff]
      %v594 = vld [vmem:[%s165 + $0x3a] sm:$0xff]
      %v595 = vld [vmem:[%s165 + $0x42] sm:$0xff]
      %v596 = vld [vmem:[%s165 + $0x4a] sm:$0xff]
      %v597 = vld [vmem:[%s165 + $0x52] sm:$0xff]
      %v598 = vld [vmem:[%s165 + $0x5a] sm:$0xff]
      %v599 = vld [vmem:[%s165 + $0x62] sm:$0xff]
      %v600 = vld [vmem:[%s165 + $0x6a] sm:$0xf]
      %v601 = vpack.c.bf16 %v589, %v588
      %v602 = vpack.c.bf16 %v591, %v590
      %v603 = vpack.c.bf16 %v593, %v592
      %v604 = vpack.c.bf16 %v595, %v594
      %v605 = vpack.c.bf16 %v597, %v596
      %v606 = vpack.c.bf16 %v599, %v598
      %v607 = vpack.c.bf16 %v600, %v600
      %s608 = scalar_lea.vmem %s1, 12
      %v609 = vld [vmem:[%s608] sm:$0xf]
      %v611 = vsel %vm215, %v601, 0
      %v614 = vsel %vm215, %v602, 0
      %v617 = vsel %vm215, %v603, 0
      %v620 = vsel %vm215, %v604, 0
      %v623 = vsel %vm215, %v605, 0
      %v626 = vsel %vm215, %v606, 0
      %v629 = vsel %vm215, %v607, 0
      %v632 = vsel %vm237, %v609, 0
      %634 = vmatprep.subr.bf16.mxu0 0
      %635 = vmatpush1.bf16.msra.mxu0 0
      %636 = vmatprep.subr.bf16.mxu0 0
      %637 = vmatpush1.bf16.msra.mxu0 0
      %638 = vmatprep.subr.bf16.mxu0 0
      %639 = vmatpush1.bf16.msra.mxu0 0
      %640 = vmatprep.subr.bf16.mxu0 0
      %641 = vmatpush1.bf16.msra.mxu0 0
      %642 = vmatprep.subr.bf16.mxu0 0
      %643 = vmatpush1.bf16.msra.mxu0 0
      %644 = vmatprep.subr.bf16.mxu0 0
      %645 = vmatpush1.bf16.msra.mxu0 0
      %646 = vmatprep.subr.bf16.mxu0 0
      %647 = vmatpush1.bf16.msra.mxu0 0
      %648 = vmatprep.subr.bf16.mxu0 0
      %649 = vmatpush1.bf16.msra.mxu0 %v632
      %650 = vmatprep.subr.bf16.mxu0 0
      %651 = vmatpush2.bf16.msra.mxu0 0
      %652 = vmatprep.subr.bf16.mxu0 0
      %653 = vmatpush2.bf16.msra.mxu0 0
      %654 = vmatprep.subr.bf16.mxu0 0
      %655 = vmatpush2.bf16.msra.mxu0 0
      %656 = vmatprep.subr.bf16.mxu0 0
      %657 = vmatpush2.bf16.msra.mxu0 0
      %658 = vmatprep.subr.bf16.mxu0 0
      %659 = vmatpush2.bf16.msra.mxu0 0
      %660 = vmatprep.subr.bf16.mxu0 0
      %661 = vmatpush2.bf16.msra.mxu0 0
      %662 = vmatprep.subr.bf16.mxu0 0
      %663 = vmatpush2.bf16.msra.mxu0 0
      %664 = vmatprep.subr.bf16.mxu0 0
      %665 = vmatpush2.bf16.msra.mxu0 0
      %666 = vmatprep.mubr.bf16.mxu0 0
      %667 = vmatmul.mubr.bf16.gmra.mxu0 %v611
      %v668 = vpop.f32.mrf.mxu0
      %v669 = vadd.f32 0.0, %v668
      %v670 = vpop.f32.mrf.mxu0
      %v671 = vpop.f32.mrf.mxu0
      %v672 = vadd.f32 0.0, %v671
      %v673 = vpop.f32.mrf.mxu0
      %674 = vmatprep.mubr.bf16.mxu0 0
      %675 = vmatmul.mubr.bf16.gmra.mxu0 %v614
      %v676 = vpop.f32.mrf.mxu0
      %v677 = vadd.f32 0.0, %v676
      %v678 = vpop.f32.mrf.mxu0
      %v679 = vpop.f32.mrf.mxu0
      %v680 = vadd.f32 0.0, %v679
      %v681 = vpop.f32.mrf.mxu0
      %682 = vmatprep.mubr.bf16.mxu0 0
      %683 = vmatmul.mubr.bf16.gmra.mxu0 %v617
      %v684 = vpop.f32.mrf.mxu0
      %v685 = vadd.f32 0.0, %v684
      %v686 = vpop.f32.mrf.mxu0
      %v687 = vpop.f32.mrf.mxu0
      %v688 = vadd.f32 0.0, %v687
      %v689 = vpop.f32.mrf.mxu0
      %690 = vmatprep.mubr.bf16.mxu0 0
      %691 = vmatmul.mubr.bf16.gmra.mxu0 %v620
      %v692 = vpop.f32.mrf.mxu0
      %v693 = vadd.f32 0.0, %v692
      %v694 = vpop.f32.mrf.mxu0
      %v695 = vpop.f32.mrf.mxu0
      %v696 = vadd.f32 0.0, %v695
      %v697 = vpop.f32.mrf.mxu0
      %698 = vmatprep.mubr.bf16.mxu0 0
      %699 = vmatmul.mubr.bf16.gmra.mxu0 %v623
      %v700 = vpop.f32.mrf.mxu0
      %v701 = vadd.f32 0.0, %v700
      %v702 = vpop.f32.mrf.mxu0
      %v703 = vpop.f32.mrf.mxu0
      %v704 = vadd.f32 0.0, %v703
      %v705 = vpop.f32.mrf.mxu0
      %706 = vmatprep.mubr.bf16.mxu0 0
      %707 = vmatmul.mubr.bf16.gmra.mxu0 %v626
      %v708 = vpop.f32.mrf.mxu0
      %v709 = vadd.f32 0.0, %v708
      %v710 = vpop.f32.mrf.mxu0
      %v711 = vpop.f32.mrf.mxu0
      %v712 = vadd.f32 0.0, %v711
      %v713 = vpop.f32.mrf.mxu0
      %714 = vmatprep.mubr.bf16.mxu0 0
      %715 = vmatmul.mubr.bf16.gmra.mxu0 %v629
      %v716 = vpop.f32.mrf.mxu0
      %v717 = vadd.f32 0.0, %v716
      %v718 = vpop.f32.mrf.mxu0
      %v719 = vpop.f32.mrf.mxu0
      %v720 = vpop.f32.mrf.mxu0
      %721 = vdwg.mxu0
      %v722 = vadd.f32 %v575, %v669
      %v723 = vadd.f32 %v576, %v672
      %v724 = vadd.f32 %v577, %v677
      %v725 = vadd.f32 %v578, %v680
      %v726 = vadd.f32 %v579, %v685
      %v727 = vadd.f32 %v580, %v688
      %v728 = vadd.f32 %v581, %v693
      %v729 = vadd.f32 %v582, %v696
      %v730 = vadd.f32 %v583, %v701
      %v731 = vadd.f32 %v584, %v704
      %v732 = vadd.f32 %v585, %v709
      %v733 = vadd.f32 %v586, %v712
      %v734 = vadd.f32 %v587, %v717
      %v735 = vld [vmem:[%s165 + $0xb] sm:$0xff]
      %v736 = vld [vmem:[%s165 + $0x13] sm:$0xff]
      %v737 = vld [vmem:[%s165 + $0x1b] sm:$0xff]
      %v738 = vld [vmem:[%s165 + $0x23] sm:$0xff]
      %v739 = vld [vmem:[%s165 + $0x2b] sm:$0xff]
      %v740 = vld [vmem:[%s165 + $0x33] sm:$0xff]
      %v741 = vld [vmem:[%s165 + $0x3b] sm:$0xff]
      %v742 = vld [vmem:[%s165 + $0x43] sm:$0xff]
      %v743 = vld [vmem:[%s165 + $0x4b] sm:$0xff]
      %v744 = vld [vmem:[%s165 + $0x53] sm:$0xff]
      %v745 = vld [vmem:[%s165 + $0x5b] sm:$0xff]
      %v746 = vld [vmem:[%s165 + $0x63] sm:$0xff]
      %v747 = vld [vmem:[%s165 + $0x6b] sm:$0xf]
      %v748 = vpack.c.bf16 %v736, %v735
      %v749 = vpack.c.bf16 %v738, %v737
      %v750 = vpack.c.bf16 %v740, %v739
      %v751 = vpack.c.bf16 %v742, %v741
      %v752 = vpack.c.bf16 %v744, %v743
      %v753 = vpack.c.bf16 %v746, %v745
      %v754 = vpack.c.bf16 %v747, %v747
      %s755 = scalar_lea.vmem %s1, 16
      %v756 = vld [vmem:[%s755] sm:$0xf]
      %v758 = vsel %vm215, %v748, 0
      %v761 = vsel %vm215, %v749, 0
      %v764 = vsel %vm215, %v750, 0
      %v767 = vsel %vm215, %v751, 0
      %v770 = vsel %vm215, %v752, 0
      %v773 = vsel %vm215, %v753, 0
      %v776 = vsel %vm215, %v754, 0
      %v779 = vsel %vm237, %v756, 0
      %781 = vmatprep.subr.bf16.mxu0 0
      %782 = vmatpush1.bf16.msra.mxu0 0
      %783 = vmatprep.subr.bf16.mxu0 0
      %784 = vmatpush1.bf16.msra.mxu0 0
      %785 = vmatprep.subr.bf16.mxu0 0
      %786 = vmatpush1.bf16.msra.mxu0 0
      %787 = vmatprep.subr.bf16.mxu0 0
      %788 = vmatpush1.bf16.msra.mxu0 0
      %789 = vmatprep.subr.bf16.mxu0 0
      %790 = vmatpush1.bf16.msra.mxu0 0
      %791 = vmatprep.subr.bf16.mxu0 0
      %792 = vmatpush1.bf16.msra.mxu0 0
      %793 = vmatprep.subr.bf16.mxu0 0
      %794 = vmatpush1.bf16.msra.mxu0 0
      %795 = vmatprep.subr.bf16.mxu0 0
      %796 = vmatpush1.bf16.msra.mxu0 %v779
      %797 = vmatprep.subr.bf16.mxu0 0
      %798 = vmatpush2.bf16.msra.mxu0 0
      %799 = vmatprep.subr.bf16.mxu0 0
      %800 = vmatpush2.bf16.msra.mxu0 0
      %801 = vmatprep.subr.bf16.mxu0 0
      %802 = vmatpush2.bf16.msra.mxu0 0
      %803 = vmatprep.subr.bf16.mxu0 0
      %804 = vmatpush2.bf16.msra.mxu0 0
      %805 = vmatprep.subr.bf16.mxu0 0
      %806 = vmatpush2.bf16.msra.mxu0 0
      %807 = vmatprep.subr.bf16.mxu0 0
      %808 = vmatpush2.bf16.msra.mxu0 0
      %809 = vmatprep.subr.bf16.mxu0 0
      %810 = vmatpush2.bf16.msra.mxu0 0
      %811 = vmatprep.subr.bf16.mxu0 0
      %812 = vmatpush2.bf16.msra.mxu0 0
      %813 = vmatprep.mubr.bf16.mxu0 0
      %814 = vmatmul.mubr.bf16.gmra.mxu0 %v758
      %v815 = vpop.f32.mrf.mxu0
      %v816 = vadd.f32 0.0, %v815
      %v817 = vpop.f32.mrf.mxu0
      %v818 = vpop.f32.mrf.mxu0
      %v819 = vadd.f32 0.0, %v818
      %v820 = vpop.f32.mrf.mxu0
      %821 = vmatprep.mubr.bf16.mxu0 0
      %822 = vmatmul.mubr.bf16.gmra.mxu0 %v761
      %v823 = vpop.f32.mrf.mxu0
      %v824 = vadd.f32 0.0, %v823
      %v825 = vpop.f32.mrf.mxu0
      %v826 = vpop.f32.mrf.mxu0
      %v827 = vadd.f32 0.0, %v826
      %v828 = vpop.f32.mrf.mxu0
      %829 = vmatprep.mubr.bf16.mxu0 0
      %830 = vmatmul.mubr.bf16.gmra.mxu0 %v764
      %v831 = vpop.f32.mrf.mxu0
      %v832 = vadd.f32 0.0, %v831
      %v833 = vpop.f32.mrf.mxu0
      %v834 = vpop.f32.mrf.mxu0
      %v835 = vadd.f32 0.0, %v834
      %v836 = vpop.f32.mrf.mxu0
      %837 = vmatprep.mubr.bf16.mxu0 0
      %838 = vmatmul.mubr.bf16.gmra.mxu0 %v767
      %v839 = vpop.f32.mrf.mxu0
      %v840 = vadd.f32 0.0, %v839
      %v841 = vpop.f32.mrf.mxu0
      %v842 = vpop.f32.mrf.mxu0
      %v843 = vadd.f32 0.0, %v842
      %v844 = vpop.f32.mrf.mxu0
      %845 = vmatprep.mubr.bf16.mxu0 0
      %846 = vmatmul.mubr.bf16.gmra.mxu0 %v770
      %v847 = vpop.f32.mrf.mxu0
      %v848 = vadd.f32 0.0, %v847
      %v849 = vpop.f32.mrf.mxu0
      %v850 = vpop.f32.mrf.mxu0
      %v851 = vadd.f32 0.0, %v850
      %v852 = vpop.f32.mrf.mxu0
      %853 = vmatprep.mubr.bf16.mxu0 0
      %854 = vmatmul.mubr.bf16.gmra.mxu0 %v773
      %v855 = vpop.f32.mrf.mxu0
      %v856 = vadd.f32 0.0, %v855
      %v857 = vpop.f32.mrf.mxu0
      %v858 = vpop.f32.mrf.mxu0
      %v859 = vadd.f32 0.0, %v858
      %v860 = vpop.f32.mrf.mxu0
      %861 = vmatprep.mubr.bf16.mxu0 0
      %862 = vmatmul.mubr.bf16.gmra.mxu0 %v776
      %v863 = vpop.f32.mrf.mxu0
      %v864 = vadd.f32 0.0, %v863
      %v865 = vpop.f32.mrf.mxu0
      %v866 = vpop.f32.mrf.mxu0
      %v867 = vpop.f32.mrf.mxu0
      %868 = vdwg.mxu0
      %v869 = vadd.f32 %v722, %v816
      %v870 = vadd.f32 %v723, %v819
      %v871 = vadd.f32 %v724, %v824
      %v872 = vadd.f32 %v725, %v827
      %v873 = vadd.f32 %v726, %v832
      %v874 = vadd.f32 %v727, %v835
      %v875 = vadd.f32 %v728, %v840
      %v876 = vadd.f32 %v729, %v843
      %v877 = vadd.f32 %v730, %v848
      %v878 = vadd.f32 %v731, %v851
      %v879 = vadd.f32 %v732, %v856
      %v880 = vadd.f32 %v733, %v859
      %v881 = vadd.f32 %v734, %v864
      %v882 = vld [vmem:[%s165 + $0xc] sm:$0xff]
      %v883 = vld [vmem:[%s165 + $0x14] sm:$0xff]
      %v884 = vld [vmem:[%s165 + $0x1c] sm:$0xff]
      %v885 = vld [vmem:[%s165 + $0x24] sm:$0xff]
      %v886 = vld [vmem:[%s165 + $0x2c] sm:$0xff]
      %v887 = vld [vmem:[%s165 + $0x34] sm:$0xff]
      %v888 = vld [vmem:[%s165 + $0x3c] sm:$0xff]
      %v889 = vld [vmem:[%s165 + $0x44] sm:$0xff]
      %v890 = vld [vmem:[%s165 + $0x4c] sm:$0xff]
      %v891 = vld [vmem:[%s165 + $0x54] sm:$0xff]
      %v892 = vld [vmem:[%s165 + $0x5c] sm:$0xff]
      %v893 = vld [vmem:[%s165 + $0x64] sm:$0xff]
      %v894 = vld [vmem:[%s165 + $0x6c] sm:$0xf]
      %v895 = vpack.c.bf16 %v883, %v882
      %v896 = vpack.c.bf16 %v885, %v884
      %v897 = vpack.c.bf16 %v887, %v886
      %v898 = vpack.c.bf16 %v889, %v888
      %v899 = vpack.c.bf16 %v891, %v890
      %v900 = vpack.c.bf16 %v893, %v892
      %v901 = vpack.c.bf16 %v894, %v894
      %s902 = scalar_lea.vmem %s1, 20
      %v903 = vld [vmem:[%s902] sm:$0xf]
      %v905 = vsel %vm215, %v895, 0
      %v908 = vsel %vm215, %v896, 0
      %v911 = vsel %vm215, %v897, 0
      %v914 = vsel %vm215, %v898, 0
      %v917 = vsel %vm215, %v899, 0
      %v920 = vsel %vm215, %v900, 0
      %v923 = vsel %vm215, %v901, 0
      %v926 = vsel %vm237, %v903, 0
      %928 = vmatprep.subr.bf16.mxu0 0
      %929 = vmatpush1.bf16.msra.mxu0 0
      %930 = vmatprep.subr.bf16.mxu0 0
      %931 = vmatpush1.bf16.msra.mxu0 0
      %932 = vmatprep.subr.bf16.mxu0 0
      %933 = vmatpush1.bf16.msra.mxu0 0
      %934 = vmatprep.subr.bf16.mxu0 0
      %935 = vmatpush1.bf16.msra.mxu0 0
      %936 = vmatprep.subr.bf16.mxu0 0
      %937 = vmatpush1.bf16.msra.mxu0 0
      %938 = vmatprep.subr.bf16.mxu0 0
      %939 = vmatpush1.bf16.msra.mxu0 0
      %940 = vmatprep.subr.bf16.mxu0 0
      %941 = vmatpush1.bf16.msra.mxu0 0
      %942 = vmatprep.subr.bf16.mxu0 0
      %943 = vmatpush1.bf16.msra.mxu0 %v926
      %944 = vmatprep.subr.bf16.mxu0 0
      %945 = vmatpush2.bf16.msra.mxu0 0
      %946 = vmatprep.subr.bf16.mxu0 0
      %947 = vmatpush2.bf16.msra.mxu0 0
      %948 = vmatprep.subr.bf16.mxu0 0
      %949 = vmatpush2.bf16.msra.mxu0 0
      %950 = vmatprep.subr.bf16.mxu0 0
      %951 = vmatpush2.bf16.msra.mxu0 0
      %952 = vmatprep.subr.bf16.mxu0 0
      %953 = vmatpush2.bf16.msra.mxu0 0
      %954 = vmatprep.subr.bf16.mxu0 0
      %955 = vmatpush2.bf16.msra.mxu0 0
      %956 = vmatprep.subr.bf16.mxu0 0
      %957 = vmatpush2.bf16.msra.mxu0 0
      %958 = vmatprep.subr.bf16.mxu0 0
      %959 = vmatpush2.bf16.msra.mxu0 0
      %960 = vmatprep.mubr.bf16.mxu0 0
      %961 = vmatmul.mubr.bf16.gmra.mxu0 %v905
      %v962 = vpop.f32.mrf.mxu0
      %v963 = vadd.f32 0.0, %v962
      %v964 = vpop.f32.mrf.mxu0
      %v965 = vpop.f32.mrf.mxu0
      %v966 = vadd.f32 0.0, %v965
      %v967 = vpop.f32.mrf.mxu0
      %968 = vmatprep.mubr.bf16.mxu0 0
      %969 = vmatmul.mubr.bf16.gmra.mxu0 %v908
      %v970 = vpop.f32.mrf.mxu0
      %v971 = vadd.f32 0.0, %v970
      %v972 = vpop.f32.mrf.mxu0
      %v973 = vpop.f32.mrf.mxu0
      %v974 = vadd.f32 0.0, %v973
      %v975 = vpop.f32.mrf.mxu0
      %976 = vmatprep.mubr.bf16.mxu0 0
      %977 = vmatmul.mubr.bf16.gmra.mxu0 %v911
      %v978 = vpop.f32.mrf.mxu0
      %v979 = vadd.f32 0.0, %v978
      %v980 = vpop.f32.mrf.mxu0
      %v981 = vpop.f32.mrf.mxu0
      %v982 = vadd.f32 0.0, %v981
      %v983 = vpop.f32.mrf.mxu0
      %984 = vmatprep.mubr.bf16.mxu0 0
      %985 = vmatmul.mubr.bf16.gmra.mxu0 %v914
      %v986 = vpop.f32.mrf.mxu0
      %v987 = vadd.f32 0.0, %v986
      %v988 = vpop.f32.mrf.mxu0
      %v989 = vpop.f32.mrf.mxu0
      %v990 = vadd.f32 0.0, %v989
      %v991 = vpop.f32.mrf.mxu0
      %992 = vmatprep.mubr.bf16.mxu0 0
      %993 = vmatmul.mubr.bf16.gmra.mxu0 %v917
      %v994 = vpop.f32.mrf.mxu0
      %v995 = vadd.f32 0.0, %v994
      %v996 = vpop.f32.mrf.mxu0
      %v997 = vpop.f32.mrf.mxu0
      %v998 = vadd.f32 0.0, %v997
      %v999 = vpop.f32.mrf.mxu0
      %1000 = vmatprep.mubr.bf16.mxu0 0
      %1001 = vmatmul.mubr.bf16.gmra.mxu0 %v920
      %v1002 = vpop.f32.mrf.mxu0
      %v1003 = vadd.f32 0.0, %v1002
      %v1004 = vpop.f32.mrf.mxu0
      %v1005 = vpop.f32.mrf.mxu0
      %v1006 = vadd.f32 0.0, %v1005
      %v1007 = vpop.f32.mrf.mxu0
      %1008 = vmatprep.mubr.bf16.mxu0 0
      %1009 = vmatmul.mubr.bf16.gmra.mxu0 %v923
      %v1010 = vpop.f32.mrf.mxu0
      %v1011 = vadd.f32 0.0, %v1010
      %v1012 = vpop.f32.mrf.mxu0
      %v1013 = vpop.f32.mrf.mxu0
      %v1014 = vpop.f32.mrf.mxu0
      %1015 = vdwg.mxu0
      %v1016 = vadd.f32 %v869, %v963
      %v1017 = vadd.f32 %v870, %v966
      %v1018 = vadd.f32 %v871, %v971
      %v1019 = vadd.f32 %v872, %v974
      %v1020 = vadd.f32 %v873, %v979
      %v1021 = vadd.f32 %v874, %v982
      %v1022 = vadd.f32 %v875, %v987
      %v1023 = vadd.f32 %v876, %v990
      %v1024 = vadd.f32 %v877, %v995
      %v1025 = vadd.f32 %v878, %v998
      %v1026 = vadd.f32 %v879, %v1003
      %v1027 = vadd.f32 %v880, %v1006
      %v1028 = vadd.f32 %v881, %v1011
      %v1029 = vld [vmem:[%s165 + $0x14] sm:$0xff]
      %v1030 = vld [vmem:[%s165 + $0x1c] sm:$0xff]
      %v1031 = vld [vmem:[%s165 + $0x24] sm:$0xff]
      %v1032 = vld [vmem:[%s165 + $0x2c] sm:$0xff]
      %v1033 = vld [vmem:[%s165 + $0x34] sm:$0xff]
      %v1034 = vld [vmem:[%s165 + $0x3c] sm:$0xff]
      %v1035 = vld [vmem:[%s165 + $0x44] sm:$0xff]
      %v1036 = vld [vmem:[%s165 + $0x4c] sm:$0xff]
      %v1037 = vld [vmem:[%s165 + $0x54] sm:$0xff]
      %v1038 = vld [vmem:[%s165 + $0x5c] sm:$0xff]
      %v1039 = vld [vmem:[%s165 + $0x64] sm:$0xff]
      %v1040 = vld [vmem:[%s165 + $0x6c] sm:$0xff]
      %v1041 = vld [vmem:[%s165 + $0x74] sm:$0xf]
      %v1042 = vpack.c.bf16 %v1030, %v1029
      %v1043 = vpack.c.bf16 %v1032, %v1031
      %v1044 = vpack.c.bf16 %v1034, %v1033
      %v1045 = vpack.c.bf16 %v1036, %v1035
      %v1046 = vpack.c.bf16 %v1038, %v1037
      %v1047 = vpack.c.bf16 %v1040, %v1039
      %v1048 = vpack.c.bf16 %v1041, %v1041
      %s1049 = scalar_lea.vmem %s1, 24
      %v1050 = vld [vmem:[%s1049] sm:$0xf]
      %v1052 = vsel %vm215, %v1042, 0
      %v1055 = vsel %vm215, %v1043, 0
      %v1058 = vsel %vm215, %v1044, 0
      %v1061 = vsel %vm215, %v1045, 0
      %v1064 = vsel %vm215, %v1046, 0
      %v1067 = vsel %vm215, %v1047, 0
      %v1070 = vsel %vm215, %v1048, 0
      %v1073 = vsel %vm237, %v1050, 0
      %1075 = vmatprep.subr.bf16.mxu0 0
      %1076 = vmatpush1.bf16.msra.mxu0 0
      %1077 = vmatprep.subr.bf16.mxu0 0
      %1078 = vmatpush1.bf16.msra.mxu0 0
      %1079 = vmatprep.subr.bf16.mxu0 0
      %1080 = vmatpush1.bf16.msra.mxu0 0
      %1081 = vmatprep.subr.bf16.mxu0 0
      %1082 = vmatpush1.bf16.msra.mxu0 0
      %1083 = vmatprep.subr.bf16.mxu0 0
      %1084 = vmatpush1.bf16.msra.mxu0 0
      %1085 = vmatprep.subr.bf16.mxu0 0
      %1086 = vmatpush1.bf16.msra.mxu0 0
      %1087 = vmatprep.subr.bf16.mxu0 0
      %1088 = vmatpush1.bf16.msra.mxu0 0
      %1089 = vmatprep.subr.bf16.mxu0 0
      %1090 = vmatpush1.bf16.msra.mxu0 %v1073
      %1091 = vmatprep.subr.bf16.mxu0 0
      %1092 = vmatpush2.bf16.msra.mxu0 0
      %1093 = vmatprep.subr.bf16.mxu0 0
      %1094 = vmatpush2.bf16.msra.mxu0 0
      %1095 = vmatprep.subr.bf16.mxu0 0
      %1096 = vmatpush2.bf16.msra.mxu0 0
      %1097 = vmatprep.subr.bf16.mxu0 0
      %1098 = vmatpush2.bf16.msra.mxu0 0
      %1099 = vmatprep.subr.bf16.mxu0 0
      %1100 = vmatpush2.bf16.msra.mxu0 0
      %1101 = vmatprep.subr.bf16.mxu0 0
      %1102 = vmatpush2.bf16.msra.mxu0 0
      %1103 = vmatprep.subr.bf16.mxu0 0
      %1104 = vmatpush2.bf16.msra.mxu0 0
      %1105 = vmatprep.subr.bf16.mxu0 0
      %1106 = vmatpush2.bf16.msra.mxu0 0
      %1107 = vmatprep.mubr.bf16.mxu0 0
      %1108 = vmatmul.mubr.bf16.gmra.mxu0 %v1052
      %v1109 = vpop.f32.mrf.mxu0
      %v1110 = vadd.f32 0.0, %v1109
      %v1111 = vpop.f32.mrf.mxu0
      %v1112 = vpop.f32.mrf.mxu0
      %v1113 = vadd.f32 0.0, %v1112
      %v1114 = vpop.f32.mrf.mxu0
      %1115 = vmatprep.mubr.bf16.mxu0 0
      %1116 = vmatmul.mubr.bf16.gmra.mxu0 %v1055
      %v1117 = vpop.f32.mrf.mxu0
      %v1118 = vadd.f32 0.0, %v1117
      %v1119 = vpop.f32.mrf.mxu0
      %v1120 = vpop.f32.mrf.mxu0
      %v1121 = vadd.f32 0.0, %v1120
      %v1122 = vpop.f32.mrf.mxu0
      %1123 = vmatprep.mubr.bf16.mxu0 0
      %1124 = vmatmul.mubr.bf16.gmra.mxu0 %v1058
      %v1125 = vpop.f32.mrf.mxu0
      %v1126 = vadd.f32 0.0, %v1125
      %v1127 = vpop.f32.mrf.mxu0
      %v1128 = vpop.f32.mrf.mxu0
      %v1129 = vadd.f32 0.0, %v1128
      %v1130 = vpop.f32.mrf.mxu0
      %1131 = vmatprep.mubr.bf16.mxu0 0
      %1132 = vmatmul.mubr.bf16.gmra.mxu0 %v1061
      %v1133 = vpop.f32.mrf.mxu0
      %v1134 = vadd.f32 0.0, %v1133
      %v1135 = vpop.f32.mrf.mxu0
      %v1136 = vpop.f32.mrf.mxu0
      %v1137 = vadd.f32 0.0, %v1136
      %v1138 = vpop.f32.mrf.mxu0
      %1139 = vmatprep.mubr.bf16.mxu0 0
      %1140 = vmatmul.mubr.bf16.gmra.mxu0 %v1064
      %v1141 = vpop.f32.mrf.mxu0
      %v1142 = vadd.f32 0.0, %v1141
      %v1143 = vpop.f32.mrf.mxu0
      %v1144 = vpop.f32.mrf.mxu0
      %v1145 = vadd.f32 0.0, %v1144
      %v1146 = vpop.f32.mrf.mxu0
      %1147 = vmatprep.mubr.bf16.mxu0 0
      %1148 = vmatmul.mubr.bf16.gmra.mxu0 %v1067
      %v1149 = vpop.f32.mrf.mxu0
      %v1150 = vadd.f32 0.0, %v1149
      %v1151 = vpop.f32.mrf.mxu0
      %v1152 = vpop.f32.mrf.mxu0
      %v1153 = vadd.f32 0.0, %v1152
      %v1154 = vpop.f32.mrf.mxu0
      %1155 = vmatprep.mubr.bf16.mxu0 0
      %1156 = vmatmul.mubr.bf16.gmra.mxu0 %v1070
      %v1157 = vpop.f32.mrf.mxu0
      %v1158 = vadd.f32 0.0, %v1157
      %v1159 = vpop.f32.mrf.mxu0
      %v1160 = vpop.f32.mrf.mxu0
      %v1161 = vpop.f32.mrf.mxu0
      %1162 = vdwg.mxu0
      %v1163 = vadd.f32 %v1016, %v1110
      %v1164 = vadd.f32 %v1017, %v1113
      %v1165 = vadd.f32 %v1018, %v1118
      %v1166 = vadd.f32 %v1019, %v1121
      %v1167 = vadd.f32 %v1020, %v1126
      %v1168 = vadd.f32 %v1021, %v1129
      %v1169 = vadd.f32 %v1022, %v1134
      %v1170 = vadd.f32 %v1023, %v1137
      %v1171 = vadd.f32 %v1024, %v1142
      %v1172 = vadd.f32 %v1025, %v1145
      %v1173 = vadd.f32 %v1026, %v1150
      %v1174 = vadd.f32 %v1027, %v1153
      %v1175 = vadd.f32 %v1028, %v1158
      %v1176 = vld [vmem:[%s165 + $0x15] sm:$0xff]
      %v1177 = vld [vmem:[%s165 + $0x1d] sm:$0xff]
      %v1178 = vld [vmem:[%s165 + $0x25] sm:$0xff]
      %v1179 = vld [vmem:[%s165 + $0x2d] sm:$0xff]
      %v1180 = vld [vmem:[%s165 + $0x35] sm:$0xff]
      %v1181 = vld [vmem:[%s165 + $0x3d] sm:$0xff]
      %v1182 = vld [vmem:[%s165 + $0x45] sm:$0xff]
      %v1183 = vld [vmem:[%s165 + $0x4d] sm:$0xff]
      %v1184 = vld [vmem:[%s165 + $0x55] sm:$0xff]
      %v1185 = vld [vmem:[%s165 + $0x5d] sm:$0xff]
      %v1186 = vld [vmem:[%s165 + $0x65] sm:$0xff]
      %v1187 = vld [vmem:[%s165 + $0x6d] sm:$0xff]
      %v1188 = vld [vmem:[%s165 + $0x75] sm:$0xf]
      %v1189 = vpack.c.bf16 %v1177, %v1176
      %v1190 = vpack.c.bf16 %v1179, %v1178
      %v1191 = vpack.c.bf16 %v1181, %v1180
      %v1192 = vpack.c.bf16 %v1183, %v1182
      %v1193 = vpack.c.bf16 %v1185, %v1184
      %v1194 = vpack.c.bf16 %v1187, %v1186
      %v1195 = vpack.c.bf16 %v1188, %v1188
      %s1196 = scalar_lea.vmem %s1, 28
      %v1197 = vld [vmem:[%s1196] sm:$0xf]
      %v1199 = vsel %vm215, %v1189, 0
      %v1202 = vsel %vm215, %v1190, 0
      %v1205 = vsel %vm215, %v1191, 0
      %v1208 = vsel %vm215, %v1192, 0
      %v1211 = vsel %vm215, %v1193, 0
      %v1214 = vsel %vm215, %v1194, 0
      %v1217 = vsel %vm215, %v1195, 0
      %v1220 = vsel %vm237, %v1197, 0
      %1222 = vmatprep.subr.bf16.mxu0 0
      %1223 = vmatpush1.bf16.msra.mxu0 0
      %1224 = vmatprep.subr.bf16.mxu0 0
      %1225 = vmatpush1.bf16.msra.mxu0 0
      %1226 = vmatprep.subr.bf16.mxu0 0
      %1227 = vmatpush1.bf16.msra.mxu0 0
      %1228 = vmatprep.subr.bf16.mxu0 0
      %1229 = vmatpush1.bf16.msra.mxu0 0
      %1230 = vmatprep.subr.bf16.mxu0 0
      %1231 = vmatpush1.bf16.msra.mxu0 0
      %1232 = vmatprep.subr.bf16.mxu0 0
      %1233 = vmatpush1.bf16.msra.mxu0 0
      %1234 = vmatprep.subr.bf16.mxu0 0
      %1235 = vmatpush1.bf16.msra.mxu0 0
      %1236 = vmatprep.subr.bf16.mxu0 0
      %1237 = vmatpush1.bf16.msra.mxu0 %v1220
      %1238 = vmatprep.subr.bf16.mxu0 0
      %1239 = vmatpush2.bf16.msra.mxu0 0
      %1240 = vmatprep.subr.bf16.mxu0 0
      %1241 = vmatpush2.bf16.msra.mxu0 0
      %1242 = vmatprep.subr.bf16.mxu0 0
      %1243 = vmatpush2.bf16.msra.mxu0 0
      %1244 = vmatprep.subr.bf16.mxu0 0
      %1245 = vmatpush2.bf16.msra.mxu0 0
      %1246 = vmatprep.subr.bf16.mxu0 0
      %1247 = vmatpush2.bf16.msra.mxu0 0
      %1248 = vmatprep.subr.bf16.mxu0 0
      %1249 = vmatpush2.bf16.msra.mxu0 0
      %1250 = vmatprep.subr.bf16.mxu0 0
      %1251 = vmatpush2.bf16.msra.mxu0 0
      %1252 = vmatprep.subr.bf16.mxu0 0
      %1253 = vmatpush2.bf16.msra.mxu0 0
      %1254 = vmatprep.mubr.bf16.mxu0 0
      %1255 = vmatmul.mubr.bf16.gmra.mxu0 %v1199
      %v1256 = vpop.f32.mrf.mxu0
      %v1257 = vadd.f32 0.0, %v1256
      %v1258 = vpop.f32.mrf.mxu0
      %v1259 = vpop.f32.mrf.mxu0
      %v1260 = vadd.f32 0.0, %v1259
      %v1261 = vpop.f32.mrf.mxu0
      %1262 = vmatprep.mubr.bf16.mxu0 0
      %1263 = vmatmul.mubr.bf16.gmra.mxu0 %v1202
      %v1264 = vpop.f32.mrf.mxu0
      %v1265 = vadd.f32 0.0, %v1264
      %v1266 = vpop.f32.mrf.mxu0
      %v1267 = vpop.f32.mrf.mxu0
      %v1268 = vadd.f32 0.0, %v1267
      %v1269 = vpop.f32.mrf.mxu0
      %1270 = vmatprep.mubr.bf16.mxu0 0
      %1271 = vmatmul.mubr.bf16.gmra.mxu0 %v1205
      %v1272 = vpop.f32.mrf.mxu0
      %v1273 = vadd.f32 0.0, %v1272
      %v1274 = vpop.f32.mrf.mxu0
      %v1275 = vpop.f32.mrf.mxu0
      %v1276 = vadd.f32 0.0, %v1275
      %v1277 = vpop.f32.mrf.mxu0
      %1278 = vmatprep.mubr.bf16.mxu0 0
      %1279 = vmatmul.mubr.bf16.gmra.mxu0 %v1208
      %v1280 = vpop.f32.mrf.mxu0
      %v1281 = vadd.f32 0.0, %v1280
      %v1282 = vpop.f32.mrf.mxu0
      %v1283 = vpop.f32.mrf.mxu0
      %v1284 = vadd.f32 0.0, %v1283
      %v1285 = vpop.f32.mrf.mxu0
      %1286 = vmatprep.mubr.bf16.mxu0 0
      %1287 = vmatmul.mubr.bf16.gmra.mxu0 %v1211
      %v1288 = vpop.f32.mrf.mxu0
      %v1289 = vadd.f32 0.0, %v1288
      %v1290 = vpop.f32.mrf.mxu0
      %v1291 = vpop.f32.mrf.mxu0
      %v1292 = vadd.f32 0.0, %v1291
      %v1293 = vpop.f32.mrf.mxu0
      %1294 = vmatprep.mubr.bf16.mxu0 0
      %1295 = vmatmul.mubr.bf16.gmra.mxu0 %v1214
      %v1296 = vpop.f32.mrf.mxu0
      %v1297 = vadd.f32 0.0, %v1296
      %v1298 = vpop.f32.mrf.mxu0
      %v1299 = vpop.f32.mrf.mxu0
      %v1300 = vadd.f32 0.0, %v1299
      %v1301 = vpop.f32.mrf.mxu0
      %1302 = vmatprep.mubr.bf16.mxu0 0
      %1303 = vmatmul.mubr.bf16.gmra.mxu0 %v1217
      %v1304 = vpop.f32.mrf.mxu0
      %v1305 = vadd.f32 0.0, %v1304
      %v1306 = vpop.f32.mrf.mxu0
      %v1307 = vpop.f32.mrf.mxu0
      %v1308 = vpop.f32.mrf.mxu0
      %1309 = vdwg.mxu0
      %v1310 = vadd.f32 %v1163, %v1257
      %v1311 = vadd.f32 %v1164, %v1260
      %v1312 = vadd.f32 %v1165, %v1265
      %v1313 = vadd.f32 %v1166, %v1268
      %v1314 = vadd.f32 %v1167, %v1273
      %v1315 = vadd.f32 %v1168, %v1276
      %v1316 = vadd.f32 %v1169, %v1281
      %v1317 = vadd.f32 %v1170, %v1284
      %v1318 = vadd.f32 %v1171, %v1289
      %v1319 = vadd.f32 %v1172, %v1292
      %v1320 = vadd.f32 %v1173, %v1297
      %v1321 = vadd.f32 %v1174, %v1300
      %v1322 = vadd.f32 %v1175, %v1305
      %v1323 = vld [vmem:[%s165 + $0x16] sm:$0xff]
      %v1324 = vld [vmem:[%s165 + $0x1e] sm:$0xff]
      %v1325 = vld [vmem:[%s165 + $0x26] sm:$0xff]
      %v1326 = vld [vmem:[%s165 + $0x2e] sm:$0xff]
      %v1327 = vld [vmem:[%s165 + $0x36] sm:$0xff]
      %v1328 = vld [vmem:[%s165 + $0x3e] sm:$0xff]
      %v1329 = vld [vmem:[%s165 + $0x46] sm:$0xff]
      %v1330 = vld [vmem:[%s165 + $0x4e] sm:$0xff]
      %v1331 = vld [vmem:[%s165 + $0x56] sm:$0xff]
      %v1332 = vld [vmem:[%s165 + $0x5e] sm:$0xff]
      %v1333 = vld [vmem:[%s165 + $0x66] sm:$0xff]
      %v1334 = vld [vmem:[%s165 + $0x6e] sm:$0xff]
      %v1335 = vld [vmem:[%s165 + $0x76] sm:$0xf]
      %v1336 = vpack.c.bf16 %v1324, %v1323
      %v1337 = vpack.c.bf16 %v1326, %v1325
      %v1338 = vpack.c.bf16 %v1328, %v1327
      %v1339 = vpack.c.bf16 %v1330, %v1329
      %v1340 = vpack.c.bf16 %v1332, %v1331
      %v1341 = vpack.c.bf16 %v1334, %v1333
      %v1342 = vpack.c.bf16 %v1335, %v1335
      %s1343 = scalar_lea.vmem %s1, 32
      %v1344 = vld [vmem:[%s1343] sm:$0xf]
      %v1346 = vsel %vm215, %v1336, 0
      %v1349 = vsel %vm215, %v1337, 0
      %v1352 = vsel %vm215, %v1338, 0
      %v1355 = vsel %vm215, %v1339, 0
      %v1358 = vsel %vm215, %v1340, 0
      %v1361 = vsel %vm215, %v1341, 0
      %v1364 = vsel %vm215, %v1342, 0
      %v1367 = vsel %vm237, %v1344, 0
      %1369 = vmatprep.subr.bf16.mxu0 0
      %1370 = vmatpush1.bf16.msra.mxu0 0
      %1371 = vmatprep.subr.bf16.mxu0 0
      %1372 = vmatpush1.bf16.msra.mxu0 0
      %1373 = vmatprep.subr.bf16.mxu0 0
      %1374 = vmatpush1.bf16.msra.mxu0 0
      %1375 = vmatprep.subr.bf16.mxu0 0
      %1376 = vmatpush1.bf16.msra.mxu0 0
      %1377 = vmatprep.subr.bf16.mxu0 0
      %1378 = vmatpush1.bf16.msra.mxu0 0
      %1379 = vmatprep.subr.bf16.mxu0 0
      %1380 = vmatpush1.bf16.msra.mxu0 0
      %1381 = vmatprep.subr.bf16.mxu0 0
      %1382 = vmatpush1.bf16.msra.mxu0 0
      %1383 = vmatprep.subr.bf16.mxu0 0
      %1384 = vmatpush1.bf16.msra.mxu0 %v1367
      %1385 = vmatprep.subr.bf16.mxu0 0
      %1386 = vmatpush2.bf16.msra.mxu0 0
      %1387 = vmatprep.subr.bf16.mxu0 0
      %1388 = vmatpush2.bf16.msra.mxu0 0
      %1389 = vmatprep.subr.bf16.mxu0 0
      %1390 = vmatpush2.bf16.msra.mxu0 0
      %1391 = vmatprep.subr.bf16.mxu0 0
      %1392 = vmatpush2.bf16.msra.mxu0 0
      %1393 = vmatprep.subr.bf16.mxu0 0
      %1394 = vmatpush2.bf16.msra.mxu0 0
      %1395 = vmatprep.subr.bf16.mxu0 0
      %1396 = vmatpush2.bf16.msra.mxu0 0
      %1397 = vmatprep.subr.bf16.mxu0 0
      %1398 = vmatpush2.bf16.msra.mxu0 0
      %1399 = vmatprep.subr.bf16.mxu0 0
      %1400 = vmatpush2.bf16.msra.mxu0 0
      %1401 = vmatprep.mubr.bf16.mxu0 0
      %1402 = vmatmul.mubr.bf16.gmra.mxu0 %v1346
      %v1403 = vpop.f32.mrf.mxu0
      %v1404 = vadd.f32 0.0, %v1403
      %v1405 = vpop.f32.mrf.mxu0
      %v1406 = vpop.f32.mrf.mxu0
      %v1407 = vadd.f32 0.0, %v1406
      %v1408 = vpop.f32.mrf.mxu0
      %1409 = vmatprep.mubr.bf16.mxu0 0
      %1410 = vmatmul.mubr.bf16.gmra.mxu0 %v1349
      %v1411 = vpop.f32.mrf.mxu0
      %v1412 = vadd.f32 0.0, %v1411
      %v1413 = vpop.f32.mrf.mxu0
      %v1414 = vpop.f32.mrf.mxu0
      %v1415 = vadd.f32 0.0, %v1414
      %v1416 = vpop.f32.mrf.mxu0
      %1417 = vmatprep.mubr.bf16.mxu0 0
      %1418 = vmatmul.mubr.bf16.gmra.mxu0 %v1352
      %v1419 = vpop.f32.mrf.mxu0
      %v1420 = vadd.f32 0.0, %v1419
      %v1421 = vpop.f32.mrf.mxu0
      %v1422 = vpop.f32.mrf.mxu0
      %v1423 = vadd.f32 0.0, %v1422
      %v1424 = vpop.f32.mrf.mxu0
      %1425 = vmatprep.mubr.bf16.mxu0 0
      %1426 = vmatmul.mubr.bf16.gmra.mxu0 %v1355
      %v1427 = vpop.f32.mrf.mxu0
      %v1428 = vadd.f32 0.0, %v1427
      %v1429 = vpop.f32.mrf.mxu0
      %v1430 = vpop.f32.mrf.mxu0
      %v1431 = vadd.f32 0.0, %v1430
      %v1432 = vpop.f32.mrf.mxu0
      %1433 = vmatprep.mubr.bf16.mxu0 0
      %1434 = vmatmul.mubr.bf16.gmra.mxu0 %v1358
      %v1435 = vpop.f32.mrf.mxu0
      %v1436 = vadd.f32 0.0, %v1435
      %v1437 = vpop.f32.mrf.mxu0
      %v1438 = vpop.f32.mrf.mxu0
      %v1439 = vadd.f32 0.0, %v1438
      %v1440 = vpop.f32.mrf.mxu0
      %1441 = vmatprep.mubr.bf16.mxu0 0
      %1442 = vmatmul.mubr.bf16.gmra.mxu0 %v1361
      %v1443 = vpop.f32.mrf.mxu0
      %v1444 = vadd.f32 0.0, %v1443
      %v1445 = vpop.f32.mrf.mxu0
      %v1446 = vpop.f32.mrf.mxu0
      %v1447 = vadd.f32 0.0, %v1446
      %v1448 = vpop.f32.mrf.mxu0
      %1449 = vmatprep.mubr.bf16.mxu0 0
      %1450 = vmatmul.mubr.bf16.gmra.mxu0 %v1364
      %v1451 = vpop.f32.mrf.mxu0
      %v1452 = vadd.f32 0.0, %v1451
      %v1453 = vpop.f32.mrf.mxu0
      %v1454 = vpop.f32.mrf.mxu0
      %v1455 = vpop.f32.mrf.mxu0
      %1456 = vdwg.mxu0
      %v1457 = vadd.f32 %v1310, %v1404
      %v1458 = vadd.f32 %v1311, %v1407
      %v1459 = vadd.f32 %v1312, %v1412
      %v1460 = vadd.f32 %v1313, %v1415
      %v1461 = vadd.f32 %v1314, %v1420
      %v1462 = vadd.f32 %v1315, %v1423
      %v1463 = vadd.f32 %v1316, %v1428
      %v1464 = vadd.f32 %v1317, %v1431
      %v1465 = vadd.f32 %v1318, %v1436
      %v1466 = vadd.f32 %v1319, %v1439
      %v1467 = vadd.f32 %v1320, %v1444
      %v1468 = vadd.f32 %v1321, %v1447
      %v1469 = vadd.f32 %v1322, %v1452
      %v1470 = vld [vmem:[%s2] sm:$0x1]
      %v1472 = vlaneseq
      %v1473 = vshrl.u32 %v1472, 7
      %v1474 = vsub.s32 0, %v1473
      %v1475 = vrot.slane %v1470, %v1474
      %v1477 = vadd.f32 %v1457, %v1475
      %v1478 = vadd.f32 %v1458, %v1475
      %v1479 = vadd.f32 %v1459, %v1475
      %v1480 = vadd.f32 %v1460, %v1475
      %v1481 = vadd.f32 %v1461, %v1475
      %v1482 = vadd.f32 %v1462, %v1475
      %v1483 = vadd.f32 %v1463, %v1475
      %v1484 = vadd.f32 %v1464, %v1475
      %v1485 = vadd.f32 %v1465, %v1475
      %v1486 = vadd.f32 %v1466, %v1475
      %v1487 = vadd.f32 %v1467, %v1475
      %v1488 = vadd.f32 %v1468, %v1475
      %v1489 = vadd.f32 %v1469, %v1475
      %vm1490 = vcmp.gt.f32.partialorder %v1477, 0.0
      %vm1491 = vcmp.gt.f32.partialorder %v1478, 0.0
      %vm1492 = vcmp.gt.f32.partialorder %v1479, 0.0
      %vm1493 = vcmp.gt.f32.partialorder %v1480, 0.0
      %vm1494 = vcmp.gt.f32.partialorder %v1481, 0.0
      %vm1495 = vcmp.gt.f32.partialorder %v1482, 0.0
      %vm1496 = vcmp.gt.f32.partialorder %v1483, 0.0
      %vm1497 = vcmp.gt.f32.partialorder %v1484, 0.0
      %vm1498 = vcmp.gt.f32.partialorder %v1485, 0.0
      %vm1499 = vcmp.gt.f32.partialorder %v1486, 0.0
      %vm1500 = vcmp.gt.f32.partialorder %v1487, 0.0
      %vm1501 = vcmp.gt.f32.partialorder %v1488, 0.0
      %vm1502 = vcmp.gt.f32.partialorder %v1489, 0.0
      %v1503 = vmul.f32 %v1477, 0.1
      %v1504 = vmul.f32 %v1478, 0.1
      %v1505 = vmul.f32 %v1479, 0.1
      %v1506 = vmul.f32 %v1480, 0.1
      %v1507 = vmul.f32 %v1481, 0.1
      %v1508 = vmul.f32 %v1482, 0.1
      %v1509 = vmul.f32 %v1483, 0.1
      %v1510 = vmul.f32 %v1484, 0.1
      %v1511 = vmul.f32 %v1485, 0.1
      %v1512 = vmul.f32 %v1486, 0.1
      %v1513 = vmul.f32 %v1487, 0.1
      %v1514 = vmul.f32 %v1488, 0.1
      %v1515 = vmul.f32 %v1489, 0.1
      %v1516 = vsel %vm1490, %v1477, %v1503
      %v1517 = vsel %vm1491, %v1478, %v1504
      %v1518 = vsel %vm1492, %v1479, %v1505
      %v1519 = vsel %vm1493, %v1480, %v1506
      %v1520 = vsel %vm1494, %v1481, %v1507
      %v1521 = vsel %vm1495, %v1482, %v1508
      %v1522 = vsel %vm1496, %v1483, %v1509
      %v1523 = vsel %vm1497, %v1484, %v1510
      %v1524 = vsel %vm1498, %v1485, %v1511
      %v1525 = vsel %vm1499, %v1486, %v1512
      %v1526 = vsel %vm1500, %v1487, %v1513
      %v1527 = vsel %vm1501, %v1488, %v1514
      %v1528 = vsel %vm1502, %v1489, %v1515
      %vm1529 = vcmask 130048
      %1530 = vst.msk [vmem:[%s170] sm:$0xff] %vm1529, %v1516
      %1531 = vst.msk [vmem:[%s170 + $0x8] sm:$0xff] %vm1529, %v1517
      %1532 = vst.msk [vmem:[%s170 + $0x10] sm:$0xff] %vm1529, %v1518
      %1533 = vst.msk [vmem:[%s170 + $0x18] sm:$0xff] %vm1529, %v1519
      %1534 = vst.msk [vmem:[%s170 + $0x20] sm:$0xff] %vm1529, %v1520
      %1535 = vst.msk [vmem:[%s170 + $0x28] sm:$0xff] %vm1529, %v1521
      %1536 = vst.msk [vmem:[%s170 + $0x30] sm:$0xff] %vm1529, %v1522
      %1537 = vst.msk [vmem:[%s170 + $0x38] sm:$0xff] %vm1529, %v1523
      %1538 = vst.msk [vmem:[%s170 + $0x40] sm:$0xff] %vm1529, %v1524
      %1539 = vst.msk [vmem:[%s170 + $0x48] sm:$0xff] %vm1529, %v1525
      %1540 = vst.msk [vmem:[%s170 + $0x50] sm:$0xff] %vm1529, %v1526
      %1541 = vst.msk [vmem:[%s170 + $0x58] sm:$0xff] %vm1529, %v1527
      %vm1542 = vcmask 125952
      %1543 = vst.msk [vmem:[%s170 + $0x60] sm:$0xf] %vm1542, %v1528
      %p1544 = scmp.lt.s32.totalorder %s14, 1
      %s1545 = scalar_select %p1544, %s14, 1
      %s1546 = smul.addr %s1545, 13
      %s1547 = smul.addr %s1546, 8
      %s1548 = scalar_lea.vmem %s3, %s1547
      // Predicated region
      $region33: #{forward.8} parent=31 // pred_check
        %p1549 = pneg %p100
      $region34: #{forward.8} parent=31 // pred_check_branch
        %1551 = sbr.rel (%p1549) target = $region36
      $region35: #{forward.8} parent=31 // pred_region
        _
      $region36: #{forward.8} parent=31 // pred_fallthru
        _
    $region32: #{forward.8} parent=5 // pred_fallthru
      _
    %p1552 = scmp.le.s32.totalorder 2, %s9
    // Predicated region
    $region37: #{forward.8} parent=5 // pred_check
      %p1553 = pneg %p1552
    $region38: #{forward.8} parent=5 // pred_check_branch
      %1555 = sbr.rel (%p1553) target = $region40
    $region39: #{forward.8} parent=5 // pred_region
      %s1556 = ssub.s32 %s9, 2
      // Predicated region
      $region41: #{forward.8} parent=39 // pred_check
        %p1557 = pneg %p106
      $region42: #{forward.8} parent=39 // pred_check_branch
        %1559 = sbr.rel (%p1557) target = $region44
      $region43: #{forward.8} parent=39 // pred_region
        %p1560 = scmp.lt.s32.totalorder %s15, 1
        %s1561 = scalar_select %p1560, %s15, 1
        %s1562 = smul.addr %s1561, 13
        %s1563 = smul.addr %s1562, 8
        %s1564 = scalar_lea.vmem %s3, %s1563
      $region44: #{forward.8} parent=39 // pred_fallthru
        _
    $region40: #{forward.8} parent=5 // pred_fallthru
      _
  $region6: #{forward.8} parent=0 // loop_footer
    %s13 = sadd.s32 1, %s9
  $region7: #{forward.8} parent=0 // loop_footer_branch
    %8 = sbr.rel target = $region3
  $region8: #{forward.8} parent=0 // loop_exit
    _

// kernel: forward.9
$region0: #{forward.9}
  #allocation0 [shape = 'u32[]', space=smem, size = 0x4, offset = 0x4, fixed_abs, tag = 'smem constant byte address 0x4 - core index']
  #allocation1 [shape = 'u32[144,128]{1,0:T(1,128)}', space=vmem, size = 0x12000, scoped, tag = 'internal scratch']
  %s0 = inlined_call_operand.vmem [shape: f32[2,50,16], index: 0, kind: input, shape index: {}]
  %s1 = inlined_call_operand.vmem [shape: bf16[9,16,32], index: 1, kind: input, shape index: {}]
  %s2 = inlined_call_operand.vmem [shape: f32[1,32], index: 2, kind: input, shape index: {}]
  %s3 = inlined_call_operand.vmem [shape: f32[2,36,32], index: 3, kind: output, shape index: {}]
  %s4 = sld [smem:[#allocation0]]
  $region45: #{forward.9} parent=0
    _
  %s6 = ssub.s32 1, %s4
  %s7 = scalar_select 0, %s6, %s4
  loop: start=0, step=1, limit=4
  $region2: #{forward.9} parent=0 // loop_pre_header
    _
  $region3: #{forward.9} parent=0 // loop_header
    %s9 = sphi 0, %s13
    %p10 = scmp.ge.s32.totalorder %s9, 4
    %s19 = sphi 0, %s21
    %s22 = sphi 0, %s19
    %s23 = sphi 0, %s22
    %s39 = sphi 0, %s23
    %s43 = sphi 0, %s43
    %s45 = sphi 0, %s43
    %s46 = sphi 0, %s45
    %s60 = sphi 0, %s46
    %s64 = sphi 0, %s64
    %s66 = sphi 0, %s64
    %s67 = sphi 0, %s66
    %s81 = sphi 0, %s67
    %s87 = sphi 0, %s89
    %s90 = sphi 0, %s87
    %s91 = sphi 0, %s90
    %s107 = sphi 0, %s91
  $region4: #{forward.9} parent=0 // loop_header_branch
    %12 = sbr.rel (%p10) target = $region8
  $region5: #{forward.9} parent=0 // loop_body
    %s14 = ssub.s32 %s9, 1
    %s15 = ssub.s32 %s9, 2
    %s16 = sadd.s32 %s9, 1
    %s17 = ssub.s32 %s9, %s16
    %p18 = scmp.eq.s32.totalorder %s17, 0
    %s20 = sadd.s32 %s19, 1
    %s21 = scalar_select %p18, %s19, %s20
    %p24 = pneg %p18
    %p25 = scmp.eq.s32.totalorder %s9, 1
    %p26 = por %p24, %p25
    %p27 = scmp.ne.s32.totalorder %s19, %s22
    %p28 = scmp.eq.s32.totalorder %s9, 0
    %p29 = por %p27, %p28
    %p30 = scmp.ne.s32.totalorder %s19, %s22
    %p31 = scmp.eq.s32.totalorder %s14, 1
    %p32 = por %p30, %p31
    %p33 = scmp.ne.s32.totalorder %s22, %s23
    %p34 = scmp.eq.s32.totalorder %s14, 0
    %p35 = por %p33, %p34
    %p36 = scmp.ne.s32.totalorder %s22, %s23
    %p37 = scmp.eq.s32.totalorder %s15, 1
    %p38 = por %p36, %p37
    %p40 = scmp.ne.s32.totalorder %s23, %s39
    %p41 = scmp.eq.s32.totalorder %s15, 0
    %p42 = por %p40, %p41
    %s44 = sadd.s32 %s43, 1
    %p47 = scmp.eq.s32.totalorder %s9, 1
    %p48 = scmp.ne.s32.totalorder %s43, %s45
    %p49 = scmp.eq.s32.totalorder %s9, 0
    %p50 = por %p48, %p49
    %p51 = scmp.ne.s32.totalorder %s43, %s45
    %p52 = scmp.eq.s32.totalorder %s14, 1
    %p53 = por %p51, %p52
    %p54 = scmp.ne.s32.totalorder %s45, %s46
    %p55 = scmp.eq.s32.totalorder %s14, 0
    %p56 = por %p54, %p55
    %p57 = scmp.ne.s32.totalorder %s45, %s46
    %p58 = scmp.eq.s32.totalorder %s15, 1
    %p59 = por %p57, %p58
    %p61 = scmp.ne.s32.totalorder %s46, %s60
    %p62 = scmp.eq.s32.totalorder %s15, 0
    %p63 = por %p61, %p62
    %s65 = sadd.s32 %s64, 1
    %p68 = scmp.eq.s32.totalorder %s9, 1
    %p69 = scmp.ne.s32.totalorder %s64, %s66
    %p70 = scmp.eq.s32.totalorder %s9, 0
    %p71 = por %p69, %p70
    %p72 = scmp.ne.s32.totalorder %s64, %s66
    %p73 = scmp.eq.s32.totalorder %s14, 1
    %p74 = por %p72, %p73
    %p75 = scmp.ne.s32.totalorder %s66, %s67
    %p76 = scmp.eq.s32.totalorder %s14, 0
    %p77 = por %p75, %p76
    %p78 = scmp.ne.s32.totalorder %s66, %s67
    %p79 = scmp.eq.s32.totalorder %s15, 1
    %p80 = por %p78, %p79
    %p82 = scmp.ne.s32.totalorder %s67, %s81
    %p83 = scmp.eq.s32.totalorder %s15, 0
    %p84 = por %p82, %p83
    %s85 = ssub.s32 %s9, %s16
    %p86 = scmp.eq.s32.totalorder %s85, 0
    %s88 = sadd.s32 %s87, 1
    %s89 = scalar_select %p86, %s87, %s88
    %p92 = pneg %p86
    %p93 = scmp.eq.s32.totalorder %s9, 1
    %p94 = por %p92, %p93
    %p95 = scmp.ne.s32.totalorder %s87, %s90
    %p96 = scmp.eq.s32.totalorder %s9, 0
    %p97 = por %p95, %p96
    %p98 = scmp.ne.s32.totalorder %s87, %s90
    %p99 = scmp.eq.s32.totalorder %s14, 1
    %p100 = por %p98, %p99
    %p101 = scmp.ne.s32.totalorder %s90, %s91
    %p102 = scmp.eq.s32.totalorder %s14, 0
    %p103 = por %p101, %p102
    %p104 = scmp.ne.s32.totalorder %s90, %s91
    %p105 = scmp.eq.s32.totalorder %s15, 1
    %p106 = por %p104, %p105
    %p108 = scmp.ne.s32.totalorder %s91, %s107
    %p109 = scmp.eq.s32.totalorder %s15, 0
    %p110 = por %p108, %p109
    %p111 = scmp.le.s32.totalorder 1, %s9
    %p112 = scmp.lt.s32.totalorder %s9, 3
    %p113 = pnand %p111, %p112
    %p114 = pneg %p113
    // Predicated region
    $region9: #{forward.9} parent=5 // pred_check
      _
    $region10: #{forward.9} parent=5 // pred_check_branch
      %116 = sbr.rel (%p113) target = $region12
    $region11: #{forward.9} parent=5 // pred_region
      %s117 = ssub.s32 %s9, 1
      // Predicated region
      $region13: #{forward.9} parent=11 // pred_check
        %p118 = pneg %p56
      $region14: #{forward.9} parent=11 // pred_check_branch
        %120 = sbr.rel (%p118) target = $region16
      $region15: #{forward.9} parent=11 // pred_region
        _
      $region16: #{forward.9} parent=11 // pred_fallthru
        _
      // Predicated region
      $region17: #{forward.9} parent=11 // pred_check
        %p121 = pneg %p77
      $region18: #{forward.9} parent=11 // pred_check_branch
        %123 = sbr.rel (%p121) target = $region20
      $region19: #{forward.9} parent=11 // pred_region
        _
      $region20: #{forward.9} parent=11 // pred_fallthru
        _
    $region12: #{forward.9} parent=5 // pred_fallthru
      _
    %p124 = scmp.lt.s32.totalorder %s9, 2
    // Predicated region
    $region21: #{forward.9} parent=5 // pred_check
      %p125 = pneg %p124
    $region22: #{forward.9} parent=5 // pred_check_branch
      %127 = sbr.rel (%p125) target = $region24
    $region23: #{forward.9} parent=5 // pred_region
      // Predicated region
      $region25: #{forward.9} parent=23 // pred_check
        %p128 = pneg %p29
      $region26: #{forward.9} parent=23 // pred_check_branch
        %130 = sbr.rel (%p128) target = $region28
      $region27: #{forward.9} parent=23 // pred_region
        %p131 = scmp.lt.s32.totalorder %s9, 1
        %s132 = scalar_select %p131, %s9, 1
        %s133 = smul.addr %s132, 7
        %s134 = smul.addr %s133, 8
        %s135 = scalar_lea.vmem %s0, %s134
      $region28: #{forward.9} parent=23 // pred_fallthru
        _
    $region24: #{forward.9} parent=5 // pred_fallthru
      _
    %p136 = scmp.le.s32.totalorder 1, %s9
    %p137 = scmp.lt.s32.totalorder %s9, 3
    %p138 = pnand %p136, %p137
    %p139 = pneg %p138
    // Predicated region
    $region29: #{forward.9} parent=5 // pred_check
      _
    $region30: #{forward.9} parent=5 // pred_check_branch
      %141 = sbr.rel (%p138) target = $region32
    $region31: #{forward.9} parent=5 // pred_region
      %s142 = ssub.s32 %s9, 1
      %p143 = scmp.lt.s32.totalorder %s14, 1
      %s144 = scalar_select %p143, %s14, 1
      %s145 = smul.addr %s144, 7
      %s146 = smul.addr %s145, 8
      %s147 = scalar_lea.vmem %s0, %s146
      %p148 = pneg %p35
      %p149 = pneg %p32
      %p150 = pneg %p56
      %p151 = pneg %p53
      %p152 = pneg %p77
      %p153 = pneg %p74
      %p154 = pneg %p103
      %p155 = pneg %p100
      %p156 = scmp.lt.s32.totalorder %s14, 1
      %s157 = scalar_select %p156, %s14, 1
      %s158 = smul.addr %s157, 5
      %s159 = smul.addr %s158, 8
      %s160 = scalar_lea.vmem %s3, %s159
      %p161 = scmp.lt.s32.totalorder %s14, 1
      %s162 = scalar_select %p161, %s14, 1
      %s163 = smul.addr %s162, 7
      %s164 = smul.addr %s163, 8
      %s165 = scalar_lea.vmem %s0, %s164
      %p166 = scmp.lt.s32.totalorder %s14, 1
      %s167 = scalar_select %p166, %s14, 1
      %s168 = smul.addr %s167, 5
      %s169 = smul.addr %s168, 8
      %s170 = scalar_lea.vmem %s3, %s169
      %v172 = vld [vmem:[%s165] sm:$0xff]
      %v173 = vld [vmem:[%s165 + $0x8] sm:$0xff]
      %v174 = vld [vmem:[%s165 + $0x10] sm:$0xff]
      %v175 = vld [vmem:[%s165 + $0x18] sm:$0xff]
      %v176 = vld [vmem:[%s165 + $0x20] sm:$0xf]
      %v177 = vpack.c.bf16 %v173, %v172
      %v178 = vpack.c.bf16 %v175, %v174
      %v179 = vpack.c.bf16 %v176, %v176
      %v180 = vld [vmem:[%s1] sm:$0xf]
      %v181 = vld [vmem:[%s1 + $0x4] sm:$0xf]
      %v182 = vld [vmem:[%s165 + $0x1] sm:$0xff]
      %v183 = vld [vmem:[%s165 + $0x9] sm:$0xff]
      %v184 = vld [vmem:[%s165 + $0x11] sm:$0xff]
      %v185 = vld [vmem:[%s165 + $0x19] sm:$0xff]
      %v186 = vld [vmem:[%s165 + $0x21] sm:$0xf]
      %v187 = vpack.c.bf16 %v183, %v182
      %v188 = vpack.c.bf16 %v185, %v184
      %v189 = vpack.c.bf16 %v186, %v186
      %s190 = scalar_lea.vmem %s1, 8
      %v191 = vld [vmem:[%s190] sm:$0xf]
      %v192 = vld [vmem:[%s190 + $0x4] sm:$0xf]
      %v195 = vunpack.c.l.b16 %v191
      %v196 = vunpack.c.l.b16 %v192
      %v197 = vpack.c.b16 %v196, %v195
      %vm199 = vcmask 130048
      %v201 = vsel %vm199, %v187, 0
      %v204 = vsel %vm199, %v188, 0
      %v207 = vsel %vm199, %v189, 0
      %209 = vmatprep.subr.bf16.mxu0 0
      %210 = vmatpush1.bf16.msra.mxu0 0
      %211 = vmatprep.subr.bf16.mxu0 0
      %212 = vmatpush1.bf16.msra.mxu0 0
      %213 = vmatprep.subr.bf16.mxu0 0
      %214 = vmatpush1.bf16.msra.mxu0 0
      %215 = vmatprep.subr.bf16.mxu0 0
      %216 = vmatpush1.bf16.msra.mxu0 0
      %217 = vmatprep.subr.bf16.mxu0 0
      %218 = vmatpush1.bf16.msra.mxu0 0
      %219 = vmatprep.subr.bf16.mxu0 0
      %220 = vmatpush1.bf16.msra.mxu0 0
      %221 = vmatprep.subr.bf16.mxu0 0
      %222 = vmatpush1.bf16.msra.mxu0 0
      %223 = vmatprep.subr.bf16.mxu0 0
      %224 = vmatpush1.bf16.msra.mxu0 %v197
      %225 = vmatprep.subr.bf16.mxu0 0
      %226 = vmatpush2.bf16.msra.mxu0 0
      %227 = vmatprep.subr.bf16.mxu0 0
      %228 = vmatpush2.bf16.msra.mxu0 0
      %229 = vmatprep.subr.bf16.mxu0 0
      %230 = vmatpush2.bf16.msra.mxu0 0
      %231 = vmatprep.subr.bf16.mxu0 0
      %232 = vmatpush2.bf16.msra.mxu0 0
      %233 = vmatprep.subr.bf16.mxu0 0
      %234 = vmatpush2.bf16.msra.mxu0 0
      %235 = vmatprep.subr.bf16.mxu0 0
      %236 = vmatpush2.bf16.msra.mxu0 0
      %237 = vmatprep.subr.bf16.mxu0 0
      %238 = vmatpush2.bf16.msra.mxu0 0
      %239 = vmatprep.subr.bf16.mxu0 0
      %240 = vmatpush2.bf16.msra.mxu0 0
      %241 = vmatprep.mubr.bf16.mxu0 0
      %242 = vmatmul.mubr.bf16.gmra.mxu0 %v201
      %v243 = vpop.f32.mrf.mxu0
      %v244 = vadd.f32 0.0, %v243
      %v245 = vpop.f32.mrf.mxu0
      %v246 = vpop.f32.mrf.mxu0
      %v247 = vadd.f32 0.0, %v246
      %v248 = vpop.f32.mrf.mxu0
      %249 = vmatprep.mubr.bf16.mxu0 0
      %250 = vmatmul.mubr.bf16.gmra.mxu0 %v204
      %v251 = vpop.f32.mrf.mxu0
      %v252 = vadd.f32 0.0, %v251
      %v253 = vpop.f32.mrf.mxu0
      %v254 = vpop.f32.mrf.mxu0
      %v255 = vadd.f32 0.0, %v254
      %v256 = vpop.f32.mrf.mxu0
      %257 = vmatprep.mubr.bf16.mxu0 0
      %258 = vmatmul.mubr.bf16.gmra.mxu0 %v207
      %v259 = vpop.f32.mrf.mxu0
      %v260 = vadd.f32 0.0, %v259
      %v261 = vpop.f32.mrf.mxu0
      %v262 = vpop.f32.mrf.mxu0
      %v263 = vpop.f32.mrf.mxu0
      %264 = vdwg.mxu0
      %v267 = vunpack.c.l.b16 %v180
      %v268 = vunpack.c.l.b16 %v181
      %v269 = vpack.c.b16 %v268, %v267
      %v272 = vsel %vm199, %v177, 0
      %v275 = vsel %vm199, %v178, 0
      %v278 = vsel %vm199, %v179, 0
      %280 = vmatprep.subr.bf16.mxu0 0
      %281 = vmatpush1.bf16.msra.mxu0 0
      %282 = vmatprep.subr.bf16.mxu0 0
      %283 = vmatpush1.bf16.msra.mxu0 0
      %284 = vmatprep.subr.bf16.mxu0 0
      %285 = vmatpush1.bf16.msra.mxu0 0
      %286 = vmatprep.subr.bf16.mxu0 0
      %287 = vmatpush1.bf16.msra.mxu0 0
      %288 = vmatprep.subr.bf16.mxu0 0
      %289 = vmatpush1.bf16.msra.mxu0 0
      %290 = vmatprep.subr.bf16.mxu0 0
      %291 = vmatpush1.bf16.msra.mxu0 0
      %292 = vmatprep.subr.bf16.mxu0 0
      %293 = vmatpush1.bf16.msra.mxu0 0
      %294 = vmatprep.subr.bf16.mxu0 0
      %295 = vmatpush1.bf16.msra.mxu0 %v269
      %296 = vmatprep.subr.bf16.mxu0 0
      %297 = vmatpush2.bf16.msra.mxu0 0
      %298 = vmatprep.subr.bf16.mxu0 0
      %299 = vmatpush2.bf16.msra.mxu0 0
      %300 = vmatprep.subr.bf16.mxu0 0
      %301 = vmatpush2.bf16.msra.mxu0 0
      %302 = vmatprep.subr.bf16.mxu0 0
      %303 = vmatpush2.bf16.msra.mxu0 0
      %304 = vmatprep.subr.bf16.mxu0 0
      %305 = vmatpush2.bf16.msra.mxu0 0
      %306 = vmatprep.subr.bf16.mxu0 0
      %307 = vmatpush2.bf16.msra.mxu0 0
      %308 = vmatprep.subr.bf16.mxu0 0
      %309 = vmatpush2.bf16.msra.mxu0 0
      %310 = vmatprep.subr.bf16.mxu0 0
      %311 = vmatpush2.bf16.msra.mxu0 0
      %312 = vmatprep.mubr.bf16.mxu0 0
      %313 = vmatmul.mubr.bf16.gmra.mxu0 %v272
      %v314 = vpop.f32.mrf.mxu0
      %v315 = vadd.f32 %v244, %v314
      %v316 = vpop.f32.mrf.mxu0
      %v317 = vpop.f32.mrf.mxu0
      %v318 = vadd.f32 %v247, %v317
      %v319 = vpop.f32.mrf.mxu0
      %320 = vmatprep.mubr.bf16.mxu0 0
      %321 = vmatmul.mubr.bf16.gmra.mxu0 %v275
      %v322 = vpop.f32.mrf.mxu0
      %v323 = vadd.f32 %v252, %v322
      %v324 = vpop.f32.mrf.mxu0
      %v325 = vpop.f32.mrf.mxu0
      %v326 = vadd.f32 %v255, %v325
      %v327 = vpop.f32.mrf.mxu0
      %328 = vmatprep.mubr.bf16.mxu0 0
      %329 = vmatmul.mubr.bf16.gmra.mxu0 %v278
      %v330 = vpop.f32.mrf.mxu0
      %v331 = vadd.f32 %v260, %v330
      %v332 = vpop.f32.mrf.mxu0
      %v333 = vpop.f32.mrf.mxu0
      %v334 = vpop.f32.mrf.mxu0
      %335 = vdwg.mxu0
      %v336 = vld [vmem:[%s165 + $0x2] sm:$0xff]
      %v337 = vld [vmem:[%s165 + $0xa] sm:$0xff]
      %v338 = vld [vmem:[%s165 + $0x12] sm:$0xff]
      %v339 = vld [vmem:[%s165 + $0x1a] sm:$0xff]
      %v340 = vld [vmem:[%s165 + $0x22] sm:$0xf]
      %v341 = vpack.c.bf16 %v337, %v336
      %v342 = vpack.c.bf16 %v339, %v338
      %v343 = vpack.c.bf16 %v340, %v340
      %s344 = scalar_lea.vmem %s1, 16
      %v345 = vld [vmem:[%s344] sm:$0xf]
      %v346 = vld [vmem:[%s344 + $0x4] sm:$0xf]
      %v349 = vunpack.c.l.b16 %v345
      %v350 = vunpack.c.l.b16 %v346
      %v351 = vpack.c.b16 %v350, %v349
      %v354 = vsel %vm199, %v341, 0
      %v357 = vsel %vm199, %v342, 0
      %v360 = vsel %vm199, %v343, 0
      %362 = vmatprep.subr.bf16.mxu0 0
      %363 = vmatpush1.bf16.msra.mxu0 0
      %364 = vmatprep.subr.bf16.mxu0 0
      %365 = vmatpush1.bf16.msra.mxu0 0
      %366 = vmatprep.subr.bf16.mxu0 0
      %367 = vmatpush1.bf16.msra.mxu0 0
      %368 = vmatprep.subr.bf16.mxu0 0
      %369 = vmatpush1.bf16.msra.mxu0 0
      %370 = vmatprep.subr.bf16.mxu0 0
      %371 = vmatpush1.bf16.msra.mxu0 0
      %372 = vmatprep.subr.bf16.mxu0 0
      %373 = vmatpush1.bf16.msra.mxu0 0
      %374 = vmatprep.subr.bf16.mxu0 0
      %375 = vmatpush1.bf16.msra.mxu0 0
      %376 = vmatprep.subr.bf16.mxu0 0
      %377 = vmatpush1.bf16.msra.mxu0 %v351
      %378 = vmatprep.subr.bf16.mxu0 0
      %379 = vmatpush2.bf16.msra.mxu0 0
      %380 = vmatprep.subr.bf16.mxu0 0
      %381 = vmatpush2.bf16.msra.mxu0 0
      %382 = vmatprep.subr.bf16.mxu0 0
      %383 = vmatpush2.bf16.msra.mxu0 0
      %384 = vmatprep.subr.bf16.mxu0 0
      %385 = vmatpush2.bf16.msra.mxu0 0
      %386 = vmatprep.subr.bf16.mxu0 0
      %387 = vmatpush2.bf16.msra.mxu0 0
      %388 = vmatprep.subr.bf16.mxu0 0
      %389 = vmatpush2.bf16.msra.mxu0 0
      %390 = vmatprep.subr.bf16.mxu0 0
      %391 = vmatpush2.bf16.msra.mxu0 0
      %392 = vmatprep.subr.bf16.mxu0 0
      %393 = vmatpush2.bf16.msra.mxu0 0
      %394 = vmatprep.mubr.bf16.mxu0 0
      %395 = vmatmul.mubr.bf16.gmra.mxu0 %v354
      %v396 = vpop.f32.mrf.mxu0
      %v397 = vadd.f32 0.0, %v396
      %v398 = vpop.f32.mrf.mxu0
      %v399 = vpop.f32.mrf.mxu0
      %v400 = vadd.f32 0.0, %v399
      %v401 = vpop.f32.mrf.mxu0
      %402 = vmatprep.mubr.bf16.mxu0 0
      %403 = vmatmul.mubr.bf16.gmra.mxu0 %v357
      %v404 = vpop.f32.mrf.mxu0
      %v405 = vadd.f32 0.0, %v404
      %v406 = vpop.f32.mrf.mxu0
      %v407 = vpop.f32.mrf.mxu0
      %v408 = vadd.f32 0.0, %v407
      %v409 = vpop.f32.mrf.mxu0
      %410 = vmatprep.mubr.bf16.mxu0 0
      %411 = vmatmul.mubr.bf16.gmra.mxu0 %v360
      %v412 = vpop.f32.mrf.mxu0
      %v413 = vadd.f32 0.0, %v412
      %v414 = vpop.f32.mrf.mxu0
      %v415 = vpop.f32.mrf.mxu0
      %v416 = vpop.f32.mrf.mxu0
      %417 = vdwg.mxu0
      %v418 = vadd.f32 %v315, %v397
      %v419 = vadd.f32 %v318, %v400
      %v420 = vadd.f32 %v323, %v405
      %v421 = vadd.f32 %v326, %v408
      %v422 = vadd.f32 %v331, %v413
      %v423 = vld [vmem:[%s165 + $0x6] sm:$0xff]
      %v424 = vld [vmem:[%s165 + $0xe] sm:$0xff]
      %v425 = vld [vmem:[%s165 + $0x16] sm:$0xff]
      %v426 = vld [vmem:[%s165 + $0x1e] sm:$0xff]
      %v427 = vld [vmem:[%s165 + $0x26] sm:$0xf]
      %v428 = vpack.c.bf16 %v424, %v423
      %v429 = vpack.c.bf16 %v426, %v425
      %v430 = vpack.c.bf16 %v427, %v427
      %s431 = scalar_lea.vmem %s1, 24
      %v432 = vld [vmem:[%s431] sm:$0xf]
      %v433 = vld [vmem:[%s431 + $0x4] sm:$0xf]
      %v436 = vunpack.c.l.b16 %v432
      %v437 = vunpack.c.l.b16 %v433
      %v438 = vpack.c.b16 %v437, %v436
      %v441 = vsel %vm199, %v428, 0
      %v444 = vsel %vm199, %v429, 0
      %v447 = vsel %vm199, %v430, 0
      %449 = vmatprep.subr.bf16.mxu0 0
      %450 = vmatpush1.bf16.msra.mxu0 0
      %451 = vmatprep.subr.bf16.mxu0 0
      %452 = vmatpush1.bf16.msra.mxu0 0
      %453 = vmatprep.subr.bf16.mxu0 0
      %454 = vmatpush1.bf16.msra.mxu0 0
      %455 = vmatprep.subr.bf16.mxu0 0
      %456 = vmatpush1.bf16.msra.mxu0 0
      %457 = vmatprep.subr.bf16.mxu0 0
      %458 = vmatpush1.bf16.msra.mxu0 0
      %459 = vmatprep.subr.bf16.mxu0 0
      %460 = vmatpush1.bf16.msra.mxu0 0
      %461 = vmatprep.subr.bf16.mxu0 0
      %462 = vmatpush1.bf16.msra.mxu0 0
      %463 = vmatprep.subr.bf16.mxu0 0
      %464 = vmatpush1.bf16.msra.mxu0 %v438
      %465 = vmatprep.subr.bf16.mxu0 0
      %466 = vmatpush2.bf16.msra.mxu0 0
      %467 = vmatprep.subr.bf16.mxu0 0
      %468 = vmatpush2.bf16.msra.mxu0 0
      %469 = vmatprep.subr.bf16.mxu0 0
      %470 = vmatpush2.bf16.msra.mxu0 0
      %471 = vmatprep.subr.bf16.mxu0 0
      %472 = vmatpush2.bf16.msra.mxu0 0
      %473 = vmatprep.subr.bf16.mxu0 0
      %474 = vmatpush2.bf16.msra.mxu0 0
      %475 = vmatprep.subr.bf16.mxu0 0
      %476 = vmatpush2.bf16.msra.mxu0 0
      %477 = vmatprep.subr.bf16.mxu0 0
      %478 = vmatpush2.bf16.msra.mxu0 0
      %479 = vmatprep.subr.bf16.mxu0 0
      %480 = vmatpush2.bf16.msra.mxu0 0
      %481 = vmatprep.mubr.bf16.mxu0 0
      %482 = vmatmul.mubr.bf16.gmra.mxu0 %v441
      %v483 = vpop.f32.mrf.mxu0
      %v484 = vadd.f32 0.0, %v483
      %v485 = vpop.f32.mrf.mxu0
      %v486 = vpop.f32.mrf.mxu0
      %v487 = vadd.f32 0.0, %v486
      %v488 = vpop.f32.mrf.mxu0
      %489 = vmatprep.mubr.bf16.mxu0 0
      %490 = vmatmul.mubr.bf16.gmra.mxu0 %v444
      %v491 = vpop.f32.mrf.mxu0
      %v492 = vadd.f32 0.0, %v491
      %v493 = vpop.f32.mrf.mxu0
      %v494 = vpop.f32.mrf.mxu0
      %v495 = vadd.f32 0.0, %v494
      %v496 = vpop.f32.mrf.mxu0
      %497 = vmatprep.mubr.bf16.mxu0 0
      %498 = vmatmul.mubr.bf16.gmra.mxu0 %v447
      %v499 = vpop.f32.mrf.mxu0
      %v500 = vadd.f32 0.0, %v499
      %v501 = vpop.f32.mrf.mxu0
      %v502 = vpop.f32.mrf.mxu0
      %v503 = vpop.f32.mrf.mxu0
      %504 = vdwg.mxu0
      %v505 = vadd.f32 %v418, %v484
      %v506 = vadd.f32 %v419, %v487
      %v507 = vadd.f32 %v420, %v492
      %v508 = vadd.f32 %v421, %v495
      %v509 = vadd.f32 %v422, %v500
      %v510 = vld [vmem:[%s165 + $0x7] sm:$0xff]
      %v511 = vld [vmem:[%s165 + $0xf] sm:$0xff]
      %v512 = vld [vmem:[%s165 + $0x17] sm:$0xff]
      %v513 = vld [vmem:[%s165 + $0x1f] sm:$0xff]
      %v514 = vld [vmem:[%s165 + $0x27] sm:$0xf]
      %v515 = vpack.c.bf16 %v511, %v510
      %v516 = vpack.c.bf16 %v513, %v512
      %v517 = vpack.c.bf16 %v514, %v514
      %s518 = scalar_lea.vmem %s1, 32
      %v519 = vld [vmem:[%s518] sm:$0xf]
      %v520 = vld [vmem:[%s518 + $0x4] sm:$0xf]
      %v523 = vunpack.c.l.b16 %v519
      %v524 = vunpack.c.l.b16 %v520
      %v525 = vpack.c.b16 %v524, %v523
      %v528 = vsel %vm199, %v515, 0
      %v531 = vsel %vm199, %v516, 0
      %v534 = vsel %vm199, %v517, 0
      %536 = vmatprep.subr.bf16.mxu0 0
      %537 = vmatpush1.bf16.msra.mxu0 0
      %538 = vmatprep.subr.bf16.mxu0 0
      %539 = vmatpush1.bf16.msra.mxu0 0
      %540 = vmatprep.subr.bf16.mxu0 0
      %541 = vmatpush1.bf16.msra.mxu0 0
      %542 = vmatprep.subr.bf16.mxu0 0
      %543 = vmatpush1.bf16.msra.mxu0 0
      %544 = vmatprep.subr.bf16.mxu0 0
      %545 = vmatpush1.bf16.msra.mxu0 0
      %546 = vmatprep.subr.bf16.mxu0 0
      %547 = vmatpush1.bf16.msra.mxu0 0
      %548 = vmatprep.subr.bf16.mxu0 0
      %549 = vmatpush1.bf16.msra.mxu0 0
      %550 = vmatprep.subr.bf16.mxu0 0
      %551 = vmatpush1.bf16.msra.mxu0 %v525
      %552 = vmatprep.subr.bf16.mxu0 0
      %553 = vmatpush2.bf16.msra.mxu0 0
      %554 = vmatprep.subr.bf16.mxu0 0
      %555 = vmatpush2.bf16.msra.mxu0 0
      %556 = vmatprep.subr.bf16.mxu0 0
      %557 = vmatpush2.bf16.msra.mxu0 0
      %558 = vmatprep.subr.bf16.mxu0 0
      %559 = vmatpush2.bf16.msra.mxu0 0
      %560 = vmatprep.subr.bf16.mxu0 0
      %561 = vmatpush2.bf16.msra.mxu0 0
      %562 = vmatprep.subr.bf16.mxu0 0
      %563 = vmatpush2.bf16.msra.mxu0 0
      %564 = vmatprep.subr.bf16.mxu0 0
      %565 = vmatpush2.bf16.msra.mxu0 0
      %566 = vmatprep.subr.bf16.mxu0 0
      %567 = vmatpush2.bf16.msra.mxu0 0
      %568 = vmatprep.mubr.bf16.mxu0 0
      %569 = vmatmul.mubr.bf16.gmra.mxu0 %v528
      %v570 = vpop.f32.mrf.mxu0
      %v571 = vadd.f32 0.0, %v570
      %v572 = vpop.f32.mrf.mxu0
      %v573 = vpop.f32.mrf.mxu0
      %v574 = vadd.f32 0.0, %v573
      %v575 = vpop.f32.mrf.mxu0
      %576 = vmatprep.mubr.bf16.mxu0 0
      %577 = vmatmul.mubr.bf16.gmra.mxu0 %v531
      %v578 = vpop.f32.mrf.mxu0
      %v579 = vadd.f32 0.0, %v578
      %v580 = vpop.f32.mrf.mxu0
      %v581 = vpop.f32.mrf.mxu0
      %v582 = vadd.f32 0.0, %v581
      %v583 = vpop.f32.mrf.mxu0
      %584 = vmatprep.mubr.bf16.mxu0 0
      %585 = vmatmul.mubr.bf16.gmra.mxu0 %v534
      %v586 = vpop.f32.mrf.mxu0
      %v587 = vadd.f32 0.0, %v586
      %v588 = vpop.f32.mrf.mxu0
      %v589 = vpop.f32.mrf.mxu0
      %v590 = vpop.f32.mrf.mxu0
      %591 = vdwg.mxu0
      %v592 = vadd.f32 %v505, %v571
      %v593 = vadd.f32 %v506, %v574
      %v594 = vadd.f32 %v507, %v579
      %v595 = vadd.f32 %v508, %v582
      %v596 = vadd.f32 %v509, %v587
      %v597 = vld [vmem:[%s165 + $0x8] sm:$0xff]
      %v598 = vld [vmem:[%s165 + $0x10] sm:$0xff]
      %v599 = vld [vmem:[%s165 + $0x18] sm:$0xff]
      %v600 = vld [vmem:[%s165 + $0x20] sm:$0xff]
      %v601 = vld [vmem:[%s165 + $0x28] sm:$0xf]
      %v602 = vpack.c.bf16 %v598, %v597
      %v603 = vpack.c.bf16 %v600, %v599
      %v604 = vpack.c.bf16 %v601, %v601
      %s605 = scalar_lea.vmem %s1, 40
      %v606 = vld [vmem:[%s605] sm:$0xf]
      %v607 = vld [vmem:[%s605 + $0x4] sm:$0xf]
      %v610 = vunpack.c.l.b16 %v606
      %v611 = vunpack.c.l.b16 %v607
      %v612 = vpack.c.b16 %v611, %v610
      %v615 = vsel %vm199, %v602, 0
      %v618 = vsel %vm199, %v603, 0
      %v621 = vsel %vm199, %v604, 0
      %623 = vmatprep.subr.bf16.mxu0 0
      %624 = vmatpush1.bf16.msra.mxu0 0
      %625 = vmatprep.subr.bf16.mxu0 0
      %626 = vmatpush1.bf16.msra.mxu0 0
      %627 = vmatprep.subr.bf16.mxu0 0
      %628 = vmatpush1.bf16.msra.mxu0 0
      %629 = vmatprep.subr.bf16.mxu0 0
      %630 = vmatpush1.bf16.msra.mxu0 0
      %631 = vmatprep.subr.bf16.mxu0 0
      %632 = vmatpush1.bf16.msra.mxu0 0
      %633 = vmatprep.subr.bf16.mxu0 0
      %634 = vmatpush1.bf16.msra.mxu0 0
      %635 = vmatprep.subr.bf16.mxu0 0
      %636 = vmatpush1.bf16.msra.mxu0 0
      %637 = vmatprep.subr.bf16.mxu0 0
      %638 = vmatpush1.bf16.msra.mxu0 %v612
      %639 = vmatprep.subr.bf16.mxu0 0
      %640 = vmatpush2.bf16.msra.mxu0 0
      %641 = vmatprep.subr.bf16.mxu0 0
      %642 = vmatpush2.bf16.msra.mxu0 0
      %643 = vmatprep.subr.bf16.mxu0 0
      %644 = vmatpush2.bf16.msra.mxu0 0
      %645 = vmatprep.subr.bf16.mxu0 0
      %646 = vmatpush2.bf16.msra.mxu0 0
      %647 = vmatprep.subr.bf16.mxu0 0
      %648 = vmatpush2.bf16.msra.mxu0 0
      %649 = vmatprep.subr.bf16.mxu0 0
      %650 = vmatpush2.bf16.msra.mxu0 0
      %651 = vmatprep.subr.bf16.mxu0 0
      %652 = vmatpush2.bf16.msra.mxu0 0
      %653 = vmatprep.subr.bf16.mxu0 0
      %654 = vmatpush2.bf16.msra.mxu0 0
      %655 = vmatprep.mubr.bf16.mxu0 0
      %656 = vmatmul.mubr.bf16.gmra.mxu0 %v615
      %v657 = vpop.f32.mrf.mxu0
      %v658 = vadd.f32 0.0, %v657
      %v659 = vpop.f32.mrf.mxu0
      %v660 = vpop.f32.mrf.mxu0
      %v661 = vadd.f32 0.0, %v660
      %v662 = vpop.f32.mrf.mxu0
      %663 = vmatprep.mubr.bf16.mxu0 0
      %664 = vmatmul.mubr.bf16.gmra.mxu0 %v618
      %v665 = vpop.f32.mrf.mxu0
      %v666 = vadd.f32 0.0, %v665
      %v667 = vpop.f32.mrf.mxu0
      %v668 = vpop.f32.mrf.mxu0
      %v669 = vadd.f32 0.0, %v668
      %v670 = vpop.f32.mrf.mxu0
      %671 = vmatprep.mubr.bf16.mxu0 0
      %672 = vmatmul.mubr.bf16.gmra.mxu0 %v621
      %v673 = vpop.f32.mrf.mxu0
      %v674 = vadd.f32 0.0, %v673
      %v675 = vpop.f32.mrf.mxu0
      %v676 = vpop.f32.mrf.mxu0
      %v677 = vpop.f32.mrf.mxu0
      %678 = vdwg.mxu0
      %v679 = vadd.f32 %v592, %v658
      %v680 = vadd.f32 %v593, %v661
      %v681 = vadd.f32 %v594, %v666
      %v682 = vadd.f32 %v595, %v669
      %v683 = vadd.f32 %v596, %v674
      %v684 = vld [vmem:[%s165 + $0xc] sm:$0xff]
      %v685 = vld [vmem:[%s165 + $0x14] sm:$0xff]
      %v686 = vld [vmem:[%s165 + $0x1c] sm:$0xff]
      %v687 = vld [vmem:[%s165 + $0x24] sm:$0xff]
      %v688 = vld [vmem:[%s165 + $0x2c] sm:$0xf]
      %v689 = vpack.c.bf16 %v685, %v684
      %v690 = vpack.c.bf16 %v687, %v686
      %v691 = vpack.c.bf16 %v688, %v688
      %s692 = scalar_lea.vmem %s1, 48
      %v693 = vld [vmem:[%s692] sm:$0xf]
      %v694 = vld [vmem:[%s692 + $0x4] sm:$0xf]
      %v697 = vunpack.c.l.b16 %v693
      %v698 = vunpack.c.l.b16 %v694
      %v699 = vpack.c.b16 %v698, %v697
      %v702 = vsel %vm199, %v689, 0
      %v705 = vsel %vm199, %v690, 0
      %v708 = vsel %vm199, %v691, 0
      %710 = vmatprep.subr.bf16.mxu0 0
      %711 = vmatpush1.bf16.msra.mxu0 0
      %712 = vmatprep.subr.bf16.mxu0 0
      %713 = vmatpush1.bf16.msra.mxu0 0
      %714 = vmatprep.subr.bf16.mxu0 0
      %715 = vmatpush1.bf16.msra.mxu0 0
      %716 = vmatprep.subr.bf16.mxu0 0
      %717 = vmatpush1.bf16.msra.mxu0 0
      %718 = vmatprep.subr.bf16.mxu0 0
      %719 = vmatpush1.bf16.msra.mxu0 0
      %720 = vmatprep.subr.bf16.mxu0 0
      %721 = vmatpush1.bf16.msra.mxu0 0
      %722 = vmatprep.subr.bf16.mxu0 0
      %723 = vmatpush1.bf16.msra.mxu0 0
      %724 = vmatprep.subr.bf16.mxu0 0
      %725 = vmatpush1.bf16.msra.mxu0 %v699
      %726 = vmatprep.subr.bf16.mxu0 0
      %727 = vmatpush2.bf16.msra.mxu0 0
      %728 = vmatprep.subr.bf16.mxu0 0
      %729 = vmatpush2.bf16.msra.mxu0 0
      %730 = vmatprep.subr.bf16.mxu0 0
      %731 = vmatpush2.bf16.msra.mxu0 0
      %732 = vmatprep.subr.bf16.mxu0 0
      %733 = vmatpush2.bf16.msra.mxu0 0
      %734 = vmatprep.subr.bf16.mxu0 0
      %735 = vmatpush2.bf16.msra.mxu0 0
      %736 = vmatprep.subr.bf16.mxu0 0
      %737 = vmatpush2.bf16.msra.mxu0 0
      %738 = vmatprep.subr.bf16.mxu0 0
      %739 = vmatpush2.bf16.msra.mxu0 0
      %740 = vmatprep.subr.bf16.mxu0 0
      %741 = vmatpush2.bf16.msra.mxu0 0
      %742 = vmatprep.mubr.bf16.mxu0 0
      %743 = vmatmul.mubr.bf16.gmra.mxu0 %v702
      %v744 = vpop.f32.mrf.mxu0
      %v745 = vadd.f32 0.0, %v744
      %v746 = vpop.f32.mrf.mxu0
      %v747 = vpop.f32.mrf.mxu0
      %v748 = vadd.f32 0.0, %v747
      %v749 = vpop.f32.mrf.mxu0
      %750 = vmatprep.mubr.bf16.mxu0 0
      %751 = vmatmul.mubr.bf16.gmra.mxu0 %v705
      %v752 = vpop.f32.mrf.mxu0
      %v753 = vadd.f32 0.0, %v752
      %v754 = vpop.f32.mrf.mxu0
      %v755 = vpop.f32.mrf.mxu0
      %v756 = vadd.f32 0.0, %v755
      %v757 = vpop.f32.mrf.mxu0
      %758 = vmatprep.mubr.bf16.mxu0 0
      %759 = vmatmul.mubr.bf16.gmra.mxu0 %v708
      %v760 = vpop.f32.mrf.mxu0
      %v761 = vadd.f32 0.0, %v760
      %v762 = vpop.f32.mrf.mxu0
      %v763 = vpop.f32.mrf.mxu0
      %v764 = vpop.f32.mrf.mxu0
      %765 = vdwg.mxu0
      %v766 = vadd.f32 %v679, %v745
      %v767 = vadd.f32 %v680, %v748
      %v768 = vadd.f32 %v681, %v753
      %v769 = vadd.f32 %v682, %v756
      %v770 = vadd.f32 %v683, %v761
      %v771 = vld [vmem:[%s165 + $0xd] sm:$0xff]
      %v772 = vld [vmem:[%s165 + $0x15] sm:$0xff]
      %v773 = vld [vmem:[%s165 + $0x1d] sm:$0xff]
      %v774 = vld [vmem:[%s165 + $0x25] sm:$0xff]
      %v775 = vld [vmem:[%s165 + $0x2d] sm:$0xf]
      %v776 = vpack.c.bf16 %v772, %v771
      %v777 = vpack.c.bf16 %v774, %v773
      %v778 = vpack.c.bf16 %v775, %v775
      %s779 = scalar_lea.vmem %s1, 56
      %v780 = vld [vmem:[%s779] sm:$0xf]
      %v781 = vld [vmem:[%s779 + $0x4] sm:$0xf]
      %v784 = vunpack.c.l.b16 %v780
      %v785 = vunpack.c.l.b16 %v781
      %v786 = vpack.c.b16 %v785, %v784
      %v789 = vsel %vm199, %v776, 0
      %v792 = vsel %vm199, %v777, 0
      %v795 = vsel %vm199, %v778, 0
      %797 = vmatprep.subr.bf16.mxu0 0
      %798 = vmatpush1.bf16.msra.mxu0 0
      %799 = vmatprep.subr.bf16.mxu0 0
      %800 = vmatpush1.bf16.msra.mxu0 0
      %801 = vmatprep.subr.bf16.mxu0 0
      %802 = vmatpush1.bf16.msra.mxu0 0
      %803 = vmatprep.subr.bf16.mxu0 0
      %804 = vmatpush1.bf16.msra.mxu0 0
      %805 = vmatprep.subr.bf16.mxu0 0
      %806 = vmatpush1.bf16.msra.mxu0 0
      %807 = vmatprep.subr.bf16.mxu0 0
      %808 = vmatpush1.bf16.msra.mxu0 0
      %809 = vmatprep.subr.bf16.mxu0 0
      %810 = vmatpush1.bf16.msra.mxu0 0
      %811 = vmatprep.subr.bf16.mxu0 0
      %812 = vmatpush1.bf16.msra.mxu0 %v786
      %813 = vmatprep.subr.bf16.mxu0 0
      %814 = vmatpush2.bf16.msra.mxu0 0
      %815 = vmatprep.subr.bf16.mxu0 0
      %816 = vmatpush2.bf16.msra.mxu0 0
      %817 = vmatprep.subr.bf16.mxu0 0
      %818 = vmatpush2.bf16.msra.mxu0 0
      %819 = vmatprep.subr.bf16.mxu0 0
      %820 = vmatpush2.bf16.msra.mxu0 0
      %821 = vmatprep.subr.bf16.mxu0 0
      %822 = vmatpush2.bf16.msra.mxu0 0
      %823 = vmatprep.subr.bf16.mxu0 0
      %824 = vmatpush2.bf16.msra.mxu0 0
      %825 = vmatprep.subr.bf16.mxu0 0
      %826 = vmatpush2.bf16.msra.mxu0 0
      %827 = vmatprep.subr.bf16.mxu0 0
      %828 = vmatpush2.bf16.msra.mxu0 0
      %829 = vmatprep.mubr.bf16.mxu0 0
      %830 = vmatmul.mubr.bf16.gmra.mxu0 %v789
      %v831 = vpop.f32.mrf.mxu0
      %v832 = vadd.f32 0.0, %v831
      %v833 = vpop.f32.mrf.mxu0
      %v834 = vpop.f32.mrf.mxu0
      %v835 = vadd.f32 0.0, %v834
      %v836 = vpop.f32.mrf.mxu0
      %837 = vmatprep.mubr.bf16.mxu0 0
      %838 = vmatmul.mubr.bf16.gmra.mxu0 %v792
      %v839 = vpop.f32.mrf.mxu0
      %v840 = vadd.f32 0.0, %v839
      %v841 = vpop.f32.mrf.mxu0
      %v842 = vpop.f32.mrf.mxu0
      %v843 = vadd.f32 0.0, %v842
      %v844 = vpop.f32.mrf.mxu0
      %845 = vmatprep.mubr.bf16.mxu0 0
      %846 = vmatmul.mubr.bf16.gmra.mxu0 %v795
      %v847 = vpop.f32.mrf.mxu0
      %v848 = vadd.f32 0.0, %v847
      %v849 = vpop.f32.mrf.mxu0
      %v850 = vpop.f32.mrf.mxu0
      %v851 = vpop.f32.mrf.mxu0
      %852 = vdwg.mxu0
      %v853 = vadd.f32 %v766, %v832
      %v854 = vadd.f32 %v767, %v835
      %v855 = vadd.f32 %v768, %v840
      %v856 = vadd.f32 %v769, %v843
      %v857 = vadd.f32 %v770, %v848
      %v858 = vld [vmem:[%s165 + $0xe] sm:$0xff]
      %v859 = vld [vmem:[%s165 + $0x16] sm:$0xff]
      %v860 = vld [vmem:[%s165 + $0x1e] sm:$0xff]
      %v861 = vld [vmem:[%s165 + $0x26] sm:$0xff]
      %v862 = vld [vmem:[%s165 + $0x2e] sm:$0xf]
      %v863 = vpack.c.bf16 %v859, %v858
      %v864 = vpack.c.bf16 %v861, %v860
      %v865 = vpack.c.bf16 %v862, %v862
      %s866 = scalar_lea.vmem %s1, 64
      %v867 = vld [vmem:[%s866] sm:$0xf]
      %v868 = vld [vmem:[%s866 + $0x4] sm:$0xf]
      %v871 = vunpack.c.l.b16 %v867
      %v872 = vunpack.c.l.b16 %v868
      %v873 = vpack.c.b16 %v872, %v871
      %v876 = vsel %vm199, %v863, 0
      %v879 = vsel %vm199, %v864, 0
      %v882 = vsel %vm199, %v865, 0
      %884 = vmatprep.subr.bf16.mxu0 0
      %885 = vmatpush1.bf16.msra.mxu0 0
      %886 = vmatprep.subr.bf16.mxu0 0
      %887 = vmatpush1.bf16.msra.mxu0 0
      %888 = vmatprep.subr.bf16.mxu0 0
      %889 = vmatpush1.bf16.msra.mxu0 0
      %890 = vmatprep.subr.bf16.mxu0 0
      %891 = vmatpush1.bf16.msra.mxu0 0
      %892 = vmatprep.subr.bf16.mxu0 0
      %893 = vmatpush1.bf16.msra.mxu0 0
      %894 = vmatprep.subr.bf16.mxu0 0
      %895 = vmatpush1.bf16.msra.mxu0 0
      %896 = vmatprep.subr.bf16.mxu0 0
      %897 = vmatpush1.bf16.msra.mxu0 0
      %898 = vmatprep.subr.bf16.mxu0 0
      %899 = vmatpush1.bf16.msra.mxu0 %v873
      %900 = vmatprep.subr.bf16.mxu0 0
      %901 = vmatpush2.bf16.msra.mxu0 0
      %902 = vmatprep.subr.bf16.mxu0 0
      %903 = vmatpush2.bf16.msra.mxu0 0
      %904 = vmatprep.subr.bf16.mxu0 0
      %905 = vmatpush2.bf16.msra.mxu0 0
      %906 = vmatprep.subr.bf16.mxu0 0
      %907 = vmatpush2.bf16.msra.mxu0 0
      %908 = vmatprep.subr.bf16.mxu0 0
      %909 = vmatpush2.bf16.msra.mxu0 0
      %910 = vmatprep.subr.bf16.mxu0 0
      %911 = vmatpush2.bf16.msra.mxu0 0
      %912 = vmatprep.subr.bf16.mxu0 0
      %913 = vmatpush2.bf16.msra.mxu0 0
      %914 = vmatprep.subr.bf16.mxu0 0
      %915 = vmatpush2.bf16.msra.mxu0 0
      %916 = vmatprep.mubr.bf16.mxu0 0
      %917 = vmatmul.mubr.bf16.gmra.mxu0 %v876
      %v918 = vpop.f32.mrf.mxu0
      %v919 = vadd.f32 0.0, %v918
      %v920 = vpop.f32.mrf.mxu0
      %v921 = vpop.f32.mrf.mxu0
      %v922 = vadd.f32 0.0, %v921
      %v923 = vpop.f32.mrf.mxu0
      %924 = vmatprep.mubr.bf16.mxu0 0
      %925 = vmatmul.mubr.bf16.gmra.mxu0 %v879
      %v926 = vpop.f32.mrf.mxu0
      %v927 = vadd.f32 0.0, %v926
      %v928 = vpop.f32.mrf.mxu0
      %v929 = vpop.f32.mrf.mxu0
      %v930 = vadd.f32 0.0, %v929
      %v931 = vpop.f32.mrf.mxu0
      %932 = vmatprep.mubr.bf16.mxu0 0
      %933 = vmatmul.mubr.bf16.gmra.mxu0 %v882
      %v934 = vpop.f32.mrf.mxu0
      %v935 = vadd.f32 0.0, %v934
      %v936 = vpop.f32.mrf.mxu0
      %v937 = vpop.f32.mrf.mxu0
      %v938 = vpop.f32.mrf.mxu0
      %939 = vdwg.mxu0
      %v940 = vadd.f32 %v853, %v919
      %v941 = vadd.f32 %v854, %v922
      %v942 = vadd.f32 %v855, %v927
      %v943 = vadd.f32 %v856, %v930
      %v944 = vadd.f32 %v857, %v935
      %v945 = vld [vmem:[%s2] sm:$0x1]
      %v947 = vlaneseq
      %v948 = vshrl.u32 %v947, 7
      %v949 = vsub.s32 0, %v948
      %v950 = vrot.slane %v945, %v949
      %v952 = vadd.f32 %v940, %v950
      %v953 = vadd.f32 %v941, %v950
      %v954 = vadd.f32 %v942, %v950
      %v955 = vadd.f32 %v943, %v950
      %v956 = vadd.f32 %v944, %v950
      %vm957 = vcmp.gt.f32.partialorder %v952, 0.0
      %vm958 = vcmp.gt.f32.partialorder %v953, 0.0
      %vm959 = vcmp.gt.f32.partialorder %v954, 0.0
      %vm960 = vcmp.gt.f32.partialorder %v955, 0.0
      %vm961 = vcmp.gt.f32.partialorder %v956, 0.0
      %v962 = vmul.f32 %v952, 0.1
      %v963 = vmul.f32 %v953, 0.1
      %v964 = vmul.f32 %v954, 0.1
      %v965 = vmul.f32 %v955, 0.1
      %v966 = vmul.f32 %v956, 0.1
      %v967 = vsel %vm957, %v952, %v962
      %v968 = vsel %vm958, %v953, %v963
      %v969 = vsel %vm959, %v954, %v964
      %v970 = vsel %vm960, %v955, %v965
      %v971 = vsel %vm961, %v956, %v966
      %vm972 = vcmask 261120
      %973 = vst.msk [vmem:[%s170] sm:$0xff] %vm972, %v967
      %974 = vst.msk [vmem:[%s170 + $0x8] sm:$0xff] %vm972, %v968
      %975 = vst.msk [vmem:[%s170 + $0x10] sm:$0xff] %vm972, %v969
      %976 = vst.msk [vmem:[%s170 + $0x18] sm:$0xff] %vm972, %v970
      %vm977 = vcmask 257024
      %978 = vst.msk [vmem:[%s170 + $0x20] sm:$0xf] %vm977, %v971
      %p979 = scmp.lt.s32.totalorder %s14, 1
      %s980 = scalar_select %p979, %s14, 1
      %s981 = smul.addr %s980, 5
      %s982 = smul.addr %s981, 8
      %s983 = scalar_lea.vmem %s3, %s982
      // Predicated region
      $region33: #{forward.9} parent=31 // pred_check
        %p984 = pneg %p100
      $region34: #{forward.9} parent=31 // pred_check_branch
        %986 = sbr.rel (%p984) target = $region36
      $region35: #{forward.9} parent=31 // pred_region
        _
      $region36: #{forward.9} parent=31 // pred_fallthru
        _
    $region32: #{forward.9} parent=5 // pred_fallthru
      _
    %p987 = scmp.le.s32.totalorder 2, %s9
    // Predicated region
    $region37: #{forward.9} parent=5 // pred_check
      %p988 = pneg %p987
    $region38: #{forward.9} parent=5 // pred_check_branch
      %990 = sbr.rel (%p988) target = $region40
    $region39: #{forward.9} parent=5 // pred_region
      %s991 = ssub.s32 %s9, 2
      // Predicated region
      $region41: #{forward.9} parent=39 // pred_check
        %p992 = pneg %p106
      $region42: #{forward.9} parent=39 // pred_check_branch
        %994 = sbr.rel (%p992) target = $region44
      $region43: #{forward.9} parent=39 // pred_region
        %p995 = scmp.lt.s32.totalorder %s15, 1
        %s996 = scalar_select %p995, %s15, 1
        %s997 = smul.addr %s996, 5
        %s998 = smul.addr %s997, 8
        %s999 = scalar_lea.vmem %s3, %s998
      $region44: #{forward.9} parent=39 // pred_fallthru
        _
    $region40: #{forward.9} parent=5 // pred_fallthru
      _
  $region6: #{forward.9} parent=0 // loop_footer
    %s13 = sadd.s32 1, %s9
  $region7: #{forward.9} parent=0 // loop_footer_branch
    %8 = sbr.rel target = $region3
  $region8: #{forward.9} parent=0 // loop_exit
    _

// kernel: forward.7
$region0: #{forward.7}
  #allocation0 [shape = 'u32[]', space=smem, size = 0x4, offset = 0x4, fixed_abs, tag = 'smem constant byte address 0x4 - core index']
  #allocation1 [shape = 'u32[144,128]{1,0:T(1,128)}', space=vmem, size = 0x12000, scoped, tag = 'internal scratch']
  %s0 = inlined_call_operand.vmem [shape: f32[2,362,3], index: 0, kind: input, shape index: {}]
  %s1 = inlined_call_operand.vmem [shape: bf16[9,3,8], index: 1, kind: input, shape index: {}]
  %s2 = inlined_call_operand.vmem [shape: f32[1,8], index: 2, kind: input, shape index: {}]
  %s3 = inlined_call_operand.vmem [shape: f32[2,324,8], index: 3, kind: output, shape index: {}]
  %s4 = sld [smem:[#allocation0]]
  $region45: #{forward.7} parent=0
    _
  %s6 = ssub.s32 1, %s4
  %s7 = scalar_select 0, %s6, %s4
  loop: start=0, step=1, limit=4
  $region2: #{forward.7} parent=0 // loop_pre_header
    _
  $region3: #{forward.7} parent=0 // loop_header
    %s9 = sphi 0, %s13
    %p10 = scmp.ge.s32.totalorder %s9, 4
    %s19 = sphi 0, %s21
    %s22 = sphi 0, %s19
    %s23 = sphi 0, %s22
    %s39 = sphi 0, %s23
    %s43 = sphi 0, %s43
    %s45 = sphi 0, %s43
    %s46 = sphi 0, %s45
    %s60 = sphi 0, %s46
    %s64 = sphi 0, %s64
    %s66 = sphi 0, %s64
    %s67 = sphi 0, %s66
    %s81 = sphi 0, %s67
    %s87 = sphi 0, %s89
    %s90 = sphi 0, %s87
    %s91 = sphi 0, %s90
    %s107 = sphi 0, %s91
  $region4: #{forward.7} parent=0 // loop_header_branch
    %12 = sbr.rel (%p10) target = $region8
  $region5: #{forward.7} parent=0 // loop_body
    %s14 = ssub.s32 %s9, 1
    %s15 = ssub.s32 %s9, 2
    %s16 = sadd.s32 %s9, 1
    %s17 = ssub.s32 %s9, %s16
    %p18 = scmp.eq.s32.totalorder %s17, 0
    %s20 = sadd.s32 %s19, 1
    %s21 = scalar_select %p18, %s19, %s20
    %p24 = pneg %p18
    %p25 = scmp.eq.s32.totalorder %s9, 1
    %p26 = por %p24, %p25
    %p27 = scmp.ne.s32.totalorder %s19, %s22
    %p28 = scmp.eq.s32.totalorder %s9, 0
    %p29 = por %p27, %p28
    %p30 = scmp.ne.s32.totalorder %s19, %s22
    %p31 = scmp.eq.s32.totalorder %s14, 1
    %p32 = por %p30, %p31
    %p33 = scmp.ne.s32.totalorder %s22, %s23
    %p34 = scmp.eq.s32.totalorder %s14, 0
    %p35 = por %p33, %p34
    %p36 = scmp.ne.s32.totalorder %s22, %s23
    %p37 = scmp.eq.s32.totalorder %s15, 1
    %p38 = por %p36, %p37
    %p40 = scmp.ne.s32.totalorder %s23, %s39
    %p41 = scmp.eq.s32.totalorder %s15, 0
    %p42 = por %p40, %p41
    %s44 = sadd.s32 %s43, 1
    %p47 = scmp.eq.s32.totalorder %s9, 1
    %p48 = scmp.ne.s32.totalorder %s43, %s45
    %p49 = scmp.eq.s32.totalorder %s9, 0
    %p50 = por %p48, %p49
    %p51 = scmp.ne.s32.totalorder %s43, %s45
    %p52 = scmp.eq.s32.totalorder %s14, 1
    %p53 = por %p51, %p52
    %p54 = scmp.ne.s32.totalorder %s45, %s46
    %p55 = scmp.eq.s32.totalorder %s14, 0
    %p56 = por %p54, %p55
    %p57 = scmp.ne.s32.totalorder %s45, %s46
    %p58 = scmp.eq.s32.totalorder %s15, 1
    %p59 = por %p57, %p58
    %p61 = scmp.ne.s32.totalorder %s46, %s60
    %p62 = scmp.eq.s32.totalorder %s15, 0
    %p63 = por %p61, %p62
    %s65 = sadd.s32 %s64, 1
    %p68 = scmp.eq.s32.totalorder %s9, 1
    %p69 = scmp.ne.s32.totalorder %s64, %s66
    %p70 = scmp.eq.s32.totalorder %s9, 0
    %p71 = por %p69, %p70
    %p72 = scmp.ne.s32.totalorder %s64, %s66
    %p73 = scmp.eq.s32.totalorder %s14, 1
    %p74 = por %p72, %p73
    %p75 = scmp.ne.s32.totalorder %s66, %s67
    %p76 = scmp.eq.s32.totalorder %s14, 0
    %p77 = por %p75, %p76
    %p78 = scmp.ne.s32.totalorder %s66, %s67
    %p79 = scmp.eq.s32.totalorder %s15, 1
    %p80 = por %p78, %p79
    %p82 = scmp.ne.s32.totalorder %s67, %s81
    %p83 = scmp.eq.s32.totalorder %s15, 0
    %p84 = por %p82, %p83
    %s85 = ssub.s32 %s9, %s16
    %p86 = scmp.eq.s32.totalorder %s85, 0
    %s88 = sadd.s32 %s87, 1
    %s89 = scalar_select %p86, %s87, %s88
    %p92 = pneg %p86
    %p93 = scmp.eq.s32.totalorder %s9, 1
    %p94 = por %p92, %p93
    %p95 = scmp.ne.s32.totalorder %s87, %s90
    %p96 = scmp.eq.s32.totalorder %s9, 0
    %p97 = por %p95, %p96
    %p98 = scmp.ne.s32.totalorder %s87, %s90
    %p99 = scmp.eq.s32.totalorder %s14, 1
    %p100 = por %p98, %p99
    %p101 = scmp.ne.s32.totalorder %s90, %s91
    %p102 = scmp.eq.s32.totalorder %s14, 0
    %p103 = por %p101, %p102
    %p104 = scmp.ne.s32.totalorder %s90, %s91
    %p105 = scmp.eq.s32.totalorder %s15, 1
    %p106 = por %p104, %p105
    %p108 = scmp.ne.s32.totalorder %s91, %s107
    %p109 = scmp.eq.s32.totalorder %s15, 0
    %p110 = por %p108, %p109
    %p111 = scmp.le.s32.totalorder 1, %s9
    %p112 = scmp.lt.s32.totalorder %s9, 3
    %p113 = pnand %p111, %p112
    %p114 = pneg %p113
    // Predicated region
    $region9: #{forward.7} parent=5 // pred_check
      _
    $region10: #{forward.7} parent=5 // pred_check_branch
      %116 = sbr.rel (%p113) target = $region12
    $region11: #{forward.7} parent=5 // pred_region
      %s117 = ssub.s32 %s9, 1
      // Predicated region
      $region13: #{forward.7} parent=11 // pred_check
        %p118 = pneg %p56
      $region14: #{forward.7} parent=11 // pred_check_branch
        %120 = sbr.rel (%p118) target = $region16
      $region15: #{forward.7} parent=11 // pred_region
        _
      $region16: #{forward.7} parent=11 // pred_fallthru
        _
      // Predicated region
      $region17: #{forward.7} parent=11 // pred_check
        %p121 = pneg %p77
      $region18: #{forward.7} parent=11 // pred_check_branch
        %123 = sbr.rel (%p121) target = $region20
      $region19: #{forward.7} parent=11 // pred_region
        _
      $region20: #{forward.7} parent=11 // pred_fallthru
        _
    $region12: #{forward.7} parent=5 // pred_fallthru
      _
    %p124 = scmp.lt.s32.totalorder %s9, 2
    // Predicated region
    $region21: #{forward.7} parent=5 // pred_check
      %p125 = pneg %p124
    $region22: #{forward.7} parent=5 // pred_check_branch
      %127 = sbr.rel (%p125) target = $region24
    $region23: #{forward.7} parent=5 // pred_region
      // Predicated region
      $region25: #{forward.7} parent=23 // pred_check
        %p128 = pneg %p29
      $region26: #{forward.7} parent=23 // pred_check_branch
        %130 = sbr.rel (%p128) target = $region28
      $region27: #{forward.7} parent=23 // pred_region
        %p131 = scmp.lt.s32.totalorder %s9, 1
        %s132 = scalar_select %p131, %s9, 1
        %s133 = smul.addr %s132, 46
        %s134 = smul.addr %s133, 8
        %s135 = scalar_lea.vmem %s0, %s134
      $region28: #{forward.7} parent=23 // pred_fallthru
        _
    $region24: #{forward.7} parent=5 // pred_fallthru
      _
    %p136 = scmp.le.s32.totalorder 1, %s9
    %p137 = scmp.lt.s32.totalorder %s9, 3
    %p138 = pnand %p136, %p137
    %p139 = pneg %p138
    // Predicated region
    $region29: #{forward.7} parent=5 // pred_check
      _
    $region30: #{forward.7} parent=5 // pred_check_branch
      %141 = sbr.rel (%p138) target = $region32
    $region31: #{forward.7} parent=5 // pred_region
      %s142 = ssub.s32 %s9, 1
      %p143 = scmp.lt.s32.totalorder %s14, 1
      %s144 = scalar_select %p143, %s14, 1
      %s145 = smul.addr %s144, 46
      %s146 = smul.addr %s145, 8
      %s147 = scalar_lea.vmem %s0, %s146
      %p148 = pneg %p35
      %p149 = pneg %p32
      %p150 = pneg %p56
      %p151 = pneg %p53
      %p152 = pneg %p77
      %p153 = pneg %p74
      %p154 = pneg %p103
      %p155 = pneg %p100
      %p156 = scmp.lt.s32.totalorder %s14, 1
      %s157 = scalar_select %p156, %s14, 1
      %s158 = smul.addr %s157, 41
      %s159 = smul.addr %s158, 8
      %s160 = scalar_lea.vmem %s3, %s159
      %p161 = scmp.lt.s32.totalorder %s14, 1
      %s162 = scalar_select %p161, %s14, 1
      %s163 = smul.addr %s162, 46
      %s164 = smul.addr %s163, 8
      %s165 = scalar_lea.vmem %s0, %s164
      %p166 = scmp.lt.s32.totalorder %s14, 1
      %s167 = scalar_select %p166, %s14, 1
      %s168 = smul.addr %s167, 41
      %s169 = smul.addr %s168, 8
      %s170 = scalar_lea.vmem %s3, %s169
      %v172 = vld [vmem:[%s165] sm:$0xff]
      %v173 = vld [vmem:[%s165 + $0x8] sm:$0xff]
      %v174 = vld [vmem:[%s165 + $0x10] sm:$0xff]
      %v175 = vld [vmem:[%s165 + $0x18] sm:$0xff]
      %v176 = vld [vmem:[%s165 + $0x20] sm:$0xff]
      %v177 = vld [vmem:[%s165 + $0x28] sm:$0xff]
      %v178 = vld [vmem:[%s165 + $0x30] sm:$0xff]
      %v179 = vld [vmem:[%s165 + $0x38] sm:$0xff]
      %v180 = vld [vmem:[%s165 + $0x40] sm:$0xff]
      %v181 = vld [vmem:[%s165 + $0x48] sm:$0xff]
      %v182 = vld [vmem:[%s165 + $0x50] sm:$0xff]
      %v183 = vld [vmem:[%s165 + $0x58] sm:$0xff]
      %v184 = vld [vmem:[%s165 + $0x60] sm:$0xff]
      %v185 = vld [vmem:[%s165 + $0x68] sm:$0xff]
      %v186 = vld [vmem:[%s165 + $0x70] sm:$0xff]
      %v187 = vld [vmem:[%s165 + $0x78] sm:$0xff]
      %v188 = vld [vmem:[%s165 + $0x80] sm:$0xff]
      %v189 = vld [vmem:[%s165 + $0x88] sm:$0xff]
      %v190 = vld [vmem:[%s165 + $0x90] sm:$0xff]
      %v191 = vld [vmem:[%s165 + $0x98] sm:$0xff]
      %v192 = vld [vmem:[%s165 + $0xa0] sm:$0xff]
      %v193 = vld [vmem:[%s165 + $0xa8] sm:$0xff]
      %v194 = vld [vmem:[%s165 + $0xb0] sm:$0xff]
      %v195 = vld [vmem:[%s165 + $0xb8] sm:$0xff]
      %v196 = vld [vmem:[%s165 + $0xc0] sm:$0xff]
      %v197 = vld [vmem:[%s165 + $0xc8] sm:$0xff]
      %v198 = vld [vmem:[%s165 + $0xd0] sm:$0xff]
      %v199 = vld [vmem:[%s165 + $0xd8] sm:$0xff]
      %v200 = vld [vmem:[%s165 + $0xe0] sm:$0xff]
      %v201 = vld [vmem:[%s165 + $0xe8] sm:$0xff]
      %v202 = vld [vmem:[%s165 + $0xf0] sm:$0xff]
      %v203 = vld [vmem:[%s165 + $0xf8] sm:$0xff]
      %v204 = vld [vmem:[%s165 + $0x100] sm:$0xff]
      %v205 = vld [vmem:[%s165 + $0x108] sm:$0xff]
      %v206 = vld [vmem:[%s165 + $0x110] sm:$0xff]
      %v207 = vld [vmem:[%s165 + $0x118] sm:$0xff]
      %v208 = vld [vmem:[%s165 + $0x120] sm:$0xff]
      %v209 = vld [vmem:[%s165 + $0x128] sm:$0xff]
      %v210 = vld [vmem:[%s165 + $0x130] sm:$0xff]
      %v211 = vld [vmem:[%s165 + $0x138] sm:$0xff]
      %v212 = vld [vmem:[%s165 + $0x140] sm:$0xf]
      %v213 = vpack.c.bf16 %v173, %v172
      %v214 = vpack.c.bf16 %v175, %v174
      %v215 = vpack.c.bf16 %v177, %v176
      %v216 = vpack.c.bf16 %v179, %v178
      %v217 = vpack.c.bf16 %v181, %v180
      %v218 = vpack.c.bf16 %v183, %v182
      %v219 = vpack.c.bf16 %v185, %v184
      %v220 = vpack.c.bf16 %v187, %v186
      %v221 = vpack.c.bf16 %v189, %v188
      %v222 = vpack.c.bf16 %v191, %v190
      %v223 = vpack.c.bf16 %v193, %v192
      %v224 = vpack.c.bf16 %v195, %v194
      %v225 = vpack.c.bf16 %v197, %v196
      %v226 = vpack.c.bf16 %v199, %v198
      %v227 = vpack.c.bf16 %v201, %v200
      %v228 = vpack.c.bf16 %v203, %v202
      %v229 = vpack.c.bf16 %v205, %v204
      %v230 = vpack.c.bf16 %v207, %v206
      %v231 = vpack.c.bf16 %v209, %v208
      %v232 = vpack.c.bf16 %v211, %v210
      %v233 = vpack.c.bf16 %v212, %v212
      %v234 = vld [vmem:[%s1] sm:$0x3]
      %v235 = vld [vmem:[%s165 + $0x1] sm:$0xff]
      %v236 = vld [vmem:[%s165 + $0x9] sm:$0xff]
      %v237 = vld [vmem:[%s165 + $0x11] sm:$0xff]
      %v238 = vld [vmem:[%s165 + $0x19] sm:$0xff]
      %v239 = vld [vmem:[%s165 + $0x21] sm:$0xff]
      %v240 = vld [vmem:[%s165 + $0x29] sm:$0xff]
      %v241 = vld [vmem:[%s165 + $0x31] sm:$0xff]
      %v242 = vld [vmem:[%s165 + $0x39] sm:$0xff]
      %v243 = vld [vmem:[%s165 + $0x41] sm:$0xff]
      %v244 = vld [vmem:[%s165 + $0x49] sm:$0xff]
      %v245 = vld [vmem:[%s165 + $0x51] sm:$0xff]
      %v246 = vld [vmem:[%s165 + $0x59] sm:$0xff]
      %v247 = vld [vmem:[%s165 + $0x61] sm:$0xff]
      %v248 = vld [vmem:[%s165 + $0x69] sm:$0xff]
      %v249 = vld [vmem:[%s165 + $0x71] sm:$0xff]
      %v250 = vld [vmem:[%s165 + $0x79] sm:$0xff]
      %v251 = vld [vmem:[%s165 + $0x81] sm:$0xff]
      %v252 = vld [vmem:[%s165 + $0x89] sm:$0xff]
      %v253 = vld [vmem:[%s165 + $0x91] sm:$0xff]
      %v254 = vld [vmem:[%s165 + $0x99] sm:$0xff]
      %v255 = vld [vmem:[%s165 + $0xa1] sm:$0xff]
      %v256 = vld [vmem:[%s165 + $0xa9] sm:$0xff]
      %v257 = vld [vmem:[%s165 + $0xb1] sm:$0xff]
      %v258 = vld [vmem:[%s165 + $0xb9] sm:$0xff]
      %v259 = vld [vmem:[%s165 + $0xc1] sm:$0xff]
      %v260 = vld [vmem:[%s165 + $0xc9] sm:$0xff]
      %v261 = vld [vmem:[%s165 + $0xd1] sm:$0xff]
      %v262 = vld [vmem:[%s165 + $0xd9] sm:$0xff]
      %v263 = vld [vmem:[%s165 + $0xe1] sm:$0xff]
      %v264 = vld [vmem:[%s165 + $0xe9] sm:$0xff]
      %v265 = vld [vmem:[%s165 + $0xf1] sm:$0xff]
      %v266 = vld [vmem:[%s165 + $0xf9] sm:$0xff]
      %v267 = vld [vmem:[%s165 + $0x101] sm:$0xff]
      %v268 = vld [vmem:[%s165 + $0x109] sm:$0xff]
      %v269 = vld [vmem:[%s165 + $0x111] sm:$0xff]
      %v270 = vld [vmem:[%s165 + $0x119] sm:$0xff]
      %v271 = vld [vmem:[%s165 + $0x121] sm:$0xff]
      %v272 = vld [vmem:[%s165 + $0x129] sm:$0xff]
      %v273 = vld [vmem:[%s165 + $0x131] sm:$0xff]
      %v274 = vld [vmem:[%s165 + $0x139] sm:$0xff]
      %v275 = vld [vmem:[%s165 + $0x141] sm:$0xf]
      %v276 = vpack.c.bf16 %v236, %v235
      %v277 = vpack.c.bf16 %v238, %v237
      %v278 = vpack.c.bf16 %v240, %v239
      %v279 = vpack.c.bf16 %v242, %v241
      %v280 = vpack.c.bf16 %v244, %v243
      %v281 = vpack.c.bf16 %v246, %v245
      %v282 = vpack.c.bf16 %v248, %v247
      %v283 = vpack.c.bf16 %v250, %v249
      %v284 = vpack.c.bf16 %v252, %v251
      %v285 = vpack.c.bf16 %v254, %v253
      %v286 = vpack.c.bf16 %v256, %v255
      %v287 = vpack.c.bf16 %v258, %v257
      %v288 = vpack.c.bf16 %v260, %v259
      %v289 = vpack.c.bf16 %v262, %v261
      %v290 = vpack.c.bf16 %v264, %v263
      %v291 = vpack.c.bf16 %v266, %v265
      %v292 = vpack.c.bf16 %v268, %v267
      %v293 = vpack.c.bf16 %v270, %v269
      %v294 = vpack.c.bf16 %v272, %v271
      %v295 = vpack.c.bf16 %v274, %v273
      %v296 = vpack.c.bf16 %v275, %v275
      %s297 = scalar_lea.vmem %s1, 2
      %v298 = vld [vmem:[%s297] sm:$0x3]
      %vm299 = vcmask 23552
      %v301 = vsel %vm299, %v276, 0
      %v304 = vsel %vm299, %v277, 0
      %v307 = vsel %vm299, %v278, 0
      %v310 = vsel %vm299, %v279, 0
      %v313 = vsel %vm299, %v280, 0
      %v316 = vsel %vm299, %v281, 0
      %v319 = vsel %vm299, %v282, 0
      %v322 = vsel %vm299, %v283, 0
      %v325 = vsel %vm299, %v284, 0
      %v328 = vsel %vm299, %v285, 0
      %v331 = vsel %vm299, %v286, 0
      %v334 = vsel %vm299, %v287, 0
      %v337 = vsel %vm299, %v288, 0
      %v340 = vsel %vm299, %v289, 0
      %v343 = vsel %vm299, %v290, 0
      %v346 = vsel %vm299, %v291, 0
      %v349 = vsel %vm299, %v292, 0
      %v352 = vsel %vm299, %v293, 0
      %v355 = vsel %vm299, %v294, 0
      %v358 = vsel %vm299, %v295, 0
      %v361 = vsel %vm299, %v296, 0
      %vm363 = vcmask 1040384
      %vm364 = vcmask 1041408
      %v365 = vsel %vm363, 4294967295, 65535
      %v366 = vsel %vm364, %v365, 0
      %v368 = vand.u32 %v298, %v366
      %370 = vmatprep.subr.bf16.mxu0 0
      %371 = vmatpush1.bf16.msra.mxu0 0
      %372 = vmatprep.subr.bf16.mxu0 0
      %373 = vmatpush1.bf16.msra.mxu0 0
      %374 = vmatprep.subr.bf16.mxu0 0
      %375 = vmatpush1.bf16.msra.mxu0 0
      %376 = vmatprep.subr.bf16.mxu0 0
      %377 = vmatpush1.bf16.msra.mxu0 0
      %378 = vmatprep.subr.bf16.mxu0 0
      %379 = vmatpush1.bf16.msra.mxu0 0
      %380 = vmatprep.subr.bf16.mxu0 0
      %381 = vmatpush1.bf16.msra.mxu0 0
      %382 = vmatprep.subr.bf16.mxu0 0
      %383 = vmatpush1.bf16.msra.mxu0 0
      %384 = vmatprep.subr.bf16.mxu0 0
      %385 = vmatpush1.bf16.msra.mxu0 %v368
      %386 = vmatprep.subr.bf16.mxu0 0
      %387 = vmatpush2.bf16.msra.mxu0 0
      %388 = vmatprep.subr.bf16.mxu0 0
      %389 = vmatpush2.bf16.msra.mxu0 0
      %390 = vmatprep.subr.bf16.mxu0 0
      %391 = vmatpush2.bf16.msra.mxu0 0
      %392 = vmatprep.subr.bf16.mxu0 0
      %393 = vmatpush2.bf16.msra.mxu0 0
      %394 = vmatprep.subr.bf16.mxu0 0
      %395 = vmatpush2.bf16.msra.mxu0 0
      %396 = vmatprep.subr.bf16.mxu0 0
      %397 = vmatpush2.bf16.msra.mxu0 0
      %398 = vmatprep.subr.bf16.mxu0 0
      %399 = vmatpush2.bf16.msra.mxu0 0
      %400 = vmatprep.subr.bf16.mxu0 0
      %401 = vmatpush2.bf16.msra.mxu0 0
      %402 = vmatprep.mubr.bf16.mxu0 0
      %403 = vmatmul.mubr.bf16.gmra.mxu0 %v301
      %v404 = vpop.f32.mrf.mxu0
      %v405 = vadd.f32 0.0, %v404
      %v406 = vpop.f32.mrf.mxu0
      %v407 = vpop.f32.mrf.mxu0
      %v408 = vadd.f32 0.0, %v407
      %v409 = vpop.f32.mrf.mxu0
      %410 = vmatprep.mubr.bf16.mxu0 0
      %411 = vmatmul.mubr.bf16.gmra.mxu0 %v304
      %v412 = vpop.f32.mrf.mxu0
      %v413 = vadd.f32 0.0, %v412
      %v414 = vpop.f32.mrf.mxu0
      %v415 = vpop.f32.mrf.mxu0
      %v416 = vadd.f32 0.0, %v415
      %v417 = vpop.f32.mrf.mxu0
      %418 = vmatprep.mubr.bf16.mxu0 0
      %419 = vmatmul.mubr.bf16.gmra.mxu0 %v307
      %v420 = vpop.f32.mrf.mxu0
      %v421 = vadd.f32 0.0, %v420
      %v422 = vpop.f32.mrf.mxu0
      %v423 = vpop.f32.mrf.mxu0
      %v424 = vadd.f32 0.0, %v423
      %v425 = vpop.f32.mrf.mxu0
      %426 = vmatprep.mubr.bf16.mxu0 0
      %427 = vmatmul.mubr.bf16.gmra.mxu0 %v310
      %v428 = vpop.f32.mrf.mxu0
      %v429 = vadd.f32 0.0, %v428
      %v430 = vpop.f32.mrf.mxu0
      %v431 = vpop.f32.mrf.mxu0
      %v432 = vadd.f32 0.0, %v431
      %v433 = vpop.f32.mrf.mxu0
      %434 = vmatprep.mubr.bf16.mxu0 0
      %435 = vmatmul.mubr.bf16.gmra.mxu0 %v313
      %v436 = vpop.f32.mrf.mxu0
      %v437 = vadd.f32 0.0, %v436
      %v438 = vpop.f32.mrf.mxu0
      %v439 = vpop.f32.mrf.mxu0
      %v440 = vadd.f32 0.0, %v439
      %v441 = vpop.f32.mrf.mxu0
      %442 = vmatprep.mubr.bf16.mxu0 0
      %443 = vmatmul.mubr.bf16.gmra.mxu0 %v316
      %v444 = vpop.f32.mrf.mxu0
      %v445 = vadd.f32 0.0, %v444
      %v446 = vpop.f32.mrf.mxu0
      %v447 = vpop.f32.mrf.mxu0
      %v448 = vadd.f32 0.0, %v447
      %v449 = vpop.f32.mrf.mxu0
      %450 = vmatprep.mubr.bf16.mxu0 0
      %451 = vmatmul.mubr.bf16.gmra.mxu0 %v319
      %v452 = vpop.f32.mrf.mxu0
      %v453 = vadd.f32 0.0, %v452
      %v454 = vpop.f32.mrf.mxu0
      %v455 = vpop.f32.mrf.mxu0
      %v456 = vadd.f32 0.0, %v455
      %v457 = vpop.f32.mrf.mxu0
      %458 = vmatprep.mubr.bf16.mxu0 0
      %459 = vmatmul.mubr.bf16.gmra.mxu0 %v322
      %v460 = vpop.f32.mrf.mxu0
      %v461 = vadd.f32 0.0, %v460
      %v462 = vpop.f32.mrf.mxu0
      %v463 = vpop.f32.mrf.mxu0
      %v464 = vadd.f32 0.0, %v463
      %v465 = vpop.f32.mrf.mxu0
      %466 = vmatprep.mubr.bf16.mxu0 0
      %467 = vmatmul.mubr.bf16.gmra.mxu0 %v325
      %v468 = vpop.f32.mrf.mxu0
      %v469 = vadd.f32 0.0, %v468
      %v470 = vpop.f32.mrf.mxu0
      %v471 = vpop.f32.mrf.mxu0
      %v472 = vadd.f32 0.0, %v471
      %v473 = vpop.f32.mrf.mxu0
      %474 = vmatprep.mubr.bf16.mxu0 0
      %475 = vmatmul.mubr.bf16.gmra.mxu0 %v328
      %v476 = vpop.f32.mrf.mxu0
      %v477 = vadd.f32 0.0, %v476
      %v478 = vpop.f32.mrf.mxu0
      %v479 = vpop.f32.mrf.mxu0
      %v480 = vadd.f32 0.0, %v479
      %v481 = vpop.f32.mrf.mxu0
      %482 = vmatprep.mubr.bf16.mxu0 0
      %483 = vmatmul.mubr.bf16.gmra.mxu0 %v331
      %v484 = vpop.f32.mrf.mxu0
      %v485 = vadd.f32 0.0, %v484
      %v486 = vpop.f32.mrf.mxu0
      %v487 = vpop.f32.mrf.mxu0
      %v488 = vadd.f32 0.0, %v487
      %v489 = vpop.f32.mrf.mxu0
      %490 = vmatprep.mubr.bf16.mxu0 0
      %491 = vmatmul.mubr.bf16.gmra.mxu0 %v334
      %v492 = vpop.f32.mrf.mxu0
      %v493 = vadd.f32 0.0, %v492
      %v494 = vpop.f32.mrf.mxu0
      %v495 = vpop.f32.mrf.mxu0
      %v496 = vadd.f32 0.0, %v495
      %v497 = vpop.f32.mrf.mxu0
      %498 = vmatprep.mubr.bf16.mxu0 0
      %499 = vmatmul.mubr.bf16.gmra.mxu0 %v337
      %v500 = vpop.f32.mrf.mxu0
      %v501 = vadd.f32 0.0, %v500
      %v502 = vpop.f32.mrf.mxu0
      %v503 = vpop.f32.mrf.mxu0
      %v504 = vadd.f32 0.0, %v503
      %v505 = vpop.f32.mrf.mxu0
      %506 = vmatprep.mubr.bf16.mxu0 0
      %507 = vmatmul.mubr.bf16.gmra.mxu0 %v340
      %v508 = vpop.f32.mrf.mxu0
      %v509 = vadd.f32 0.0, %v508
      %v510 = vpop.f32.mrf.mxu0
      %v511 = vpop.f32.mrf.mxu0
      %v512 = vadd.f32 0.0, %v511
      %v513 = vpop.f32.mrf.mxu0
      %514 = vmatprep.mubr.bf16.mxu0 0
      %515 = vmatmul.mubr.bf16.gmra.mxu0 %v343
      %v516 = vpop.f32.mrf.mxu0
      %v517 = vadd.f32 0.0, %v516
      %v518 = vpop.f32.mrf.mxu0
      %v519 = vpop.f32.mrf.mxu0
      %v520 = vadd.f32 0.0, %v519
      %v521 = vpop.f32.mrf.mxu0
      %522 = vmatprep.mubr.bf16.mxu0 0
      %523 = vmatmul.mubr.bf16.gmra.mxu0 %v346
      %v524 = vpop.f32.mrf.mxu0
      %v525 = vadd.f32 0.0, %v524
      %v526 = vpop.f32.mrf.mxu0
      %v527 = vpop.f32.mrf.mxu0
      %v528 = vadd.f32 0.0, %v527
      %v529 = vpop.f32.mrf.mxu0
      %530 = vmatprep.mubr.bf16.mxu0 0
      %531 = vmatmul.mubr.bf16.gmra.mxu0 %v349
      %v532 = vpop.f32.mrf.mxu0
      %v533 = vadd.f32 0.0, %v532
      %v534 = vpop.f32.mrf.mxu0
      %v535 = vpop.f32.mrf.mxu0
      %v536 = vadd.f32 0.0, %v535
      %v537 = vpop.f32.mrf.mxu0
      %538 = vmatprep.mubr.bf16.mxu0 0
      %539 = vmatmul.mubr.bf16.gmra.mxu0 %v352
      %v540 = vpop.f32.mrf.mxu0
      %v541 = vadd.f32 0.0, %v540
      %v542 = vpop.f32.mrf.mxu0
      %v543 = vpop.f32.mrf.mxu0
      %v544 = vadd.f32 0.0, %v543
      %v545 = vpop.f32.mrf.mxu0
      %546 = vmatprep.mubr.bf16.mxu0 0
      %547 = vmatmul.mubr.bf16.gmra.mxu0 %v355
      %v548 = vpop.f32.mrf.mxu0
      %v549 = vadd.f32 0.0, %v548
      %v550 = vpop.f32.mrf.mxu0
      %v551 = vpop.f32.mrf.mxu0
      %v552 = vadd.f32 0.0, %v551
      %v553 = vpop.f32.mrf.mxu0
      %554 = vmatprep.mubr.bf16.mxu0 0
      %555 = vmatmul.mubr.bf16.gmra.mxu0 %v358
      %v556 = vpop.f32.mrf.mxu0
      %v557 = vadd.f32 0.0, %v556
      %v558 = vpop.f32.mrf.mxu0
      %v559 = vpop.f32.mrf.mxu0
      %v560 = vadd.f32 0.0, %v559
      %v561 = vpop.f32.mrf.mxu0
      %562 = vmatprep.mubr.bf16.mxu0 0
      %563 = vmatmul.mubr.bf16.gmra.mxu0 %v361
      %v564 = vpop.f32.mrf.mxu0
      %v565 = vadd.f32 0.0, %v564
      %v566 = vpop.f32.mrf.mxu0
      %v567 = vpop.f32.mrf.mxu0
      %v568 = vpop.f32.mrf.mxu0
      %569 = vdwg.mxu0
      %v571 = vsel %vm299, %v213, 0
      %v574 = vsel %vm299, %v214, 0
      %v577 = vsel %vm299, %v215, 0
      %v580 = vsel %vm299, %v216, 0
      %v583 = vsel %vm299, %v217, 0
      %v586 = vsel %vm299, %v218, 0
      %v589 = vsel %vm299, %v219, 0
      %v592 = vsel %vm299, %v220, 0
      %v595 = vsel %vm299, %v221, 0
      %v598 = vsel %vm299, %v222, 0
      %v601 = vsel %vm299, %v223, 0
      %v604 = vsel %vm299, %v224, 0
      %v607 = vsel %vm299, %v225, 0
      %v610 = vsel %vm299, %v226, 0
      %v613 = vsel %vm299, %v227, 0
      %v616 = vsel %vm299, %v228, 0
      %v619 = vsel %vm299, %v229, 0
      %v622 = vsel %vm299, %v230, 0
      %v625 = vsel %vm299, %v231, 0
      %v628 = vsel %vm299, %v232, 0
      %v631 = vsel %vm299, %v233, 0
      %v634 = vand.u32 %v234, %v366
      %636 = vmatprep.subr.bf16.mxu0 0
      %637 = vmatpush1.bf16.msra.mxu0 0
      %638 = vmatprep.subr.bf16.mxu0 0
      %639 = vmatpush1.bf16.msra.mxu0 0
      %640 = vmatprep.subr.bf16.mxu0 0
      %641 = vmatpush1.bf16.msra.mxu0 0
      %642 = vmatprep.subr.bf16.mxu0 0
      %643 = vmatpush1.bf16.msra.mxu0 0
      %644 = vmatprep.subr.bf16.mxu0 0
      %645 = vmatpush1.bf16.msra.mxu0 0
      %646 = vmatprep.subr.bf16.mxu0 0
      %647 = vmatpush1.bf16.msra.mxu0 0
      %648 = vmatprep.subr.bf16.mxu0 0
      %649 = vmatpush1.bf16.msra.mxu0 0
      %650 = vmatprep.subr.bf16.mxu0 0
      %651 = vmatpush1.bf16.msra.mxu0 %v634
      %652 = vmatprep.subr.bf16.mxu0 0
      %653 = vmatpush2.bf16.msra.mxu0 0
      %654 = vmatprep.subr.bf16.mxu0 0
      %655 = vmatpush2.bf16.msra.mxu0 0
      %656 = vmatprep.subr.bf16.mxu0 0
      %657 = vmatpush2.bf16.msra.mxu0 0
      %658 = vmatprep.subr.bf16.mxu0 0
      %659 = vmatpush2.bf16.msra.mxu0 0
      %660 = vmatprep.subr.bf16.mxu0 0
      %661 = vmatpush2.bf16.msra.mxu0 0
      %662 = vmatprep.subr.bf16.mxu0 0
      %663 = vmatpush2.bf16.msra.mxu0 0
      %664 = vmatprep.subr.bf16.mxu0 0
      %665 = vmatpush2.bf16.msra.mxu0 0
      %666 = vmatprep.subr.bf16.mxu0 0
      %667 = vmatpush2.bf16.msra.mxu0 0
      %668 = vmatprep.mubr.bf16.mxu0 0
      %669 = vmatmul.mubr.bf16.gmra.mxu0 %v571
      %v670 = vpop.f32.mrf.mxu0
      %v671 = vadd.f32 %v405, %v670
      %v672 = vpop.f32.mrf.mxu0
      %v673 = vpop.f32.mrf.mxu0
      %v674 = vadd.f32 %v408, %v673
      %v675 = vpop.f32.mrf.mxu0
      %676 = vmatprep.mubr.bf16.mxu0 0
      %677 = vmatmul.mubr.bf16.gmra.mxu0 %v574
      %v678 = vpop.f32.mrf.mxu0
      %v679 = vadd.f32 %v413, %v678
      %v680 = vpop.f32.mrf.mxu0
      %v681 = vpop.f32.mrf.mxu0
      %v682 = vadd.f32 %v416, %v681
      %v683 = vpop.f32.mrf.mxu0
      %684 = vmatprep.mubr.bf16.mxu0 0
      %685 = vmatmul.mubr.bf16.gmra.mxu0 %v577
      %v686 = vpop.f32.mrf.mxu0
      %v687 = vadd.f32 %v421, %v686
      %v688 = vpop.f32.mrf.mxu0
      %v689 = vpop.f32.mrf.mxu0
      %v690 = vadd.f32 %v424, %v689
      %v691 = vpop.f32.mrf.mxu0
      %692 = vmatprep.mubr.bf16.mxu0 0
      %693 = vmatmul.mubr.bf16.gmra.mxu0 %v580
      %v694 = vpop.f32.mrf.mxu0
      %v695 = vadd.f32 %v429, %v694
      %v696 = vpop.f32.mrf.mxu0
      %v697 = vpop.f32.mrf.mxu0
      %v698 = vadd.f32 %v432, %v697
      %v699 = vpop.f32.mrf.mxu0
      %700 = vmatprep.mubr.bf16.mxu0 0
      %701 = vmatmul.mubr.bf16.gmra.mxu0 %v583
      %v702 = vpop.f32.mrf.mxu0
      %v703 = vadd.f32 %v437, %v702
      %v704 = vpop.f32.mrf.mxu0
      %v705 = vpop.f32.mrf.mxu0
      %v706 = vadd.f32 %v440, %v705
      %v707 = vpop.f32.mrf.mxu0
      %708 = vmatprep.mubr.bf16.mxu0 0
      %709 = vmatmul.mubr.bf16.gmra.mxu0 %v586
      %v710 = vpop.f32.mrf.mxu0
      %v711 = vadd.f32 %v445, %v710
      %v712 = vpop.f32.mrf.mxu0
      %v713 = vpop.f32.mrf.mxu0
      %v714 = vadd.f32 %v448, %v713
      %v715 = vpop.f32.mrf.mxu0
      %716 = vmatprep.mubr.bf16.mxu0 0
      %717 = vmatmul.mubr.bf16.gmra.mxu0 %v589
      %v718 = vpop.f32.mrf.mxu0
      %v719 = vadd.f32 %v453, %v718
      %v720 = vpop.f32.mrf.mxu0
      %v721 = vpop.f32.mrf.mxu0
      %v722 = vadd.f32 %v456, %v721
      %v723 = vpop.f32.mrf.mxu0
      %724 = vmatprep.mubr.bf16.mxu0 0
      %725 = vmatmul.mubr.bf16.gmra.mxu0 %v592
      %v726 = vpop.f32.mrf.mxu0
      %v727 = vadd.f32 %v461, %v726
      %v728 = vpop.f32.mrf.mxu0
      %v729 = vpop.f32.mrf.mxu0
      %v730 = vadd.f32 %v464, %v729
      %v731 = vpop.f32.mrf.mxu0
      %732 = vmatprep.mubr.bf16.mxu0 0
      %733 = vmatmul.mubr.bf16.gmra.mxu0 %v595
      %v734 = vpop.f32.mrf.mxu0
      %v735 = vadd.f32 %v469, %v734
      %v736 = vpop.f32.mrf.mxu0
      %v737 = vpop.f32.mrf.mxu0
      %v738 = vadd.f32 %v472, %v737
      %v739 = vpop.f32.mrf.mxu0
      %740 = vmatprep.mubr.bf16.mxu0 0
      %741 = vmatmul.mubr.bf16.gmra.mxu0 %v598
      %v742 = vpop.f32.mrf.mxu0
      %v743 = vadd.f32 %v477, %v742
      %v744 = vpop.f32.mrf.mxu0
      %v745 = vpop.f32.mrf.mxu0
      %v746 = vadd.f32 %v480, %v745
      %v747 = vpop.f32.mrf.mxu0
      %748 = vmatprep.mubr.bf16.mxu0 0
      %749 = vmatmul.mubr.bf16.gmra.mxu0 %v601
      %v750 = vpop.f32.mrf.mxu0
      %v751 = vadd.f32 %v485, %v750
      %v752 = vpop.f32.mrf.mxu0
      %v753 = vpop.f32.mrf.mxu0
      %v754 = vadd.f32 %v488, %v753
      %v755 = vpop.f32.mrf.mxu0
      %756 = vmatprep.mubr.bf16.mxu0 0
      %757 = vmatmul.mubr.bf16.gmra.mxu0 %v604
      %v758 = vpop.f32.mrf.mxu0
      %v759 = vadd.f32 %v493, %v758
      %v760 = vpop.f32.mrf.mxu0
      %v761 = vpop.f32.mrf.mxu0
      %v762 = vadd.f32 %v496, %v761
      %v763 = vpop.f32.mrf.mxu0
      %764 = vmatprep.mubr.bf16.mxu0 0
      %765 = vmatmul.mubr.bf16.gmra.mxu0 %v607
      %v766 = vpop.f32.mrf.mxu0
      %v767 = vadd.f32 %v501, %v766
      %v768 = vpop.f32.mrf.mxu0
      %v769 = vpop.f32.mrf.mxu0
      %v770 = vadd.f32 %v504, %v769
      %v771 = vpop.f32.mrf.mxu0
      %772 = vmatprep.mubr.bf16.mxu0 0
      %773 = vmatmul.mubr.bf16.gmra.mxu0 %v610
      %v774 = vpop.f32.mrf.mxu0
      %v775 = vadd.f32 %v509, %v774
      %v776 = vpop.f32.mrf.mxu0
      %v777 = vpop.f32.mrf.mxu0
      %v778 = vadd.f32 %v512, %v777
      %v779 = vpop.f32.mrf.mxu0
      %780 = vmatprep.mubr.bf16.mxu0 0
      %781 = vmatmul.mubr.bf16.gmra.mxu0 %v613
      %v782 = vpop.f32.mrf.mxu0
      %v783 = vadd.f32 %v517, %v782
      %v784 = vpop.f32.mrf.mxu0
      %v785 = vpop.f32.mrf.mxu0
      %v786 = vadd.f32 %v520, %v785
      %v787 = vpop.f32.mrf.mxu0
      %788 = vmatprep.mubr.bf16.mxu0 0
      %789 = vmatmul.mubr.bf16.gmra.mxu0 %v616
      %v790 = vpop.f32.mrf.mxu0
      %v791 = vadd.f32 %v525, %v790
      %v792 = vpop.f32.mrf.mxu0
      %v793 = vpop.f32.mrf.mxu0
      %v794 = vadd.f32 %v528, %v793
      %v795 = vpop.f32.mrf.mxu0
      %796 = vmatprep.mubr.bf16.mxu0 0
      %797 = vmatmul.mubr.bf16.gmra.mxu0 %v619
      %v798 = vpop.f32.mrf.mxu0
      %v799 = vadd.f32 %v533, %v798
      %v800 = vpop.f32.mrf.mxu0
      %v801 = vpop.f32.mrf.mxu0
      %v802 = vadd.f32 %v536, %v801
      %v803 = vpop.f32.mrf.mxu0
      %804 = vmatprep.mubr.bf16.mxu0 0
      %805 = vmatmul.mubr.bf16.gmra.mxu0 %v622
      %v806 = vpop.f32.mrf.mxu0
      %v807 = vadd.f32 %v541, %v806
      %v808 = vpop.f32.mrf.mxu0
      %v809 = vpop.f32.mrf.mxu0
      %v810 = vadd.f32 %v544, %v809
      %v811 = vpop.f32.mrf.mxu0
      %812 = vmatprep.mubr.bf16.mxu0 0
      %813 = vmatmul.mubr.bf16.gmra.mxu0 %v625
      %v814 = vpop.f32.mrf.mxu0
      %v815 = vadd.f32 %v549, %v814
      %v816 = vpop.f32.mrf.mxu0
      %v817 = vpop.f32.mrf.mxu0
      %v818 = vadd.f32 %v552, %v817
      %v819 = vpop.f32.mrf.mxu0
      %820 = vmatprep.mubr.bf16.mxu0 0
      %821 = vmatmul.mubr.bf16.gmra.mxu0 %v628
      %v822 = vpop.f32.mrf.mxu0
      %v823 = vadd.f32 %v557, %v822
      %v824 = vpop.f32.mrf.mxu0
      %v825 = vpop.f32.mrf.mxu0
      %v826 = vadd.f32 %v560, %v825
      %v827 = vpop.f32.mrf.mxu0
      %828 = vmatprep.mubr.bf16.mxu0 0
      %829 = vmatmul.mubr.bf16.gmra.mxu0 %v631
      %v830 = vpop.f32.mrf.mxu0
      %v831 = vadd.f32 %v565, %v830
      %v832 = vpop.f32.mrf.mxu0
      %v833 = vpop.f32.mrf.mxu0
      %v834 = vpop.f32.mrf.mxu0
      %835 = vdwg.mxu0
      %v836 = vld [vmem:[%s165 + $0x2] sm:$0xff]
      %v837 = vld [vmem:[%s165 + $0xa] sm:$0xff]
      %v838 = vld [vmem:[%s165 + $0x12] sm:$0xff]
      %v839 = vld [vmem:[%s165 + $0x1a] sm:$0xff]
      %v840 = vld [vmem:[%s165 + $0x22] sm:$0xff]
      %v841 = vld [vmem:[%s165 + $0x2a] sm:$0xff]
      %v842 = vld [vmem:[%s165 + $0x32] sm:$0xff]
      %v843 = vld [vmem:[%s165 + $0x3a] sm:$0xff]
      %v844 = vld [vmem:[%s165 + $0x42] sm:$0xff]
      %v845 = vld [vmem:[%s165 + $0x4a] sm:$0xff]
      %v846 = vld [vmem:[%s165 + $0x52] sm:$0xff]
      %v847 = vld [vmem:[%s165 + $0x5a] sm:$0xff]
      %v848 = vld [vmem:[%s165 + $0x62] sm:$0xff]
      %v849 = vld [vmem:[%s165 + $0x6a] sm:$0xff]
      %v850 = vld [vmem:[%s165 + $0x72] sm:$0xff]
      %v851 = vld [vmem:[%s165 + $0x7a] sm:$0xff]
      %v852 = vld [vmem:[%s165 + $0x82] sm:$0xff]
      %v853 = vld [vmem:[%s165 + $0x8a] sm:$0xff]
      %v854 = vld [vmem:[%s165 + $0x92] sm:$0xff]
      %v855 = vld [vmem:[%s165 + $0x9a] sm:$0xff]
      %v856 = vld [vmem:[%s165 + $0xa2] sm:$0xff]
      %v857 = vld [vmem:[%s165 + $0xaa] sm:$0xff]
      %v858 = vld [vmem:[%s165 + $0xb2] sm:$0xff]
      %v859 = vld [vmem:[%s165 + $0xba] sm:$0xff]
      %v860 = vld [vmem:[%s165 + $0xc2] sm:$0xff]
      %v861 = vld [vmem:[%s165 + $0xca] sm:$0xff]
      %v862 = vld [vmem:[%s165 + $0xd2] sm:$0xff]
      %v863 = vld [vmem:[%s165 + $0xda] sm:$0xff]
      %v864 = vld [vmem:[%s165 + $0xe2] sm:$0xff]
      %v865 = vld [vmem:[%s165 + $0xea] sm:$0xff]
      %v866 = vld [vmem:[%s165 + $0xf2] sm:$0xff]
      %v867 = vld [vmem:[%s165 + $0xfa] sm:$0xff]
      %v868 = vld [vmem:[%s165 + $0x102] sm:$0xff]
      %v869 = vld [vmem:[%s165 + $0x10a] sm:$0xff]
      %v870 = vld [vmem:[%s165 + $0x112] sm:$0xff]
      %v871 = vld [vmem:[%s165 + $0x11a] sm:$0xff]
      %v872 = vld [vmem:[%s165 + $0x122] sm:$0xff]
      %v873 = vld [vmem:[%s165 + $0x12a] sm:$0xff]
      %v874 = vld [vmem:[%s165 + $0x132] sm:$0xff]
      %v875 = vld [vmem:[%s165 + $0x13a] sm:$0xff]
      %v876 = vld [vmem:[%s165 + $0x142] sm:$0xf]
      %v877 = vpack.c.bf16 %v837, %v836
      %v878 = vpack.c.bf16 %v839, %v838
      %v879 = vpack.c.bf16 %v841, %v840
      %v880 = vpack.c.bf16 %v843, %v842
      %v881 = vpack.c.bf16 %v845, %v844
      %v882 = vpack.c.bf16 %v847, %v846
      %v883 = vpack.c.bf16 %v849, %v848
      %v884 = vpack.c.bf16 %v851, %v850
      %v885 = vpack.c.bf16 %v853, %v852
      %v886 = vpack.c.bf16 %v855, %v854
      %v887 = vpack.c.bf16 %v857, %v856
      %v888 = vpack.c.bf16 %v859, %v858
      %v889 = vpack.c.bf16 %v861, %v860
      %v890 = vpack.c.bf16 %v863, %v862
      %v891 = vpack.c.bf16 %v865, %v864
      %v892 = vpack.c.bf16 %v867, %v866
      %v893 = vpack.c.bf16 %v869, %v868
      %v894 = vpack.c.bf16 %v871, %v870
      %v895 = vpack.c.bf16 %v873, %v872
      %v896 = vpack.c.bf16 %v875, %v874
      %v897 = vpack.c.bf16 %v876, %v876
      %s898 = scalar_lea.vmem %s1, 4
      %v899 = vld [vmem:[%s898] sm:$0x3]
      %v901 = vsel %vm299, %v877, 0
      %v904 = vsel %vm299, %v878, 0
      %v907 = vsel %vm299, %v879, 0
      %v910 = vsel %vm299, %v880, 0
      %v913 = vsel %vm299, %v881, 0
      %v916 = vsel %vm299, %v882, 0
      %v919 = vsel %vm299, %v883, 0
      %v922 = vsel %vm299, %v884, 0
      %v925 = vsel %vm299, %v885, 0
      %v928 = vsel %vm299, %v886, 0
      %v931 = vsel %vm299, %v887, 0
      %v934 = vsel %vm299, %v888, 0
      %v937 = vsel %vm299, %v889, 0
      %v940 = vsel %vm299, %v890, 0
      %v943 = vsel %vm299, %v891, 0
      %v946 = vsel %vm299, %v892, 0
      %v949 = vsel %vm299, %v893, 0
      %v952 = vsel %vm299, %v894, 0
      %v955 = vsel %vm299, %v895, 0
      %v958 = vsel %vm299, %v896, 0
      %v961 = vsel %vm299, %v897, 0
      %v964 = vand.u32 %v899, %v366
      %966 = vmatprep.subr.bf16.mxu0 0
      %967 = vmatpush1.bf16.msra.mxu0 0
      %968 = vmatprep.subr.bf16.mxu0 0
      %969 = vmatpush1.bf16.msra.mxu0 0
      %970 = vmatprep.subr.bf16.mxu0 0
      %971 = vmatpush1.bf16.msra.mxu0 0
      %972 = vmatprep.subr.bf16.mxu0 0
      %973 = vmatpush1.bf16.msra.mxu0 0
      %974 = vmatprep.subr.bf16.mxu0 0
      %975 = vmatpush1.bf16.msra.mxu0 0
      %976 = vmatprep.subr.bf16.mxu0 0
      %977 = vmatpush1.bf16.msra.mxu0 0
      %978 = vmatprep.subr.bf16.mxu0 0
      %979 = vmatpush1.bf16.msra.mxu0 0
      %980 = vmatprep.subr.bf16.mxu0 0
      %981 = vmatpush1.bf16.msra.mxu0 %v964
      %982 = vmatprep.subr.bf16.mxu0 0
      %983 = vmatpush2.bf16.msra.mxu0 0
      %984 = vmatprep.subr.bf16.mxu0 0
      %985 = vmatpush2.bf16.msra.mxu0 0
      %986 = vmatprep.subr.bf16.mxu0 0
      %987 = vmatpush2.bf16.msra.mxu0 0
      %988 = vmatprep.subr.bf16.mxu0 0
      %989 = vmatpush2.bf16.msra.mxu0 0
      %990 = vmatprep.subr.bf16.mxu0 0
      %991 = vmatpush2.bf16.msra.mxu0 0
      %992 = vmatprep.subr.bf16.mxu0 0
      %993 = vmatpush2.bf16.msra.mxu0 0
      %994 = vmatprep.subr.bf16.mxu0 0
      %995 = vmatpush2.bf16.msra.mxu0 0
      %996 = vmatprep.subr.bf16.mxu0 0
      %997 = vmatpush2.bf16.msra.mxu0 0
      %998 = vmatprep.mubr.bf16.mxu0 0
      %999 = vmatmul.mubr.bf16.gmra.mxu0 %v901
      %v1000 = vpop.f32.mrf.mxu0
      %v1001 = vadd.f32 0.0, %v1000
      %v1002 = vpop.f32.mrf.mxu0
      %v1003 = vpop.f32.mrf.mxu0
      %v1004 = vadd.f32 0.0, %v1003
      %v1005 = vpop.f32.mrf.mxu0
      %1006 = vmatprep.mubr.bf16.mxu0 0
      %1007 = vmatmul.mubr.bf16.gmra.mxu0 %v904
      %v1008 = vpop.f32.mrf.mxu0
      %v1009 = vadd.f32 0.0, %v1008
      %v1010 = vpop.f32.mrf.mxu0
      %v1011 = vpop.f32.mrf.mxu0
      %v1012 = vadd.f32 0.0, %v1011
      %v1013 = vpop.f32.mrf.mxu0
      %1014 = vmatprep.mubr.bf16.mxu0 0
      %1015 = vmatmul.mubr.bf16.gmra.mxu0 %v907
      %v1016 = vpop.f32.mrf.mxu0
      %v1017 = vadd.f32 0.0, %v1016
      %v1018 = vpop.f32.mrf.mxu0
      %v1019 = vpop.f32.mrf.mxu0
      %v1020 = vadd.f32 0.0, %v1019
      %v1021 = vpop.f32.mrf.mxu0
      %1022 = vmatprep.mubr.bf16.mxu0 0
      %1023 = vmatmul.mubr.bf16.gmra.mxu0 %v910
      %v1024 = vpop.f32.mrf.mxu0
      %v1025 = vadd.f32 0.0, %v1024
      %v1026 = vpop.f32.mrf.mxu0
      %v1027 = vpop.f32.mrf.mxu0
      %v1028 = vadd.f32 0.0, %v1027
      %v1029 = vpop.f32.mrf.mxu0
      %1030 = vmatprep.mubr.bf16.mxu0 0
      %1031 = vmatmul.mubr.bf16.gmra.mxu0 %v913
      %v1032 = vpop.f32.mrf.mxu0
      %v1033 = vadd.f32 0.0, %v1032
      %v1034 = vpop.f32.mrf.mxu0
      %v1035 = vpop.f32.mrf.mxu0
      %v1036 = vadd.f32 0.0, %v1035
      %v1037 = vpop.f32.mrf.mxu0
      %1038 = vmatprep.mubr.bf16.mxu0 0
      %1039 = vmatmul.mubr.bf16.gmra.mxu0 %v916
      %v1040 = vpop.f32.mrf.mxu0
      %v1041 = vadd.f32 0.0, %v1040
      %v1042 = vpop.f32.mrf.mxu0
      %v1043 = vpop.f32.mrf.mxu0
      %v1044 = vadd.f32 0.0, %v1043
      %v1045 = vpop.f32.mrf.mxu0
      %1046 = vmatprep.mubr.bf16.mxu0 0
      %1047 = vmatmul.mubr.bf16.gmra.mxu0 %v919
      %v1048 = vpop.f32.mrf.mxu0
      %v1049 = vadd.f32 0.0, %v1048
      %v1050 = vpop.f32.mrf.mxu0
      %v1051 = vpop.f32.mrf.mxu0
      %v1052 = vadd.f32 0.0, %v1051
      %v1053 = vpop.f32.mrf.mxu0
      %1054 = vmatprep.mubr.bf16.mxu0 0
      %1055 = vmatmul.mubr.bf16.gmra.mxu0 %v922
      %v1056 = vpop.f32.mrf.mxu0
      %v1057 = vadd.f32 0.0, %v1056
      %v1058 = vpop.f32.mrf.mxu0
      %v1059 = vpop.f32.mrf.mxu0
      %v1060 = vadd.f32 0.0, %v1059
      %v1061 = vpop.f32.mrf.mxu0
      %1062 = vmatprep.mubr.bf16.mxu0 0
      %1063 = vmatmul.mubr.bf16.gmra.mxu0 %v925
      %v1064 = vpop.f32.mrf.mxu0
      %v1065 = vadd.f32 0.0, %v1064
      %v1066 = vpop.f32.mrf.mxu0
      %v1067 = vpop.f32.mrf.mxu0
      %v1068 = vadd.f32 0.0, %v1067
      %v1069 = vpop.f32.mrf.mxu0
      %1070 = vmatprep.mubr.bf16.mxu0 0
      %1071 = vmatmul.mubr.bf16.gmra.mxu0 %v928
      %v1072 = vpop.f32.mrf.mxu0
      %v1073 = vadd.f32 0.0, %v1072
      %v1074 = vpop.f32.mrf.mxu0
      %v1075 = vpop.f32.mrf.mxu0
      %v1076 = vadd.f32 0.0, %v1075
      %v1077 = vpop.f32.mrf.mxu0
      %1078 = vmatprep.mubr.bf16.mxu0 0
      %1079 = vmatmul.mubr.bf16.gmra.mxu0 %v931
      %v1080 = vpop.f32.mrf.mxu0
      %v1081 = vadd.f32 0.0, %v1080
      %v1082 = vpop.f32.mrf.mxu0
      %v1083 = vpop.f32.mrf.mxu0
      %v1084 = vadd.f32 0.0, %v1083
      %v1085 = vpop.f32.mrf.mxu0
      %1086 = vmatprep.mubr.bf16.mxu0 0
      %1087 = vmatmul.mubr.bf16.gmra.mxu0 %v934
      %v1088 = vpop.f32.mrf.mxu0
      %v1089 = vadd.f32 0.0, %v1088
      %v1090 = vpop.f32.mrf.mxu0
      %v1091 = vpop.f32.mrf.mxu0
      %v1092 = vadd.f32 0.0, %v1091
      %v1093 = vpop.f32.mrf.mxu0
      %1094 = vmatprep.mubr.bf16.mxu0 0
      %1095 = vmatmul.mubr.bf16.gmra.mxu0 %v937
      %v1096 = vpop.f32.mrf.mxu0
      %v1097 = vadd.f32 0.0, %v1096
      %v1098 = vpop.f32.mrf.mxu0
      %v1099 = vpop.f32.mrf.mxu0
      %v1100 = vadd.f32 0.0, %v1099
      %v1101 = vpop.f32.mrf.mxu0
      %1102 = vmatprep.mubr.bf16.mxu0 0
      %1103 = vmatmul.mubr.bf16.gmra.mxu0 %v940
      %v1104 = vpop.f32.mrf.mxu0
      %v1105 = vadd.f32 0.0, %v1104
      %v1106 = vpop.f32.mrf.mxu0
      %v1107 = vpop.f32.mrf.mxu0
      %v1108 = vadd.f32 0.0, %v1107
      %v1109 = vpop.f32.mrf.mxu0
      %1110 = vmatprep.mubr.bf16.mxu0 0
      %1111 = vmatmul.mubr.bf16.gmra.mxu0 %v943
      %v1112 = vpop.f32.mrf.mxu0
      %v1113 = vadd.f32 0.0, %v1112
      %v1114 = vpop.f32.mrf.mxu0
      %v1115 = vpop.f32.mrf.mxu0
      %v1116 = vadd.f32 0.0, %v1115
      %v1117 = vpop.f32.mrf.mxu0
      %1118 = vmatprep.mubr.bf16.mxu0 0
      %1119 = vmatmul.mubr.bf16.gmra.mxu0 %v946
      %v1120 = vpop.f32.mrf.mxu0
      %v1121 = vadd.f32 0.0, %v1120
      %v1122 = vpop.f32.mrf.mxu0
      %v1123 = vpop.f32.mrf.mxu0
      %v1124 = vadd.f32 0.0, %v1123
      %v1125 = vpop.f32.mrf.mxu0
      %1126 = vmatprep.mubr.bf16.mxu0 0
      %1127 = vmatmul.mubr.bf16.gmra.mxu0 %v949
      %v1128 = vpop.f32.mrf.mxu0
      %v1129 = vadd.f32 0.0, %v1128
      %v1130 = vpop.f32.mrf.mxu0
      %v1131 = vpop.f32.mrf.mxu0
      %v1132 = vadd.f32 0.0, %v1131
      %v1133 = vpop.f32.mrf.mxu0
      %1134 = vmatprep.mubr.bf16.mxu0 0
      %1135 = vmatmul.mubr.bf16.gmra.mxu0 %v952
      %v1136 = vpop.f32.mrf.mxu0
      %v1137 = vadd.f32 0.0, %v1136
      %v1138 = vpop.f32.mrf.mxu0
      %v1139 = vpop.f32.mrf.mxu0
      %v1140 = vadd.f32 0.0, %v1139
      %v1141 = vpop.f32.mrf.mxu0
      %1142 = vmatprep.mubr.bf16.mxu0 0
      %1143 = vmatmul.mubr.bf16.gmra.mxu0 %v955
      %v1144 = vpop.f32.mrf.mxu0
      %v1145 = vadd.f32 0.0, %v1144
      %v1146 = vpop.f32.mrf.mxu0
      %v1147 = vpop.f32.mrf.mxu0
      %v1148 = vadd.f32 0.0, %v1147
      %v1149 = vpop.f32.mrf.mxu0
      %1150 = vmatprep.mubr.bf16.mxu0 0
      %1151 = vmatmul.mubr.bf16.gmra.mxu0 %v958
      %v1152 = vpop.f32.mrf.mxu0
      %v1153 = vadd.f32 0.0, %v1152
      %v1154 = vpop.f32.mrf.mxu0
      %v1155 = vpop.f32.mrf.mxu0
      %v1156 = vadd.f32 0.0, %v1155
      %v1157 = vpop.f32.mrf.mxu0
      %1158 = vmatprep.mubr.bf16.mxu0 0
      %1159 = vmatmul.mubr.bf16.gmra.mxu0 %v961
      %v1160 = vpop.f32.mrf.mxu0
      %v1161 = vadd.f32 0.0, %v1160
      %v1162 = vpop.f32.mrf.mxu0
      %v1163 = vpop.f32.mrf.mxu0
      %v1164 = vpop.f32.mrf.mxu0
      %1165 = vdwg.mxu0
      %v1166 = vadd.f32 %v671, %v1001
      %v1167 = vadd.f32 %v674, %v1004
      %v1168 = vadd.f32 %v679, %v1009
      %v1169 = vadd.f32 %v682, %v1012
      %v1170 = vadd.f32 %v687, %v1017
      %v1171 = vadd.f32 %v690, %v1020
      %v1172 = vadd.f32 %v695, %v1025
      %v1173 = vadd.f32 %v698, %v1028
      %v1174 = vadd.f32 %v703, %v1033
      %v1175 = vadd.f32 %v706, %v1036
      %v1176 = vadd.f32 %v711, %v1041
      %v1177 = vadd.f32 %v714, %v1044
      %v1178 = vadd.f32 %v719, %v1049
      %v1179 = vadd.f32 %v722, %v1052
      %v1180 = vadd.f32 %v727, %v1057
      %v1181 = vadd.f32 %v730, %v1060
      %v1182 = vadd.f32 %v735, %v1065
      %v1183 = vadd.f32 %v738, %v1068
      %v1184 = vadd.f32 %v743, %v1073
      %v1185 = vadd.f32 %v746, %v1076
      %v1186 = vadd.f32 %v751, %v1081
      %v1187 = vadd.f32 %v754, %v1084
      %v1188 = vadd.f32 %v759, %v1089
      %v1189 = vadd.f32 %v762, %v1092
      %v1190 = vadd.f32 %v767, %v1097
      %v1191 = vadd.f32 %v770, %v1100
      %v1192 = vadd.f32 %v775, %v1105
      %v1193 = vadd.f32 %v778, %v1108
      %v1194 = vadd.f32 %v783, %v1113
      %v1195 = vadd.f32 %v786, %v1116
      %v1196 = vadd.f32 %v791, %v1121
      %v1197 = vadd.f32 %v794, %v1124
      %v1198 = vadd.f32 %v799, %v1129
      %v1199 = vadd.f32 %v802, %v1132
      %v1200 = vadd.f32 %v807, %v1137
      %v1201 = vadd.f32 %v810, %v1140
      %v1202 = vadd.f32 %v815, %v1145
      %v1203 = vadd.f32 %v818, %v1148
      %v1204 = vadd.f32 %v823, %v1153
      %v1205 = vadd.f32 %v826, %v1156
      %v1206 = vadd.f32 %v831, %v1161
      %v1207 = vld [vmem:[%s165 + $0x12] sm:$0xff]
      %v1208 = vld [vmem:[%s165 + $0x1a] sm:$0xff]
      %v1209 = vld [vmem:[%s165 + $0x22] sm:$0xff]
      %v1210 = vld [vmem:[%s165 + $0x2a] sm:$0xff]
      %v1211 = vld [vmem:[%s165 + $0x32] sm:$0xff]
      %v1212 = vld [vmem:[%s165 + $0x3a] sm:$0xff]
      %v1213 = vld [vmem:[%s165 + $0x42] sm:$0xff]
      %v1214 = vld [vmem:[%s165 + $0x4a] sm:$0xff]
      %v1215 = vld [vmem:[%s165 + $0x52] sm:$0xff]
      %v1216 = vld [vmem:[%s165 + $0x5a] sm:$0xff]
      %v1217 = vld [vmem:[%s165 + $0x62] sm:$0xff]
      %v1218 = vld [vmem:[%s165 + $0x6a] sm:$0xff]
      %v1219 = vld [vmem:[%s165 + $0x72] sm:$0xff]
      %v1220 = vld [vmem:[%s165 + $0x7a] sm:$0xff]
      %v1221 = vld [vmem:[%s165 + $0x82] sm:$0xff]
      %v1222 = vld [vmem:[%s165 + $0x8a] sm:$0xff]
      %v1223 = vld [vmem:[%s165 + $0x92] sm:$0xff]
      %v1224 = vld [vmem:[%s165 + $0x9a] sm:$0xff]
      %v1225 = vld [vmem:[%s165 + $0xa2] sm:$0xff]
      %v1226 = vld [vmem:[%s165 + $0xaa] sm:$0xff]
      %v1227 = vld [vmem:[%s165 + $0xb2] sm:$0xff]
      %v1228 = vld [vmem:[%s165 + $0xba] sm:$0xff]
      %v1229 = vld [vmem:[%s165 + $0xc2] sm:$0xff]
      %v1230 = vld [vmem:[%s165 + $0xca] sm:$0xff]
      %v1231 = vld [vmem:[%s165 + $0xd2] sm:$0xff]
      %v1232 = vld [vmem:[%s165 + $0xda] sm:$0xff]
      %v1233 = vld [vmem:[%s165 + $0xe2] sm:$0xff]
      %v1234 = vld [vmem:[%s165 + $0xea] sm:$0xff]
      %v1235 = vld [vmem:[%s165 + $0xf2] sm:$0xff]
      %v1236 = vld [vmem:[%s165 + $0xfa] sm:$0xff]
      %v1237 = vld [vmem:[%s165 + $0x102] sm:$0xff]
      %v1238 = vld [vmem:[%s165 + $0x10a] sm:$0xff]
      %v1239 = vld [vmem:[%s165 + $0x112] sm:$0xff]
      %v1240 = vld [vmem:[%s165 + $0x11a] sm:$0xff]
      %v1241 = vld [vmem:[%s165 + $0x122] sm:$0xff]
      %v1242 = vld [vmem:[%s165 + $0x12a] sm:$0xff]
      %v1243 = vld [vmem:[%s165 + $0x132] sm:$0xff]
      %v1244 = vld [vmem:[%s165 + $0x13a] sm:$0xff]
      %v1245 = vld [vmem:[%s165 + $0x142] sm:$0xff]
      %v1246 = vld [vmem:[%s165 + $0x14a] sm:$0xff]
      %v1247 = vld [vmem:[%s165 + $0x152] sm:$0xf]
      %v1248 = vpack.c.bf16 %v1208, %v1207
      %v1249 = vpack.c.bf16 %v1210, %v1209
      %v1250 = vpack.c.bf16 %v1212, %v1211
      %v1251 = vpack.c.bf16 %v1214, %v1213
      %v1252 = vpack.c.bf16 %v1216, %v1215
      %v1253 = vpack.c.bf16 %v1218, %v1217
      %v1254 = vpack.c.bf16 %v1220, %v1219
      %v1255 = vpack.c.bf16 %v1222, %v1221
      %v1256 = vpack.c.bf16 %v1224, %v1223
      %v1257 = vpack.c.bf16 %v1226, %v1225
      %v1258 = vpack.c.bf16 %v1228, %v1227
      %v1259 = vpack.c.bf16 %v1230, %v1229
      %v1260 = vpack.c.bf16 %v1232, %v1231
      %v1261 = vpack.c.bf16 %v1234, %v1233
      %v1262 = vpack.c.bf16 %v1236, %v1235
      %v1263 = vpack.c.bf16 %v1238, %v1237
      %v1264 = vpack.c.bf16 %v1240, %v1239
      %v1265 = vpack.c.bf16 %v1242, %v1241
      %v1266 = vpack.c.bf16 %v1244, %v1243
      %v1267 = vpack.c.bf16 %v1246, %v1245
      %v1268 = vpack.c.bf16 %v1247, %v1247
      %s1269 = scalar_lea.vmem %s1, 6
      %v1270 = vld [vmem:[%s1269] sm:$0x3]
      %v1272 = vsel %vm299, %v1248, 0
      %v1275 = vsel %vm299, %v1249, 0
      %v1278 = vsel %vm299, %v1250, 0
      %v1281 = vsel %vm299, %v1251, 0
      %v1284 = vsel %vm299, %v1252, 0
      %v1287 = vsel %vm299, %v1253, 0
      %v1290 = vsel %vm299, %v1254, 0
      %v1293 = vsel %vm299, %v1255, 0
      %v1296 = vsel %vm299, %v1256, 0
      %v1299 = vsel %vm299, %v1257, 0
      %v1302 = vsel %vm299, %v1258, 0
      %v1305 = vsel %vm299, %v1259, 0
      %v1308 = vsel %vm299, %v1260, 0
      %v1311 = vsel %vm299, %v1261, 0
      %v1314 = vsel %vm299, %v1262, 0
      %v1317 = vsel %vm299, %v1263, 0
      %v1320 = vsel %vm299, %v1264, 0
      %v1323 = vsel %vm299, %v1265, 0
      %v1326 = vsel %vm299, %v1266, 0
      %v1329 = vsel %vm299, %v1267, 0
      %v1332 = vsel %vm299, %v1268, 0
      %v1335 = vand.u32 %v1270, %v366
      %1337 = vmatprep.subr.bf16.mxu0 0
      %1338 = vmatpush1.bf16.msra.mxu0 0
      %1339 = vmatprep.subr.bf16.mxu0 0
      %1340 = vmatpush1.bf16.msra.mxu0 0
      %1341 = vmatprep.subr.bf16.mxu0 0
      %1342 = vmatpush1.bf16.msra.mxu0 0
      %1343 = vmatprep.subr.bf16.mxu0 0
      %1344 = vmatpush1.bf16.msra.mxu0 0
      %1345 = vmatprep.subr.bf16.mxu0 0
      %1346 = vmatpush1.bf16.msra.mxu0 0
      %1347 = vmatprep.subr.bf16.mxu0 0
      %1348 = vmatpush1.bf16.msra.mxu0 0
      %1349 = vmatprep.subr.bf16.mxu0 0
      %1350 = vmatpush1.bf16.msra.mxu0 0
      %1351 = vmatprep.subr.bf16.mxu0 0
      %1352 = vmatpush1.bf16.msra.mxu0 %v1335
      %1353 = vmatprep.subr.bf16.mxu0 0
      %1354 = vmatpush2.bf16.msra.mxu0 0
      %1355 = vmatprep.subr.bf16.mxu0 0
      %1356 = vmatpush2.bf16.msra.mxu0 0
      %1357 = vmatprep.subr.bf16.mxu0 0
      %1358 = vmatpush2.bf16.msra.mxu0 0
      %1359 = vmatprep.subr.bf16.mxu0 0
      %1360 = vmatpush2.bf16.msra.mxu0 0
      %1361 = vmatprep.subr.bf16.mxu0 0
      %1362 = vmatpush2.bf16.msra.mxu0 0
      %1363 = vmatprep.subr.bf16.mxu0 0
      %1364 = vmatpush2.bf16.msra.mxu0 0
      %1365 = vmatprep.subr.bf16.mxu0 0
      %1366 = vmatpush2.bf16.msra.mxu0 0
      %1367 = vmatprep.subr.bf16.mxu0 0
      %1368 = vmatpush2.bf16.msra.mxu0 0
      %1369 = vmatprep.mubr.bf16.mxu0 0
      %1370 = vmatmul.mubr.bf16.gmra.mxu0 %v1272
      %v1371 = vpop.f32.mrf.mxu0
      %v1372 = vadd.f32 0.0, %v1371
      %v1373 = vpop.f32.mrf.mxu0
      %v1374 = vpop.f32.mrf.mxu0
      %v1375 = vadd.f32 0.0, %v1374
      %v1376 = vpop.f32.mrf.mxu0
      %1377 = vmatprep.mubr.bf16.mxu0 0
      %1378 = vmatmul.mubr.bf16.gmra.mxu0 %v1275
      %v1379 = vpop.f32.mrf.mxu0
      %v1380 = vadd.f32 0.0, %v1379
      %v1381 = vpop.f32.mrf.mxu0
      %v1382 = vpop.f32.mrf.mxu0
      %v1383 = vadd.f32 0.0, %v1382
      %v1384 = vpop.f32.mrf.mxu0
      %1385 = vmatprep.mubr.bf16.mxu0 0
      %1386 = vmatmul.mubr.bf16.gmra.mxu0 %v1278
      %v1387 = vpop.f32.mrf.mxu0
      %v1388 = vadd.f32 0.0, %v1387
      %v1389 = vpop.f32.mrf.mxu0
      %v1390 = vpop.f32.mrf.mxu0
      %v1391 = vadd.f32 0.0, %v1390
      %v1392 = vpop.f32.mrf.mxu0
      %1393 = vmatprep.mubr.bf16.mxu0 0
      %1394 = vmatmul.mubr.bf16.gmra.mxu0 %v1281
      %v1395 = vpop.f32.mrf.mxu0
      %v1396 = vadd.f32 0.0, %v1395
      %v1397 = vpop.f32.mrf.mxu0
      %v1398 = vpop.f32.mrf.mxu0
      %v1399 = vadd.f32 0.0, %v1398
      %v1400 = vpop.f32.mrf.mxu0
      %1401 = vmatprep.mubr.bf16.mxu0 0
      %1402 = vmatmul.mubr.bf16.gmra.mxu0 %v1284
      %v1403 = vpop.f32.mrf.mxu0
      %v1404 = vadd.f32 0.0, %v1403
      %v1405 = vpop.f32.mrf.mxu0
      %v1406 = vpop.f32.mrf.mxu0
      %v1407 = vadd.f32 0.0, %v1406
      %v1408 = vpop.f32.mrf.mxu0
      %1409 = vmatprep.mubr.bf16.mxu0 0
      %1410 = vmatmul.mubr.bf16.gmra.mxu0 %v1287
      %v1411 = vpop.f32.mrf.mxu0
      %v1412 = vadd.f32 0.0, %v1411
      %v1413 = vpop.f32.mrf.mxu0
      %v1414 = vpop.f32.mrf.mxu0
      %v1415 = vadd.f32 0.0, %v1414
      %v1416 = vpop.f32.mrf.mxu0
      %1417 = vmatprep.mubr.bf16.mxu0 0
      %1418 = vmatmul.mubr.bf16.gmra.mxu0 %v1290
      %v1419 = vpop.f32.mrf.mxu0
      %v1420 = vadd.f32 0.0, %v1419
      %v1421 = vpop.f32.mrf.mxu0
      %v1422 = vpop.f32.mrf.mxu0
      %v1423 = vadd.f32 0.0, %v1422
      %v1424 = vpop.f32.mrf.mxu0
      %1425 = vmatprep.mubr.bf16.mxu0 0
      %1426 = vmatmul.mubr.bf16.gmra.mxu0 %v1293
      %v1427 = vpop.f32.mrf.mxu0
      %v1428 = vadd.f32 0.0, %v1427
      %v1429 = vpop.f32.mrf.mxu0
      %v1430 = vpop.f32.mrf.mxu0
      %v1431 = vadd.f32 0.0, %v1430
      %v1432 = vpop.f32.mrf.mxu0
      %1433 = vmatprep.mubr.bf16.mxu0 0
      %1434 = vmatmul.mubr.bf16.gmra.mxu0 %v1296
      %v1435 = vpop.f32.mrf.mxu0
      %v1436 = vadd.f32 0.0, %v1435
      %v1437 = vpop.f32.mrf.mxu0
      %v1438 = vpop.f32.mrf.mxu0
      %v1439 = vadd.f32 0.0, %v1438
      %v1440 = vpop.f32.mrf.mxu0
      %1441 = vmatprep.mubr.bf16.mxu0 0
      %1442 = vmatmul.mubr.bf16.gmra.mxu0 %v1299
      %v1443 = vpop.f32.mrf.mxu0
      %v1444 = vadd.f32 0.0, %v1443
      %v1445 = vpop.f32.mrf.mxu0
      %v1446 = vpop.f32.mrf.mxu0
      %v1447 = vadd.f32 0.0, %v1446
      %v1448 = vpop.f32.mrf.mxu0
      %1449 = vmatprep.mubr.bf16.mxu0 0
      %1450 = vmatmul.mubr.bf16.gmra.mxu0 %v1302
      %v1451 = vpop.f32.mrf.mxu0
      %v1452 = vadd.f32 0.0, %v1451
      %v1453 = vpop.f32.mrf.mxu0
      %v1454 = vpop.f32.mrf.mxu0
      %v1455 = vadd.f32 0.0, %v1454
      %v1456 = vpop.f32.mrf.mxu0
      %1457 = vmatprep.mubr.bf16.mxu0 0
      %1458 = vmatmul.mubr.bf16.gmra.mxu0 %v1305
      %v1459 = vpop.f32.mrf.mxu0
      %v1460 = vadd.f32 0.0, %v1459
      %v1461 = vpop.f32.mrf.mxu0
      %v1462 = vpop.f32.mrf.mxu0
      %v1463 = vadd.f32 0.0, %v1462
      %v1464 = vpop.f32.mrf.mxu0
      %1465 = vmatprep.mubr.bf16.mxu0 0
      %1466 = vmatmul.mubr.bf16.gmra.mxu0 %v1308
      %v1467 = vpop.f32.mrf.mxu0
      %v1468 = vadd.f32 0.0, %v1467
      %v1469 = vpop.f32.mrf.mxu0
      %v1470 = vpop.f32.mrf.mxu0
      %v1471 = vadd.f32 0.0, %v1470
      %v1472 = vpop.f32.mrf.mxu0
      %1473 = vmatprep.mubr.bf16.mxu0 0
      %1474 = vmatmul.mubr.bf16.gmra.mxu0 %v1311
      %v1475 = vpop.f32.mrf.mxu0
      %v1476 = vadd.f32 0.0, %v1475
      %v1477 = vpop.f32.mrf.mxu0
      %v1478 = vpop.f32.mrf.mxu0
      %v1479 = vadd.f32 0.0, %v1478
      %v1480 = vpop.f32.mrf.mxu0
      %1481 = vmatprep.mubr.bf16.mxu0 0
      %1482 = vmatmul.mubr.bf16.gmra.mxu0 %v1314
      %v1483 = vpop.f32.mrf.mxu0
      %v1484 = vadd.f32 0.0, %v1483
      %v1485 = vpop.f32.mrf.mxu0
      %v1486 = vpop.f32.mrf.mxu0
      %v1487 = vadd.f32 0.0, %v1486
      %v1488 = vpop.f32.mrf.mxu0
      %1489 = vmatprep.mubr.bf16.mxu0 0
      %1490 = vmatmul.mubr.bf16.gmra.mxu0 %v1317
      %v1491 = vpop.f32.mrf.mxu0
      %v1492 = vadd.f32 0.0, %v1491
      %v1493 = vpop.f32.mrf.mxu0
      %v1494 = vpop.f32.mrf.mxu0
      %v1495 = vadd.f32 0.0, %v1494
      %v1496 = vpop.f32.mrf.mxu0
      %1497 = vmatprep.mubr.bf16.mxu0 0
      %1498 = vmatmul.mubr.bf16.gmra.mxu0 %v1320
      %v1499 = vpop.f32.mrf.mxu0
      %v1500 = vadd.f32 0.0, %v1499
      %v1501 = vpop.f32.mrf.mxu0
      %v1502 = vpop.f32.mrf.mxu0
      %v1503 = vadd.f32 0.0, %v1502
      %v1504 = vpop.f32.mrf.mxu0
      %1505 = vmatprep.mubr.bf16.mxu0 0
      %1506 = vmatmul.mubr.bf16.gmra.mxu0 %v1323
      %v1507 = vpop.f32.mrf.mxu0
      %v1508 = vadd.f32 0.0, %v1507
      %v1509 = vpop.f32.mrf.mxu0
      %v1510 = vpop.f32.mrf.mxu0
      %v1511 = vadd.f32 0.0, %v1510
      %v1512 = vpop.f32.mrf.mxu0
      %1513 = vmatprep.mubr.bf16.mxu0 0
      %1514 = vmatmul.mubr.bf16.gmra.mxu0 %v1326
      %v1515 = vpop.f32.mrf.mxu0
      %v1516 = vadd.f32 0.0, %v1515
      %v1517 = vpop.f32.mrf.mxu0
      %v1518 = vpop.f32.mrf.mxu0
      %v1519 = vadd.f32 0.0, %v1518
      %v1520 = vpop.f32.mrf.mxu0
      %1521 = vmatprep.mubr.bf16.mxu0 0
      %1522 = vmatmul.mubr.bf16.gmra.mxu0 %v1329
      %v1523 = vpop.f32.mrf.mxu0
      %v1524 = vadd.f32 0.0, %v1523
      %v1525 = vpop.f32.mrf.mxu0
      %v1526 = vpop.f32.mrf.mxu0
      %v1527 = vadd.f32 0.0, %v1526
      %v1528 = vpop.f32.mrf.mxu0
      %1529 = vmatprep.mubr.bf16.mxu0 0
      %1530 = vmatmul.mubr.bf16.gmra.mxu0 %v1332
      %v1531 = vpop.f32.mrf.mxu0
      %v1532 = vadd.f32 0.0, %v1531
      %v1533 = vpop.f32.mrf.mxu0
      %v1534 = vpop.f32.mrf.mxu0
      %v1535 = vpop.f32.mrf.mxu0
      %1536 = vdwg.mxu0
      %v1537 = vadd.f32 %v1166, %v1372
      %v1538 = vadd.f32 %v1167, %v1375
      %v1539 = vadd.f32 %v1168, %v1380
      %v1540 = vadd.f32 %v1169, %v1383
      %v1541 = vadd.f32 %v1170, %v1388
      %v1542 = vadd.f32 %v1171, %v1391
      %v1543 = vadd.f32 %v1172, %v1396
      %v1544 = vadd.f32 %v1173, %v1399
      %v1545 = vadd.f32 %v1174, %v1404
      %v1546 = vadd.f32 %v1175, %v1407
      %v1547 = vadd.f32 %v1176, %v1412
      %v1548 = vadd.f32 %v1177, %v1415
      %v1549 = vadd.f32 %v1178, %v1420
      %v1550 = vadd.f32 %v1179, %v1423
      %v1551 = vadd.f32 %v1180, %v1428
      %v1552 = vadd.f32 %v1181, %v1431
      %v1553 = vadd.f32 %v1182, %v1436
      %v1554 = vadd.f32 %v1183, %v1439
      %v1555 = vadd.f32 %v1184, %v1444
      %v1556 = vadd.f32 %v1185, %v1447
      %v1557 = vadd.f32 %v1186, %v1452
      %v1558 = vadd.f32 %v1187, %v1455
      %v1559 = vadd.f32 %v1188, %v1460
      %v1560 = vadd.f32 %v1189, %v1463
      %v1561 = vadd.f32 %v1190, %v1468
      %v1562 = vadd.f32 %v1191, %v1471
      %v1563 = vadd.f32 %v1192, %v1476
      %v1564 = vadd.f32 %v1193, %v1479
      %v1565 = vadd.f32 %v1194, %v1484
      %v1566 = vadd.f32 %v1195, %v1487
      %v1567 = vadd.f32 %v1196, %v1492
      %v1568 = vadd.f32 %v1197, %v1495
      %v1569 = vadd.f32 %v1198, %v1500
      %v1570 = vadd.f32 %v1199, %v1503
      %v1571 = vadd.f32 %v1200, %v1508
      %v1572 = vadd.f32 %v1201, %v1511
      %v1573 = vadd.f32 %v1202, %v1516
      %v1574 = vadd.f32 %v1203, %v1519
      %v1575 = vadd.f32 %v1204, %v1524
      %v1576 = vadd.f32 %v1205, %v1527
      %v1577 = vadd.f32 %v1206, %v1532
      %v1578 = vld [vmem:[%s165 + $0x13] sm:$0xff]
      %v1579 = vld [vmem:[%s165 + $0x1b] sm:$0xff]
      %v1580 = vld [vmem:[%s165 + $0x23] sm:$0xff]
      %v1581 = vld [vmem:[%s165 + $0x2b] sm:$0xff]
      %v1582 = vld [vmem:[%s165 + $0x33] sm:$0xff]
      %v1583 = vld [vmem:[%s165 + $0x3b] sm:$0xff]
      %v1584 = vld [vmem:[%s165 + $0x43] sm:$0xff]
      %v1585 = vld [vmem:[%s165 + $0x4b] sm:$0xff]
      %v1586 = vld [vmem:[%s165 + $0x53] sm:$0xff]
      %v1587 = vld [vmem:[%s165 + $0x5b] sm:$0xff]
      %v1588 = vld [vmem:[%s165 + $0x63] sm:$0xff]
      %v1589 = vld [vmem:[%s165 + $0x6b] sm:$0xff]
      %v1590 = vld [vmem:[%s165 + $0x73] sm:$0xff]
      %v1591 = vld [vmem:[%s165 + $0x7b] sm:$0xff]
      %v1592 = vld [vmem:[%s165 + $0x83] sm:$0xff]
      %v1593 = vld [vmem:[%s165 + $0x8b] sm:$0xff]
      %v1594 = vld [vmem:[%s165 + $0x93] sm:$0xff]
      %v1595 = vld [vmem:[%s165 + $0x9b] sm:$0xff]
      %v1596 = vld [vmem:[%s165 + $0xa3] sm:$0xff]
      %v1597 = vld [vmem:[%s165 + $0xab] sm:$0xff]
      %v1598 = vld [vmem:[%s165 + $0xb3] sm:$0xff]
      %v1599 = vld [vmem:[%s165 + $0xbb] sm:$0xff]
      %v1600 = vld [vmem:[%s165 + $0xc3] sm:$0xff]
      %v1601 = vld [vmem:[%s165 + $0xcb] sm:$0xff]
      %v1602 = vld [vmem:[%s165 + $0xd3] sm:$0xff]
      %v1603 = vld [vmem:[%s165 + $0xdb] sm:$0xff]
      %v1604 = vld [vmem:[%s165 + $0xe3] sm:$0xff]
      %v1605 = vld [vmem:[%s165 + $0xeb] sm:$0xff]
      %v1606 = vld [vmem:[%s165 + $0xf3] sm:$0xff]
      %v1607 = vld [vmem:[%s165 + $0xfb] sm:$0xff]
      %v1608 = vld [vmem:[%s165 + $0x103] sm:$0xff]
      %v1609 = vld [vmem:[%s165 + $0x10b] sm:$0xff]
      %v1610 = vld [vmem:[%s165 + $0x113] sm:$0xff]
      %v1611 = vld [vmem:[%s165 + $0x11b] sm:$0xff]
      %v1612 = vld [vmem:[%s165 + $0x123] sm:$0xff]
      %v1613 = vld [vmem:[%s165 + $0x12b] sm:$0xff]
      %v1614 = vld [vmem:[%s165 + $0x133] sm:$0xff]
      %v1615 = vld [vmem:[%s165 + $0x13b] sm:$0xff]
      %v1616 = vld [vmem:[%s165 + $0x143] sm:$0xff]
      %v1617 = vld [vmem:[%s165 + $0x14b] sm:$0xff]
      %v1618 = vld [vmem:[%s165 + $0x153] sm:$0xf]
      %v1619 = vpack.c.bf16 %v1579, %v1578
      %v1620 = vpack.c.bf16 %v1581, %v1580
      %v1621 = vpack.c.bf16 %v1583, %v1582
      %v1622 = vpack.c.bf16 %v1585, %v1584
      %v1623 = vpack.c.bf16 %v1587, %v1586
      %v1624 = vpack.c.bf16 %v1589, %v1588
      %v1625 = vpack.c.bf16 %v1591, %v1590
      %v1626 = vpack.c.bf16 %v1593, %v1592
      %v1627 = vpack.c.bf16 %v1595, %v1594
      %v1628 = vpack.c.bf16 %v1597, %v1596
      %v1629 = vpack.c.bf16 %v1599, %v1598
      %v1630 = vpack.c.bf16 %v1601, %v1600
      %v1631 = vpack.c.bf16 %v1603, %v1602
      %v1632 = vpack.c.bf16 %v1605, %v1604
      %v1633 = vpack.c.bf16 %v1607, %v1606
      %v1634 = vpack.c.bf16 %v1609, %v1608
      %v1635 = vpack.c.bf16 %v1611, %v1610
      %v1636 = vpack.c.bf16 %v1613, %v1612
      %v1637 = vpack.c.bf16 %v1615, %v1614
      %v1638 = vpack.c.bf16 %v1617, %v1616
      %v1639 = vpack.c.bf16 %v1618, %v1618
      %s1640 = scalar_lea.vmem %s1, 8
      %v1641 = vld [vmem:[%s1640] sm:$0x3]
      %v1643 = vsel %vm299, %v1619, 0
      %v1646 = vsel %vm299, %v1620, 0
      %v1649 = vsel %vm299, %v1621, 0
      %v1652 = vsel %vm299, %v1622, 0
      %v1655 = vsel %vm299, %v1623, 0
      %v1658 = vsel %vm299, %v1624, 0
      %v1661 = vsel %vm299, %v1625, 0
      %v1664 = vsel %vm299, %v1626, 0
      %v1667 = vsel %vm299, %v1627, 0
      %v1670 = vsel %vm299, %v1628, 0
      %v1673 = vsel %vm299, %v1629, 0
      %v1676 = vsel %vm299, %v1630, 0
      %v1679 = vsel %vm299, %v1631, 0
      %v1682 = vsel %vm299, %v1632, 0
      %v1685 = vsel %vm299, %v1633, 0
      %v1688 = vsel %vm299, %v1634, 0
      %v1691 = vsel %vm299, %v1635, 0
      %v1694 = vsel %vm299, %v1636, 0
      %v1697 = vsel %vm299, %v1637, 0
      %v1700 = vsel %vm299, %v1638, 0
      %v1703 = vsel %vm299, %v1639, 0
      %v1706 = vand.u32 %v1641, %v366
      %1708 = vmatprep.subr.bf16.mxu0 0
      %1709 = vmatpush1.bf16.msra.mxu0 0
      %1710 = vmatprep.subr.bf16.mxu0 0
      %1711 = vmatpush1.bf16.msra.mxu0 0
      %1712 = vmatprep.subr.bf16.mxu0 0
      %1713 = vmatpush1.bf16.msra.mxu0 0
      %1714 = vmatprep.subr.bf16.mxu0 0
      %1715 = vmatpush1.bf16.msra.mxu0 0
      %1716 = vmatprep.subr.bf16.mxu0 0
      %1717 = vmatpush1.bf16.msra.mxu0 0
      %1718 = vmatprep.subr.bf16.mxu0 0
      %1719 = vmatpush1.bf16.msra.mxu0 0
      %1720 = vmatprep.subr.bf16.mxu0 0
      %1721 = vmatpush1.bf16.msra.mxu0 0
      %1722 = vmatprep.subr.bf16.mxu0 0
      %1723 = vmatpush1.bf16.msra.mxu0 %v1706
      %1724 = vmatprep.subr.bf16.mxu0 0
      %1725 = vmatpush2.bf16.msra.mxu0 0
      %1726 = vmatprep.subr.bf16.mxu0 0
      %1727 = vmatpush2.bf16.msra.mxu0 0
      %1728 = vmatprep.subr.bf16.mxu0 0
      %1729 = vmatpush2.bf16.msra.mxu0 0
      %1730 = vmatprep.subr.bf16.mxu0 0
      %1731 = vmatpush2.bf16.msra.mxu0 0
      %1732 = vmatprep.subr.bf16.mxu0 0
      %1733 = vmatpush2.bf16.msra.mxu0 0
      %1734 = vmatprep.subr.bf16.mxu0 0
      %1735 = vmatpush2.bf16.msra.mxu0 0
      %1736 = vmatprep.subr.bf16.mxu0 0
      %1737 = vmatpush2.bf16.msra.mxu0 0
      %1738 = vmatprep.subr.bf16.mxu0 0
      %1739 = vmatpush2.bf16.msra.mxu0 0
      %1740 = vmatprep.mubr.bf16.mxu0 0
      %1741 = vmatmul.mubr.bf16.gmra.mxu0 %v1643
      %v1742 = vpop.f32.mrf.mxu0
      %v1743 = vadd.f32 0.0, %v1742
      %v1744 = vpop.f32.mrf.mxu0
      %v1745 = vpop.f32.mrf.mxu0
      %v1746 = vadd.f32 0.0, %v1745
      %v1747 = vpop.f32.mrf.mxu0
      %1748 = vmatprep.mubr.bf16.mxu0 0
      %1749 = vmatmul.mubr.bf16.gmra.mxu0 %v1646
      %v1750 = vpop.f32.mrf.mxu0
      %v1751 = vadd.f32 0.0, %v1750
      %v1752 = vpop.f32.mrf.mxu0
      %v1753 = vpop.f32.mrf.mxu0
      %v1754 = vadd.f32 0.0, %v1753
      %v1755 = vpop.f32.mrf.mxu0
      %1756 = vmatprep.mubr.bf16.mxu0 0
      %1757 = vmatmul.mubr.bf16.gmra.mxu0 %v1649
      %v1758 = vpop.f32.mrf.mxu0
      %v1759 = vadd.f32 0.0, %v1758
      %v1760 = vpop.f32.mrf.mxu0
      %v1761 = vpop.f32.mrf.mxu0
      %v1762 = vadd.f32 0.0, %v1761
      %v1763 = vpop.f32.mrf.mxu0
      %1764 = vmatprep.mubr.bf16.mxu0 0
      %1765 = vmatmul.mubr.bf16.gmra.mxu0 %v1652
      %v1766 = vpop.f32.mrf.mxu0
      %v1767 = vadd.f32 0.0, %v1766
      %v1768 = vpop.f32.mrf.mxu0
      %v1769 = vpop.f32.mrf.mxu0
      %v1770 = vadd.f32 0.0, %v1769
      %v1771 = vpop.f32.mrf.mxu0
      %1772 = vmatprep.mubr.bf16.mxu0 0
      %1773 = vmatmul.mubr.bf16.gmra.mxu0 %v1655
      %v1774 = vpop.f32.mrf.mxu0
      %v1775 = vadd.f32 0.0, %v1774
      %v1776 = vpop.f32.mrf.mxu0
      %v1777 = vpop.f32.mrf.mxu0
      %v1778 = vadd.f32 0.0, %v1777
      %v1779 = vpop.f32.mrf.mxu0
      %1780 = vmatprep.mubr.bf16.mxu0 0
      %1781 = vmatmul.mubr.bf16.gmra.mxu0 %v1658
      %v1782 = vpop.f32.mrf.mxu0
      %v1783 = vadd.f32 0.0, %v1782
      %v1784 = vpop.f32.mrf.mxu0
      %v1785 = vpop.f32.mrf.mxu0
      %v1786 = vadd.f32 0.0, %v1785
      %v1787 = vpop.f32.mrf.mxu0
      %1788 = vmatprep.mubr.bf16.mxu0 0
      %1789 = vmatmul.mubr.bf16.gmra.mxu0 %v1661
      %v1790 = vpop.f32.mrf.mxu0
      %v1791 = vadd.f32 0.0, %v1790
      %v1792 = vpop.f32.mrf.mxu0
      %v1793 = vpop.f32.mrf.mxu0
      %v1794 = vadd.f32 0.0, %v1793
      %v1795 = vpop.f32.mrf.mxu0
      %1796 = vmatprep.mubr.bf16.mxu0 0
      %1797 = vmatmul.mubr.bf16.gmra.mxu0 %v1664
      %v1798 = vpop.f32.mrf.mxu0
      %v1799 = vadd.f32 0.0, %v1798
      %v1800 = vpop.f32.mrf.mxu0
      %v1801 = vpop.f32.mrf.mxu0
      %v1802 = vadd.f32 0.0, %v1801
      %v1803 = vpop.f32.mrf.mxu0
      %1804 = vmatprep.mubr.bf16.mxu0 0
      %1805 = vmatmul.mubr.bf16.gmra.mxu0 %v1667
      %v1806 = vpop.f32.mrf.mxu0
      %v1807 = vadd.f32 0.0, %v1806
      %v1808 = vpop.f32.mrf.mxu0
      %v1809 = vpop.f32.mrf.mxu0
      %v1810 = vadd.f32 0.0, %v1809
      %v1811 = vpop.f32.mrf.mxu0
      %1812 = vmatprep.mubr.bf16.mxu0 0
      %1813 = vmatmul.mubr.bf16.gmra.mxu0 %v1670
      %v1814 = vpop.f32.mrf.mxu0
      %v1815 = vadd.f32 0.0, %v1814
      %v1816 = vpop.f32.mrf.mxu0
      %v1817 = vpop.f32.mrf.mxu0
      %v1818 = vadd.f32 0.0, %v1817
      %v1819 = vpop.f32.mrf.mxu0
      %1820 = vmatprep.mubr.bf16.mxu0 0
      %1821 = vmatmul.mubr.bf16.gmra.mxu0 %v1673
      %v1822 = vpop.f32.mrf.mxu0
      %v1823 = vadd.f32 0.0, %v1822
      %v1824 = vpop.f32.mrf.mxu0
      %v1825 = vpop.f32.mrf.mxu0
      %v1826 = vadd.f32 0.0, %v1825
      %v1827 = vpop.f32.mrf.mxu0
      %1828 = vmatprep.mubr.bf16.mxu0 0
      %1829 = vmatmul.mubr.bf16.gmra.mxu0 %v1676
      %v1830 = vpop.f32.mrf.mxu0
      %v1831 = vadd.f32 0.0, %v1830
      %v1832 = vpop.f32.mrf.mxu0
      %v1833 = vpop.f32.mrf.mxu0
      %v1834 = vadd.f32 0.0, %v1833
      %v1835 = vpop.f32.mrf.mxu0
      %1836 = vmatprep.mubr.bf16.mxu0 0
      %1837 = vmatmul.mubr.bf16.gmra.mxu0 %v1679
      %v1838 = vpop.f32.mrf.mxu0
      %v1839 = vadd.f32 0.0, %v1838
      %v1840 = vpop.f32.mrf.mxu0
      %v1841 = vpop.f32.mrf.mxu0
      %v1842 = vadd.f32 0.0, %v1841
      %v1843 = vpop.f32.mrf.mxu0
      %1844 = vmatprep.mubr.bf16.mxu0 0
      %1845 = vmatmul.mubr.bf16.gmra.mxu0 %v1682
      %v1846 = vpop.f32.mrf.mxu0
      %v1847 = vadd.f32 0.0, %v1846
      %v1848 = vpop.f32.mrf.mxu0
      %v1849 = vpop.f32.mrf.mxu0
      %v1850 = vadd.f32 0.0, %v1849
      %v1851 = vpop.f32.mrf.mxu0
      %1852 = vmatprep.mubr.bf16.mxu0 0
      %1853 = vmatmul.mubr.bf16.gmra.mxu0 %v1685
      %v1854 = vpop.f32.mrf.mxu0
      %v1855 = vadd.f32 0.0, %v1854
      %v1856 = vpop.f32.mrf.mxu0
      %v1857 = vpop.f32.mrf.mxu0
      %v1858 = vadd.f32 0.0, %v1857
      %v1859 = vpop.f32.mrf.mxu0
      %1860 = vmatprep.mubr.bf16.mxu0 0
      %1861 = vmatmul.mubr.bf16.gmra.mxu0 %v1688
      %v1862 = vpop.f32.mrf.mxu0
      %v1863 = vadd.f32 0.0, %v1862
      %v1864 = vpop.f32.mrf.mxu0
      %v1865 = vpop.f32.mrf.mxu0
      %v1866 = vadd.f32 0.0, %v1865
      %v1867 = vpop.f32.mrf.mxu0
      %1868 = vmatprep.mubr.bf16.mxu0 0
      %1869 = vmatmul.mubr.bf16.gmra.mxu0 %v1691
      %v1870 = vpop.f32.mrf.mxu0
      %v1871 = vadd.f32 0.0, %v1870
      %v1872 = vpop.f32.mrf.mxu0
      %v1873 = vpop.f32.mrf.mxu0
      %v1874 = vadd.f32 0.0, %v1873
      %v1875 = vpop.f32.mrf.mxu0
      %1876 = vmatprep.mubr.bf16.mxu0 0
      %1877 = vmatmul.mubr.bf16.gmra.mxu0 %v1694
      %v1878 = vpop.f32.mrf.mxu0
      %v1879 = vadd.f32 0.0, %v1878
      %v1880 = vpop.f32.mrf.mxu0
      %v1881 = vpop.f32.mrf.mxu0
      %v1882 = vadd.f32 0.0, %v1881
      %v1883 = vpop.f32.mrf.mxu0
      %1884 = vmatprep.mubr.bf16.mxu0 0
      %1885 = vmatmul.mubr.bf16.gmra.mxu0 %v1697
      %v1886 = vpop.f32.mrf.mxu0
      %v1887 = vadd.f32 0.0, %v1886
      %v1888 = vpop.f32.mrf.mxu0
      %v1889 = vpop.f32.mrf.mxu0
      %v1890 = vadd.f32 0.0, %v1889
      %v1891 = vpop.f32.mrf.mxu0
      %1892 = vmatprep.mubr.bf16.mxu0 0
      %1893 = vmatmul.mubr.bf16.gmra.mxu0 %v1700
      %v1894 = vpop.f32.mrf.mxu0
      %v1895 = vadd.f32 0.0, %v1894
      %v1896 = vpop.f32.mrf.mxu0
      %v1897 = vpop.f32.mrf.mxu0
      %v1898 = vadd.f32 0.0, %v1897
      %v1899 = vpop.f32.mrf.mxu0
      %1900 = vmatprep.mubr.bf16.mxu0 0
      %1901 = vmatmul.mubr.bf16.gmra.mxu0 %v1703
      %v1902 = vpop.f32.mrf.mxu0
      %v1903 = vadd.f32 0.0, %v1902
      %v1904 = vpop.f32.mrf.mxu0
      %v1905 = vpop.f32.mrf.mxu0
      %v1906 = vpop.f32.mrf.mxu0
      %1907 = vdwg.mxu0
      %v1908 = vadd.f32 %v1537, %v1743
      %v1909 = vadd.f32 %v1538, %v1746
      %v1910 = vadd.f32 %v1539, %v1751
      %v1911 = vadd.f32 %v1540, %v1754
      %v1912 = vadd.f32 %v1541, %v1759
      %v1913 = vadd.f32 %v1542, %v1762
      %v1914 = vadd.f32 %v1543, %v1767
      %v1915 = vadd.f32 %v1544, %v1770
      %v1916 = vadd.f32 %v1545, %v1775
      %v1917 = vadd.f32 %v1546, %v1778
      %v1918 = vadd.f32 %v1547, %v1783
      %v1919 = vadd.f32 %v1548, %v1786
      %v1920 = vadd.f32 %v1549, %v1791
      %v1921 = vadd.f32 %v1550, %v1794
      %v1922 = vadd.f32 %v1551, %v1799
      %v1923 = vadd.f32 %v1552, %v1802
      %v1924 = vadd.f32 %v1553, %v1807
      %v1925 = vadd.f32 %v1554, %v1810
      %v1926 = vadd.f32 %v1555, %v1815
      %v1927 = vadd.f32 %v1556, %v1818
      %v1928 = vadd.f32 %v1557, %v1823
      %v1929 = vadd.f32 %v1558, %v1826
      %v1930 = vadd.f32 %v1559, %v1831
      %v1931 = vadd.f32 %v1560, %v1834
      %v1932 = vadd.f32 %v1561, %v1839
      %v1933 = vadd.f32 %v1562, %v1842
      %v1934 = vadd.f32 %v1563, %v1847
      %v1935 = vadd.f32 %v1564, %v1850
      %v1936 = vadd.f32 %v1565, %v1855
      %v1937 = vadd.f32 %v1566, %v1858
      %v1938 = vadd.f32 %v1567, %v1863
      %v1939 = vadd.f32 %v1568, %v1866
      %v1940 = vadd.f32 %v1569, %v1871
      %v1941 = vadd.f32 %v1570, %v1874
      %v1942 = vadd.f32 %v1571, %v1879
      %v1943 = vadd.f32 %v1572, %v1882
      %v1944 = vadd.f32 %v1573, %v1887
      %v1945 = vadd.f32 %v1574, %v1890
      %v1946 = vadd.f32 %v1575, %v1895
      %v1947 = vadd.f32 %v1576, %v1898
      %v1948 = vadd.f32 %v1577, %v1903
      %v1949 = vld [vmem:[%s165 + $0x14] sm:$0xff]
      %v1950 = vld [vmem:[%s165 + $0x1c] sm:$0xff]
      %v1951 = vld [vmem:[%s165 + $0x24] sm:$0xff]
      %v1952 = vld [vmem:[%s165 + $0x2c] sm:$0xff]
      %v1953 = vld [vmem:[%s165 + $0x34] sm:$0xff]
      %v1954 = vld [vmem:[%s165 + $0x3c] sm:$0xff]
      %v1955 = vld [vmem:[%s165 + $0x44] sm:$0xff]
      %v1956 = vld [vmem:[%s165 + $0x4c] sm:$0xff]
      %v1957 = vld [vmem:[%s165 + $0x54] sm:$0xff]
      %v1958 = vld [vmem:[%s165 + $0x5c] sm:$0xff]
      %v1959 = vld [vmem:[%s165 + $0x64] sm:$0xff]
      %v1960 = vld [vmem:[%s165 + $0x6c] sm:$0xff]
      %v1961 = vld [vmem:[%s165 + $0x74] sm:$0xff]
      %v1962 = vld [vmem:[%s165 + $0x7c] sm:$0xff]
      %v1963 = vld [vmem:[%s165 + $0x84] sm:$0xff]
      %v1964 = vld [vmem:[%s165 + $0x8c] sm:$0xff]
      %v1965 = vld [vmem:[%s165 + $0x94] sm:$0xff]
      %v1966 = vld [vmem:[%s165 + $0x9c] sm:$0xff]
      %v1967 = vld [vmem:[%s165 + $0xa4] sm:$0xff]
      %v1968 = vld [vmem:[%s165 + $0xac] sm:$0xff]
      %v1969 = vld [vmem:[%s165 + $0xb4] sm:$0xff]
      %v1970 = vld [vmem:[%s165 + $0xbc] sm:$0xff]
      %v1971 = vld [vmem:[%s165 + $0xc4] sm:$0xff]
      %v1972 = vld [vmem:[%s165 + $0xcc] sm:$0xff]
      %v1973 = vld [vmem:[%s165 + $0xd4] sm:$0xff]
      %v1974 = vld [vmem:[%s165 + $0xdc] sm:$0xff]
      %v1975 = vld [vmem:[%s165 + $0xe4] sm:$0xff]
      %v1976 = vld [vmem:[%s165 + $0xec] sm:$0xff]
      %v1977 = vld [vmem:[%s165 + $0xf4] sm:$0xff]
      %v1978 = vld [vmem:[%s165 + $0xfc] sm:$0xff]
      %v1979 = vld [vmem:[%s165 + $0x104] sm:$0xff]
      %v1980 = vld [vmem:[%s165 + $0x10c] sm:$0xff]
      %v1981 = vld [vmem:[%s165 + $0x114] sm:$0xff]
      %v1982 = vld [vmem:[%s165 + $0x11c] sm:$0xff]
      %v1983 = vld [vmem:[%s165 + $0x124] sm:$0xff]
      %v1984 = vld [vmem:[%s165 + $0x12c] sm:$0xff]
      %v1985 = vld [vmem:[%s165 + $0x134] sm:$0xff]
      %v1986 = vld [vmem:[%s165 + $0x13c] sm:$0xff]
      %v1987 = vld [vmem:[%s165 + $0x144] sm:$0xff]
      %v1988 = vld [vmem:[%s165 + $0x14c] sm:$0xff]
      %v1989 = vld [vmem:[%s165 + $0x154] sm:$0xf]
      %v1990 = vpack.c.bf16 %v1950, %v1949
      %v1991 = vpack.c.bf16 %v1952, %v1951
      %v1992 = vpack.c.bf16 %v1954, %v1953
      %v1993 = vpack.c.bf16 %v1956, %v1955
      %v1994 = vpack.c.bf16 %v1958, %v1957
      %v1995 = vpack.c.bf16 %v1960, %v1959
      %v1996 = vpack.c.bf16 %v1962, %v1961
      %v1997 = vpack.c.bf16 %v1964, %v1963
      %v1998 = vpack.c.bf16 %v1966, %v1965
      %v1999 = vpack.c.bf16 %v1968, %v1967
      %v2000 = vpack.c.bf16 %v1970, %v1969
      %v2001 = vpack.c.bf16 %v1972, %v1971
      %v2002 = vpack.c.bf16 %v1974, %v1973
      %v2003 = vpack.c.bf16 %v1976, %v1975
      %v2004 = vpack.c.bf16 %v1978, %v1977
      %v2005 = vpack.c.bf16 %v1980, %v1979
      %v2006 = vpack.c.bf16 %v1982, %v1981
      %v2007 = vpack.c.bf16 %v1984, %v1983
      %v2008 = vpack.c.bf16 %v1986, %v1985
      %v2009 = vpack.c.bf16 %v1988, %v1987
      %v2010 = vpack.c.bf16 %v1989, %v1989
      %s2011 = scalar_lea.vmem %s1, 10
      %v2012 = vld [vmem:[%s2011] sm:$0x3]
      %v2014 = vsel %vm299, %v1990, 0
      %v2017 = vsel %vm299, %v1991, 0
      %v2020 = vsel %vm299, %v1992, 0
      %v2023 = vsel %vm299, %v1993, 0
      %v2026 = vsel %vm299, %v1994, 0
      %v2029 = vsel %vm299, %v1995, 0
      %v2032 = vsel %vm299, %v1996, 0
      %v2035 = vsel %vm299, %v1997, 0
      %v2038 = vsel %vm299, %v1998, 0
      %v2041 = vsel %vm299, %v1999, 0
      %v2044 = vsel %vm299, %v2000, 0
      %v2047 = vsel %vm299, %v2001, 0
      %v2050 = vsel %vm299, %v2002, 0
      %v2053 = vsel %vm299, %v2003, 0
      %v2056 = vsel %vm299, %v2004, 0
      %v2059 = vsel %vm299, %v2005, 0
      %v2062 = vsel %vm299, %v2006, 0
      %v2065 = vsel %vm299, %v2007, 0
      %v2068 = vsel %vm299, %v2008, 0
      %v2071 = vsel %vm299, %v2009, 0
      %v2074 = vsel %vm299, %v2010, 0
      %v2077 = vand.u32 %v2012, %v366
      %2079 = vmatprep.subr.bf16.mxu0 0
      %2080 = vmatpush1.bf16.msra.mxu0 0
      %2081 = vmatprep.subr.bf16.mxu0 0
      %2082 = vmatpush1.bf16.msra.mxu0 0
      %2083 = vmatprep.subr.bf16.mxu0 0
      %2084 = vmatpush1.bf16.msra.mxu0 0
      %2085 = vmatprep.subr.bf16.mxu0 0
      %2086 = vmatpush1.bf16.msra.mxu0 0
      %2087 = vmatprep.subr.bf16.mxu0 0
      %2088 = vmatpush1.bf16.msra.mxu0 0
      %2089 = vmatprep.subr.bf16.mxu0 0
      %2090 = vmatpush1.bf16.msra.mxu0 0
      %2091 = vmatprep.subr.bf16.mxu0 0
      %2092 = vmatpush1.bf16.msra.mxu0 0
      %2093 = vmatprep.subr.bf16.mxu0 0
      %2094 = vmatpush1.bf16.msra.mxu0 %v2077
      %2095 = vmatprep.subr.bf16.mxu0 0
      %2096 = vmatpush2.bf16.msra.mxu0 0
      %2097 = vmatprep.subr.bf16.mxu0 0
      %2098 = vmatpush2.bf16.msra.mxu0 0
      %2099 = vmatprep.subr.bf16.mxu0 0
      %2100 = vmatpush2.bf16.msra.mxu0 0
      %2101 = vmatprep.subr.bf16.mxu0 0
      %2102 = vmatpush2.bf16.msra.mxu0 0
      %2103 = vmatprep.subr.bf16.mxu0 0
      %2104 = vmatpush2.bf16.msra.mxu0 0
      %2105 = vmatprep.subr.bf16.mxu0 0
      %2106 = vmatpush2.bf16.msra.mxu0 0
      %2107 = vmatprep.subr.bf16.mxu0 0
      %2108 = vmatpush2.bf16.msra.mxu0 0
      %2109 = vmatprep.subr.bf16.mxu0 0
      %2110 = vmatpush2.bf16.msra.mxu0 0
      %2111 = vmatprep.mubr.bf16.mxu0 0
      %2112 = vmatmul.mubr.bf16.gmra.mxu0 %v2014
      %v2113 = vpop.f32.mrf.mxu0
      %v2114 = vadd.f32 0.0, %v2113
      %v2115 = vpop.f32.mrf.mxu0
      %v2116 = vpop.f32.mrf.mxu0
      %v2117 = vadd.f32 0.0, %v2116
      %v2118 = vpop.f32.mrf.mxu0
      %2119 = vmatprep.mubr.bf16.mxu0 0
      %2120 = vmatmul.mubr.bf16.gmra.mxu0 %v2017
      %v2121 = vpop.f32.mrf.mxu0
      %v2122 = vadd.f32 0.0, %v2121
      %v2123 = vpop.f32.mrf.mxu0
      %v2124 = vpop.f32.mrf.mxu0
      %v2125 = vadd.f32 0.0, %v2124
      %v2126 = vpop.f32.mrf.mxu0
      %2127 = vmatprep.mubr.bf16.mxu0 0
      %2128 = vmatmul.mubr.bf16.gmra.mxu0 %v2020
      %v2129 = vpop.f32.mrf.mxu0
      %v2130 = vadd.f32 0.0, %v2129
      %v2131 = vpop.f32.mrf.mxu0
      %v2132 = vpop.f32.mrf.mxu0
      %v2133 = vadd.f32 0.0, %v2132
      %v2134 = vpop.f32.mrf.mxu0
      %2135 = vmatprep.mubr.bf16.mxu0 0
      %2136 = vmatmul.mubr.bf16.gmra.mxu0 %v2023
      %v2137 = vpop.f32.mrf.mxu0
      %v2138 = vadd.f32 0.0, %v2137
      %v2139 = vpop.f32.mrf.mxu0
      %v2140 = vpop.f32.mrf.mxu0
      %v2141 = vadd.f32 0.0, %v2140
      %v2142 = vpop.f32.mrf.mxu0
      %2143 = vmatprep.mubr.bf16.mxu0 0
      %2144 = vmatmul.mubr.bf16.gmra.mxu0 %v2026
      %v2145 = vpop.f32.mrf.mxu0
      %v2146 = vadd.f32 0.0, %v2145
      %v2147 = vpop.f32.mrf.mxu0
      %v2148 = vpop.f32.mrf.mxu0
      %v2149 = vadd.f32 0.0, %v2148
      %v2150 = vpop.f32.mrf.mxu0
      %2151 = vmatprep.mubr.bf16.mxu0 0
      %2152 = vmatmul.mubr.bf16.gmra.mxu0 %v2029
      %v2153 = vpop.f32.mrf.mxu0
      %v2154 = vadd.f32 0.0, %v2153
      %v2155 = vpop.f32.mrf.mxu0
      %v2156 = vpop.f32.mrf.mxu0
      %v2157 = vadd.f32 0.0, %v2156
      %v2158 = vpop.f32.mrf.mxu0
      %2159 = vmatprep.mubr.bf16.mxu0 0
      %2160 = vmatmul.mubr.bf16.gmra.mxu0 %v2032
      %v2161 = vpop.f32.mrf.mxu0
      %v2162 = vadd.f32 0.0, %v2161
      %v2163 = vpop.f32.mrf.mxu0
      %v2164 = vpop.f32.mrf.mxu0
      %v2165 = vadd.f32 0.0, %v2164
      %v2166 = vpop.f32.mrf.mxu0
      %2167 = vmatprep.mubr.bf16.mxu0 0
      %2168 = vmatmul.mubr.bf16.gmra.mxu0 %v2035
      %v2169 = vpop.f32.mrf.mxu0
      %v2170 = vadd.f32 0.0, %v2169
      %v2171 = vpop.f32.mrf.mxu0
      %v2172 = vpop.f32.mrf.mxu0
      %v2173 = vadd.f32 0.0, %v2172
      %v2174 = vpop.f32.mrf.mxu0
      %2175 = vmatprep.mubr.bf16.mxu0 0
      %2176 = vmatmul.mubr.bf16.gmra.mxu0 %v2038
      %v2177 = vpop.f32.mrf.mxu0
      %v2178 = vadd.f32 0.0, %v2177
      %v2179 = vpop.f32.mrf.mxu0
      %v2180 = vpop.f32.mrf.mxu0
      %v2181 = vadd.f32 0.0, %v2180
      %v2182 = vpop.f32.mrf.mxu0
      %2183 = vmatprep.mubr.bf16.mxu0 0
      %2184 = vmatmul.mubr.bf16.gmra.mxu0 %v2041
      %v2185 = vpop.f32.mrf.mxu0
      %v2186 = vadd.f32 0.0, %v2185
      %v2187 = vpop.f32.mrf.mxu0
      %v2188 = vpop.f32.mrf.mxu0
      %v2189 = vadd.f32 0.0, %v2188
      %v2190 = vpop.f32.mrf.mxu0
      %2191 = vmatprep.mubr.bf16.mxu0 0
      %2192 = vmatmul.mubr.bf16.gmra.mxu0 %v2044
      %v2193 = vpop.f32.mrf.mxu0
      %v2194 = vadd.f32 0.0, %v2193
      %v2195 = vpop.f32.mrf.mxu0
      %v2196 = vpop.f32.mrf.mxu0
      %v2197 = vadd.f32 0.0, %v2196
      %v2198 = vpop.f32.mrf.mxu0
      %2199 = vmatprep.mubr.bf16.mxu0 0
      %2200 = vmatmul.mubr.bf16.gmra.mxu0 %v2047
      %v2201 = vpop.f32.mrf.mxu0
      %v2202 = vadd.f32 0.0, %v2201
      %v2203 = vpop.f32.mrf.mxu0
      %v2204 = vpop.f32.mrf.mxu0
      %v2205 = vadd.f32 0.0, %v2204
      %v2206 = vpop.f32.mrf.mxu0
      %2207 = vmatprep.mubr.bf16.mxu0 0
      %2208 = vmatmul.mubr.bf16.gmra.mxu0 %v2050
      %v2209 = vpop.f32.mrf.mxu0
      %v2210 = vadd.f32 0.0, %v2209
      %v2211 = vpop.f32.mrf.mxu0
      %v2212 = vpop.f32.mrf.mxu0
      %v2213 = vadd.f32 0.0, %v2212
      %v2214 = vpop.f32.mrf.mxu0
      %2215 = vmatprep.mubr.bf16.mxu0 0
      %2216 = vmatmul.mubr.bf16.gmra.mxu0 %v2053
      %v2217 = vpop.f32.mrf.mxu0
      %v2218 = vadd.f32 0.0, %v2217
      %v2219 = vpop.f32.mrf.mxu0
      %v2220 = vpop.f32.mrf.mxu0
      %v2221 = vadd.f32 0.0, %v2220
      %v2222 = vpop.f32.mrf.mxu0
      %2223 = vmatprep.mubr.bf16.mxu0 0
      %2224 = vmatmul.mubr.bf16.gmra.mxu0 %v2056
      %v2225 = vpop.f32.mrf.mxu0
      %v2226 = vadd.f32 0.0, %v2225
      %v2227 = vpop.f32.mrf.mxu0
      %v2228 = vpop.f32.mrf.mxu0
      %v2229 = vadd.f32 0.0, %v2228
      %v2230 = vpop.f32.mrf.mxu0
      %2231 = vmatprep.mubr.bf16.mxu0 0
      %2232 = vmatmul.mubr.bf16.gmra.mxu0 %v2059
      %v2233 = vpop.f32.mrf.mxu0
      %v2234 = vadd.f32 0.0, %v2233
      %v2235 = vpop.f32.mrf.mxu0
      %v2236 = vpop.f32.mrf.mxu0
      %v2237 = vadd.f32 0.0, %v2236
      %v2238 = vpop.f32.mrf.mxu0
      %2239 = vmatprep.mubr.bf16.mxu0 0
      %2240 = vmatmul.mubr.bf16.gmra.mxu0 %v2062
      %v2241 = vpop.f32.mrf.mxu0
      %v2242 = vadd.f32 0.0, %v2241
      %v2243 = vpop.f32.mrf.mxu0
      %v2244 = vpop.f32.mrf.mxu0
      %v2245 = vadd.f32 0.0, %v2244
      %v2246 = vpop.f32.mrf.mxu0
      %2247 = vmatprep.mubr.bf16.mxu0 0
      %2248 = vmatmul.mubr.bf16.gmra.mxu0 %v2065
      %v2249 = vpop.f32.mrf.mxu0
      %v2250 = vadd.f32 0.0, %v2249
      %v2251 = vpop.f32.mrf.mxu0
      %v2252 = vpop.f32.mrf.mxu0
      %v2253 = vadd.f32 0.0, %v2252
      %v2254 = vpop.f32.mrf.mxu0
      %2255 = vmatprep.mubr.bf16.mxu0 0
      %2256 = vmatmul.mubr.bf16.gmra.mxu0 %v2068
      %v2257 = vpop.f32.mrf.mxu0
      %v2258 = vadd.f32 0.0, %v2257
      %v2259 = vpop.f32.mrf.mxu0
      %v2260 = vpop.f32.mrf.mxu0
      %v2261 = vadd.f32 0.0, %v2260
      %v2262 = vpop.f32.mrf.mxu0
      %2263 = vmatprep.mubr.bf16.mxu0 0
      %2264 = vmatmul.mubr.bf16.gmra.mxu0 %v2071
      %v2265 = vpop.f32.mrf.mxu0
      %v2266 = vadd.f32 0.0, %v2265
      %v2267 = vpop.f32.mrf.mxu0
      %v2268 = vpop.f32.mrf.mxu0
      %v2269 = vadd.f32 0.0, %v2268
      %v2270 = vpop.f32.mrf.mxu0
      %2271 = vmatprep.mubr.bf16.mxu0 0
      %2272 = vmatmul.mubr.bf16.gmra.mxu0 %v2074
      %v2273 = vpop.f32.mrf.mxu0
      %v2274 = vadd.f32 0.0, %v2273
      %v2275 = vpop.f32.mrf.mxu0
      %v2276 = vpop.f32.mrf.mxu0
      %v2277 = vpop.f32.mrf.mxu0
      %2278 = vdwg.mxu0
      %v2279 = vadd.f32 %v1908, %v2114
      %v2280 = vadd.f32 %v1909, %v2117
      %v2281 = vadd.f32 %v1910, %v2122
      %v2282 = vadd.f32 %v1911, %v2125
      %v2283 = vadd.f32 %v1912, %v2130
      %v2284 = vadd.f32 %v1913, %v2133
      %v2285 = vadd.f32 %v1914, %v2138
      %v2286 = vadd.f32 %v1915, %v2141
      %v2287 = vadd.f32 %v1916, %v2146
      %v2288 = vadd.f32 %v1917, %v2149
      %v2289 = vadd.f32 %v1918, %v2154
      %v2290 = vadd.f32 %v1919, %v2157
      %v2291 = vadd.f32 %v1920, %v2162
      %v2292 = vadd.f32 %v1921, %v2165
      %v2293 = vadd.f32 %v1922, %v2170
      %v2294 = vadd.f32 %v1923, %v2173
      %v2295 = vadd.f32 %v1924, %v2178
      %v2296 = vadd.f32 %v1925, %v2181
      %v2297 = vadd.f32 %v1926, %v2186
      %v2298 = vadd.f32 %v1927, %v2189
      %v2299 = vadd.f32 %v1928, %v2194
      %v2300 = vadd.f32 %v1929, %v2197
      %v2301 = vadd.f32 %v1930, %v2202
      %v2302 = vadd.f32 %v1931, %v2205
      %v2303 = vadd.f32 %v1932, %v2210
      %v2304 = vadd.f32 %v1933, %v2213
      %v2305 = vadd.f32 %v1934, %v2218
      %v2306 = vadd.f32 %v1935, %v2221
      %v2307 = vadd.f32 %v1936, %v2226
      %v2308 = vadd.f32 %v1937, %v2229
      %v2309 = vadd.f32 %v1938, %v2234
      %v2310 = vadd.f32 %v1939, %v2237
      %v2311 = vadd.f32 %v1940, %v2242
      %v2312 = vadd.f32 %v1941, %v2245
      %v2313 = vadd.f32 %v1942, %v2250
      %v2314 = vadd.f32 %v1943, %v2253
      %v2315 = vadd.f32 %v1944, %v2258
      %v2316 = vadd.f32 %v1945, %v2261
      %v2317 = vadd.f32 %v1946, %v2266
      %v2318 = vadd.f32 %v1947, %v2269
      %v2319 = vadd.f32 %v1948, %v2274
      %v2320 = vld [vmem:[%s165 + $0x24] sm:$0xff]
      %v2321 = vld [vmem:[%s165 + $0x2c] sm:$0xff]
      %v2322 = vld [vmem:[%s165 + $0x34] sm:$0xff]
      %v2323 = vld [vmem:[%s165 + $0x3c] sm:$0xff]
      %v2324 = vld [vmem:[%s165 + $0x44] sm:$0xff]
      %v2325 = vld [vmem:[%s165 + $0x4c] sm:$0xff]
      %v2326 = vld [vmem:[%s165 + $0x54] sm:$0xff]
      %v2327 = vld [vmem:[%s165 + $0x5c] sm:$0xff]
      %v2328 = vld [vmem:[%s165 + $0x64] sm:$0xff]
      %v2329 = vld [vmem:[%s165 + $0x6c] sm:$0xff]
      %v2330 = vld [vmem:[%s165 + $0x74] sm:$0xff]
      %v2331 = vld [vmem:[%s165 + $0x7c] sm:$0xff]
      %v2332 = vld [vmem:[%s165 + $0x84] sm:$0xff]
      %v2333 = vld [vmem:[%s165 + $0x8c] sm:$0xff]
      %v2334 = vld [vmem:[%s165 + $0x94] sm:$0xff]
      %v2335 = vld [vmem:[%s165 + $0x9c] sm:$0xff]
      %v2336 = vld [vmem:[%s165 + $0xa4] sm:$0xff]
      %v2337 = vld [vmem:[%s165 + $0xac] sm:$0xff]
      %v2338 = vld [vmem:[%s165 + $0xb4] sm:$0xff]
      %v2339 = vld [vmem:[%s165 + $0xbc] sm:$0xff]
      %v2340 = vld [vmem:[%s165 + $0xc4] sm:$0xff]
      %v2341 = vld [vmem:[%s165 + $0xcc] sm:$0xff]
      %v2342 = vld [vmem:[%s165 + $0xd4] sm:$0xff]
      %v2343 = vld [vmem:[%s165 + $0xdc] sm:$0xff]
      %v2344 = vld [vmem:[%s165 + $0xe4] sm:$0xff]
      %v2345 = vld [vmem:[%s165 + $0xec] sm:$0xff]
      %v2346 = vld [vmem:[%s165 + $0xf4] sm:$0xff]
      %v2347 = vld [vmem:[%s165 + $0xfc] sm:$0xff]
      %v2348 = vld [vmem:[%s165 + $0x104] sm:$0xff]
      %v2349 = vld [vmem:[%s165 + $0x10c] sm:$0xff]
      %v2350 = vld [vmem:[%s165 + $0x114] sm:$0xff]
      %v2351 = vld [vmem:[%s165 + $0x11c] sm:$0xff]
      %v2352 = vld [vmem:[%s165 + $0x124] sm:$0xff]
      %v2353 = vld [vmem:[%s165 + $0x12c] sm:$0xff]
      %v2354 = vld [vmem:[%s165 + $0x134] sm:$0xff]
      %v2355 = vld [vmem:[%s165 + $0x13c] sm:$0xff]
      %v2356 = vld [vmem:[%s165 + $0x144] sm:$0xff]
      %v2357 = vld [vmem:[%s165 + $0x14c] sm:$0xff]
      %v2358 = vld [vmem:[%s165 + $0x154] sm:$0xff]
      %v2359 = vld [vmem:[%s165 + $0x15c] sm:$0xff]
      %v2360 = vld [vmem:[%s165 + $0x164] sm:$0xf]
      %v2361 = vpack.c.bf16 %v2321, %v2320
      %v2362 = vpack.c.bf16 %v2323, %v2322
      %v2363 = vpack.c.bf16 %v2325, %v2324
      %v2364 = vpack.c.bf16 %v2327, %v2326
      %v2365 = vpack.c.bf16 %v2329, %v2328
      %v2366 = vpack.c.bf16 %v2331, %v2330
      %v2367 = vpack.c.bf16 %v2333, %v2332
      %v2368 = vpack.c.bf16 %v2335, %v2334
      %v2369 = vpack.c.bf16 %v2337, %v2336
      %v2370 = vpack.c.bf16 %v2339, %v2338
      %v2371 = vpack.c.bf16 %v2341, %v2340
      %v2372 = vpack.c.bf16 %v2343, %v2342
      %v2373 = vpack.c.bf16 %v2345, %v2344
      %v2374 = vpack.c.bf16 %v2347, %v2346
      %v2375 = vpack.c.bf16 %v2349, %v2348
      %v2376 = vpack.c.bf16 %v2351, %v2350
      %v2377 = vpack.c.bf16 %v2353, %v2352
      %v2378 = vpack.c.bf16 %v2355, %v2354
      %v2379 = vpack.c.bf16 %v2357, %v2356
      %v2380 = vpack.c.bf16 %v2359, %v2358
      %v2381 = vpack.c.bf16 %v2360, %v2360
      %s2382 = scalar_lea.vmem %s1, 12
      %v2383 = vld [vmem:[%s2382] sm:$0x3]
      %v2385 = vsel %vm299, %v2361, 0
      %v2388 = vsel %vm299, %v2362, 0
      %v2391 = vsel %vm299, %v2363, 0
      %v2394 = vsel %vm299, %v2364, 0
      %v2397 = vsel %vm299, %v2365, 0
      %v2400 = vsel %vm299, %v2366, 0
      %v2403 = vsel %vm299, %v2367, 0
      %v2406 = vsel %vm299, %v2368, 0
      %v2409 = vsel %vm299, %v2369, 0
      %v2412 = vsel %vm299, %v2370, 0
      %v2415 = vsel %vm299, %v2371, 0
      %v2418 = vsel %vm299, %v2372, 0
      %v2421 = vsel %vm299, %v2373, 0
      %v2424 = vsel %vm299, %v2374, 0
      %v2427 = vsel %vm299, %v2375, 0
      %v2430 = vsel %vm299, %v2376, 0
      %v2433 = vsel %vm299, %v2377, 0
      %v2436 = vsel %vm299, %v2378, 0
      %v2439 = vsel %vm299, %v2379, 0
      %v2442 = vsel %vm299, %v2380, 0
      %v2445 = vsel %vm299, %v2381, 0
      %v2448 = vand.u32 %v2383, %v366
      %2450 = vmatprep.subr.bf16.mxu0 0
      %2451 = vmatpush1.bf16.msra.mxu0 0
      %2452 = vmatprep.subr.bf16.mxu0 0
      %2453 = vmatpush1.bf16.msra.mxu0 0
      %2454 = vmatprep.subr.bf16.mxu0 0
      %2455 = vmatpush1.bf16.msra.mxu0 0
      %2456 = vmatprep.subr.bf16.mxu0 0
      %2457 = vmatpush1.bf16.msra.mxu0 0
      %2458 = vmatprep.subr.bf16.mxu0 0
      %2459 = vmatpush1.bf16.msra.mxu0 0
      %2460 = vmatprep.subr.bf16.mxu0 0
      %2461 = vmatpush1.bf16.msra.mxu0 0
      %2462 = vmatprep.subr.bf16.mxu0 0
      %2463 = vmatpush1.bf16.msra.mxu0 0
      %2464 = vmatprep.subr.bf16.mxu0 0
      %2465 = vmatpush1.bf16.msra.mxu0 %v2448
      %2466 = vmatprep.subr.bf16.mxu0 0
      %2467 = vmatpush2.bf16.msra.mxu0 0
      %2468 = vmatprep.subr.bf16.mxu0 0
      %2469 = vmatpush2.bf16.msra.mxu0 0
      %2470 = vmatprep.subr.bf16.mxu0 0
      %2471 = vmatpush2.bf16.msra.mxu0 0
      %2472 = vmatprep.subr.bf16.mxu0 0
      %2473 = vmatpush2.bf16.msra.mxu0 0
      %2474 = vmatprep.subr.bf16.mxu0 0
      %2475 = vmatpush2.bf16.msra.mxu0 0
      %2476 = vmatprep.subr.bf16.mxu0 0
      %2477 = vmatpush2.bf16.msra.mxu0 0
      %2478 = vmatprep.subr.bf16.mxu0 0
      %2479 = vmatpush2.bf16.msra.mxu0 0
      %2480 = vmatprep.subr.bf16.mxu0 0
      %2481 = vmatpush2.bf16.msra.mxu0 0
      %2482 = vmatprep.mubr.bf16.mxu0 0
      %2483 = vmatmul.mubr.bf16.gmra.mxu0 %v2385
      %v2484 = vpop.f32.mrf.mxu0
      %v2485 = vadd.f32 0.0, %v2484
      %v2486 = vpop.f32.mrf.mxu0
      %v2487 = vpop.f32.mrf.mxu0
      %v2488 = vadd.f32 0.0, %v2487
      %v2489 = vpop.f32.mrf.mxu0
      %2490 = vmatprep.mubr.bf16.mxu0 0
      %2491 = vmatmul.mubr.bf16.gmra.mxu0 %v2388
      %v2492 = vpop.f32.mrf.mxu0
      %v2493 = vadd.f32 0.0, %v2492
      %v2494 = vpop.f32.mrf.mxu0
      %v2495 = vpop.f32.mrf.mxu0
      %v2496 = vadd.f32 0.0, %v2495
      %v2497 = vpop.f32.mrf.mxu0
      %2498 = vmatprep.mubr.bf16.mxu0 0
      %2499 = vmatmul.mubr.bf16.gmra.mxu0 %v2391
      %v2500 = vpop.f32.mrf.mxu0
      %v2501 = vadd.f32 0.0, %v2500
      %v2502 = vpop.f32.mrf.mxu0
      %v2503 = vpop.f32.mrf.mxu0
      %v2504 = vadd.f32 0.0, %v2503
      %v2505 = vpop.f32.mrf.mxu0
      %2506 = vmatprep.mubr.bf16.mxu0 0
      %2507 = vmatmul.mubr.bf16.gmra.mxu0 %v2394
      %v2508 = vpop.f32.mrf.mxu0
      %v2509 = vadd.f32 0.0, %v2508
      %v2510 = vpop.f32.mrf.mxu0
      %v2511 = vpop.f32.mrf.mxu0
      %v2512 = vadd.f32 0.0, %v2511
      %v2513 = vpop.f32.mrf.mxu0
      %2514 = vmatprep.mubr.bf16.mxu0 0
      %2515 = vmatmul.mubr.bf16.gmra.mxu0 %v2397
      %v2516 = vpop.f32.mrf.mxu0
      %v2517 = vadd.f32 0.0, %v2516
      %v2518 = vpop.f32.mrf.mxu0
      %v2519 = vpop.f32.mrf.mxu0
      %v2520 = vadd.f32 0.0, %v2519
      %v2521 = vpop.f32.mrf.mxu0
      %2522 = vmatprep.mubr.bf16.mxu0 0
      %2523 = vmatmul.mubr.bf16.gmra.mxu0 %v2400
      %v2524 = vpop.f32.mrf.mxu0
      %v2525 = vadd.f32 0.0, %v2524
      %v2526 = vpop.f32.mrf.mxu0
      %v2527 = vpop.f32.mrf.mxu0
      %v2528 = vadd.f32 0.0, %v2527
      %v2529 = vpop.f32.mrf.mxu0
      %2530 = vmatprep.mubr.bf16.mxu0 0
      %2531 = vmatmul.mubr.bf16.gmra.mxu0 %v2403
      %v2532 = vpop.f32.mrf.mxu0
      %v2533 = vadd.f32 0.0, %v2532
      %v2534 = vpop.f32.mrf.mxu0
      %v2535 = vpop.f32.mrf.mxu0
      %v2536 = vadd.f32 0.0, %v2535
      %v2537 = vpop.f32.mrf.mxu0
      %2538 = vmatprep.mubr.bf16.mxu0 0
      %2539 = vmatmul.mubr.bf16.gmra.mxu0 %v2406
      %v2540 = vpop.f32.mrf.mxu0
      %v2541 = vadd.f32 0.0, %v2540
      %v2542 = vpop.f32.mrf.mxu0
      %v2543 = vpop.f32.mrf.mxu0
      %v2544 = vadd.f32 0.0, %v2543
      %v2545 = vpop.f32.mrf.mxu0
      %2546 = vmatprep.mubr.bf16.mxu0 0
      %2547 = vmatmul.mubr.bf16.gmra.mxu0 %v2409
      %v2548 = vpop.f32.mrf.mxu0
      %v2549 = vadd.f32 0.0, %v2548
      %v2550 = vpop.f32.mrf.mxu0
      %v2551 = vpop.f32.mrf.mxu0
      %v2552 = vadd.f32 0.0, %v2551
      %v2553 = vpop.f32.mrf.mxu0
      %2554 = vmatprep.mubr.bf16.mxu0 0
      %2555 = vmatmul.mubr.bf16.gmra.mxu0 %v2412
      %v2556 = vpop.f32.mrf.mxu0
      %v2557 = vadd.f32 0.0, %v2556
      %v2558 = vpop.f32.mrf.mxu0
      %v2559 = vpop.f32.mrf.mxu0
      %v2560 = vadd.f32 0.0, %v2559
      %v2561 = vpop.f32.mrf.mxu0
      %2562 = vmatprep.mubr.bf16.mxu0 0
      %2563 = vmatmul.mubr.bf16.gmra.mxu0 %v2415
      %v2564 = vpop.f32.mrf.mxu0
      %v2565 = vadd.f32 0.0, %v2564
      %v2566 = vpop.f32.mrf.mxu0
      %v2567 = vpop.f32.mrf.mxu0
      %v2568 = vadd.f32 0.0, %v2567
      %v2569 = vpop.f32.mrf.mxu0
      %2570 = vmatprep.mubr.bf16.mxu0 0
      %2571 = vmatmul.mubr.bf16.gmra.mxu0 %v2418
      %v2572 = vpop.f32.mrf.mxu0
      %v2573 = vadd.f32 0.0, %v2572
      %v2574 = vpop.f32.mrf.mxu0
      %v2575 = vpop.f32.mrf.mxu0
      %v2576 = vadd.f32 0.0, %v2575
      %v2577 = vpop.f32.mrf.mxu0
      %2578 = vmatprep.mubr.bf16.mxu0 0
      %2579 = vmatmul.mubr.bf16.gmra.mxu0 %v2421
      %v2580 = vpop.f32.mrf.mxu0
      %v2581 = vadd.f32 0.0, %v2580
      %v2582 = vpop.f32.mrf.mxu0
      %v2583 = vpop.f32.mrf.mxu0
      %v2584 = vadd.f32 0.0, %v2583
      %v2585 = vpop.f32.mrf.mxu0
      %2586 = vmatprep.mubr.bf16.mxu0 0
      %2587 = vmatmul.mubr.bf16.gmra.mxu0 %v2424
      %v2588 = vpop.f32.mrf.mxu0
      %v2589 = vadd.f32 0.0, %v2588
      %v2590 = vpop.f32.mrf.mxu0
      %v2591 = vpop.f32.mrf.mxu0
      %v2592 = vadd.f32 0.0, %v2591
      %v2593 = vpop.f32.mrf.mxu0
      %2594 = vmatprep.mubr.bf16.mxu0 0
      %2595 = vmatmul.mubr.bf16.gmra.mxu0 %v2427
      %v2596 = vpop.f32.mrf.mxu0
      %v2597 = vadd.f32 0.0, %v2596
      %v2598 = vpop.f32.mrf.mxu0
      %v2599 = vpop.f32.mrf.mxu0
      %v2600 = vadd.f32 0.0, %v2599
      %v2601 = vpop.f32.mrf.mxu0
      %2602 = vmatprep.mubr.bf16.mxu0 0
      %2603 = vmatmul.mubr.bf16.gmra.mxu0 %v2430
      %v2604 = vpop.f32.mrf.mxu0
      %v2605 = vadd.f32 0.0, %v2604
      %v2606 = vpop.f32.mrf.mxu0
      %v2607 = vpop.f32.mrf.mxu0
      %v2608 = vadd.f32 0.0, %v2607
      %v2609 = vpop.f32.mrf.mxu0
      %2610 = vmatprep.mubr.bf16.mxu0 0
      %2611 = vmatmul.mubr.bf16.gmra.mxu0 %v2433
      %v2612 = vpop.f32.mrf.mxu0
      %v2613 = vadd.f32 0.0, %v2612
      %v2614 = vpop.f32.mrf.mxu0
      %v2615 = vpop.f32.mrf.mxu0
      %v2616 = vadd.f32 0.0, %v2615
      %v2617 = vpop.f32.mrf.mxu0
      %2618 = vmatprep.mubr.bf16.mxu0 0
      %2619 = vmatmul.mubr.bf16.gmra.mxu0 %v2436
      %v2620 = vpop.f32.mrf.mxu0
      %v2621 = vadd.f32 0.0, %v2620
      %v2622 = vpop.f32.mrf.mxu0
      %v2623 = vpop.f32.mrf.mxu0
      %v2624 = vadd.f32 0.0, %v2623
      %v2625 = vpop.f32.mrf.mxu0
      %2626 = vmatprep.mubr.bf16.mxu0 0
      %2627 = vmatmul.mubr.bf16.gmra.mxu0 %v2439
      %v2628 = vpop.f32.mrf.mxu0
      %v2629 = vadd.f32 0.0, %v2628
      %v2630 = vpop.f32.mrf.mxu0
      %v2631 = vpop.f32.mrf.mxu0
      %v2632 = vadd.f32 0.0, %v2631
      %v2633 = vpop.f32.mrf.mxu0
      %2634 = vmatprep.mubr.bf16.mxu0 0
      %2635 = vmatmul.mubr.bf16.gmra.mxu0 %v2442
      %v2636 = vpop.f32.mrf.mxu0
      %v2637 = vadd.f32 0.0, %v2636
      %v2638 = vpop.f32.mrf.mxu0
      %v2639 = vpop.f32.mrf.mxu0
      %v2640 = vadd.f32 0.0, %v2639
      %v2641 = vpop.f32.mrf.mxu0
      %2642 = vmatprep.mubr.bf16.mxu0 0
      %2643 = vmatmul.mubr.bf16.gmra.mxu0 %v2445
      %v2644 = vpop.f32.mrf.mxu0
      %v2645 = vadd.f32 0.0, %v2644
      %v2646 = vpop.f32.mrf.mxu0
      %v2647 = vpop.f32.mrf.mxu0
      %v2648 = vpop.f32.mrf.mxu0
      %2649 = vdwg.mxu0
      %v2650 = vadd.f32 %v2279, %v2485
      %v2651 = vadd.f32 %v2280, %v2488
      %v2652 = vadd.f32 %v2281, %v2493
      %v2653 = vadd.f32 %v2282, %v2496
      %v2654 = vadd.f32 %v2283, %v2501
      %v2655 = vadd.f32 %v2284, %v2504
      %v2656 = vadd.f32 %v2285, %v2509
      %v2657 = vadd.f32 %v2286, %v2512
      %v2658 = vadd.f32 %v2287, %v2517
      %v2659 = vadd.f32 %v2288, %v2520
      %v2660 = vadd.f32 %v2289, %v2525
      %v2661 = vadd.f32 %v2290, %v2528
      %v2662 = vadd.f32 %v2291, %v2533
      %v2663 = vadd.f32 %v2292, %v2536
      %v2664 = vadd.f32 %v2293, %v2541
      %v2665 = vadd.f32 %v2294, %v2544
      %v2666 = vadd.f32 %v2295, %v2549
      %v2667 = vadd.f32 %v2296, %v2552
      %v2668 = vadd.f32 %v2297, %v2557
      %v2669 = vadd.f32 %v2298, %v2560
      %v2670 = vadd.f32 %v2299, %v2565
      %v2671 = vadd.f32 %v2300, %v2568
      %v2672 = vadd.f32 %v2301, %v2573
      %v2673 = vadd.f32 %v2302, %v2576
      %v2674 = vadd.f32 %v2303, %v2581
      %v2675 = vadd.f32 %v2304, %v2584
      %v2676 = vadd.f32 %v2305, %v2589
      %v2677 = vadd.f32 %v2306, %v2592
      %v2678 = vadd.f32 %v2307, %v2597
      %v2679 = vadd.f32 %v2308, %v2600
      %v2680 = vadd.f32 %v2309, %v2605
      %v2681 = vadd.f32 %v2310, %v2608
      %v2682 = vadd.f32 %v2311, %v2613
      %v2683 = vadd.f32 %v2312, %v2616
      %v2684 = vadd.f32 %v2313, %v2621
      %v2685 = vadd.f32 %v2314, %v2624
      %v2686 = vadd.f32 %v2315, %v2629
      %v2687 = vadd.f32 %v2316, %v2632
      %v2688 = vadd.f32 %v2317, %v2637
      %v2689 = vadd.f32 %v2318, %v2640
      %v2690 = vadd.f32 %v2319, %v2645
      %v2691 = vld [vmem:[%s165 + $0x25] sm:$0xff]
      %v2692 = vld [vmem:[%s165 + $0x2d] sm:$0xff]
      %v2693 = vld [vmem:[%s165 + $0x35] sm:$0xff]
      %v2694 = vld [vmem:[%s165 + $0x3d] sm:$0xff]
      %v2695 = vld [vmem:[%s165 + $0x45] sm:$0xff]
      %v2696 = vld [vmem:[%s165 + $0x4d] sm:$0xff]
      %v2697 = vld [vmem:[%s165 + $0x55] sm:$0xff]
      %v2698 = vld [vmem:[%s165 + $0x5d] sm:$0xff]
      %v2699 = vld [vmem:[%s165 + $0x65] sm:$0xff]
      %v2700 = vld [vmem:[%s165 + $0x6d] sm:$0xff]
      %v2701 = vld [vmem:[%s165 + $0x75] sm:$0xff]
      %v2702 = vld [vmem:[%s165 + $0x7d] sm:$0xff]
      %v2703 = vld [vmem:[%s165 + $0x85] sm:$0xff]
      %v2704 = vld [vmem:[%s165 + $0x8d] sm:$0xff]
      %v2705 = vld [vmem:[%s165 + $0x95] sm:$0xff]
      %v2706 = vld [vmem:[%s165 + $0x9d] sm:$0xff]
      %v2707 = vld [vmem:[%s165 + $0xa5] sm:$0xff]
      %v2708 = vld [vmem:[%s165 + $0xad] sm:$0xff]
      %v2709 = vld [vmem:[%s165 + $0xb5] sm:$0xff]
      %v2710 = vld [vmem:[%s165 + $0xbd] sm:$0xff]
      %v2711 = vld [vmem:[%s165 + $0xc5] sm:$0xff]
      %v2712 = vld [vmem:[%s165 + $0xcd] sm:$0xff]
      %v2713 = vld [vmem:[%s165 + $0xd5] sm:$0xff]
      %v2714 = vld [vmem:[%s165 + $0xdd] sm:$0xff]
      %v2715 = vld [vmem:[%s165 + $0xe5] sm:$0xff]
      %v2716 = vld [vmem:[%s165 + $0xed] sm:$0xff]
      %v2717 = vld [vmem:[%s165 + $0xf5] sm:$0xff]
      %v2718 = vld [vmem:[%s165 + $0xfd] sm:$0xff]
      %v2719 = vld [vmem:[%s165 + $0x105] sm:$0xff]
      %v2720 = vld [vmem:[%s165 + $0x10d] sm:$0xff]
      %v2721 = vld [vmem:[%s165 + $0x115] sm:$0xff]
      %v2722 = vld [vmem:[%s165 + $0x11d] sm:$0xff]
      %v2723 = vld [vmem:[%s165 + $0x125] sm:$0xff]
      %v2724 = vld [vmem:[%s165 + $0x12d] sm:$0xff]
      %v2725 = vld [vmem:[%s165 + $0x135] sm:$0xff]
      %v2726 = vld [vmem:[%s165 + $0x13d] sm:$0xff]
      %v2727 = vld [vmem:[%s165 + $0x145] sm:$0xff]
      %v2728 = vld [vmem:[%s165 + $0x14d] sm:$0xff]
      %v2729 = vld [vmem:[%s165 + $0x155] sm:$0xff]
      %v2730 = vld [vmem:[%s165 + $0x15d] sm:$0xff]
      %v2731 = vld [vmem:[%s165 + $0x165] sm:$0xf]
      %v2732 = vpack.c.bf16 %v2692, %v2691
      %v2733 = vpack.c.bf16 %v2694, %v2693
      %v2734 = vpack.c.bf16 %v2696, %v2695
      %v2735 = vpack.c.bf16 %v2698, %v2697
      %v2736 = vpack.c.bf16 %v2700, %v2699
      %v2737 = vpack.c.bf16 %v2702, %v2701
      %v2738 = vpack.c.bf16 %v2704, %v2703
      %v2739 = vpack.c.bf16 %v2706, %v2705
      %v2740 = vpack.c.bf16 %v2708, %v2707
      %v2741 = vpack.c.bf16 %v2710, %v2709
      %v2742 = vpack.c.bf16 %v2712, %v2711
      %v2743 = vpack.c.bf16 %v2714, %v2713
      %v2744 = vpack.c.bf16 %v2716, %v2715
      %v2745 = vpack.c.bf16 %v2718, %v2717
      %v2746 = vpack.c.bf16 %v2720, %v2719
      %v2747 = vpack.c.bf16 %v2722, %v2721
      %v2748 = vpack.c.bf16 %v2724, %v2723
      %v2749 = vpack.c.bf16 %v2726, %v2725
      %v2750 = vpack.c.bf16 %v2728, %v2727
      %v2751 = vpack.c.bf16 %v2730, %v2729
      %v2752 = vpack.c.bf16 %v2731, %v2731
      %s2753 = scalar_lea.vmem %s1, 14
      %v2754 = vld [vmem:[%s2753] sm:$0x3]
      %v2756 = vsel %vm299, %v2732, 0
      %v2759 = vsel %vm299, %v2733, 0
      %v2762 = vsel %vm299, %v2734, 0
      %v2765 = vsel %vm299, %v2735, 0
      %v2768 = vsel %vm299, %v2736, 0
      %v2771 = vsel %vm299, %v2737, 0
      %v2774 = vsel %vm299, %v2738, 0
      %v2777 = vsel %vm299, %v2739, 0
      %v2780 = vsel %vm299, %v2740, 0
      %v2783 = vsel %vm299, %v2741, 0
      %v2786 = vsel %vm299, %v2742, 0
      %v2789 = vsel %vm299, %v2743, 0
      %v2792 = vsel %vm299, %v2744, 0
      %v2795 = vsel %vm299, %v2745, 0
      %v2798 = vsel %vm299, %v2746, 0
      %v2801 = vsel %vm299, %v2747, 0
      %v2804 = vsel %vm299, %v2748, 0
      %v2807 = vsel %vm299, %v2749, 0
      %v2810 = vsel %vm299, %v2750, 0
      %v2813 = vsel %vm299, %v2751, 0
      %v2816 = vsel %vm299, %v2752, 0
      %v2819 = vand.u32 %v2754, %v366
      %2821 = vmatprep.subr.bf16.mxu0 0
      %2822 = vmatpush1.bf16.msra.mxu0 0
      %2823 = vmatprep.subr.bf16.mxu0 0
      %2824 = vmatpush1.bf16.msra.mxu0 0
      %2825 = vmatprep.subr.bf16.mxu0 0
      %2826 = vmatpush1.bf16.msra.mxu0 0
      %2827 = vmatprep.subr.bf16.mxu0 0
      %2828 = vmatpush1.bf16.msra.mxu0 0
      %2829 = vmatprep.subr.bf16.mxu0 0
      %2830 = vmatpush1.bf16.msra.mxu0 0
      %2831 = vmatprep.subr.bf16.mxu0 0
      %2832 = vmatpush1.bf16.msra.mxu0 0
      %2833 = vmatprep.subr.bf16.mxu0 0
      %2834 = vmatpush1.bf16.msra.mxu0 0
      %2835 = vmatprep.subr.bf16.mxu0 0
      %2836 = vmatpush1.bf16.msra.mxu0 %v2819
      %2837 = vmatprep.subr.bf16.mxu0 0
      %2838 = vmatpush2.bf16.msra.mxu0 0
      %2839 = vmatprep.subr.bf16.mxu0 0
      %2840 = vmatpush2.bf16.msra.mxu0 0
      %2841 = vmatprep.subr.bf16.mxu0 0
      %2842 = vmatpush2.bf16.msra.mxu0 0
      %2843 = vmatprep.subr.bf16.mxu0 0
      %2844 = vmatpush2.bf16.msra.mxu0 0
      %2845 = vmatprep.subr.bf16.mxu0 0
      %2846 = vmatpush2.bf16.msra.mxu0 0
      %2847 = vmatprep.subr.bf16.mxu0 0
      %2848 = vmatpush2.bf16.msra.mxu0 0
      %2849 = vmatprep.subr.bf16.mxu0 0
      %2850 = vmatpush2.bf16.msra.mxu0 0
      %2851 = vmatprep.subr.bf16.mxu0 0
      %2852 = vmatpush2.bf16.msra.mxu0 0
      %2853 = vmatprep.mubr.bf16.mxu0 0
      %2854 = vmatmul.mubr.bf16.gmra.mxu0 %v2756
      %v2855 = vpop.f32.mrf.mxu0
      %v2856 = vadd.f32 0.0, %v2855
      %v2857 = vpop.f32.mrf.mxu0
      %v2858 = vpop.f32.mrf.mxu0
      %v2859 = vadd.f32 0.0, %v2858
      %v2860 = vpop.f32.mrf.mxu0
      %2861 = vmatprep.mubr.bf16.mxu0 0
      %2862 = vmatmul.mubr.bf16.gmra.mxu0 %v2759
      %v2863 = vpop.f32.mrf.mxu0
      %v2864 = vadd.f32 0.0, %v2863
      %v2865 = vpop.f32.mrf.mxu0
      %v2866 = vpop.f32.mrf.mxu0
      %v2867 = vadd.f32 0.0, %v2866
      %v2868 = vpop.f32.mrf.mxu0
      %2869 = vmatprep.mubr.bf16.mxu0 0
      %2870 = vmatmul.mubr.bf16.gmra.mxu0 %v2762
      %v2871 = vpop.f32.mrf.mxu0
      %v2872 = vadd.f32 0.0, %v2871
      %v2873 = vpop.f32.mrf.mxu0
      %v2874 = vpop.f32.mrf.mxu0
      %v2875 = vadd.f32 0.0, %v2874
      %v2876 = vpop.f32.mrf.mxu0
      %2877 = vmatprep.mubr.bf16.mxu0 0
      %2878 = vmatmul.mubr.bf16.gmra.mxu0 %v2765
      %v2879 = vpop.f32.mrf.mxu0
      %v2880 = vadd.f32 0.0, %v2879
      %v2881 = vpop.f32.mrf.mxu0
      %v2882 = vpop.f32.mrf.mxu0
      %v2883 = vadd.f32 0.0, %v2882
      %v2884 = vpop.f32.mrf.mxu0
      %2885 = vmatprep.mubr.bf16.mxu0 0
      %2886 = vmatmul.mubr.bf16.gmra.mxu0 %v2768
      %v2887 = vpop.f32.mrf.mxu0
      %v2888 = vadd.f32 0.0, %v2887
      %v2889 = vpop.f32.mrf.mxu0
      %v2890 = vpop.f32.mrf.mxu0
      %v2891 = vadd.f32 0.0, %v2890
      %v2892 = vpop.f32.mrf.mxu0
      %2893 = vmatprep.mubr.bf16.mxu0 0
      %2894 = vmatmul.mubr.bf16.gmra.mxu0 %v2771
      %v2895 = vpop.f32.mrf.mxu0
      %v2896 = vadd.f32 0.0, %v2895
      %v2897 = vpop.f32.mrf.mxu0
      %v2898 = vpop.f32.mrf.mxu0
      %v2899 = vadd.f32 0.0, %v2898
      %v2900 = vpop.f32.mrf.mxu0
      %2901 = vmatprep.mubr.bf16.mxu0 0
      %2902 = vmatmul.mubr.bf16.gmra.mxu0 %v2774
      %v2903 = vpop.f32.mrf.mxu0
      %v2904 = vadd.f32 0.0, %v2903
      %v2905 = vpop.f32.mrf.mxu0
      %v2906 = vpop.f32.mrf.mxu0
      %v2907 = vadd.f32 0.0, %v2906
      %v2908 = vpop.f32.mrf.mxu0
      %2909 = vmatprep.mubr.bf16.mxu0 0
      %2910 = vmatmul.mubr.bf16.gmra.mxu0 %v2777
      %v2911 = vpop.f32.mrf.mxu0
      %v2912 = vadd.f32 0.0, %v2911
      %v2913 = vpop.f32.mrf.mxu0
      %v2914 = vpop.f32.mrf.mxu0
      %v2915 = vadd.f32 0.0, %v2914
      %v2916 = vpop.f32.mrf.mxu0
      %2917 = vmatprep.mubr.bf16.mxu0 0
      %2918 = vmatmul.mubr.bf16.gmra.mxu0 %v2780
      %v2919 = vpop.f32.mrf.mxu0
      %v2920 = vadd.f32 0.0, %v2919
      %v2921 = vpop.f32.mrf.mxu0
      %v2922 = vpop.f32.mrf.mxu0
      %v2923 = vadd.f32 0.0, %v2922
      %v2924 = vpop.f32.mrf.mxu0
      %2925 = vmatprep.mubr.bf16.mxu0 0
      %2926 = vmatmul.mubr.bf16.gmra.mxu0 %v2783
      %v2927 = vpop.f32.mrf.mxu0
      %v2928 = vadd.f32 0.0, %v2927
      %v2929 = vpop.f32.mrf.mxu0
      %v2930 = vpop.f32.mrf.mxu0
      %v2931 = vadd.f32 0.0, %v2930
      %v2932 = vpop.f32.mrf.mxu0
      %2933 = vmatprep.mubr.bf16.mxu0 0
      %2934 = vmatmul.mubr.bf16.gmra.mxu0 %v2786
      %v2935 = vpop.f32.mrf.mxu0
      %v2936 = vadd.f32 0.0, %v2935
      %v2937 = vpop.f32.mrf.mxu0
      %v2938 = vpop.f32.mrf.mxu0
      %v2939 = vadd.f32 0.0, %v2938
      %v2940 = vpop.f32.mrf.mxu0
      %2941 = vmatprep.mubr.bf16.mxu0 0
      %2942 = vmatmul.mubr.bf16.gmra.mxu0 %v2789
      %v2943 = vpop.f32.mrf.mxu0
      %v2944 = vadd.f32 0.0, %v2943
      %v2945 = vpop.f32.mrf.mxu0
      %v2946 = vpop.f32.mrf.mxu0
      %v2947 = vadd.f32 0.0, %v2946
      %v2948 = vpop.f32.mrf.mxu0
      %2949 = vmatprep.mubr.bf16.mxu0 0
      %2950 = vmatmul.mubr.bf16.gmra.mxu0 %v2792
      %v2951 = vpop.f32.mrf.mxu0
      %v2952 = vadd.f32 0.0, %v2951
      %v2953 = vpop.f32.mrf.mxu0
      %v2954 = vpop.f32.mrf.mxu0
      %v2955 = vadd.f32 0.0, %v2954
      %v2956 = vpop.f32.mrf.mxu0
      %2957 = vmatprep.mubr.bf16.mxu0 0
      %2958 = vmatmul.mubr.bf16.gmra.mxu0 %v2795
      %v2959 = vpop.f32.mrf.mxu0
      %v2960 = vadd.f32 0.0, %v2959
      %v2961 = vpop.f32.mrf.mxu0
      %v2962 = vpop.f32.mrf.mxu0
      %v2963 = vadd.f32 0.0, %v2962
      %v2964 = vpop.f32.mrf.mxu0
      %2965 = vmatprep.mubr.bf16.mxu0 0
      %2966 = vmatmul.mubr.bf16.gmra.mxu0 %v2798
      %v2967 = vpop.f32.mrf.mxu0
      %v2968 = vadd.f32 0.0, %v2967
      %v2969 = vpop.f32.mrf.mxu0
      %v2970 = vpop.f32.mrf.mxu0
      %v2971 = vadd.f32 0.0, %v2970
      %v2972 = vpop.f32.mrf.mxu0
      %2973 = vmatprep.mubr.bf16.mxu0 0
      %2974 = vmatmul.mubr.bf16.gmra.mxu0 %v2801
      %v2975 = vpop.f32.mrf.mxu0
      %v2976 = vadd.f32 0.0, %v2975
      %v2977 = vpop.f32.mrf.mxu0
      %v2978 = vpop.f32.mrf.mxu0
      %v2979 = vadd.f32 0.0, %v2978
      %v2980 = vpop.f32.mrf.mxu0
      %2981 = vmatprep.mubr.bf16.mxu0 0
      %2982 = vmatmul.mubr.bf16.gmra.mxu0 %v2804
      %v2983 = vpop.f32.mrf.mxu0
      %v2984 = vadd.f32 0.0, %v2983
      %v2985 = vpop.f32.mrf.mxu0
      %v2986 = vpop.f32.mrf.mxu0
      %v2987 = vadd.f32 0.0, %v2986
      %v2988 = vpop.f32.mrf.mxu0
      %2989 = vmatprep.mubr.bf16.mxu0 0
      %2990 = vmatmul.mubr.bf16.gmra.mxu0 %v2807
      %v2991 = vpop.f32.mrf.mxu0
      %v2992 = vadd.f32 0.0, %v2991
      %v2993 = vpop.f32.mrf.mxu0
      %v2994 = vpop.f32.mrf.mxu0
      %v2995 = vadd.f32 0.0, %v2994
      %v2996 = vpop.f32.mrf.mxu0
      %2997 = vmatprep.mubr.bf16.mxu0 0
      %2998 = vmatmul.mubr.bf16.gmra.mxu0 %v2810
      %v2999 = vpop.f32.mrf.mxu0
      %v3000 = vadd.f32 0.0, %v2999
      %v3001 = vpop.f32.mrf.mxu0
      %v3002 = vpop.f32.mrf.mxu0
      %v3003 = vadd.f32 0.0, %v3002
      %v3004 = vpop.f32.mrf.mxu0
      %3005 = vmatprep.mubr.bf16.mxu0 0
      %3006 = vmatmul.mubr.bf16.gmra.mxu0 %v2813
      %v3007 = vpop.f32.mrf.mxu0
      %v3008 = vadd.f32 0.0, %v3007
      %v3009 = vpop.f32.mrf.mxu0
      %v3010 = vpop.f32.mrf.mxu0
      %v3011 = vadd.f32 0.0, %v3010
      %v3012 = vpop.f32.mrf.mxu0
      %3013 = vmatprep.mubr.bf16.mxu0 0
      %3014 = vmatmul.mubr.bf16.gmra.mxu0 %v2816
      %v3015 = vpop.f32.mrf.mxu0
      %v3016 = vadd.f32 0.0, %v3015
      %v3017 = vpop.f32.mrf.mxu0
      %v3018 = vpop.f32.mrf.mxu0
      %v3019 = vpop.f32.mrf.mxu0
      %3020 = vdwg.mxu0
      %v3021 = vadd.f32 %v2650, %v2856
      %v3022 = vadd.f32 %v2651, %v2859
      %v3023 = vadd.f32 %v2652, %v2864
      %v3024 = vadd.f32 %v2653, %v2867
      %v3025 = vadd.f32 %v2654, %v2872
      %v3026 = vadd.f32 %v2655, %v2875
      %v3027 = vadd.f32 %v2656, %v2880
      %v3028 = vadd.f32 %v2657, %v2883
      %v3029 = vadd.f32 %v2658, %v2888
      %v3030 = vadd.f32 %v2659, %v2891
      %v3031 = vadd.f32 %v2660, %v2896
      %v3032 = vadd.f32 %v2661, %v2899
      %v3033 = vadd.f32 %v2662, %v2904
      %v3034 = vadd.f32 %v2663, %v2907
      %v3035 = vadd.f32 %v2664, %v2912
      %v3036 = vadd.f32 %v2665, %v2915
      %v3037 = vadd.f32 %v2666, %v2920
      %v3038 = vadd.f32 %v2667, %v2923
      %v3039 = vadd.f32 %v2668, %v2928
      %v3040 = vadd.f32 %v2669, %v2931
      %v3041 = vadd.f32 %v2670, %v2936
      %v3042 = vadd.f32 %v2671, %v2939
      %v3043 = vadd.f32 %v2672, %v2944
      %v3044 = vadd.f32 %v2673, %v2947
      %v3045 = vadd.f32 %v2674, %v2952
      %v3046 = vadd.f32 %v2675, %v2955
      %v3047 = vadd.f32 %v2676, %v2960
      %v3048 = vadd.f32 %v2677, %v2963
      %v3049 = vadd.f32 %v2678, %v2968
      %v3050 = vadd.f32 %v2679, %v2971
      %v3051 = vadd.f32 %v2680, %v2976
      %v3052 = vadd.f32 %v2681, %v2979
      %v3053 = vadd.f32 %v2682, %v2984
      %v3054 = vadd.f32 %v2683, %v2987
      %v3055 = vadd.f32 %v2684, %v2992
      %v3056 = vadd.f32 %v2685, %v2995
      %v3057 = vadd.f32 %v2686, %v3000
      %v3058 = vadd.f32 %v2687, %v3003
      %v3059 = vadd.f32 %v2688, %v3008
      %v3060 = vadd.f32 %v2689, %v3011
      %v3061 = vadd.f32 %v2690, %v3016
      %v3062 = vld [vmem:[%s165 + $0x26] sm:$0xff]
      %v3063 = vld [vmem:[%s165 + $0x2e] sm:$0xff]
      %v3064 = vld [vmem:[%s165 + $0x36] sm:$0xff]
      %v3065 = vld [vmem:[%s165 + $0x3e] sm:$0xff]
      %v3066 = vld [vmem:[%s165 + $0x46] sm:$0xff]
      %v3067 = vld [vmem:[%s165 + $0x4e] sm:$0xff]
      %v3068 = vld [vmem:[%s165 + $0x56] sm:$0xff]
      %v3069 = vld [vmem:[%s165 + $0x5e] sm:$0xff]
      %v3070 = vld [vmem:[%s165 + $0x66] sm:$0xff]
      %v3071 = vld [vmem:[%s165 + $0x6e] sm:$0xff]
      %v3072 = vld [vmem:[%s165 + $0x76] sm:$0xff]
      %v3073 = vld [vmem:[%s165 + $0x7e] sm:$0xff]
      %v3074 = vld [vmem:[%s165 + $0x86] sm:$0xff]
      %v3075 = vld [vmem:[%s165 + $0x8e] sm:$0xff]
      %v3076 = vld [vmem:[%s165 + $0x96] sm:$0xff]
      %v3077 = vld [vmem:[%s165 + $0x9e] sm:$0xff]
      %v3078 = vld [vmem:[%s165 + $0xa6] sm:$0xff]
      %v3079 = vld [vmem:[%s165 + $0xae] sm:$0xff]
      %v3080 = vld [vmem:[%s165 + $0xb6] sm:$0xff]
      %v3081 = vld [vmem:[%s165 + $0xbe] sm:$0xff]
      %v3082 = vld [vmem:[%s165 + $0xc6] sm:$0xff]
      %v3083 = vld [vmem:[%s165 + $0xce] sm:$0xff]
      %v3084 = vld [vmem:[%s165 + $0xd6] sm:$0xff]
      %v3085 = vld [vmem:[%s165 + $0xde] sm:$0xff]
      %v3086 = vld [vmem:[%s165 + $0xe6] sm:$0xff]
      %v3087 = vld [vmem:[%s165 + $0xee] sm:$0xff]
      %v3088 = vld [vmem:[%s165 + $0xf6] sm:$0xff]
      %v3089 = vld [vmem:[%s165 + $0xfe] sm:$0xff]
      %v3090 = vld [vmem:[%s165 + $0x106] sm:$0xff]
      %v3091 = vld [vmem:[%s165 + $0x10e] sm:$0xff]
      %v3092 = vld [vmem:[%s165 + $0x116] sm:$0xff]
      %v3093 = vld [vmem:[%s165 + $0x11e] sm:$0xff]
      %v3094 = vld [vmem:[%s165 + $0x126] sm:$0xff]
      %v3095 = vld [vmem:[%s165 + $0x12e] sm:$0xff]
      %v3096 = vld [vmem:[%s165 + $0x136] sm:$0xff]
      %v3097 = vld [vmem:[%s165 + $0x13e] sm:$0xff]
      %v3098 = vld [vmem:[%s165 + $0x146] sm:$0xff]
      %v3099 = vld [vmem:[%s165 + $0x14e] sm:$0xff]
      %v3100 = vld [vmem:[%s165 + $0x156] sm:$0xff]
      %v3101 = vld [vmem:[%s165 + $0x15e] sm:$0xff]
      %v3102 = vld [vmem:[%s165 + $0x166] sm:$0xf]
      %v3103 = vpack.c.bf16 %v3063, %v3062
      %v3104 = vpack.c.bf16 %v3065, %v3064
      %v3105 = vpack.c.bf16 %v3067, %v3066
      %v3106 = vpack.c.bf16 %v3069, %v3068
      %v3107 = vpack.c.bf16 %v3071, %v3070
      %v3108 = vpack.c.bf16 %v3073, %v3072
      %v3109 = vpack.c.bf16 %v3075, %v3074
      %v3110 = vpack.c.bf16 %v3077, %v3076
      %v3111 = vpack.c.bf16 %v3079, %v3078
      %v3112 = vpack.c.bf16 %v3081, %v3080
      %v3113 = vpack.c.bf16 %v3083, %v3082
      %v3114 = vpack.c.bf16 %v3085, %v3084
      %v3115 = vpack.c.bf16 %v3087, %v3086
      %v3116 = vpack.c.bf16 %v3089, %v3088
      %v3117 = vpack.c.bf16 %v3091, %v3090
      %v3118 = vpack.c.bf16 %v3093, %v3092
      %v3119 = vpack.c.bf16 %v3095, %v3094
      %v3120 = vpack.c.bf16 %v3097, %v3096
      %v3121 = vpack.c.bf16 %v3099, %v3098
      %v3122 = vpack.c.bf16 %v3101, %v3100
      %v3123 = vpack.c.bf16 %v3102, %v3102
      %s3124 = scalar_lea.vmem %s1, 16
      %v3125 = vld [vmem:[%s3124] sm:$0x3]
      %v3127 = vsel %vm299, %v3103, 0
      %v3130 = vsel %vm299, %v3104, 0
      %v3133 = vsel %vm299, %v3105, 0
      %v3136 = vsel %vm299, %v3106, 0
      %v3139 = vsel %vm299, %v3107, 0
      %v3142 = vsel %vm299, %v3108, 0
      %v3145 = vsel %vm299, %v3109, 0
      %v3148 = vsel %vm299, %v3110, 0
      %v3151 = vsel %vm299, %v3111, 0
      %v3154 = vsel %vm299, %v3112, 0
      %v3157 = vsel %vm299, %v3113, 0
      %v3160 = vsel %vm299, %v3114, 0
      %v3163 = vsel %vm299, %v3115, 0
      %v3166 = vsel %vm299, %v3116, 0
      %v3169 = vsel %vm299, %v3117, 0
      %v3172 = vsel %vm299, %v3118, 0
      %v3175 = vsel %vm299, %v3119, 0
      %v3178 = vsel %vm299, %v3120, 0
      %v3181 = vsel %vm299, %v3121, 0
      %v3184 = vsel %vm299, %v3122, 0
      %v3187 = vsel %vm299, %v3123, 0
      %v3190 = vand.u32 %v3125, %v366
      %3192 = vmatprep.subr.bf16.mxu0 0
      %3193 = vmatpush1.bf16.msra.mxu0 0
      %3194 = vmatprep.subr.bf16.mxu0 0
      %3195 = vmatpush1.bf16.msra.mxu0 0
      %3196 = vmatprep.subr.bf16.mxu0 0
      %3197 = vmatpush1.bf16.msra.mxu0 0
      %3198 = vmatprep.subr.bf16.mxu0 0
      %3199 = vmatpush1.bf16.msra.mxu0 0
      %3200 = vmatprep.subr.bf16.mxu0 0
      %3201 = vmatpush1.bf16.msra.mxu0 0
      %3202 = vmatprep.subr.bf16.mxu0 0
      %3203 = vmatpush1.bf16.msra.mxu0 0
      %3204 = vmatprep.subr.bf16.mxu0 0
      %3205 = vmatpush1.bf16.msra.mxu0 0
      %3206 = vmatprep.subr.bf16.mxu0 0
      %3207 = vmatpush1.bf16.msra.mxu0 %v3190
      %3208 = vmatprep.subr.bf16.mxu0 0
      %3209 = vmatpush2.bf16.msra.mxu0 0
      %3210 = vmatprep.subr.bf16.mxu0 0
      %3211 = vmatpush2.bf16.msra.mxu0 0
      %3212 = vmatprep.subr.bf16.mxu0 0
      %3213 = vmatpush2.bf16.msra.mxu0 0
      %3214 = vmatprep.subr.bf16.mxu0 0
      %3215 = vmatpush2.bf16.msra.mxu0 0
      %3216 = vmatprep.subr.bf16.mxu0 0
      %3217 = vmatpush2.bf16.msra.mxu0 0
      %3218 = vmatprep.subr.bf16.mxu0 0
      %3219 = vmatpush2.bf16.msra.mxu0 0
      %3220 = vmatprep.subr.bf16.mxu0 0
      %3221 = vmatpush2.bf16.msra.mxu0 0
      %3222 = vmatprep.subr.bf16.mxu0 0
      %3223 = vmatpush2.bf16.msra.mxu0 0
      %3224 = vmatprep.mubr.bf16.mxu0 0
      %3225 = vmatmul.mubr.bf16.gmra.mxu0 %v3127
      %v3226 = vpop.f32.mrf.mxu0
      %v3227 = vadd.f32 0.0, %v3226
      %v3228 = vpop.f32.mrf.mxu0
      %v3229 = vpop.f32.mrf.mxu0
      %v3230 = vadd.f32 0.0, %v3229
      %v3231 = vpop.f32.mrf.mxu0
      %3232 = vmatprep.mubr.bf16.mxu0 0
      %3233 = vmatmul.mubr.bf16.gmra.mxu0 %v3130
      %v3234 = vpop.f32.mrf.mxu0
      %v3235 = vadd.f32 0.0, %v3234
      %v3236 = vpop.f32.mrf.mxu0
      %v3237 = vpop.f32.mrf.mxu0
      %v3238 = vadd.f32 0.0, %v3237
      %v3239 = vpop.f32.mrf.mxu0
      %3240 = vmatprep.mubr.bf16.mxu0 0
      %3241 = vmatmul.mubr.bf16.gmra.mxu0 %v3133
      %v3242 = vpop.f32.mrf.mxu0
      %v3243 = vadd.f32 0.0, %v3242
      %v3244 = vpop.f32.mrf.mxu0
      %v3245 = vpop.f32.mrf.mxu0
      %v3246 = vadd.f32 0.0, %v3245
      %v3247 = vpop.f32.mrf.mxu0
      %3248 = vmatprep.mubr.bf16.mxu0 0
      %3249 = vmatmul.mubr.bf16.gmra.mxu0 %v3136
      %v3250 = vpop.f32.mrf.mxu0
      %v3251 = vadd.f32 0.0, %v3250
      %v3252 = vpop.f32.mrf.mxu0
      %v3253 = vpop.f32.mrf.mxu0
      %v3254 = vadd.f32 0.0, %v3253
      %v3255 = vpop.f32.mrf.mxu0
      %3256 = vmatprep.mubr.bf16.mxu0 0
      %3257 = vmatmul.mubr.bf16.gmra.mxu0 %v3139
      %v3258 = vpop.f32.mrf.mxu0
      %v3259 = vadd.f32 0.0, %v3258
      %v3260 = vpop.f32.mrf.mxu0
      %v3261 = vpop.f32.mrf.mxu0
      %v3262 = vadd.f32 0.0, %v3261
      %v3263 = vpop.f32.mrf.mxu0
      %3264 = vmatprep.mubr.bf16.mxu0 0
      %3265 = vmatmul.mubr.bf16.gmra.mxu0 %v3142
      %v3266 = vpop.f32.mrf.mxu0
      %v3267 = vadd.f32 0.0, %v3266
      %v3268 = vpop.f32.mrf.mxu0
      %v3269 = vpop.f32.mrf.mxu0
      %v3270 = vadd.f32 0.0, %v3269
      %v3271 = vpop.f32.mrf.mxu0
      %3272 = vmatprep.mubr.bf16.mxu0 0
      %3273 = vmatmul.mubr.bf16.gmra.mxu0 %v3145
      %v3274 = vpop.f32.mrf.mxu0
      %v3275 = vadd.f32 0.0, %v3274
      %v3276 = vpop.f32.mrf.mxu0
      %v3277 = vpop.f32.mrf.mxu0
      %v3278 = vadd.f32 0.0, %v3277
      %v3279 = vpop.f32.mrf.mxu0
      %3280 = vmatprep.mubr.bf16.mxu0 0
      %3281 = vmatmul.mubr.bf16.gmra.mxu0 %v3148
      %v3282 = vpop.f32.mrf.mxu0
      %v3283 = vadd.f32 0.0, %v3282
      %v3284 = vpop.f32.mrf.mxu0
      %v3285 = vpop.f32.mrf.mxu0
      %v3286 = vadd.f32 0.0, %v3285
      %v3287 = vpop.f32.mrf.mxu0
      %3288 = vmatprep.mubr.bf16.mxu0 0
      %3289 = vmatmul.mubr.bf16.gmra.mxu0 %v3151
      %v3290 = vpop.f32.mrf.mxu0
      %v3291 = vadd.f32 0.0, %v3290
      %v3292 = vpop.f32.mrf.mxu0
      %v3293 = vpop.f32.mrf.mxu0
      %v3294 = vadd.f32 0.0, %v3293
      %v3295 = vpop.f32.mrf.mxu0
      %3296 = vmatprep.mubr.bf16.mxu0 0
      %3297 = vmatmul.mubr.bf16.gmra.mxu0 %v3154
      %v3298 = vpop.f32.mrf.mxu0
      %v3299 = vadd.f32 0.0, %v3298
      %v3300 = vpop.f32.mrf.mxu0
      %v3301 = vpop.f32.mrf.mxu0
      %v3302 = vadd.f32 0.0, %v3301
      %v3303 = vpop.f32.mrf.mxu0
      %3304 = vmatprep.mubr.bf16.mxu0 0
      %3305 = vmatmul.mubr.bf16.gmra.mxu0 %v3157
      %v3306 = vpop.f32.mrf.mxu0
      %v3307 = vadd.f32 0.0, %v3306
      %v3308 = vpop.f32.mrf.mxu0
      %v3309 = vpop.f32.mrf.mxu0
      %v3310 = vadd.f32 0.0, %v3309
      %v3311 = vpop.f32.mrf.mxu0
      %3312 = vmatprep.mubr.bf16.mxu0 0
      %3313 = vmatmul.mubr.bf16.gmra.mxu0 %v3160
      %v3314 = vpop.f32.mrf.mxu0
      %v3315 = vadd.f32 0.0, %v3314
      %v3316 = vpop.f32.mrf.mxu0
      %v3317 = vpop.f32.mrf.mxu0
      %v3318 = vadd.f32 0.0, %v3317
      %v3319 = vpop.f32.mrf.mxu0
      %3320 = vmatprep.mubr.bf16.mxu0 0
      %3321 = vmatmul.mubr.bf16.gmra.mxu0 %v3163
      %v3322 = vpop.f32.mrf.mxu0
      %v3323 = vadd.f32 0.0, %v3322
      %v3324 = vpop.f32.mrf.mxu0
      %v3325 = vpop.f32.mrf.mxu0
      %v3326 = vadd.f32 0.0, %v3325
      %v3327 = vpop.f32.mrf.mxu0
      %3328 = vmatprep.mubr.bf16.mxu0 0
      %3329 = vmatmul.mubr.bf16.gmra.mxu0 %v3166
      %v3330 = vpop.f32.mrf.mxu0
      %v3331 = vadd.f32 0.0, %v3330
      %v3332 = vpop.f32.mrf.mxu0
      %v3333 = vpop.f32.mrf.mxu0
      %v3334 = vadd.f32 0.0, %v3333
      %v3335 = vpop.f32.mrf.mxu0
      %3336 = vmatprep.mubr.bf16.mxu0 0
      %3337 = vmatmul.mubr.bf16.gmra.mxu0 %v3169
      %v3338 = vpop.f32.mrf.mxu0
      %v3339 = vadd.f32 0.0, %v3338
      %v3340 = vpop.f32.mrf.mxu0
      %v3341 = vpop.f32.mrf.mxu0
      %v3342 = vadd.f32 0.0, %v3341
      %v3343 = vpop.f32.mrf.mxu0
      %3344 = vmatprep.mubr.bf16.mxu0 0
      %3345 = vmatmul.mubr.bf16.gmra.mxu0 %v3172
      %v3346 = vpop.f32.mrf.mxu0
      %v3347 = vadd.f32 0.0, %v3346
      %v3348 = vpop.f32.mrf.mxu0
      %v3349 = vpop.f32.mrf.mxu0
      %v3350 = vadd.f32 0.0, %v3349
      %v3351 = vpop.f32.mrf.mxu0
      %3352 = vmatprep.mubr.bf16.mxu0 0
      %3353 = vmatmul.mubr.bf16.gmra.mxu0 %v3175
      %v3354 = vpop.f32.mrf.mxu0
      %v3355 = vadd.f32 0.0, %v3354
      %v3356 = vpop.f32.mrf.mxu0
      %v3357 = vpop.f32.mrf.mxu0
      %v3358 = vadd.f32 0.0, %v3357
      %v3359 = vpop.f32.mrf.mxu0
      %3360 = vmatprep.mubr.bf16.mxu0 0
      %3361 = vmatmul.mubr.bf16.gmra.mxu0 %v3178
      %v3362 = vpop.f32.mrf.mxu0
      %v3363 = vadd.f32 0.0, %v3362
      %v3364 = vpop.f32.mrf.mxu0
      %v3365 = vpop.f32.mrf.mxu0
      %v3366 = vadd.f32 0.0, %v3365
      %v3367 = vpop.f32.mrf.mxu0
      %3368 = vmatprep.mubr.bf16.mxu0 0
      %3369 = vmatmul.mubr.bf16.gmra.mxu0 %v3181
      %v3370 = vpop.f32.mrf.mxu0
      %v3371 = vadd.f32 0.0, %v3370
      %v3372 = vpop.f32.mrf.mxu0
      %v3373 = vpop.f32.mrf.mxu0
      %v3374 = vadd.f32 0.0, %v3373
      %v3375 = vpop.f32.mrf.mxu0
      %3376 = vmatprep.mubr.bf16.mxu0 0
      %3377 = vmatmul.mubr.bf16.gmra.mxu0 %v3184
      %v3378 = vpop.f32.mrf.mxu0
      %v3379 = vadd.f32 0.0, %v3378
      %v3380 = vpop.f32.mrf.mxu0
      %v3381 = vpop.f32.mrf.mxu0
      %v3382 = vadd.f32 0.0, %v3381
      %v3383 = vpop.f32.mrf.mxu0
      %3384 = vmatprep.mubr.bf16.mxu0 0
      %3385 = vmatmul.mubr.bf16.gmra.mxu0 %v3187
      %v3386 = vpop.f32.mrf.mxu0
      %v3387 = vadd.f32 0.0, %v3386
      %v3388 = vpop.f32.mrf.mxu0
      %v3389 = vpop.f32.mrf.mxu0
      %v3390 = vpop.f32.mrf.mxu0
      %3391 = vdwg.mxu0
      %v3392 = vadd.f32 %v3021, %v3227
      %v3393 = vadd.f32 %v3022, %v3230
      %v3394 = vadd.f32 %v3023, %v3235
      %v3395 = vadd.f32 %v3024, %v3238
      %v3396 = vadd.f32 %v3025, %v3243
      %v3397 = vadd.f32 %v3026, %v3246
      %v3398 = vadd.f32 %v3027, %v3251
      %v3399 = vadd.f32 %v3028, %v3254
      %v3400 = vadd.f32 %v3029, %v3259
      %v3401 = vadd.f32 %v3030, %v3262
      %v3402 = vadd.f32 %v3031, %v3267
      %v3403 = vadd.f32 %v3032, %v3270
      %v3404 = vadd.f32 %v3033, %v3275
      %v3405 = vadd.f32 %v3034, %v3278
      %v3406 = vadd.f32 %v3035, %v3283
      %v3407 = vadd.f32 %v3036, %v3286
      %v3408 = vadd.f32 %v3037, %v3291
      %v3409 = vadd.f32 %v3038, %v3294
      %v3410 = vadd.f32 %v3039, %v3299
      %v3411 = vadd.f32 %v3040, %v3302
      %v3412 = vadd.f32 %v3041, %v3307
      %v3413 = vadd.f32 %v3042, %v3310
      %v3414 = vadd.f32 %v3043, %v3315
      %v3415 = vadd.f32 %v3044, %v3318
      %v3416 = vadd.f32 %v3045, %v3323
      %v3417 = vadd.f32 %v3046, %v3326
      %v3418 = vadd.f32 %v3047, %v3331
      %v3419 = vadd.f32 %v3048, %v3334
      %v3420 = vadd.f32 %v3049, %v3339
      %v3421 = vadd.f32 %v3050, %v3342
      %v3422 = vadd.f32 %v3051, %v3347
      %v3423 = vadd.f32 %v3052, %v3350
      %v3424 = vadd.f32 %v3053, %v3355
      %v3425 = vadd.f32 %v3054, %v3358
      %v3426 = vadd.f32 %v3055, %v3363
      %v3427 = vadd.f32 %v3056, %v3366
      %v3428 = vadd.f32 %v3057, %v3371
      %v3429 = vadd.f32 %v3058, %v3374
      %v3430 = vadd.f32 %v3059, %v3379
      %v3431 = vadd.f32 %v3060, %v3382
      %v3432 = vadd.f32 %v3061, %v3387
      %v3433 = vld [vmem:[%s2] sm:$0x1]
      %v3435 = vlaneseq
      %v3436 = vshrl.u32 %v3435, 7
      %v3437 = vsub.s32 0, %v3436
      %v3438 = vrot.slane %v3433, %v3437
      %v3440 = vadd.f32 %v3392, %v3438
      %v3441 = vadd.f32 %v3393, %v3438
      %v3442 = vadd.f32 %v3394, %v3438
      %v3443 = vadd.f32 %v3395, %v3438
      %v3444 = vadd.f32 %v3396, %v3438
      %v3445 = vadd.f32 %v3397, %v3438
      %v3446 = vadd.f32 %v3398, %v3438
      %v3447 = vadd.f32 %v3399, %v3438
      %v3448 = vadd.f32 %v3400, %v3438
      %v3449 = vadd.f32 %v3401, %v3438
      %v3450 = vadd.f32 %v3402, %v3438
      %v3451 = vadd.f32 %v3403, %v3438
      %v3452 = vadd.f32 %v3404, %v3438
      %v3453 = vadd.f32 %v3405, %v3438
      %v3454 = vadd.f32 %v3406, %v3438
      %v3455 = vadd.f32 %v3407, %v3438
      %v3456 = vadd.f32 %v3408, %v3438
      %v3457 = vadd.f32 %v3409, %v3438
      %v3458 = vadd.f32 %v3410, %v3438
      %v3459 = vadd.f32 %v3411, %v3438
      %v3460 = vadd.f32 %v3412, %v3438
      %v3461 = vadd.f32 %v3413, %v3438
      %v3462 = vadd.f32 %v3414, %v3438
      %v3463 = vadd.f32 %v3415, %v3438
      %v3464 = vadd.f32 %v3416, %v3438
      %v3465 = vadd.f32 %v3417, %v3438
      %v3466 = vadd.f32 %v3418, %v3438
      %v3467 = vadd.f32 %v3419, %v3438
      %v3468 = vadd.f32 %v3420, %v3438
      %v3469 = vadd.f32 %v3421, %v3438
      %v3470 = vadd.f32 %v3422, %v3438
      %v3471 = vadd.f32 %v3423, %v3438
      %v3472 = vadd.f32 %v3424, %v3438
      %v3473 = vadd.f32 %v3425, %v3438
      %v3474 = vadd.f32 %v3426, %v3438
      %v3475 = vadd.f32 %v3427, %v3438
      %v3476 = vadd.f32 %v3428, %v3438
      %v3477 = vadd.f32 %v3429, %v3438
      %v3478 = vadd.f32 %v3430, %v3438
      %v3479 = vadd.f32 %v3431, %v3438
      %v3480 = vadd.f32 %v3432, %v3438
      %vm3481 = vcmp.gt.f32.partialorder %v3440, 0.0
      %vm3482 = vcmp.gt.f32.partialorder %v3441, 0.0
      %vm3483 = vcmp.gt.f32.partialorder %v3442, 0.0
      %vm3484 = vcmp.gt.f32.partialorder %v3443, 0.0
      %vm3485 = vcmp.gt.f32.partialorder %v3444, 0.0
      %vm3486 = vcmp.gt.f32.partialorder %v3445, 0.0
      %vm3487 = vcmp.gt.f32.partialorder %v3446, 0.0
      %vm3488 = vcmp.gt.f32.partialorder %v3447, 0.0
      %vm3489 = vcmp.gt.f32.partialorder %v3448, 0.0
      %vm3490 = vcmp.gt.f32.partialorder %v3449, 0.0
      %vm3491 = vcmp.gt.f32.partialorder %v3450, 0.0
      %vm3492 = vcmp.gt.f32.partialorder %v3451, 0.0
      %vm3493 = vcmp.gt.f32.partialorder %v3452, 0.0
      %vm3494 = vcmp.gt.f32.partialorder %v3453, 0.0
      %vm3495 = vcmp.gt.f32.partialorder %v3454, 0.0
      %vm3496 = vcmp.gt.f32.partialorder %v3455, 0.0
      %vm3497 = vcmp.gt.f32.partialorder %v3456, 0.0
      %vm3498 = vcmp.gt.f32.partialorder %v3457, 0.0
      %vm3499 = vcmp.gt.f32.partialorder %v3458, 0.0
      %vm3500 = vcmp.gt.f32.partialorder %v3459, 0.0
      %vm3501 = vcmp.gt.f32.partialorder %v3460, 0.0
      %vm3502 = vcmp.gt.f32.partialorder %v3461, 0.0
      %vm3503 = vcmp.gt.f32.partialorder %v3462, 0.0
      %vm3504 = vcmp.gt.f32.partialorder %v3463, 0.0
      %vm3505 = vcmp.gt.f32.partialorder %v3464, 0.0
      %vm3506 = vcmp.gt.f32.partialorder %v3465, 0.0
      %vm3507 = vcmp.gt.f32.partialorder %v3466, 0.0
      %vm3508 = vcmp.gt.f32.partialorder %v3467, 0.0
      %vm3509 = vcmp.gt.f32.partialorder %v3468, 0.0
      %vm3510 = vcmp.gt.f32.partialorder %v3469, 0.0
      %vm3511 = vcmp.gt.f32.partialorder %v3470, 0.0
      %vm3512 = vcmp.gt.f32.partialorder %v3471, 0.0
      %vm3513 = vcmp.gt.f32.partialorder %v3472, 0.0
      %vm3514 = vcmp.gt.f32.partialorder %v3473, 0.0
      %vm3515 = vcmp.gt.f32.partialorder %v3474, 0.0
      %vm3516 = vcmp.gt.f32.partialorder %v3475, 0.0
      %vm3517 = vcmp.gt.f32.partialorder %v3476, 0.0
      %vm3518 = vcmp.gt.f32.partialorder %v3477, 0.0
      %vm3519 = vcmp.gt.f32.partialorder %v3478, 0.0
      %vm3520 = vcmp.gt.f32.partialorder %v3479, 0.0
      %vm3521 = vcmp.gt.f32.partialorder %v3480, 0.0
      %v3522 = vmul.f32 %v3440, 0.1
      %v3523 = vmul.f32 %v3441, 0.1
      %v3524 = vmul.f32 %v3442, 0.1
      %v3525 = vmul.f32 %v3443, 0.1
      %v3526 = vmul.f32 %v3444, 0.1
      %v3527 = vmul.f32 %v3445, 0.1
      %v3528 = vmul.f32 %v3446, 0.1
      %v3529 = vmul.f32 %v3447, 0.1
      %v3530 = vmul.f32 %v3448, 0.1
      %v3531 = vmul.f32 %v3449, 0.1
      %v3532 = vmul.f32 %v3450, 0.1
      %v3533 = vmul.f32 %v3451, 0.1
      %v3534 = vmul.f32 %v3452, 0.1
      %v3535 = vmul.f32 %v3453, 0.1
      %v3536 = vmul.f32 %v3454, 0.1
      %v3537 = vmul.f32 %v3455, 0.1
      %v3538 = vmul.f32 %v3456, 0.1
      %v3539 = vmul.f32 %v3457, 0.1
      %v3540 = vmul.f32 %v3458, 0.1
      %v3541 = vmul.f32 %v3459, 0.1
      %v3542 = vmul.f32 %v3460, 0.1
      %v3543 = vmul.f32 %v3461, 0.1
      %v3544 = vmul.f32 %v3462, 0.1
      %v3545 = vmul.f32 %v3463, 0.1
      %v3546 = vmul.f32 %v3464, 0.1
      %v3547 = vmul.f32 %v3465, 0.1
      %v3548 = vmul.f32 %v3466, 0.1
      %v3549 = vmul.f32 %v3467, 0.1
      %v3550 = vmul.f32 %v3468, 0.1
      %v3551 = vmul.f32 %v3469, 0.1
      %v3552 = vmul.f32 %v3470, 0.1
      %v3553 = vmul.f32 %v3471, 0.1
      %v3554 = vmul.f32 %v3472, 0.1
      %v3555 = vmul.f32 %v3473, 0.1
      %v3556 = vmul.f32 %v3474, 0.1
      %v3557 = vmul.f32 %v3475, 0.1
      %v3558 = vmul.f32 %v3476, 0.1
      %v3559 = vmul.f32 %v3477, 0.1
      %v3560 = vmul.f32 %v3478, 0.1
      %v3561 = vmul.f32 %v3479, 0.1
      %v3562 = vmul.f32 %v3480, 0.1
      %v3563 = vsel %vm3481, %v3440, %v3522
      %v3564 = vsel %vm3482, %v3441, %v3523
      %v3565 = vsel %vm3483, %v3442, %v3524
      %v3566 = vsel %vm3484, %v3443, %v3525
      %v3567 = vsel %vm3485, %v3444, %v3526
      %v3568 = vsel %vm3486, %v3445, %v3527
      %v3569 = vsel %vm3487, %v3446, %v3528
      %v3570 = vsel %vm3488, %v3447, %v3529
      %v3571 = vsel %vm3489, %v3448, %v3530
      %v3572 = vsel %vm3490, %v3449, %v3531
      %v3573 = vsel %vm3491, %v3450, %v3532
      %v3574 = vsel %vm3492, %v3451, %v3533
      %v3575 = vsel %vm3493, %v3452, %v3534
      %v3576 = vsel %vm3494, %v3453, %v3535
      %v3577 = vsel %vm3495, %v3454, %v3536
      %v3578 = vsel %vm3496, %v3455, %v3537
      %v3579 = vsel %vm3497, %v3456, %v3538
      %v3580 = vsel %vm3498, %v3457, %v3539
      %v3581 = vsel %vm3499, %v3458, %v3540
      %v3582 = vsel %vm3500, %v3459, %v3541
      %v3583 = vsel %vm3501, %v3460, %v3542
      %v3584 = vsel %vm3502, %v3461, %v3543
      %v3585 = vsel %vm3503, %v3462, %v3544
      %v3586 = vsel %vm3504, %v3463, %v3545
      %v3587 = vsel %vm3505, %v3464, %v3546
      %v3588 = vsel %vm3506, %v3465, %v3547
      %v3589 = vsel %vm3507, %v3466, %v3548
      %v3590 = vsel %vm3508, %v3467, %v3549
      %v3591 = vsel %vm3509, %v3468, %v3550
      %v3592 = vsel %vm3510, %v3469, %v3551
      %v3593 = vsel %vm3511, %v3470, %v3552
      %v3594 = vsel %vm3512, %v3471, %v3553
      %v3595 = vsel %vm3513, %v3472, %v3554
      %v3596 = vsel %vm3514, %v3473, %v3555
      %v3597 = vsel %vm3515, %v3474, %v3556
      %v3598 = vsel %vm3516, %v3475, %v3557
      %v3599 = vsel %vm3517, %v3476, %v3558
      %v3600 = vsel %vm3518, %v3477, %v3559
      %v3601 = vsel %vm3519, %v3478, %v3560
      %v3602 = vsel %vm3520, %v3479, %v3561
      %v3603 = vsel %vm3521, %v3480, %v3562
      %vm3604 = vcmask 64512
      %3605 = vst.msk [vmem:[%s170] sm:$0xff] %vm3604, %v3563
      %3606 = vst.msk [vmem:[%s170 + $0x8] sm:$0xff] %vm3604, %v3564
      %3607 = vst.msk [vmem:[%s170 + $0x10] sm:$0xff] %vm3604, %v3565
      %3608 = vst.msk [vmem:[%s170 + $0x18] sm:$0xff] %vm3604, %v3566
      %3609 = vst.msk [vmem:[%s170 + $0x20] sm:$0xff] %vm3604, %v3567
      %3610 = vst.msk [vmem:[%s170 + $0x28] sm:$0xff] %vm3604, %v3568
      %3611 = vst.msk [vmem:[%s170 + $0x30] sm:$0xff] %vm3604, %v3569
      %3612 = vst.msk [vmem:[%s170 + $0x38] sm:$0xff] %vm3604, %v3570
      %3613 = vst.msk [vmem:[%s170 + $0x40] sm:$0xff] %vm3604, %v3571
      %3614 = vst.msk [vmem:[%s170 + $0x48] sm:$0xff] %vm3604, %v3572
      %3615 = vst.msk [vmem:[%s170 + $0x50] sm:$0xff] %vm3604, %v3573
      %3616 = vst.msk [vmem:[%s170 + $0x58] sm:$0xff] %vm3604, %v3574
      %3617 = vst.msk [vmem:[%s170 + $0x60] sm:$0xff] %vm3604, %v3575
      %3618 = vst.msk [vmem:[%s170 + $0x68] sm:$0xff] %vm3604, %v3576
      %3619 = vst.msk [vmem:[%s170 + $0x70] sm:$0xff] %vm3604, %v3577
      %3620 = vst.msk [vmem:[%s170 + $0x78] sm:$0xff] %vm3604, %v3578
      %3621 = vst.msk [vmem:[%s170 + $0x80] sm:$0xff] %vm3604, %v3579
      %3622 = vst.msk [vmem:[%s170 + $0x88] sm:$0xff] %vm3604, %v3580
      %3623 = vst.msk [vmem:[%s170 + $0x90] sm:$0xff] %vm3604, %v3581
      %3624 = vst.msk [vmem:[%s170 + $0x98] sm:$0xff] %vm3604, %v3582
      %3625 = vst.msk [vmem:[%s170 + $0xa0] sm:$0xff] %vm3604, %v3583
      %3626 = vst.msk [vmem:[%s170 + $0xa8] sm:$0xff] %vm3604, %v3584
      %3627 = vst.msk [vmem:[%s170 + $0xb0] sm:$0xff] %vm3604, %v3585
      %3628 = vst.msk [vmem:[%s170 + $0xb8] sm:$0xff] %vm3604, %v3586
      %3629 = vst.msk [vmem:[%s170 + $0xc0] sm:$0xff] %vm3604, %v3587
      %3630 = vst.msk [vmem:[%s170 + $0xc8] sm:$0xff] %vm3604, %v3588
      %3631 = vst.msk [vmem:[%s170 + $0xd0] sm:$0xff] %vm3604, %v3589
      %3632 = vst.msk [vmem:[%s170 + $0xd8] sm:$0xff] %vm3604, %v3590
      %3633 = vst.msk [vmem:[%s170 + $0xe0] sm:$0xff] %vm3604, %v3591
      %3634 = vst.msk [vmem:[%s170 + $0xe8] sm:$0xff] %vm3604, %v3592
      %3635 = vst.msk [vmem:[%s170 + $0xf0] sm:$0xff] %vm3604, %v3593
      %3636 = vst.msk [vmem:[%s170 + $0xf8] sm:$0xff] %vm3604, %v3594
      %3637 = vst.msk [vmem:[%s170 + $0x100] sm:$0xff] %vm3604, %v3595
      %3638 = vst.msk [vmem:[%s170 + $0x108] sm:$0xff] %vm3604, %v3596
      %3639 = vst.msk [vmem:[%s170 + $0x110] sm:$0xff] %vm3604, %v3597
      %3640 = vst.msk [vmem:[%s170 + $0x118] sm:$0xff] %vm3604, %v3598
      %3641 = vst.msk [vmem:[%s170 + $0x120] sm:$0xff] %vm3604, %v3599
      %3642 = vst.msk [vmem:[%s170 + $0x128] sm:$0xff] %vm3604, %v3600
      %3643 = vst.msk [vmem:[%s170 + $0x130] sm:$0xff] %vm3604, %v3601
      %3644 = vst.msk [vmem:[%s170 + $0x138] sm:$0xff] %vm3604, %v3602
      %vm3645 = vcmask 60416
      %3646 = vst.msk [vmem:[%s170 + $0x140] sm:$0xf] %vm3645, %v3603
      %p3647 = scmp.lt.s32.totalorder %s14, 1
      %s3648 = scalar_select %p3647, %s14, 1
      %s3649 = smul.addr %s3648, 41
      %s3650 = smul.addr %s3649, 8
      %s3651 = scalar_lea.vmem %s3, %s3650
      // Predicated region
      $region33: #{forward.7} parent=31 // pred_check
        %p3652 = pneg %p100
      $region34: #{forward.7} parent=31 // pred_check_branch
        %3654 = sbr.rel (%p3652) target = $region36
      $region35: #{forward.7} parent=31 // pred_region
        _
      $region36: #{forward.7} parent=31 // pred_fallthru
        _
    $region32: #{forward.7} parent=5 // pred_fallthru
      _
    %p3655 = scmp.le.s32.totalorder 2, %s9
    // Predicated region
    $region37: #{forward.7} parent=5 // pred_check
      %p3656 = pneg %p3655
    $region38: #{forward.7} parent=5 // pred_check_branch
      %3658 = sbr.rel (%p3656) target = $region40
    $region39: #{forward.7} parent=5 // pred_region
      %s3659 = ssub.s32 %s9, 2
      // Predicated region
      $region41: #{forward.7} parent=39 // pred_check
        %p3660 = pneg %p106
      $region42: #{forward.7} parent=39 // pred_check_branch
        %3662 = sbr.rel (%p3660) target = $region44
      $region43: #{forward.7} parent=39 // pred_region
        %p3663 = scmp.lt.s32.totalorder %s15, 1
        %s3664 = scalar_select %p3663, %s15, 1
        %s3665 = smul.addr %s3664, 41
        %s3666 = smul.addr %s3665, 8
        %s3667 = scalar_lea.vmem %s3, %s3666
      $region44: #{forward.7} parent=39 // pred_fallthru
        _
    $region40: #{forward.7} parent=5 // pred_fallthru
      _
  $region6: #{forward.7} parent=0 // loop_footer
    %s13 = sadd.s32 1, %s9
  $region7: #{forward.7} parent=0 // loop_footer_branch
    %8 = sbr.rel target = $region3
  $region8: #{forward.7} parent=0 // loop_exit
    _

// kernel: forward.10
$region0: #{forward.10}
  #allocation0 [shape = 'u32[]', space=smem, size = 0x4, offset = 0x4, fixed_abs, tag = 'smem constant byte address 0x4 - core index']
  #allocation1 [shape = 'u32[144,128]{1,0:T(1,128)}', space=vmem, size = 0x12000, scoped, tag = 'internal scratch']
  %s0 = inlined_call_operand.vmem [shape: f32[32,32], index: 0, kind: input, shape index: {}, may-alias: {0,1}]
  %s1 = inlined_call_operand.vmem [shape: f32[32,32], index: 1, kind: input, shape index: {}, may-alias: {0,1}]
  %s2 = inlined_call_operand.vmem [shape: bf16[32,32], index: 2, kind: input, shape index: {}]
  %s3 = inlined_call_operand.vmem [shape: bf16[32,32], index: 3, kind: input, shape index: {}]
  %s4 = inlined_call_operand.vmem [shape: f32[1,32], index: 4, kind: input, shape index: {}]
  %s5 = inlined_call_operand.vmem [shape: f32[32,32], index: 5, kind: output, shape index: {}]
  %s6 = sld [smem:[#allocation0]]
  $region30: #{forward.10} parent=0
    _
  %s8 = ssub.s32 1, %s6
  %s9 = scalar_select 0, %s8, %s6
  // Predicated region
  $region2: #{forward.10} parent=0 // pred_check
    _
  $region3: #{forward.10} parent=0 // pred_check_branch
    %11 = sbr.rel (0) target = $region5
  $region4: #{forward.10} parent=0 // pred_region
    _
  $region5: #{forward.10} parent=0 // pred_fallthru
    _
  // Predicated region
  $region6: #{forward.10} parent=0 // pred_check
    _
  $region7: #{forward.10} parent=0 // pred_check_branch
    %13 = sbr.rel (0) target = $region9
  $region8: #{forward.10} parent=0 // pred_region
    _
  $region9: #{forward.10} parent=0 // pred_fallthru
    _
  // Predicated region
  $region10: #{forward.10} parent=0 // pred_check
    _
  $region11: #{forward.10} parent=0 // pred_check_branch
    %15 = sbr.rel (0) target = $region13
  $region12: #{forward.10} parent=0 // pred_region
    _
  $region13: #{forward.10} parent=0 // pred_fallthru
    _
  // Predicated region
  $region14: #{forward.10} parent=0 // pred_check
    _
  $region15: #{forward.10} parent=0 // pred_check_branch
    %17 = sbr.rel (0) target = $region17
  $region16: #{forward.10} parent=0 // pred_region
    _
  $region17: #{forward.10} parent=0 // pred_fallthru
    _
  // Predicated region
  $region18: #{forward.10} parent=0 // pred_check
    _
  $region19: #{forward.10} parent=0 // pred_check_branch
    %19 = sbr.rel (0) target = $region21
  $region20: #{forward.10} parent=0 // pred_region
    _
  $region21: #{forward.10} parent=0 // pred_fallthru
    _
  %v21 = vld [vmem:[%s0] sm:$0xff]
  %v22 = vld [vmem:[%s0 + $0x8] sm:$0xff]
  %v23 = vld [vmem:[%s0 + $0x10] sm:$0xff]
  %v24 = vld [vmem:[%s0 + $0x18] sm:$0xff]
  %v25 = vpack.c.bf16 %v22, %v21
  %v26 = vpack.c.bf16 %v24, %v23
  %v27 = vld [vmem:[%s2] sm:$0xf]
  %v28 = vld [vmem:[%s2 + $0x4] sm:$0xf]
  %v29 = vld [vmem:[%s2 + $0x8] sm:$0xf]
  %v30 = vld [vmem:[%s2 + $0xc] sm:$0xf]
  %v31 = vld [vmem:[%s1] sm:$0xff]
  %v32 = vld [vmem:[%s1 + $0x8] sm:$0xff]
  %v33 = vld [vmem:[%s1 + $0x10] sm:$0xff]
  %v34 = vld [vmem:[%s1 + $0x18] sm:$0xff]
  %v35 = vpack.c.bf16 %v32, %v31
  %v36 = vpack.c.bf16 %v34, %v33
  %v37 = vld [vmem:[%s3] sm:$0xf]
  %v38 = vld [vmem:[%s3 + $0x4] sm:$0xf]
  %v39 = vld [vmem:[%s3 + $0x8] sm:$0xf]
  %v40 = vld [vmem:[%s3 + $0xc] sm:$0xf]
  %v45 = vunpack.c.l.b16 %v37
  %v46 = vunpack.c.l.b16 %v38
  %v47 = vunpack.c.l.b16 %v39
  %v48 = vunpack.c.l.b16 %v40
  %v49 = vpack.c.b16 %v46, %v45
  %v50 = vpack.c.b16 %v48, %v47
  %vm53 = vcmask 261120
  %v55 = vsel %vm53, %v35, 0
  %v58 = vsel %vm53, %v36, 0
  %60 = vmatprep.subr.bf16.mxu0 0
  %61 = vmatpush1.bf16.msra.mxu0 0
  %62 = vmatprep.subr.bf16.mxu0 0
  %63 = vmatpush1.bf16.msra.mxu0 0
  %64 = vmatprep.subr.bf16.mxu0 0
  %65 = vmatpush1.bf16.msra.mxu0 0
  %66 = vmatprep.subr.bf16.mxu0 0
  %67 = vmatpush1.bf16.msra.mxu0 0
  %68 = vmatprep.subr.bf16.mxu0 0
  %69 = vmatpush1.bf16.msra.mxu0 0
  %70 = vmatprep.subr.bf16.mxu0 0
  %71 = vmatpush1.bf16.msra.mxu0 0
  %72 = vmatprep.subr.bf16.mxu0 0
  %73 = vmatpush1.bf16.msra.mxu0 %v50
  %74 = vmatprep.subr.bf16.mxu0 0
  %75 = vmatpush1.bf16.msra.mxu0 %v49
  %76 = vmatprep.subr.bf16.mxu0 0
  %77 = vmatpush2.bf16.msra.mxu0 0
  %78 = vmatprep.subr.bf16.mxu0 0
  %79 = vmatpush2.bf16.msra.mxu0 0
  %80 = vmatprep.subr.bf16.mxu0 0
  %81 = vmatpush2.bf16.msra.mxu0 0
  %82 = vmatprep.subr.bf16.mxu0 0
  %83 = vmatpush2.bf16.msra.mxu0 0
  %84 = vmatprep.subr.bf16.mxu0 0
  %85 = vmatpush2.bf16.msra.mxu0 0
  %86 = vmatprep.subr.bf16.mxu0 0
  %87 = vmatpush2.bf16.msra.mxu0 0
  %88 = vmatprep.subr.bf16.mxu0 0
  %89 = vmatpush2.bf16.msra.mxu0 0
  %90 = vmatprep.subr.bf16.mxu0 0
  %91 = vmatpush2.bf16.msra.mxu0 0
  %92 = vmatprep.mubr.bf16.mxu0 0
  %93 = vmatmul.mubr.bf16.gmra.mxu0 %v55
  %v94 = vpop.f32.mrf.mxu0
  %v95 = vadd.f32 0.0, %v94
  %v96 = vpop.f32.mrf.mxu0
  %v97 = vpop.f32.mrf.mxu0
  %v98 = vadd.f32 0.0, %v97
  %v99 = vpop.f32.mrf.mxu0
  %100 = vmatprep.mubr.bf16.mxu0 0
  %101 = vmatmul.mubr.bf16.gmra.mxu0 %v58
  %v102 = vpop.f32.mrf.mxu0
  %v103 = vadd.f32 0.0, %v102
  %v104 = vpop.f32.mrf.mxu0
  %v105 = vpop.f32.mrf.mxu0
  %v106 = vadd.f32 0.0, %v105
  %v107 = vpop.f32.mrf.mxu0
  %108 = vdwg.mxu0
  %v113 = vunpack.c.l.b16 %v27
  %v114 = vunpack.c.l.b16 %v28
  %v115 = vunpack.c.l.b16 %v29
  %v116 = vunpack.c.l.b16 %v30
  %v117 = vpack.c.b16 %v114, %v113
  %v118 = vpack.c.b16 %v116, %v115
  %v122 = vsel %vm53, %v25, 0
  %v125 = vsel %vm53, %v26, 0
  %127 = vmatprep.subr.bf16.mxu0 0
  %128 = vmatpush1.bf16.msra.mxu0 0
  %129 = vmatprep.subr.bf16.mxu0 0
  %130 = vmatpush1.bf16.msra.mxu0 0
  %131 = vmatprep.subr.bf16.mxu0 0
  %132 = vmatpush1.bf16.msra.mxu0 0
  %133 = vmatprep.subr.bf16.mxu0 0
  %134 = vmatpush1.bf16.msra.mxu0 0
  %135 = vmatprep.subr.bf16.mxu0 0
  %136 = vmatpush1.bf16.msra.mxu0 0
  %137 = vmatprep.subr.bf16.mxu0 0
  %138 = vmatpush1.bf16.msra.mxu0 0
  %139 = vmatprep.subr.bf16.mxu0 0
  %140 = vmatpush1.bf16.msra.mxu0 %v118
  %141 = vmatprep.subr.bf16.mxu0 0
  %142 = vmatpush1.bf16.msra.mxu0 %v117
  %143 = vmatprep.subr.bf16.mxu0 0
  %144 = vmatpush2.bf16.msra.mxu0 0
  %145 = vmatprep.subr.bf16.mxu0 0
  %146 = vmatpush2.bf16.msra.mxu0 0
  %147 = vmatprep.subr.bf16.mxu0 0
  %148 = vmatpush2.bf16.msra.mxu0 0
  %149 = vmatprep.subr.bf16.mxu0 0
  %150 = vmatpush2.bf16.msra.mxu0 0
  %151 = vmatprep.subr.bf16.mxu0 0
  %152 = vmatpush2.bf16.msra.mxu0 0
  %153 = vmatprep.subr.bf16.mxu0 0
  %154 = vmatpush2.bf16.msra.mxu0 0
  %155 = vmatprep.subr.bf16.mxu0 0
  %156 = vmatpush2.bf16.msra.mxu0 0
  %157 = vmatprep.subr.bf16.mxu0 0
  %158 = vmatpush2.bf16.msra.mxu0 0
  %159 = vmatprep.mubr.bf16.mxu0 0
  %160 = vmatmul.mubr.bf16.gmra.mxu0 %v122
  %v161 = vpop.f32.mrf.mxu0
  %v162 = vadd.f32 %v95, %v161
  %v163 = vpop.f32.mrf.mxu0
  %v164 = vpop.f32.mrf.mxu0
  %v165 = vadd.f32 %v98, %v164
  %v166 = vpop.f32.mrf.mxu0
  %167 = vmatprep.mubr.bf16.mxu0 0
  %168 = vmatmul.mubr.bf16.gmra.mxu0 %v125
  %v169 = vpop.f32.mrf.mxu0
  %v170 = vadd.f32 %v103, %v169
  %v171 = vpop.f32.mrf.mxu0
  %v172 = vpop.f32.mrf.mxu0
  %v173 = vadd.f32 %v106, %v172
  %v174 = vpop.f32.mrf.mxu0
  %175 = vdwg.mxu0
  %v176 = vld [vmem:[%s4] sm:$0x1]
  %v178 = vlaneseq
  %v179 = vshrl.u32 %v178, 7
  %v180 = vsub.s32 0, %v179
  %v181 = vrot.slane %v176, %v180
  %v183 = vadd.f32 %v162, %v181
  %v184 = vadd.f32 %v165, %v181
  %v185 = vadd.f32 %v170, %v181
  %v186 = vadd.f32 %v173, %v181
  %vm187 = vcmp.gt.f32.partialorder %v183, 0.0
  %vm188 = vcmp.gt.f32.partialorder %v184, 0.0
  %vm189 = vcmp.gt.f32.partialorder %v185, 0.0
  %vm190 = vcmp.gt.f32.partialorder %v186, 0.0
  %v191 = vmul.f32 %v183, 0.1
  %v192 = vmul.f32 %v184, 0.1
  %v193 = vmul.f32 %v185, 0.1
  %v194 = vmul.f32 %v186, 0.1
  %v195 = vsel %vm187, %v183, %v191
  %v196 = vsel %vm188, %v184, %v192
  %v197 = vsel %vm189, %v185, %v193
  %v198 = vsel %vm190, %v186, %v194
  %199 = vst.msk [vmem:[%s5] sm:$0xff] %vm53, %v195
  %200 = vst.msk [vmem:[%s5 + $0x8] sm:$0xff] %vm53, %v196
  %201 = vst.msk [vmem:[%s5 + $0x10] sm:$0xff] %vm53, %v197
  %202 = vst.msk [vmem:[%s5 + $0x18] sm:$0xff] %vm53, %v198
  // Predicated region
  $region22: #{forward.10} parent=0 // pred_check
    _
  $region23: #{forward.10} parent=0 // pred_check_branch
    %204 = sbr.rel (0) target = $region25
  $region24: #{forward.10} parent=0 // pred_region
    _
  $region25: #{forward.10} parent=0 // pred_fallthru
    _
  // Predicated region
  $region26: #{forward.10} parent=0 // pred_check
    _
  $region27: #{forward.10} parent=0 // pred_check_branch
    %206 = sbr.rel (0) target = $region29
  $region28: #{forward.10} parent=0 // pred_region
    _
  $region29: #{forward.10} parent=0 // pred_fallthru
    _

// kernel: forward.12
$region0: #{forward.12}
  #allocation0 [shape = 'u32[]', space=smem, size = 0x4, offset = 0x4, fixed_abs, tag = 'smem constant byte address 0x4 - core index']
  #allocation1 [shape = 'u32[144,128]{1,0:T(1,128)}', space=vmem, size = 0x12000, scoped, tag = 'internal scratch']
  %s0 = inlined_call_operand.vmem [shape: f32[2,50,32], index: 0, kind: input, shape index: {}]
  %s1 = inlined_call_operand.vmem [shape: bf16[9,32,128], index: 1, kind: input, shape index: {}]
  %s2 = inlined_call_operand.vmem [shape: f32[1,128], index: 2, kind: input, shape index: {}]
  %s3 = inlined_call_operand.vmem [shape: f32[2,36,128], index: 3, kind: output, shape index: {}]
  %s4 = sld [smem:[#allocation0]]
  $region45: #{forward.12} parent=0
    _
  %s6 = ssub.s32 1, %s4
  %s7 = scalar_select 0, %s6, %s4
  loop: start=0, step=1, limit=4
  $region2: #{forward.12} parent=0 // loop_pre_header
    _
  $region3: #{forward.12} parent=0 // loop_header
    %s9 = sphi 0, %s13
    %p10 = scmp.ge.s32.totalorder %s9, 4
    %s19 = sphi 0, %s21
    %s22 = sphi 0, %s19
    %s23 = sphi 0, %s22
    %s39 = sphi 0, %s23
    %s43 = sphi 0, %s43
    %s45 = sphi 0, %s43
    %s46 = sphi 0, %s45
    %s60 = sphi 0, %s46
    %s64 = sphi 0, %s64
    %s66 = sphi 0, %s64
    %s67 = sphi 0, %s66
    %s81 = sphi 0, %s67
    %s87 = sphi 0, %s89
    %s90 = sphi 0, %s87
    %s91 = sphi 0, %s90
    %s107 = sphi 0, %s91
  $region4: #{forward.12} parent=0 // loop_header_branch
    %12 = sbr.rel (%p10) target = $region8
  $region5: #{forward.12} parent=0 // loop_body
    %s14 = ssub.s32 %s9, 1
    %s15 = ssub.s32 %s9, 2
    %s16 = sadd.s32 %s9, 1
    %s17 = ssub.s32 %s9, %s16
    %p18 = scmp.eq.s32.totalorder %s17, 0
    %s20 = sadd.s32 %s19, 1
    %s21 = scalar_select %p18, %s19, %s20
    %p24 = pneg %p18
    %p25 = scmp.eq.s32.totalorder %s9, 1
    %p26 = por %p24, %p25
    %p27 = scmp.ne.s32.totalorder %s19, %s22
    %p28 = scmp.eq.s32.totalorder %s9, 0
    %p29 = por %p27, %p28
    %p30 = scmp.ne.s32.totalorder %s19, %s22
    %p31 = scmp.eq.s32.totalorder %s14, 1
    %p32 = por %p30, %p31
    %p33 = scmp.ne.s32.totalorder %s22, %s23
    %p34 = scmp.eq.s32.totalorder %s14, 0
    %p35 = por %p33, %p34
    %p36 = scmp.ne.s32.totalorder %s22, %s23
    %p37 = scmp.eq.s32.totalorder %s15, 1
    %p38 = por %p36, %p37
    %p40 = scmp.ne.s32.totalorder %s23, %s39
    %p41 = scmp.eq.s32.totalorder %s15, 0
    %p42 = por %p40, %p41
    %s44 = sadd.s32 %s43, 1
    %p47 = scmp.eq.s32.totalorder %s9, 1
    %p48 = scmp.ne.s32.totalorder %s43, %s45
    %p49 = scmp.eq.s32.totalorder %s9, 0
    %p50 = por %p48, %p49
    %p51 = scmp.ne.s32.totalorder %s43, %s45
    %p52 = scmp.eq.s32.totalorder %s14, 1
    %p53 = por %p51, %p52
    %p54 = scmp.ne.s32.totalorder %s45, %s46
    %p55 = scmp.eq.s32.totalorder %s14, 0
    %p56 = por %p54, %p55
    %p57 = scmp.ne.s32.totalorder %s45, %s46
    %p58 = scmp.eq.s32.totalorder %s15, 1
    %p59 = por %p57, %p58
    %p61 = scmp.ne.s32.totalorder %s46, %s60
    %p62 = scmp.eq.s32.totalorder %s15, 0
    %p63 = por %p61, %p62
    %s65 = sadd.s32 %s64, 1
    %p68 = scmp.eq.s32.totalorder %s9, 1
    %p69 = scmp.ne.s32.totalorder %s64, %s66
    %p70 = scmp.eq.s32.totalorder %s9, 0
    %p71 = por %p69, %p70
    %p72 = scmp.ne.s32.totalorder %s64, %s66
    %p73 = scmp.eq.s32.totalorder %s14, 1
    %p74 = por %p72, %p73
    %p75 = scmp.ne.s32.totalorder %s66, %s67
    %p76 = scmp.eq.s32.totalorder %s14, 0
    %p77 = por %p75, %p76
    %p78 = scmp.ne.s32.totalorder %s66, %s67
    %p79 = scmp.eq.s32.totalorder %s15, 1
    %p80 = por %p78, %p79
    %p82 = scmp.ne.s32.totalorder %s67, %s81
    %p83 = scmp.eq.s32.totalorder %s15, 0
    %p84 = por %p82, %p83
    %s85 = ssub.s32 %s9, %s16
    %p86 = scmp.eq.s32.totalorder %s85, 0
    %s88 = sadd.s32 %s87, 1
    %s89 = scalar_select %p86, %s87, %s88
    %p92 = pneg %p86
    %p93 = scmp.eq.s32.totalorder %s9, 1
    %p94 = por %p92, %p93
    %p95 = scmp.ne.s32.totalorder %s87, %s90
    %p96 = scmp.eq.s32.totalorder %s9, 0
    %p97 = por %p95, %p96
    %p98 = scmp.ne.s32.totalorder %s87, %s90
    %p99 = scmp.eq.s32.totalorder %s14, 1
    %p100 = por %p98, %p99
    %p101 = scmp.ne.s32.totalorder %s90, %s91
    %p102 = scmp.eq.s32.totalorder %s14, 0
    %p103 = por %p101, %p102
    %p104 = scmp.ne.s32.totalorder %s90, %s91
    %p105 = scmp.eq.s32.totalorder %s15, 1
    %p106 = por %p104, %p105
    %p108 = scmp.ne.s32.totalorder %s91, %s107
    %p109 = scmp.eq.s32.totalorder %s15, 0
    %p110 = por %p108, %p109
    %p111 = scmp.le.s32.totalorder 1, %s9
    %p112 = scmp.lt.s32.totalorder %s9, 3
    %p113 = pnand %p111, %p112
    %p114 = pneg %p113
    // Predicated region
    $region9: #{forward.12} parent=5 // pred_check
      _
    $region10: #{forward.12} parent=5 // pred_check_branch
      %116 = sbr.rel (%p113) target = $region12
    $region11: #{forward.12} parent=5 // pred_region
      %s117 = ssub.s32 %s9, 1
      // Predicated region
      $region13: #{forward.12} parent=11 // pred_check
        %p118 = pneg %p56
      $region14: #{forward.12} parent=11 // pred_check_branch
        %120 = sbr.rel (%p118) target = $region16
      $region15: #{forward.12} parent=11 // pred_region
        _
      $region16: #{forward.12} parent=11 // pred_fallthru
        _
      // Predicated region
      $region17: #{forward.12} parent=11 // pred_check
        %p121 = pneg %p77
      $region18: #{forward.12} parent=11 // pred_check_branch
        %123 = sbr.rel (%p121) target = $region20
      $region19: #{forward.12} parent=11 // pred_region
        _
      $region20: #{forward.12} parent=11 // pred_fallthru
        _
    $region12: #{forward.12} parent=5 // pred_fallthru
      _
    %p124 = scmp.lt.s32.totalorder %s9, 2
    // Predicated region
    $region21: #{forward.12} parent=5 // pred_check
      %p125 = pneg %p124
    $region22: #{forward.12} parent=5 // pred_check_branch
      %127 = sbr.rel (%p125) target = $region24
    $region23: #{forward.12} parent=5 // pred_region
      // Predicated region
      $region25: #{forward.12} parent=23 // pred_check
        %p128 = pneg %p29
      $region26: #{forward.12} parent=23 // pred_check_branch
        %130 = sbr.rel (%p128) target = $region28
      $region27: #{forward.12} parent=23 // pred_region
        %p131 = scmp.lt.s32.totalorder %s9, 1
        %s132 = scalar_select %p131, %s9, 1
        %s133 = smul.addr %s132, 7
        %s134 = smul.addr %s133, 8
        %s135 = scalar_lea.vmem %s0, %s134
      $region28: #{forward.12} parent=23 // pred_fallthru
        _
    $region24: #{forward.12} parent=5 // pred_fallthru
      _
    %p136 = scmp.le.s32.totalorder 1, %s9
    %p137 = scmp.lt.s32.totalorder %s9, 3
    %p138 = pnand %p136, %p137
    %p139 = pneg %p138
    // Predicated region
    $region29: #{forward.12} parent=5 // pred_check
      _
    $region30: #{forward.12} parent=5 // pred_check_branch
      %141 = sbr.rel (%p138) target = $region32
    $region31: #{forward.12} parent=5 // pred_region
      %s142 = ssub.s32 %s9, 1
      %p143 = scmp.lt.s32.totalorder %s14, 1
      %s144 = scalar_select %p143, %s14, 1
      %s145 = smul.addr %s144, 7
      %s146 = smul.addr %s145, 8
      %s147 = scalar_lea.vmem %s0, %s146
      %p148 = pneg %p35
      %p149 = pneg %p32
      %p150 = pneg %p56
      %p151 = pneg %p53
      %p152 = pneg %p77
      %p153 = pneg %p74
      %p154 = pneg %p103
      %p155 = pneg %p100
      %p156 = scmp.lt.s32.totalorder %s14, 1
      %s157 = scalar_select %p156, %s14, 1
      %s158 = smul.addr %s157, 5
      %s159 = smul.addr %s158, 8
      %s160 = scalar_lea.vmem %s3, %s159
      %p161 = scmp.lt.s32.totalorder %s14, 1
      %s162 = scalar_select %p161, %s14, 1
      %s163 = smul.addr %s162, 7
      %s164 = smul.addr %s163, 8
      %s165 = scalar_lea.vmem %s0, %s164
      %p166 = scmp.lt.s32.totalorder %s14, 1
      %s167 = scalar_select %p166, %s14, 1
      %s168 = smul.addr %s167, 5
      %s169 = smul.addr %s168, 8
      %s170 = scalar_lea.vmem %s3, %s169
      %v172 = vld [vmem:[%s165] sm:$0xff]
      %v173 = vld [vmem:[%s165 + $0x8] sm:$0xff]
      %v174 = vld [vmem:[%s165 + $0x10] sm:$0xff]
      %v175 = vld [vmem:[%s165 + $0x18] sm:$0xff]
      %v176 = vld [vmem:[%s165 + $0x20] sm:$0xf]
      %v177 = vpack.c.bf16 %v173, %v172
      %v178 = vpack.c.bf16 %v175, %v174
      %v179 = vpack.c.bf16 %v176, %v176
      %v180 = vld [vmem:[%s1] sm:$0xf]
      %v181 = vld [vmem:[%s1 + $0x4] sm:$0xf]
      %v182 = vld [vmem:[%s1 + $0x8] sm:$0xf]
      %v183 = vld [vmem:[%s1 + $0xc] sm:$0xf]
      %v184 = vld [vmem:[%s165 + $0x1] sm:$0xff]
      %v185 = vld [vmem:[%s165 + $0x9] sm:$0xff]
      %v186 = vld [vmem:[%s165 + $0x11] sm:$0xff]
      %v187 = vld [vmem:[%s165 + $0x19] sm:$0xff]
      %v188 = vld [vmem:[%s165 + $0x21] sm:$0xf]
      %v189 = vpack.c.bf16 %v185, %v184
      %v190 = vpack.c.bf16 %v187, %v186
      %v191 = vpack.c.bf16 %v188, %v188
      %s192 = scalar_lea.vmem %s1, 16
      %v193 = vld [vmem:[%s192] sm:$0xf]
      %v194 = vld [vmem:[%s192 + $0x4] sm:$0xf]
      %v195 = vld [vmem:[%s192 + $0x8] sm:$0xf]
      %v196 = vld [vmem:[%s192 + $0xc] sm:$0xf]
      %v201 = vunpack.c.l.b16 %v193
      %v202 = vunpack.c.l.b16 %v194
      %v203 = vunpack.c.l.b16 %v195
      %v204 = vunpack.c.l.b16 %v196
      %v205 = vpack.c.b16 %v202, %v201
      %v206 = vpack.c.b16 %v204, %v203
      %vm209 = vcmask 261120
      %v211 = vsel %vm209, %v189, 0
      %v214 = vsel %vm209, %v190, 0
      %v217 = vsel %vm209, %v191, 0
      %219 = vmatprep.subr.bf16.mxu0 0
      %220 = vmatpush1.bf16.msra.mxu0 0
      %221 = vmatprep.subr.bf16.mxu0 0
      %222 = vmatpush1.bf16.msra.mxu0 0
      %223 = vmatprep.subr.bf16.mxu0 0
      %224 = vmatpush1.bf16.msra.mxu0 0
      %225 = vmatprep.subr.bf16.mxu0 0
      %226 = vmatpush1.bf16.msra.mxu0 0
      %227 = vmatprep.subr.bf16.mxu0 0
      %228 = vmatpush1.bf16.msra.mxu0 0
      %229 = vmatprep.subr.bf16.mxu0 0
      %230 = vmatpush1.bf16.msra.mxu0 0
      %231 = vmatprep.subr.bf16.mxu0 0
      %232 = vmatpush1.bf16.msra.mxu0 %v206
      %233 = vmatprep.subr.bf16.mxu0 0
      %234 = vmatpush1.bf16.msra.mxu0 %v205
      %235 = vmatprep.subr.bf16.mxu0 0
      %236 = vmatpush2.bf16.msra.mxu0 0
      %237 = vmatprep.subr.bf16.mxu0 0
      %238 = vmatpush2.bf16.msra.mxu0 0
      %239 = vmatprep.subr.bf16.mxu0 0
      %240 = vmatpush2.bf16.msra.mxu0 0
      %241 = vmatprep.subr.bf16.mxu0 0
      %242 = vmatpush2.bf16.msra.mxu0 0
      %243 = vmatprep.subr.bf16.mxu0 0
      %244 = vmatpush2.bf16.msra.mxu0 0
      %245 = vmatprep.subr.bf16.mxu0 0
      %246 = vmatpush2.bf16.msra.mxu0 0
      %247 = vmatprep.subr.bf16.mxu0 0
      %248 = vmatpush2.bf16.msra.mxu0 0
      %249 = vmatprep.subr.bf16.mxu0 0
      %250 = vmatpush2.bf16.msra.mxu0 0
      %251 = vmatprep.mubr.bf16.mxu0 0
      %252 = vmatmul.mubr.bf16.gmra.mxu0 %v211
      %v253 = vpop.f32.mrf.mxu0
      %v254 = vadd.f32 0.0, %v253
      %v255 = vpop.f32.mrf.mxu0
      %v256 = vpop.f32.mrf.mxu0
      %v257 = vadd.f32 0.0, %v256
      %v258 = vpop.f32.mrf.mxu0
      %259 = vmatprep.mubr.bf16.mxu0 0
      %260 = vmatmul.mubr.bf16.gmra.mxu0 %v214
      %v261 = vpop.f32.mrf.mxu0
      %v262 = vadd.f32 0.0, %v261
      %v263 = vpop.f32.mrf.mxu0
      %v264 = vpop.f32.mrf.mxu0
      %v265 = vadd.f32 0.0, %v264
      %v266 = vpop.f32.mrf.mxu0
      %267 = vmatprep.mubr.bf16.mxu0 0
      %268 = vmatmul.mubr.bf16.gmra.mxu0 %v217
      %v269 = vpop.f32.mrf.mxu0
      %v270 = vadd.f32 0.0, %v269
      %v271 = vpop.f32.mrf.mxu0
      %v272 = vpop.f32.mrf.mxu0
      %v273 = vpop.f32.mrf.mxu0
      %274 = vdwg.mxu0
      %v279 = vunpack.c.l.b16 %v180
      %v280 = vunpack.c.l.b16 %v181
      %v281 = vunpack.c.l.b16 %v182
      %v282 = vunpack.c.l.b16 %v183
      %v283 = vpack.c.b16 %v280, %v279
      %v284 = vpack.c.b16 %v282, %v281
      %v288 = vsel %vm209, %v177, 0
      %v291 = vsel %vm209, %v178, 0
      %v294 = vsel %vm209, %v179, 0
      %296 = vmatprep.subr.bf16.mxu0 0
      %297 = vmatpush1.bf16.msra.mxu0 0
      %298 = vmatprep.subr.bf16.mxu0 0
      %299 = vmatpush1.bf16.msra.mxu0 0
      %300 = vmatprep.subr.bf16.mxu0 0
      %301 = vmatpush1.bf16.msra.mxu0 0
      %302 = vmatprep.subr.bf16.mxu0 0
      %303 = vmatpush1.bf16.msra.mxu0 0
      %304 = vmatprep.subr.bf16.mxu0 0
      %305 = vmatpush1.bf16.msra.mxu0 0
      %306 = vmatprep.subr.bf16.mxu0 0
      %307 = vmatpush1.bf16.msra.mxu0 0
      %308 = vmatprep.subr.bf16.mxu0 0
      %309 = vmatpush1.bf16.msra.mxu0 %v284
      %310 = vmatprep.subr.bf16.mxu0 0
      %311 = vmatpush1.bf16.msra.mxu0 %v283
      %312 = vmatprep.subr.bf16.mxu0 0
      %313 = vmatpush2.bf16.msra.mxu0 0
      %314 = vmatprep.subr.bf16.mxu0 0
      %315 = vmatpush2.bf16.msra.mxu0 0
      %316 = vmatprep.subr.bf16.mxu0 0
      %317 = vmatpush2.bf16.msra.mxu0 0
      %318 = vmatprep.subr.bf16.mxu0 0
      %319 = vmatpush2.bf16.msra.mxu0 0
      %320 = vmatprep.subr.bf16.mxu0 0
      %321 = vmatpush2.bf16.msra.mxu0 0
      %322 = vmatprep.subr.bf16.mxu0 0
      %323 = vmatpush2.bf16.msra.mxu0 0
      %324 = vmatprep.subr.bf16.mxu0 0
      %325 = vmatpush2.bf16.msra.mxu0 0
      %326 = vmatprep.subr.bf16.mxu0 0
      %327 = vmatpush2.bf16.msra.mxu0 0
      %328 = vmatprep.mubr.bf16.mxu0 0
      %329 = vmatmul.mubr.bf16.gmra.mxu0 %v288
      %v330 = vpop.f32.mrf.mxu0
      %v331 = vadd.f32 %v254, %v330
      %v332 = vpop.f32.mrf.mxu0
      %v333 = vpop.f32.mrf.mxu0
      %v334 = vadd.f32 %v257, %v333
      %v335 = vpop.f32.mrf.mxu0
      %336 = vmatprep.mubr.bf16.mxu0 0
      %337 = vmatmul.mubr.bf16.gmra.mxu0 %v291
      %v338 = vpop.f32.mrf.mxu0
      %v339 = vadd.f32 %v262, %v338
      %v340 = vpop.f32.mrf.mxu0
      %v341 = vpop.f32.mrf.mxu0
      %v342 = vadd.f32 %v265, %v341
      %v343 = vpop.f32.mrf.mxu0
      %344 = vmatprep.mubr.bf16.mxu0 0
      %345 = vmatmul.mubr.bf16.gmra.mxu0 %v294
      %v346 = vpop.f32.mrf.mxu0
      %v347 = vadd.f32 %v270, %v346
      %v348 = vpop.f32.mrf.mxu0
      %v349 = vpop.f32.mrf.mxu0
      %v350 = vpop.f32.mrf.mxu0
      %351 = vdwg.mxu0
      %v352 = vld [vmem:[%s165 + $0x2] sm:$0xff]
      %v353 = vld [vmem:[%s165 + $0xa] sm:$0xff]
      %v354 = vld [vmem:[%s165 + $0x12] sm:$0xff]
      %v355 = vld [vmem:[%s165 + $0x1a] sm:$0xff]
      %v356 = vld [vmem:[%s165 + $0x22] sm:$0xf]
      %v357 = vpack.c.bf16 %v353, %v352
      %v358 = vpack.c.bf16 %v355, %v354
      %v359 = vpack.c.bf16 %v356, %v356
      %s360 = scalar_lea.vmem %s1, 32
      %v361 = vld [vmem:[%s360] sm:$0xf]
      %v362 = vld [vmem:[%s360 + $0x4] sm:$0xf]
      %v363 = vld [vmem:[%s360 + $0x8] sm:$0xf]
      %v364 = vld [vmem:[%s360 + $0xc] sm:$0xf]
      %v369 = vunpack.c.l.b16 %v361
      %v370 = vunpack.c.l.b16 %v362
      %v371 = vunpack.c.l.b16 %v363
      %v372 = vunpack.c.l.b16 %v364
      %v373 = vpack.c.b16 %v370, %v369
      %v374 = vpack.c.b16 %v372, %v371
      %v378 = vsel %vm209, %v357, 0
      %v381 = vsel %vm209, %v358, 0
      %v384 = vsel %vm209, %v359, 0
      %386 = vmatprep.subr.bf16.mxu0 0
      %387 = vmatpush1.bf16.msra.mxu0 0
      %388 = vmatprep.subr.bf16.mxu0 0
      %389 = vmatpush1.bf16.msra.mxu0 0
      %390 = vmatprep.subr.bf16.mxu0 0
      %391 = vmatpush1.bf16.msra.mxu0 0
      %392 = vmatprep.subr.bf16.mxu0 0
      %393 = vmatpush1.bf16.msra.mxu0 0
      %394 = vmatprep.subr.bf16.mxu0 0
      %395 = vmatpush1.bf16.msra.mxu0 0
      %396 = vmatprep.subr.bf16.mxu0 0
      %397 = vmatpush1.bf16.msra.mxu0 0
      %398 = vmatprep.subr.bf16.mxu0 0
      %399 = vmatpush1.bf16.msra.mxu0 %v374
      %400 = vmatprep.subr.bf16.mxu0 0
      %401 = vmatpush1.bf16.msra.mxu0 %v373
      %402 = vmatprep.subr.bf16.mxu0 0
      %403 = vmatpush2.bf16.msra.mxu0 0
      %404 = vmatprep.subr.bf16.mxu0 0
      %405 = vmatpush2.bf16.msra.mxu0 0
      %406 = vmatprep.subr.bf16.mxu0 0
      %407 = vmatpush2.bf16.msra.mxu0 0
      %408 = vmatprep.subr.bf16.mxu0 0
      %409 = vmatpush2.bf16.msra.mxu0 0
      %410 = vmatprep.subr.bf16.mxu0 0
      %411 = vmatpush2.bf16.msra.mxu0 0
      %412 = vmatprep.subr.bf16.mxu0 0
      %413 = vmatpush2.bf16.msra.mxu0 0
      %414 = vmatprep.subr.bf16.mxu0 0
      %415 = vmatpush2.bf16.msra.mxu0 0
      %416 = vmatprep.subr.bf16.mxu0 0
      %417 = vmatpush2.bf16.msra.mxu0 0
      %418 = vmatprep.mubr.bf16.mxu0 0
      %419 = vmatmul.mubr.bf16.gmra.mxu0 %v378
      %v420 = vpop.f32.mrf.mxu0
      %v421 = vadd.f32 0.0, %v420
      %v422 = vpop.f32.mrf.mxu0
      %v423 = vpop.f32.mrf.mxu0
      %v424 = vadd.f32 0.0, %v423
      %v425 = vpop.f32.mrf.mxu0
      %426 = vmatprep.mubr.bf16.mxu0 0
      %427 = vmatmul.mubr.bf16.gmra.mxu0 %v381
      %v428 = vpop.f32.mrf.mxu0
      %v429 = vadd.f32 0.0, %v428
      %v430 = vpop.f32.mrf.mxu0
      %v431 = vpop.f32.mrf.mxu0
      %v432 = vadd.f32 0.0, %v431
      %v433 = vpop.f32.mrf.mxu0
      %434 = vmatprep.mubr.bf16.mxu0 0
      %435 = vmatmul.mubr.bf16.gmra.mxu0 %v384
      %v436 = vpop.f32.mrf.mxu0
      %v437 = vadd.f32 0.0, %v436
      %v438 = vpop.f32.mrf.mxu0
      %v439 = vpop.f32.mrf.mxu0
      %v440 = vpop.f32.mrf.mxu0
      %441 = vdwg.mxu0
      %v442 = vadd.f32 %v331, %v421
      %v443 = vadd.f32 %v334, %v424
      %v444 = vadd.f32 %v339, %v429
      %v445 = vadd.f32 %v342, %v432
      %v446 = vadd.f32 %v347, %v437
      %v447 = vld [vmem:[%s165 + $0x6] sm:$0xff]
      %v448 = vld [vmem:[%s165 + $0xe] sm:$0xff]
      %v449 = vld [vmem:[%s165 + $0x16] sm:$0xff]
      %v450 = vld [vmem:[%s165 + $0x1e] sm:$0xff]
      %v451 = vld [vmem:[%s165 + $0x26] sm:$0xf]
      %v452 = vpack.c.bf16 %v448, %v447
      %v453 = vpack.c.bf16 %v450, %v449
      %v454 = vpack.c.bf16 %v451, %v451
      %s455 = scalar_lea.vmem %s1, 48
      %v456 = vld [vmem:[%s455] sm:$0xf]
      %v457 = vld [vmem:[%s455 + $0x4] sm:$0xf]
      %v458 = vld [vmem:[%s455 + $0x8] sm:$0xf]
      %v459 = vld [vmem:[%s455 + $0xc] sm:$0xf]
      %v464 = vunpack.c.l.b16 %v456
      %v465 = vunpack.c.l.b16 %v457
      %v466 = vunpack.c.l.b16 %v458
      %v467 = vunpack.c.l.b16 %v459
      %v468 = vpack.c.b16 %v465, %v464
      %v469 = vpack.c.b16 %v467, %v466
      %v473 = vsel %vm209, %v452, 0
      %v476 = vsel %vm209, %v453, 0
      %v479 = vsel %vm209, %v454, 0
      %481 = vmatprep.subr.bf16.mxu0 0
      %482 = vmatpush1.bf16.msra.mxu0 0
      %483 = vmatprep.subr.bf16.mxu0 0
      %484 = vmatpush1.bf16.msra.mxu0 0
      %485 = vmatprep.subr.bf16.mxu0 0
      %486 = vmatpush1.bf16.msra.mxu0 0
      %487 = vmatprep.subr.bf16.mxu0 0
      %488 = vmatpush1.bf16.msra.mxu0 0
      %489 = vmatprep.subr.bf16.mxu0 0
      %490 = vmatpush1.bf16.msra.mxu0 0
      %491 = vmatprep.subr.bf16.mxu0 0
      %492 = vmatpush1.bf16.msra.mxu0 0
      %493 = vmatprep.subr.bf16.mxu0 0
      %494 = vmatpush1.bf16.msra.mxu0 %v469
      %495 = vmatprep.subr.bf16.mxu0 0
      %496 = vmatpush1.bf16.msra.mxu0 %v468
      %497 = vmatprep.subr.bf16.mxu0 0
      %498 = vmatpush2.bf16.msra.mxu0 0
      %499 = vmatprep.subr.bf16.mxu0 0
      %500 = vmatpush2.bf16.msra.mxu0 0
      %501 = vmatprep.subr.bf16.mxu0 0
      %502 = vmatpush2.bf16.msra.mxu0 0
      %503 = vmatprep.subr.bf16.mxu0 0
      %504 = vmatpush2.bf16.msra.mxu0 0
      %505 = vmatprep.subr.bf16.mxu0 0
      %506 = vmatpush2.bf16.msra.mxu0 0
      %507 = vmatprep.subr.bf16.mxu0 0
      %508 = vmatpush2.bf16.msra.mxu0 0
      %509 = vmatprep.subr.bf16.mxu0 0
      %510 = vmatpush2.bf16.msra.mxu0 0
      %511 = vmatprep.subr.bf16.mxu0 0
      %512 = vmatpush2.bf16.msra.mxu0 0
      %513 = vmatprep.mubr.bf16.mxu0 0
      %514 = vmatmul.mubr.bf16.gmra.mxu0 %v473
      %v515 = vpop.f32.mrf.mxu0
      %v516 = vadd.f32 0.0, %v515
      %v517 = vpop.f32.mrf.mxu0
      %v518 = vpop.f32.mrf.mxu0
      %v519 = vadd.f32 0.0, %v518
      %v520 = vpop.f32.mrf.mxu0
      %521 = vmatprep.mubr.bf16.mxu0 0
      %522 = vmatmul.mubr.bf16.gmra.mxu0 %v476
      %v523 = vpop.f32.mrf.mxu0
      %v524 = vadd.f32 0.0, %v523
      %v525 = vpop.f32.mrf.mxu0
      %v526 = vpop.f32.mrf.mxu0
      %v527 = vadd.f32 0.0, %v526
      %v528 = vpop.f32.mrf.mxu0
      %529 = vmatprep.mubr.bf16.mxu0 0
      %530 = vmatmul.mubr.bf16.gmra.mxu0 %v479
      %v531 = vpop.f32.mrf.mxu0
      %v532 = vadd.f32 0.0, %v531
      %v533 = vpop.f32.mrf.mxu0
      %v534 = vpop.f32.mrf.mxu0
      %v535 = vpop.f32.mrf.mxu0
      %536 = vdwg.mxu0
      %v537 = vadd.f32 %v442, %v516
      %v538 = vadd.f32 %v443, %v519
      %v539 = vadd.f32 %v444, %v524
      %v540 = vadd.f32 %v445, %v527
      %v541 = vadd.f32 %v446, %v532
      %v542 = vld [vmem:[%s165 + $0x7] sm:$0xff]
      %v543 = vld [vmem:[%s165 + $0xf] sm:$0xff]
      %v544 = vld [vmem:[%s165 + $0x17] sm:$0xff]
      %v545 = vld [vmem:[%s165 + $0x1f] sm:$0xff]
      %v546 = vld [vmem:[%s165 + $0x27] sm:$0xf]
      %v547 = vpack.c.bf16 %v543, %v542
      %v548 = vpack.c.bf16 %v545, %v544
      %v549 = vpack.c.bf16 %v546, %v546
      %s550 = scalar_lea.vmem %s1, 64
      %v551 = vld [vmem:[%s550] sm:$0xf]
      %v552 = vld [vmem:[%s550 + $0x4] sm:$0xf]
      %v553 = vld [vmem:[%s550 + $0x8] sm:$0xf]
      %v554 = vld [vmem:[%s550 + $0xc] sm:$0xf]
      %v559 = vunpack.c.l.b16 %v551
      %v560 = vunpack.c.l.b16 %v552
      %v561 = vunpack.c.l.b16 %v553
      %v562 = vunpack.c.l.b16 %v554
      %v563 = vpack.c.b16 %v560, %v559
      %v564 = vpack.c.b16 %v562, %v561
      %v568 = vsel %vm209, %v547, 0
      %v571 = vsel %vm209, %v548, 0
      %v574 = vsel %vm209, %v549, 0
      %576 = vmatprep.subr.bf16.mxu0 0
      %577 = vmatpush1.bf16.msra.mxu0 0
      %578 = vmatprep.subr.bf16.mxu0 0
      %579 = vmatpush1.bf16.msra.mxu0 0
      %580 = vmatprep.subr.bf16.mxu0 0
      %581 = vmatpush1.bf16.msra.mxu0 0
      %582 = vmatprep.subr.bf16.mxu0 0
      %583 = vmatpush1.bf16.msra.mxu0 0
      %584 = vmatprep.subr.bf16.mxu0 0
      %585 = vmatpush1.bf16.msra.mxu0 0
      %586 = vmatprep.subr.bf16.mxu0 0
      %587 = vmatpush1.bf16.msra.mxu0 0
      %588 = vmatprep.subr.bf16.mxu0 0
      %589 = vmatpush1.bf16.msra.mxu0 %v564
      %590 = vmatprep.subr.bf16.mxu0 0
      %591 = vmatpush1.bf16.msra.mxu0 %v563
      %592 = vmatprep.subr.bf16.mxu0 0
      %593 = vmatpush2.bf16.msra.mxu0 0
      %594 = vmatprep.subr.bf16.mxu0 0
      %595 = vmatpush2.bf16.msra.mxu0 0
      %596 = vmatprep.subr.bf16.mxu0 0
      %597 = vmatpush2.bf16.msra.mxu0 0
      %598 = vmatprep.subr.bf16.mxu0 0
      %599 = vmatpush2.bf16.msra.mxu0 0
      %600 = vmatprep.subr.bf16.mxu0 0
      %601 = vmatpush2.bf16.msra.mxu0 0
      %602 = vmatprep.subr.bf16.mxu0 0
      %603 = vmatpush2.bf16.msra.mxu0 0
      %604 = vmatprep.subr.bf16.mxu0 0
      %605 = vmatpush2.bf16.msra.mxu0 0
      %606 = vmatprep.subr.bf16.mxu0 0
      %607 = vmatpush2.bf16.msra.mxu0 0
      %608 = vmatprep.mubr.bf16.mxu0 0
      %609 = vmatmul.mubr.bf16.gmra.mxu0 %v568
      %v610 = vpop.f32.mrf.mxu0
      %v611 = vadd.f32 0.0, %v610
      %v612 = vpop.f32.mrf.mxu0
      %v613 = vpop.f32.mrf.mxu0
      %v614 = vadd.f32 0.0, %v613
      %v615 = vpop.f32.mrf.mxu0
      %616 = vmatprep.mubr.bf16.mxu0 0
      %617 = vmatmul.mubr.bf16.gmra.mxu0 %v571
      %v618 = vpop.f32.mrf.mxu0
      %v619 = vadd.f32 0.0, %v618
      %v620 = vpop.f32.mrf.mxu0
      %v621 = vpop.f32.mrf.mxu0
      %v622 = vadd.f32 0.0, %v621
      %v623 = vpop.f32.mrf.mxu0
      %624 = vmatprep.mubr.bf16.mxu0 0
      %625 = vmatmul.mubr.bf16.gmra.mxu0 %v574
      %v626 = vpop.f32.mrf.mxu0
      %v627 = vadd.f32 0.0, %v626
      %v628 = vpop.f32.mrf.mxu0
      %v629 = vpop.f32.mrf.mxu0
      %v630 = vpop.f32.mrf.mxu0
      %631 = vdwg.mxu0
      %v632 = vadd.f32 %v537, %v611
      %v633 = vadd.f32 %v538, %v614
      %v634 = vadd.f32 %v539, %v619
      %v635 = vadd.f32 %v540, %v622
      %v636 = vadd.f32 %v541, %v627
      %v637 = vld [vmem:[%s165 + $0x8] sm:$0xff]
      %v638 = vld [vmem:[%s165 + $0x10] sm:$0xff]
      %v639 = vld [vmem:[%s165 + $0x18] sm:$0xff]
      %v640 = vld [vmem:[%s165 + $0x20] sm:$0xff]
      %v641 = vld [vmem:[%s165 + $0x28] sm:$0xf]
      %v642 = vpack.c.bf16 %v638, %v637
      %v643 = vpack.c.bf16 %v640, %v639
      %v644 = vpack.c.bf16 %v641, %v641
      %s645 = scalar_lea.vmem %s1, 80
      %v646 = vld [vmem:[%s645] sm:$0xf]
      %v647 = vld [vmem:[%s645 + $0x4] sm:$0xf]
      %v648 = vld [vmem:[%s645 + $0x8] sm:$0xf]
      %v649 = vld [vmem:[%s645 + $0xc] sm:$0xf]
      %v654 = vunpack.c.l.b16 %v646
      %v655 = vunpack.c.l.b16 %v647
      %v656 = vunpack.c.l.b16 %v648
      %v657 = vunpack.c.l.b16 %v649
      %v658 = vpack.c.b16 %v655, %v654
      %v659 = vpack.c.b16 %v657, %v656
      %v663 = vsel %vm209, %v642, 0
      %v666 = vsel %vm209, %v643, 0
      %v669 = vsel %vm209, %v644, 0
      %671 = vmatprep.subr.bf16.mxu0 0
      %672 = vmatpush1.bf16.msra.mxu0 0
      %673 = vmatprep.subr.bf16.mxu0 0
      %674 = vmatpush1.bf16.msra.mxu0 0
      %675 = vmatprep.subr.bf16.mxu0 0
      %676 = vmatpush1.bf16.msra.mxu0 0
      %677 = vmatprep.subr.bf16.mxu0 0
      %678 = vmatpush1.bf16.msra.mxu0 0
      %679 = vmatprep.subr.bf16.mxu0 0
      %680 = vmatpush1.bf16.msra.mxu0 0
      %681 = vmatprep.subr.bf16.mxu0 0
      %682 = vmatpush1.bf16.msra.mxu0 0
      %683 = vmatprep.subr.bf16.mxu0 0
      %684 = vmatpush1.bf16.msra.mxu0 %v659
      %685 = vmatprep.subr.bf16.mxu0 0
      %686 = vmatpush1.bf16.msra.mxu0 %v658
      %687 = vmatprep.subr.bf16.mxu0 0
      %688 = vmatpush2.bf16.msra.mxu0 0
      %689 = vmatprep.subr.bf16.mxu0 0
      %690 = vmatpush2.bf16.msra.mxu0 0
      %691 = vmatprep.subr.bf16.mxu0 0
      %692 = vmatpush2.bf16.msra.mxu0 0
      %693 = vmatprep.subr.bf16.mxu0 0
      %694 = vmatpush2.bf16.msra.mxu0 0
      %695 = vmatprep.subr.bf16.mxu0 0
      %696 = vmatpush2.bf16.msra.mxu0 0
      %697 = vmatprep.subr.bf16.mxu0 0
      %698 = vmatpush2.bf16.msra.mxu0 0
      %699 = vmatprep.subr.bf16.mxu0 0
      %700 = vmatpush2.bf16.msra.mxu0 0
      %701 = vmatprep.subr.bf16.mxu0 0
      %702 = vmatpush2.bf16.msra.mxu0 0
      %703 = vmatprep.mubr.bf16.mxu0 0
      %704 = vmatmul.mubr.bf16.gmra.mxu0 %v663
      %v705 = vpop.f32.mrf.mxu0
      %v706 = vadd.f32 0.0, %v705
      %v707 = vpop.f32.mrf.mxu0
      %v708 = vpop.f32.mrf.mxu0
      %v709 = vadd.f32 0.0, %v708
      %v710 = vpop.f32.mrf.mxu0
      %711 = vmatprep.mubr.bf16.mxu0 0
      %712 = vmatmul.mubr.bf16.gmra.mxu0 %v666
      %v713 = vpop.f32.mrf.mxu0
      %v714 = vadd.f32 0.0, %v713
      %v715 = vpop.f32.mrf.mxu0
      %v716 = vpop.f32.mrf.mxu0
      %v717 = vadd.f32 0.0, %v716
      %v718 = vpop.f32.mrf.mxu0
      %719 = vmatprep.mubr.bf16.mxu0 0
      %720 = vmatmul.mubr.bf16.gmra.mxu0 %v669
      %v721 = vpop.f32.mrf.mxu0
      %v722 = vadd.f32 0.0, %v721
      %v723 = vpop.f32.mrf.mxu0
      %v724 = vpop.f32.mrf.mxu0
      %v725 = vpop.f32.mrf.mxu0
      %726 = vdwg.mxu0
      %v727 = vadd.f32 %v632, %v706
      %v728 = vadd.f32 %v633, %v709
      %v729 = vadd.f32 %v634, %v714
      %v730 = vadd.f32 %v635, %v717
      %v731 = vadd.f32 %v636, %v722
      %v732 = vld [vmem:[%s165 + $0xc] sm:$0xff]
      %v733 = vld [vmem:[%s165 + $0x14] sm:$0xff]
      %v734 = vld [vmem:[%s165 + $0x1c] sm:$0xff]
      %v735 = vld [vmem:[%s165 + $0x24] sm:$0xff]
      %v736 = vld [vmem:[%s165 + $0x2c] sm:$0xf]
      %v737 = vpack.c.bf16 %v733, %v732
      %v738 = vpack.c.bf16 %v735, %v734
      %v739 = vpack.c.bf16 %v736, %v736
      %s740 = scalar_lea.vmem %s1, 96
      %v741 = vld [vmem:[%s740] sm:$0xf]
      %v742 = vld [vmem:[%s740 + $0x4] sm:$0xf]
      %v743 = vld [vmem:[%s740 + $0x8] sm:$0xf]
      %v744 = vld [vmem:[%s740 + $0xc] sm:$0xf]
      %v749 = vunpack.c.l.b16 %v741
      %v750 = vunpack.c.l.b16 %v742
      %v751 = vunpack.c.l.b16 %v743
      %v752 = vunpack.c.l.b16 %v744
      %v753 = vpack.c.b16 %v750, %v749
      %v754 = vpack.c.b16 %v752, %v751
      %v758 = vsel %vm209, %v737, 0
      %v761 = vsel %vm209, %v738, 0
      %v764 = vsel %vm209, %v739, 0
      %766 = vmatprep.subr.bf16.mxu0 0
      %767 = vmatpush1.bf16.msra.mxu0 0
      %768 = vmatprep.subr.bf16.mxu0 0
      %769 = vmatpush1.bf16.msra.mxu0 0
      %770 = vmatprep.subr.bf16.mxu0 0
      %771 = vmatpush1.bf16.msra.mxu0 0
      %772 = vmatprep.subr.bf16.mxu0 0
      %773 = vmatpush1.bf16.msra.mxu0 0
      %774 = vmatprep.subr.bf16.mxu0 0
      %775 = vmatpush1.bf16.msra.mxu0 0
      %776 = vmatprep.subr.bf16.mxu0 0
      %777 = vmatpush1.bf16.msra.mxu0 0
      %778 = vmatprep.subr.bf16.mxu0 0
      %779 = vmatpush1.bf16.msra.mxu0 %v754
      %780 = vmatprep.subr.bf16.mxu0 0
      %781 = vmatpush1.bf16.msra.mxu0 %v753
      %782 = vmatprep.subr.bf16.mxu0 0
      %783 = vmatpush2.bf16.msra.mxu0 0
      %784 = vmatprep.subr.bf16.mxu0 0
      %785 = vmatpush2.bf16.msra.mxu0 0
      %786 = vmatprep.subr.bf16.mxu0 0
      %787 = vmatpush2.bf16.msra.mxu0 0
      %788 = vmatprep.subr.bf16.mxu0 0
      %789 = vmatpush2.bf16.msra.mxu0 0
      %790 = vmatprep.subr.bf16.mxu0 0
      %791 = vmatpush2.bf16.msra.mxu0 0
      %792 = vmatprep.subr.bf16.mxu0 0
      %793 = vmatpush2.bf16.msra.mxu0 0
      %794 = vmatprep.subr.bf16.mxu0 0
      %795 = vmatpush2.bf16.msra.mxu0 0
      %796 = vmatprep.subr.bf16.mxu0 0
      %797 = vmatpush2.bf16.msra.mxu0 0
      %798 = vmatprep.mubr.bf16.mxu0 0
      %799 = vmatmul.mubr.bf16.gmra.mxu0 %v758
      %v800 = vpop.f32.mrf.mxu0
      %v801 = vadd.f32 0.0, %v800
      %v802 = vpop.f32.mrf.mxu0
      %v803 = vpop.f32.mrf.mxu0
      %v804 = vadd.f32 0.0, %v803
      %v805 = vpop.f32.mrf.mxu0
      %806 = vmatprep.mubr.bf16.mxu0 0
      %807 = vmatmul.mubr.bf16.gmra.mxu0 %v761
      %v808 = vpop.f32.mrf.mxu0
      %v809 = vadd.f32 0.0, %v808
      %v810 = vpop.f32.mrf.mxu0
      %v811 = vpop.f32.mrf.mxu0
      %v812 = vadd.f32 0.0, %v811
      %v813 = vpop.f32.mrf.mxu0
      %814 = vmatprep.mubr.bf16.mxu0 0
      %815 = vmatmul.mubr.bf16.gmra.mxu0 %v764
      %v816 = vpop.f32.mrf.mxu0
      %v817 = vadd.f32 0.0, %v816
      %v818 = vpop.f32.mrf.mxu0
      %v819 = vpop.f32.mrf.mxu0
      %v820 = vpop.f32.mrf.mxu0
      %821 = vdwg.mxu0
      %v822 = vadd.f32 %v727, %v801
      %v823 = vadd.f32 %v728, %v804
      %v824 = vadd.f32 %v729, %v809
      %v825 = vadd.f32 %v730, %v812
      %v826 = vadd.f32 %v731, %v817
      %v827 = vld [vmem:[%s165 + $0xd] sm:$0xff]
      %v828 = vld [vmem:[%s165 + $0x15] sm:$0xff]
      %v829 = vld [vmem:[%s165 + $0x1d] sm:$0xff]
      %v830 = vld [vmem:[%s165 + $0x25] sm:$0xff]
      %v831 = vld [vmem:[%s165 + $0x2d] sm:$0xf]
      %v832 = vpack.c.bf16 %v828, %v827
      %v833 = vpack.c.bf16 %v830, %v829
      %v834 = vpack.c.bf16 %v831, %v831
      %s835 = scalar_lea.vmem %s1, 112
      %v836 = vld [vmem:[%s835] sm:$0xf]
      %v837 = vld [vmem:[%s835 + $0x4] sm:$0xf]
      %v838 = vld [vmem:[%s835 + $0x8] sm:$0xf]
      %v839 = vld [vmem:[%s835 + $0xc] sm:$0xf]
      %v844 = vunpack.c.l.b16 %v836
      %v845 = vunpack.c.l.b16 %v837
      %v846 = vunpack.c.l.b16 %v838
      %v847 = vunpack.c.l.b16 %v839
      %v848 = vpack.c.b16 %v845, %v844
      %v849 = vpack.c.b16 %v847, %v846
      %v853 = vsel %vm209, %v832, 0
      %v856 = vsel %vm209, %v833, 0
      %v859 = vsel %vm209, %v834, 0
      %861 = vmatprep.subr.bf16.mxu0 0
      %862 = vmatpush1.bf16.msra.mxu0 0
      %863 = vmatprep.subr.bf16.mxu0 0
      %864 = vmatpush1.bf16.msra.mxu0 0
      %865 = vmatprep.subr.bf16.mxu0 0
      %866 = vmatpush1.bf16.msra.mxu0 0
      %867 = vmatprep.subr.bf16.mxu0 0
      %868 = vmatpush1.bf16.msra.mxu0 0
      %869 = vmatprep.subr.bf16.mxu0 0
      %870 = vmatpush1.bf16.msra.mxu0 0
      %871 = vmatprep.subr.bf16.mxu0 0
      %872 = vmatpush1.bf16.msra.mxu0 0
      %873 = vmatprep.subr.bf16.mxu0 0
      %874 = vmatpush1.bf16.msra.mxu0 %v849
      %875 = vmatprep.subr.bf16.mxu0 0
      %876 = vmatpush1.bf16.msra.mxu0 %v848
      %877 = vmatprep.subr.bf16.mxu0 0
      %878 = vmatpush2.bf16.msra.mxu0 0
      %879 = vmatprep.subr.bf16.mxu0 0
      %880 = vmatpush2.bf16.msra.mxu0 0
      %881 = vmatprep.subr.bf16.mxu0 0
      %882 = vmatpush2.bf16.msra.mxu0 0
      %883 = vmatprep.subr.bf16.mxu0 0
      %884 = vmatpush2.bf16.msra.mxu0 0
      %885 = vmatprep.subr.bf16.mxu0 0
      %886 = vmatpush2.bf16.msra.mxu0 0
      %887 = vmatprep.subr.bf16.mxu0 0
      %888 = vmatpush2.bf16.msra.mxu0 0
      %889 = vmatprep.subr.bf16.mxu0 0
      %890 = vmatpush2.bf16.msra.mxu0 0
      %891 = vmatprep.subr.bf16.mxu0 0
      %892 = vmatpush2.bf16.msra.mxu0 0
      %893 = vmatprep.mubr.bf16.mxu0 0
      %894 = vmatmul.mubr.bf16.gmra.mxu0 %v853
      %v895 = vpop.f32.mrf.mxu0
      %v896 = vadd.f32 0.0, %v895
      %v897 = vpop.f32.mrf.mxu0
      %v898 = vpop.f32.mrf.mxu0
      %v899 = vadd.f32 0.0, %v898
      %v900 = vpop.f32.mrf.mxu0
      %901 = vmatprep.mubr.bf16.mxu0 0
      %902 = vmatmul.mubr.bf16.gmra.mxu0 %v856
      %v903 = vpop.f32.mrf.mxu0
      %v904 = vadd.f32 0.0, %v903
      %v905 = vpop.f32.mrf.mxu0
      %v906 = vpop.f32.mrf.mxu0
      %v907 = vadd.f32 0.0, %v906
      %v908 = vpop.f32.mrf.mxu0
      %909 = vmatprep.mubr.bf16.mxu0 0
      %910 = vmatmul.mubr.bf16.gmra.mxu0 %v859
      %v911 = vpop.f32.mrf.mxu0
      %v912 = vadd.f32 0.0, %v911
      %v913 = vpop.f32.mrf.mxu0
      %v914 = vpop.f32.mrf.mxu0
      %v915 = vpop.f32.mrf.mxu0
      %916 = vdwg.mxu0
      %v917 = vadd.f32 %v822, %v896
      %v918 = vadd.f32 %v823, %v899
      %v919 = vadd.f32 %v824, %v904
      %v920 = vadd.f32 %v825, %v907
      %v921 = vadd.f32 %v826, %v912
      %v922 = vld [vmem:[%s165 + $0xe] sm:$0xff]
      %v923 = vld [vmem:[%s165 + $0x16] sm:$0xff]
      %v924 = vld [vmem:[%s165 + $0x1e] sm:$0xff]
      %v925 = vld [vmem:[%s165 + $0x26] sm:$0xff]
      %v926 = vld [vmem:[%s165 + $0x2e] sm:$0xf]
      %v927 = vpack.c.bf16 %v923, %v922
      %v928 = vpack.c.bf16 %v925, %v924
      %v929 = vpack.c.bf16 %v926, %v926
      %s930 = scalar_lea.vmem %s1, 128
      %v931 = vld [vmem:[%s930] sm:$0xf]
      %v932 = vld [vmem:[%s930 + $0x4] sm:$0xf]
      %v933 = vld [vmem:[%s930 + $0x8] sm:$0xf]
      %v934 = vld [vmem:[%s930 + $0xc] sm:$0xf]
      %v939 = vunpack.c.l.b16 %v931
      %v940 = vunpack.c.l.b16 %v932
      %v941 = vunpack.c.l.b16 %v933
      %v942 = vunpack.c.l.b16 %v934
      %v943 = vpack.c.b16 %v940, %v939
      %v944 = vpack.c.b16 %v942, %v941
      %v948 = vsel %vm209, %v927, 0
      %v951 = vsel %vm209, %v928, 0
      %v954 = vsel %vm209, %v929, 0
      %956 = vmatprep.subr.bf16.mxu0 0
      %957 = vmatpush1.bf16.msra.mxu0 0
      %958 = vmatprep.subr.bf16.mxu0 0
      %959 = vmatpush1.bf16.msra.mxu0 0
      %960 = vmatprep.subr.bf16.mxu0 0
      %961 = vmatpush1.bf16.msra.mxu0 0
      %962 = vmatprep.subr.bf16.mxu0 0
      %963 = vmatpush1.bf16.msra.mxu0 0
      %964 = vmatprep.subr.bf16.mxu0 0
      %965 = vmatpush1.bf16.msra.mxu0 0
      %966 = vmatprep.subr.bf16.mxu0 0
      %967 = vmatpush1.bf16.msra.mxu0 0
      %968 = vmatprep.subr.bf16.mxu0 0
      %969 = vmatpush1.bf16.msra.mxu0 %v944
      %970 = vmatprep.subr.bf16.mxu0 0
      %971 = vmatpush1.bf16.msra.mxu0 %v943
      %972 = vmatprep.subr.bf16.mxu0 0
      %973 = vmatpush2.bf16.msra.mxu0 0
      %974 = vmatprep.subr.bf16.mxu0 0
      %975 = vmatpush2.bf16.msra.mxu0 0
      %976 = vmatprep.subr.bf16.mxu0 0
      %977 = vmatpush2.bf16.msra.mxu0 0
      %978 = vmatprep.subr.bf16.mxu0 0
      %979 = vmatpush2.bf16.msra.mxu0 0
      %980 = vmatprep.subr.bf16.mxu0 0
      %981 = vmatpush2.bf16.msra.mxu0 0
      %982 = vmatprep.subr.bf16.mxu0 0
      %983 = vmatpush2.bf16.msra.mxu0 0
      %984 = vmatprep.subr.bf16.mxu0 0
      %985 = vmatpush2.bf16.msra.mxu0 0
      %986 = vmatprep.subr.bf16.mxu0 0
      %987 = vmatpush2.bf16.msra.mxu0 0
      %988 = vmatprep.mubr.bf16.mxu0 0
      %989 = vmatmul.mubr.bf16.gmra.mxu0 %v948
      %v990 = vpop.f32.mrf.mxu0
      %v991 = vadd.f32 0.0, %v990
      %v992 = vpop.f32.mrf.mxu0
      %v993 = vpop.f32.mrf.mxu0
      %v994 = vadd.f32 0.0, %v993
      %v995 = vpop.f32.mrf.mxu0
      %996 = vmatprep.mubr.bf16.mxu0 0
      %997 = vmatmul.mubr.bf16.gmra.mxu0 %v951
      %v998 = vpop.f32.mrf.mxu0
      %v999 = vadd.f32 0.0, %v998
      %v1000 = vpop.f32.mrf.mxu0
      %v1001 = vpop.f32.mrf.mxu0
      %v1002 = vadd.f32 0.0, %v1001
      %v1003 = vpop.f32.mrf.mxu0
      %1004 = vmatprep.mubr.bf16.mxu0 0
      %1005 = vmatmul.mubr.bf16.gmra.mxu0 %v954
      %v1006 = vpop.f32.mrf.mxu0
      %v1007 = vadd.f32 0.0, %v1006
      %v1008 = vpop.f32.mrf.mxu0
      %v1009 = vpop.f32.mrf.mxu0
      %v1010 = vpop.f32.mrf.mxu0
      %1011 = vdwg.mxu0
      %v1012 = vadd.f32 %v917, %v991
      %v1013 = vadd.f32 %v918, %v994
      %v1014 = vadd.f32 %v919, %v999
      %v1015 = vadd.f32 %v920, %v1002
      %v1016 = vadd.f32 %v921, %v1007
      %v1017 = vld [vmem:[%s2] sm:$0x1]
      %v1019 = vlaneseq
      %v1020 = vshrl.u32 %v1019, 7
      %v1021 = vsub.s32 0, %v1020
      %v1022 = vrot.slane %v1017, %v1021
      %v1024 = vadd.f32 %v1012, %v1022
      %v1025 = vadd.f32 %v1013, %v1022
      %v1026 = vadd.f32 %v1014, %v1022
      %v1027 = vadd.f32 %v1015, %v1022
      %v1028 = vadd.f32 %v1016, %v1022
      %1029 = vst [vmem:[%s170] sm:$0xff] %v1024
      %1030 = vst [vmem:[%s170 + $0x8] sm:$0xff] %v1025
      %1031 = vst [vmem:[%s170 + $0x10] sm:$0xff] %v1026
      %1032 = vst [vmem:[%s170 + $0x18] sm:$0xff] %v1027
      %1033 = vst [vmem:[%s170 + $0x20] sm:$0xf] %v1028
      %p1034 = scmp.lt.s32.totalorder %s14, 1
      %s1035 = scalar_select %p1034, %s14, 1
      %s1036 = smul.addr %s1035, 5
      %s1037 = smul.addr %s1036, 8
      %s1038 = scalar_lea.vmem %s3, %s1037
      // Predicated region
      $region33: #{forward.12} parent=31 // pred_check
        %p1039 = pneg %p100
      $region34: #{forward.12} parent=31 // pred_check_branch
        %1041 = sbr.rel (%p1039) target = $region36
      $region35: #{forward.12} parent=31 // pred_region
        _
      $region36: #{forward.12} parent=31 // pred_fallthru
        _
    $region32: #{forward.12} parent=5 // pred_fallthru
      _
    %p1042 = scmp.le.s32.totalorder 2, %s9
    // Predicated region
    $region37: #{forward.12} parent=5 // pred_check
      %p1043 = pneg %p1042
    $region38: #{forward.12} parent=5 // pred_check_branch
      %1045 = sbr.rel (%p1043) target = $region40
    $region39: #{forward.12} parent=5 // pred_region
      %s1046 = ssub.s32 %s9, 2
      // Predicated region
      $region41: #{forward.12} parent=39 // pred_check
        %p1047 = pneg %p106
      $region42: #{forward.12} parent=39 // pred_check_branch
        %1049 = sbr.rel (%p1047) target = $region44
      $region43: #{forward.12} parent=39 // pred_region
        %p1050 = scmp.lt.s32.totalorder %s15, 1
        %s1051 = scalar_select %p1050, %s15, 1
        %s1052 = smul.addr %s1051, 5
        %s1053 = smul.addr %s1052, 8
        %s1054 = scalar_lea.vmem %s3, %s1053
      $region44: #{forward.12} parent=39 // pred_fallthru
        _
    $region40: #{forward.12} parent=5 // pred_fallthru
      _
  $region6: #{forward.12} parent=0 // loop_footer
    %s13 = sadd.s32 1, %s9
  $region7: #{forward.12} parent=0 // loop_footer_branch
    %8 = sbr.rel target = $region3
  $region8: #{forward.12} parent=0 // loop_exit
    _

// kernel: forward.11
$region0: #{forward.11}
  #allocation0 [shape = 'u32[]', space=smem, size = 0x4, offset = 0x4, fixed_abs, tag = 'smem constant byte address 0x4 - core index']
  #allocation1 [shape = 'u32[144,128]{1,0:T(1,128)}', space=vmem, size = 0x12000, scoped, tag = 'internal scratch']
  %s0 = inlined_call_operand.vmem [shape: f32[128,32], index: 0, kind: input, shape index: {}]
  %s1 = inlined_call_operand.vmem [shape: f32[128,16], index: 1, kind: input, shape index: {}]
  %s2 = inlined_call_operand.vmem [shape: bf16[32,24], index: 2, kind: input, shape index: {}]
  %s3 = inlined_call_operand.vmem [shape: bf16[16,24], index: 3, kind: input, shape index: {}]
  %s4 = inlined_call_operand.vmem [shape: f32[1,24], index: 4, kind: input, shape index: {}]
  %s5 = inlined_call_operand.vmem [shape: f32[128,24], index: 5, kind: output, shape index: {}]
  %s6 = sld [smem:[#allocation0]]
  $region30: #{forward.11} parent=0
    _
  %s8 = ssub.s32 1, %s6
  %s9 = scalar_select 0, %s8, %s6
  // Predicated region
  $region2: #{forward.11} parent=0 // pred_check
    _
  $region3: #{forward.11} parent=0 // pred_check_branch
    %11 = sbr.rel (0) target = $region5
  $region4: #{forward.11} parent=0 // pred_region
    _
  $region5: #{forward.11} parent=0 // pred_fallthru
    _
  // Predicated region
  $region6: #{forward.11} parent=0 // pred_check
    _
  $region7: #{forward.11} parent=0 // pred_check_branch
    %13 = sbr.rel (0) target = $region9
  $region8: #{forward.11} parent=0 // pred_region
    _
  $region9: #{forward.11} parent=0 // pred_fallthru
    _
  // Predicated region
  $region10: #{forward.11} parent=0 // pred_check
    _
  $region11: #{forward.11} parent=0 // pred_check_branch
    %15 = sbr.rel (0) target = $region13
  $region12: #{forward.11} parent=0 // pred_region
    _
  $region13: #{forward.11} parent=0 // pred_fallthru
    _
  // Predicated region
  $region14: #{forward.11} parent=0 // pred_check
    _
  $region15: #{forward.11} parent=0 // pred_check_branch
    %17 = sbr.rel (0) target = $region17
  $region16: #{forward.11} parent=0 // pred_region
    _
  $region17: #{forward.11} parent=0 // pred_fallthru
    _
  // Predicated region
  $region18: #{forward.11} parent=0 // pred_check
    _
  $region19: #{forward.11} parent=0 // pred_check_branch
    %19 = sbr.rel (0) target = $region21
  $region20: #{forward.11} parent=0 // pred_region
    _
  $region21: #{forward.11} parent=0 // pred_fallthru
    _
  %v21 = vld [vmem:[%s0] sm:$0xff]
  %v22 = vld [vmem:[%s0 + $0x8] sm:$0xff]
  %v23 = vld [vmem:[%s0 + $0x10] sm:$0xff]
  %v24 = vld [vmem:[%s0 + $0x18] sm:$0xff]
  %v25 = vld [vmem:[%s0 + $0x20] sm:$0xff]
  %v26 = vld [vmem:[%s0 + $0x28] sm:$0xff]
  %v27 = vld [vmem:[%s0 + $0x30] sm:$0xff]
  %v28 = vld [vmem:[%s0 + $0x38] sm:$0xff]
  %v29 = vld [vmem:[%s0 + $0x40] sm:$0xff]
  %v30 = vld [vmem:[%s0 + $0x48] sm:$0xff]
  %v31 = vld [vmem:[%s0 + $0x50] sm:$0xff]
  %v32 = vld [vmem:[%s0 + $0x58] sm:$0xff]
  %v33 = vld [vmem:[%s0 + $0x60] sm:$0xff]
  %v34 = vld [vmem:[%s0 + $0x68] sm:$0xff]
  %v35 = vld [vmem:[%s0 + $0x70] sm:$0xff]
  %v36 = vld [vmem:[%s0 + $0x78] sm:$0xff]
  %v37 = vpack.c.bf16 %v22, %v21
  %v38 = vpack.c.bf16 %v24, %v23
  %v39 = vpack.c.bf16 %v26, %v25
  %v40 = vpack.c.bf16 %v28, %v27
  %v41 = vpack.c.bf16 %v30, %v29
  %v42 = vpack.c.bf16 %v32, %v31
  %v43 = vpack.c.bf16 %v34, %v33
  %v44 = vpack.c.bf16 %v36, %v35
  %v45 = vld [vmem:[%s2] sm:$0xf]
  %v46 = vld [vmem:[%s2 + $0x4] sm:$0xf]
  %v47 = vld [vmem:[%s2 + $0x8] sm:$0xf]
  %v48 = vld [vmem:[%s2 + $0xc] sm:$0xf]
  %v49 = vld [vmem:[%s1] sm:$0xff]
  %v50 = vld [vmem:[%s1 + $0x8] sm:$0xff]
  %v51 = vld [vmem:[%s1 + $0x10] sm:$0xff]
  %v52 = vld [vmem:[%s1 + $0x18] sm:$0xff]
  %v53 = vld [vmem:[%s1 + $0x20] sm:$0xff]
  %v54 = vld [vmem:[%s1 + $0x28] sm:$0xff]
  %v55 = vld [vmem:[%s1 + $0x30] sm:$0xff]
  %v56 = vld [vmem:[%s1 + $0x38] sm:$0xff]
  %v57 = vld [vmem:[%s1 + $0x40] sm:$0xff]
  %v58 = vld [vmem:[%s1 + $0x48] sm:$0xff]
  %v59 = vld [vmem:[%s1 + $0x50] sm:$0xff]
  %v60 = vld [vmem:[%s1 + $0x58] sm:$0xff]
  %v61 = vld [vmem:[%s1 + $0x60] sm:$0xff]
  %v62 = vld [vmem:[%s1 + $0x68] sm:$0xff]
  %v63 = vld [vmem:[%s1 + $0x70] sm:$0xff]
  %v64 = vld [vmem:[%s1 + $0x78] sm:$0xff]
  %v65 = vpack.c.bf16 %v50, %v49
  %v66 = vpack.c.bf16 %v52, %v51
  %v67 = vpack.c.bf16 %v54, %v53
  %v68 = vpack.c.bf16 %v56, %v55
  %v69 = vpack.c.bf16 %v58, %v57
  %v70 = vpack.c.bf16 %v60, %v59
  %v71 = vpack.c.bf16 %v62, %v61
  %v72 = vpack.c.bf16 %v64, %v63
  %v73 = vld [vmem:[%s3] sm:$0xf]
  %v74 = vld [vmem:[%s3 + $0x4] sm:$0xf]
  %v77 = vunpack.c.l.b16 %v73
  %v78 = vunpack.c.l.b16 %v74
  %v79 = vpack.c.b16 %v78, %v77
  %vm81 = vcmask 130048
  %v83 = vsel %vm81, %v65, 0
  %v86 = vsel %vm81, %v66, 0
  %v89 = vsel %vm81, %v67, 0
  %v92 = vsel %vm81, %v68, 0
  %v95 = vsel %vm81, %v69, 0
  %v98 = vsel %vm81, %v70, 0
  %v101 = vsel %vm81, %v71, 0
  %v104 = vsel %vm81, %v72, 0
  %106 = vmatprep.subr.bf16.mxu0 0
  %107 = vmatpush1.bf16.msra.mxu0 0
  %108 = vmatprep.subr.bf16.mxu0 0
  %109 = vmatpush1.bf16.msra.mxu0 0
  %110 = vmatprep.subr.bf16.mxu0 0
  %111 = vmatpush1.bf16.msra.mxu0 0
  %112 = vmatprep.subr.bf16.mxu0 0
  %113 = vmatpush1.bf16.msra.mxu0 0
  %114 = vmatprep.subr.bf16.mxu0 0
  %115 = vmatpush1.bf16.msra.mxu0 0
  %116 = vmatprep.subr.bf16.mxu0 0
  %117 = vmatpush1.bf16.msra.mxu0 0
  %118 = vmatprep.subr.bf16.mxu0 0
  %119 = vmatpush1.bf16.msra.mxu0 0
  %120 = vmatprep.subr.bf16.mxu0 0
  %121 = vmatpush1.bf16.msra.mxu0 %v79
  %122 = vmatprep.subr.bf16.mxu0 0
  %123 = vmatpush2.bf16.msra.mxu0 0
  %124 = vmatprep.subr.bf16.mxu0 0
  %125 = vmatpush2.bf16.msra.mxu0 0
  %126 = vmatprep.subr.bf16.mxu0 0
  %127 = vmatpush2.bf16.msra.mxu0 0
  %128 = vmatprep.subr.bf16.mxu0 0
  %129 = vmatpush2.bf16.msra.mxu0 0
  %130 = vmatprep.subr.bf16.mxu0 0
  %131 = vmatpush2.bf16.msra.mxu0 0
  %132 = vmatprep.subr.bf16.mxu0 0
  %133 = vmatpush2.bf16.msra.mxu0 0
  %134 = vmatprep.subr.bf16.mxu0 0
  %135 = vmatpush2.bf16.msra.mxu0 0
  %136 = vmatprep.subr.bf16.mxu0 0
  %137 = vmatpush2.bf16.msra.mxu0 0
  %138 = vmatprep.mubr.bf16.mxu0 0
  %139 = vmatmul.mubr.bf16.gmra.mxu0 %v83
  %v140 = vpop.f32.mrf.mxu0
  %v141 = vadd.f32 0.0, %v140
  %v142 = vpop.f32.mrf.mxu0
  %v143 = vpop.f32.mrf.mxu0
  %v144 = vadd.f32 0.0, %v143
  %v145 = vpop.f32.mrf.mxu0
  %146 = vmatprep.mubr.bf16.mxu0 0
  %147 = vmatmul.mubr.bf16.gmra.mxu0 %v86
  %v148 = vpop.f32.mrf.mxu0
  %v149 = vadd.f32 0.0, %v148
  %v150 = vpop.f32.mrf.mxu0
  %v151 = vpop.f32.mrf.mxu0
  %v152 = vadd.f32 0.0, %v151
  %v153 = vpop.f32.mrf.mxu0
  %154 = vmatprep.mubr.bf16.mxu0 0
  %155 = vmatmul.mubr.bf16.gmra.mxu0 %v89
  %v156 = vpop.f32.mrf.mxu0
  %v157 = vadd.f32 0.0, %v156
  %v158 = vpop.f32.mrf.mxu0
  %v159 = vpop.f32.mrf.mxu0
  %v160 = vadd.f32 0.0, %v159
  %v161 = vpop.f32.mrf.mxu0
  %162 = vmatprep.mubr.bf16.mxu0 0
  %163 = vmatmul.mubr.bf16.gmra.mxu0 %v92
  %v164 = vpop.f32.mrf.mxu0
  %v165 = vadd.f32 0.0, %v164
  %v166 = vpop.f32.mrf.mxu0
  %v167 = vpop.f32.mrf.mxu0
  %v168 = vadd.f32 0.0, %v167
  %v169 = vpop.f32.mrf.mxu0
  %170 = vmatprep.mubr.bf16.mxu0 0
  %171 = vmatmul.mubr.bf16.gmra.mxu0 %v95
  %v172 = vpop.f32.mrf.mxu0
  %v173 = vadd.f32 0.0, %v172
  %v174 = vpop.f32.mrf.mxu0
  %v175 = vpop.f32.mrf.mxu0
  %v176 = vadd.f32 0.0, %v175
  %v177 = vpop.f32.mrf.mxu0
  %178 = vmatprep.mubr.bf16.mxu0 0
  %179 = vmatmul.mubr.bf16.gmra.mxu0 %v98
  %v180 = vpop.f32.mrf.mxu0
  %v181 = vadd.f32 0.0, %v180
  %v182 = vpop.f32.mrf.mxu0
  %v183 = vpop.f32.mrf.mxu0
  %v184 = vadd.f32 0.0, %v183
  %v185 = vpop.f32.mrf.mxu0
  %186 = vmatprep.mubr.bf16.mxu0 0
  %187 = vmatmul.mubr.bf16.gmra.mxu0 %v101
  %v188 = vpop.f32.mrf.mxu0
  %v189 = vadd.f32 0.0, %v188
  %v190 = vpop.f32.mrf.mxu0
  %v191 = vpop.f32.mrf.mxu0
  %v192 = vadd.f32 0.0, %v191
  %v193 = vpop.f32.mrf.mxu0
  %194 = vmatprep.mubr.bf16.mxu0 0
  %195 = vmatmul.mubr.bf16.gmra.mxu0 %v104
  %v196 = vpop.f32.mrf.mxu0
  %v197 = vadd.f32 0.0, %v196
  %v198 = vpop.f32.mrf.mxu0
  %v199 = vpop.f32.mrf.mxu0
  %v200 = vadd.f32 0.0, %v199
  %v201 = vpop.f32.mrf.mxu0
  %202 = vdwg.mxu0
  %v207 = vunpack.c.l.b16 %v45
  %v208 = vunpack.c.l.b16 %v46
  %v209 = vunpack.c.l.b16 %v47
  %v210 = vunpack.c.l.b16 %v48
  %v211 = vpack.c.b16 %v208, %v207
  %v212 = vpack.c.b16 %v210, %v209
  %vm215 = vcmask 261120
  %v217 = vsel %vm215, %v37, 0
  %v220 = vsel %vm215, %v38, 0
  %v223 = vsel %vm215, %v39, 0
  %v226 = vsel %vm215, %v40, 0
  %v229 = vsel %vm215, %v41, 0
  %v232 = vsel %vm215, %v42, 0
  %v235 = vsel %vm215, %v43, 0
  %v238 = vsel %vm215, %v44, 0
  %240 = vmatprep.subr.bf16.mxu0 0
  %241 = vmatpush1.bf16.msra.mxu0 0
  %242 = vmatprep.subr.bf16.mxu0 0
  %243 = vmatpush1.bf16.msra.mxu0 0
  %244 = vmatprep.subr.bf16.mxu0 0
  %245 = vmatpush1.bf16.msra.mxu0 0
  %246 = vmatprep.subr.bf16.mxu0 0
  %247 = vmatpush1.bf16.msra.mxu0 0
  %248 = vmatprep.subr.bf16.mxu0 0
  %249 = vmatpush1.bf16.msra.mxu0 0
  %250 = vmatprep.subr.bf16.mxu0 0
  %251 = vmatpush1.bf16.msra.mxu0 0
  %252 = vmatprep.subr.bf16.mxu0 0
  %253 = vmatpush1.bf16.msra.mxu0 %v212
  %254 = vmatprep.subr.bf16.mxu0 0
  %255 = vmatpush1.bf16.msra.mxu0 %v211
  %256 = vmatprep.subr.bf16.mxu0 0
  %257 = vmatpush2.bf16.msra.mxu0 0
  %258 = vmatprep.subr.bf16.mxu0 0
  %259 = vmatpush2.bf16.msra.mxu0 0
  %260 = vmatprep.subr.bf16.mxu0 0
  %261 = vmatpush2.bf16.msra.mxu0 0
  %262 = vmatprep.subr.bf16.mxu0 0
  %263 = vmatpush2.bf16.msra.mxu0 0
  %264 = vmatprep.subr.bf16.mxu0 0
  %265 = vmatpush2.bf16.msra.mxu0 0
  %266 = vmatprep.subr.bf16.mxu0 0
  %267 = vmatpush2.bf16.msra.mxu0 0
  %268 = vmatprep.subr.bf16.mxu0 0
  %269 = vmatpush2.bf16.msra.mxu0 0
  %270 = vmatprep.subr.bf16.mxu0 0
  %271 = vmatpush2.bf16.msra.mxu0 0
  %272 = vmatprep.mubr.bf16.mxu0 0
  %273 = vmatmul.mubr.bf16.gmra.mxu0 %v217
  %v274 = vpop.f32.mrf.mxu0
  %v275 = vadd.f32 %v141, %v274
  %v276 = vpop.f32.mrf.mxu0
  %v277 = vpop.f32.mrf.mxu0
  %v278 = vadd.f32 %v144, %v277
  %v279 = vpop.f32.mrf.mxu0
  %280 = vmatprep.mubr.bf16.mxu0 0
  %281 = vmatmul.mubr.bf16.gmra.mxu0 %v220
  %v282 = vpop.f32.mrf.mxu0
  %v283 = vadd.f32 %v149, %v282
  %v284 = vpop.f32.mrf.mxu0
  %v285 = vpop.f32.mrf.mxu0
  %v286 = vadd.f32 %v152, %v285
  %v287 = vpop.f32.mrf.mxu0
  %288 = vmatprep.mubr.bf16.mxu0 0
  %289 = vmatmul.mubr.bf16.gmra.mxu0 %v223
  %v290 = vpop.f32.mrf.mxu0
  %v291 = vadd.f32 %v157, %v290
  %v292 = vpop.f32.mrf.mxu0
  %v293 = vpop.f32.mrf.mxu0
  %v294 = vadd.f32 %v160, %v293
  %v295 = vpop.f32.mrf.mxu0
  %296 = vmatprep.mubr.bf16.mxu0 0
  %297 = vmatmul.mubr.bf16.gmra.mxu0 %v226
  %v298 = vpop.f32.mrf.mxu0
  %v299 = vadd.f32 %v165, %v298
  %v300 = vpop.f32.mrf.mxu0
  %v301 = vpop.f32.mrf.mxu0
  %v302 = vadd.f32 %v168, %v301
  %v303 = vpop.f32.mrf.mxu0
  %304 = vmatprep.mubr.bf16.mxu0 0
  %305 = vmatmul.mubr.bf16.gmra.mxu0 %v229
  %v306 = vpop.f32.mrf.mxu0
  %v307 = vadd.f32 %v173, %v306
  %v308 = vpop.f32.mrf.mxu0
  %v309 = vpop.f32.mrf.mxu0
  %v310 = vadd.f32 %v176, %v309
  %v311 = vpop.f32.mrf.mxu0
  %312 = vmatprep.mubr.bf16.mxu0 0
  %313 = vmatmul.mubr.bf16.gmra.mxu0 %v232
  %v314 = vpop.f32.mrf.mxu0
  %v315 = vadd.f32 %v181, %v314
  %v316 = vpop.f32.mrf.mxu0
  %v317 = vpop.f32.mrf.mxu0
  %v318 = vadd.f32 %v184, %v317
  %v319 = vpop.f32.mrf.mxu0
  %320 = vmatprep.mubr.bf16.mxu0 0
  %321 = vmatmul.mubr.bf16.gmra.mxu0 %v235
  %v322 = vpop.f32.mrf.mxu0
  %v323 = vadd.f32 %v189, %v322
  %v324 = vpop.f32.mrf.mxu0
  %v325 = vpop.f32.mrf.mxu0
  %v326 = vadd.f32 %v192, %v325
  %v327 = vpop.f32.mrf.mxu0
  %328 = vmatprep.mubr.bf16.mxu0 0
  %329 = vmatmul.mubr.bf16.gmra.mxu0 %v238
  %v330 = vpop.f32.mrf.mxu0
  %v331 = vadd.f32 %v197, %v330
  %v332 = vpop.f32.mrf.mxu0
  %v333 = vpop.f32.mrf.mxu0
  %v334 = vadd.f32 %v200, %v333
  %v335 = vpop.f32.mrf.mxu0
  %336 = vdwg.mxu0
  %v337 = vld [vmem:[%s4] sm:$0x1]
  %v339 = vlaneseq
  %v340 = vshrl.u32 %v339, 7
  %v341 = vsub.s32 0, %v340
  %v342 = vrot.slane %v337, %v341
  %v344 = vadd.f32 %v275, %v342
  %v345 = vadd.f32 %v278, %v342
  %v346 = vadd.f32 %v283, %v342
  %v347 = vadd.f32 %v286, %v342
  %v348 = vadd.f32 %v291, %v342
  %v349 = vadd.f32 %v294, %v342
  %v350 = vadd.f32 %v299, %v342
  %v351 = vadd.f32 %v302, %v342
  %v352 = vadd.f32 %v307, %v342
  %v353 = vadd.f32 %v310, %v342
  %v354 = vadd.f32 %v315, %v342
  %v355 = vadd.f32 %v318, %v342
  %v356 = vadd.f32 %v323, %v342
  %v357 = vadd.f32 %v326, %v342
  %v358 = vadd.f32 %v331, %v342
  %v359 = vadd.f32 %v334, %v342
  %vm360 = vcmp.gt.f32.partialorder %v344, 0.0
  %vm361 = vcmp.gt.f32.partialorder %v345, 0.0
  %vm362 = vcmp.gt.f32.partialorder %v346, 0.0
  %vm363 = vcmp.gt.f32.partialorder %v347, 0.0
  %vm364 = vcmp.gt.f32.partialorder %v348, 0.0
  %vm365 = vcmp.gt.f32.partialorder %v349, 0.0
  %vm366 = vcmp.gt.f32.partialorder %v350, 0.0
  %vm367 = vcmp.gt.f32.partialorder %v351, 0.0
  %vm368 = vcmp.gt.f32.partialorder %v352, 0.0
  %vm369 = vcmp.gt.f32.partialorder %v353, 0.0
  %vm370 = vcmp.gt.f32.partialorder %v354, 0.0
  %vm371 = vcmp.gt.f32.partialorder %v355, 0.0
  %vm372 = vcmp.gt.f32.partialorder %v356, 0.0
  %vm373 = vcmp.gt.f32.partialorder %v357, 0.0
  %vm374 = vcmp.gt.f32.partialorder %v358, 0.0
  %vm375 = vcmp.gt.f32.partialorder %v359, 0.0
  %v376 = vmul.f32 %v344, 0.1
  %v377 = vmul.f32 %v345, 0.1
  %v378 = vmul.f32 %v346, 0.1
  %v379 = vmul.f32 %v347, 0.1
  %v380 = vmul.f32 %v348, 0.1
  %v381 = vmul.f32 %v349, 0.1
  %v382 = vmul.f32 %v350, 0.1
  %v383 = vmul.f32 %v351, 0.1
  %v384 = vmul.f32 %v352, 0.1
  %v385 = vmul.f32 %v353, 0.1
  %v386 = vmul.f32 %v354, 0.1
  %v387 = vmul.f32 %v355, 0.1
  %v388 = vmul.f32 %v356, 0.1
  %v389 = vmul.f32 %v357, 0.1
  %v390 = vmul.f32 %v358, 0.1
  %v391 = vmul.f32 %v359, 0.1
  %v392 = vsel %vm360, %v344, %v376
  %v393 = vsel %vm361, %v345, %v377
  %v394 = vsel %vm362, %v346, %v378
  %v395 = vsel %vm363, %v347, %v379
  %v396 = vsel %vm364, %v348, %v380
  %v397 = vsel %vm365, %v349, %v381
  %v398 = vsel %vm366, %v350, %v382
  %v399 = vsel %vm367, %v351, %v383
  %v400 = vsel %vm368, %v352, %v384
  %v401 = vsel %vm369, %v353, %v385
  %v402 = vsel %vm370, %v354, %v386
  %v403 = vsel %vm371, %v355, %v387
  %v404 = vsel %vm372, %v356, %v388
  %v405 = vsel %vm373, %v357, %v389
  %v406 = vsel %vm374, %v358, %v390
  %v407 = vsel %vm375, %v359, %v391
  %vm408 = vcmask 195584
  %409 = vst.msk [vmem:[%s5] sm:$0xff] %vm408, %v392
  %410 = vst.msk [vmem:[%s5 + $0x8] sm:$0xff] %vm408, %v393
  %411 = vst.msk [vmem:[%s5 + $0x10] sm:$0xff] %vm408, %v394
  %412 = vst.msk [vmem:[%s5 + $0x18] sm:$0xff] %vm408, %v395
  %413 = vst.msk [vmem:[%s5 + $0x20] sm:$0xff] %vm408, %v396
  %414 = vst.msk [vmem:[%s5 + $0x28] sm:$0xff] %vm408, %v397
  %415 = vst.msk [vmem:[%s5 + $0x30] sm:$0xff] %vm408, %v398
  %416 = vst.msk [vmem:[%s5 + $0x38] sm:$0xff] %vm408, %v399
  %417 = vst.msk [vmem:[%s5 + $0x40] sm:$0xff] %vm408, %v400
  %418 = vst.msk [vmem:[%s5 + $0x48] sm:$0xff] %vm408, %v401
  %419 = vst.msk [vmem:[%s5 + $0x50] sm:$0xff] %vm408, %v402
  %420 = vst.msk [vmem:[%s5 + $0x58] sm:$0xff] %vm408, %v403
  %421 = vst.msk [vmem:[%s5 + $0x60] sm:$0xff] %vm408, %v404
  %422 = vst.msk [vmem:[%s5 + $0x68] sm:$0xff] %vm408, %v405
  %423 = vst.msk [vmem:[%s5 + $0x70] sm:$0xff] %vm408, %v406
  %424 = vst.msk [vmem:[%s5 + $0x78] sm:$0xff] %vm408, %v407
  // Predicated region
  $region22: #{forward.11} parent=0 // pred_check
    _
  $region23: #{forward.11} parent=0 // pred_check_branch
    %426 = sbr.rel (0) target = $region25
  $region24: #{forward.11} parent=0 // pred_region
    _
  $region25: #{forward.11} parent=0 // pred_fallthru
    _
  // Predicated region
  $region26: #{forward.11} parent=0 // pred_check
    _
  $region27: #{forward.11} parent=0 // pred_check_branch
    %428 = sbr.rel (0) target = $region29
  $region28: #{forward.11} parent=0 // pred_region
    _
  $region29: #{forward.11} parent=0 // pred_fallthru
    _

// kernel: forward.13
$region0: #{forward.13}
  #allocation0 [shape = 'u32[]', space=smem, size = 0x4, offset = 0x4, fixed_abs, tag = 'smem constant byte address 0x4 - core index']
  #allocation1 [shape = 'u32[144,128]{1,0:T(1,128)}', space=vmem, size = 0x12000, scoped, tag = 'internal scratch']
  %s0 = inlined_call_operand.vmem [shape: f32[2,122,24], index: 0, kind: input, shape index: {}]
  %s1 = inlined_call_operand.vmem [shape: bf16[9,24,128], index: 1, kind: input, shape index: {}]
  %s2 = inlined_call_operand.vmem [shape: f32[1,128], index: 2, kind: input, shape index: {}]
  %s3 = inlined_call_operand.vmem [shape: f32[2,100,128], index: 3, kind: output, shape index: {}]
  %s4 = sld [smem:[#allocation0]]
  $region45: #{forward.13} parent=0
    _
  %s6 = ssub.s32 1, %s4
  %s7 = scalar_select 0, %s6, %s4
  loop: start=0, step=1, limit=4
  $region2: #{forward.13} parent=0 // loop_pre_header
    _
  $region3: #{forward.13} parent=0 // loop_header
    %s9 = sphi 0, %s13
    %p10 = scmp.ge.s32.totalorder %s9, 4
    %s19 = sphi 0, %s21
    %s22 = sphi 0, %s19
    %s23 = sphi 0, %s22
    %s39 = sphi 0, %s23
    %s43 = sphi 0, %s43
    %s45 = sphi 0, %s43
    %s46 = sphi 0, %s45
    %s60 = sphi 0, %s46
    %s64 = sphi 0, %s64
    %s66 = sphi 0, %s64
    %s67 = sphi 0, %s66
    %s81 = sphi 0, %s67
    %s87 = sphi 0, %s89
    %s90 = sphi 0, %s87
    %s91 = sphi 0, %s90
    %s107 = sphi 0, %s91
  $region4: #{forward.13} parent=0 // loop_header_branch
    %12 = sbr.rel (%p10) target = $region8
  $region5: #{forward.13} parent=0 // loop_body
    %s14 = ssub.s32 %s9, 1
    %s15 = ssub.s32 %s9, 2
    %s16 = sadd.s32 %s9, 1
    %s17 = ssub.s32 %s9, %s16
    %p18 = scmp.eq.s32.totalorder %s17, 0
    %s20 = sadd.s32 %s19, 1
    %s21 = scalar_select %p18, %s19, %s20
    %p24 = pneg %p18
    %p25 = scmp.eq.s32.totalorder %s9, 1
    %p26 = por %p24, %p25
    %p27 = scmp.ne.s32.totalorder %s19, %s22
    %p28 = scmp.eq.s32.totalorder %s9, 0
    %p29 = por %p27, %p28
    %p30 = scmp.ne.s32.totalorder %s19, %s22
    %p31 = scmp.eq.s32.totalorder %s14, 1
    %p32 = por %p30, %p31
    %p33 = scmp.ne.s32.totalorder %s22, %s23
    %p34 = scmp.eq.s32.totalorder %s14, 0
    %p35 = por %p33, %p34
    %p36 = scmp.ne.s32.totalorder %s22, %s23
    %p37 = scmp.eq.s32.totalorder %s15, 1
    %p38 = por %p36, %p37
    %p40 = scmp.ne.s32.totalorder %s23, %s39
    %p41 = scmp.eq.s32.totalorder %s15, 0
    %p42 = por %p40, %p41
    %s44 = sadd.s32 %s43, 1
    %p47 = scmp.eq.s32.totalorder %s9, 1
    %p48 = scmp.ne.s32.totalorder %s43, %s45
    %p49 = scmp.eq.s32.totalorder %s9, 0
    %p50 = por %p48, %p49
    %p51 = scmp.ne.s32.totalorder %s43, %s45
    %p52 = scmp.eq.s32.totalorder %s14, 1
    %p53 = por %p51, %p52
    %p54 = scmp.ne.s32.totalorder %s45, %s46
    %p55 = scmp.eq.s32.totalorder %s14, 0
    %p56 = por %p54, %p55
    %p57 = scmp.ne.s32.totalorder %s45, %s46
    %p58 = scmp.eq.s32.totalorder %s15, 1
    %p59 = por %p57, %p58
    %p61 = scmp.ne.s32.totalorder %s46, %s60
    %p62 = scmp.eq.s32.totalorder %s15, 0
    %p63 = por %p61, %p62
    %s65 = sadd.s32 %s64, 1
    %p68 = scmp.eq.s32.totalorder %s9, 1
    %p69 = scmp.ne.s32.totalorder %s64, %s66
    %p70 = scmp.eq.s32.totalorder %s9, 0
    %p71 = por %p69, %p70
    %p72 = scmp.ne.s32.totalorder %s64, %s66
    %p73 = scmp.eq.s32.totalorder %s14, 1
    %p74 = por %p72, %p73
    %p75 = scmp.ne.s32.totalorder %s66, %s67
    %p76 = scmp.eq.s32.totalorder %s14, 0
    %p77 = por %p75, %p76
    %p78 = scmp.ne.s32.totalorder %s66, %s67
    %p79 = scmp.eq.s32.totalorder %s15, 1
    %p80 = por %p78, %p79
    %p82 = scmp.ne.s32.totalorder %s67, %s81
    %p83 = scmp.eq.s32.totalorder %s15, 0
    %p84 = por %p82, %p83
    %s85 = ssub.s32 %s9, %s16
    %p86 = scmp.eq.s32.totalorder %s85, 0
    %s88 = sadd.s32 %s87, 1
    %s89 = scalar_select %p86, %s87, %s88
    %p92 = pneg %p86
    %p93 = scmp.eq.s32.totalorder %s9, 1
    %p94 = por %p92, %p93
    %p95 = scmp.ne.s32.totalorder %s87, %s90
    %p96 = scmp.eq.s32.totalorder %s9, 0
    %p97 = por %p95, %p96
    %p98 = scmp.ne.s32.totalorder %s87, %s90
    %p99 = scmp.eq.s32.totalorder %s14, 1
    %p100 = por %p98, %p99
    %p101 = scmp.ne.s32.totalorder %s90, %s91
    %p102 = scmp.eq.s32.totalorder %s14, 0
    %p103 = por %p101, %p102
    %p104 = scmp.ne.s32.totalorder %s90, %s91
    %p105 = scmp.eq.s32.totalorder %s15, 1
    %p106 = por %p104, %p105
    %p108 = scmp.ne.s32.totalorder %s91, %s107
    %p109 = scmp.eq.s32.totalorder %s15, 0
    %p110 = por %p108, %p109
    %p111 = scmp.le.s32.totalorder 1, %s9
    %p112 = scmp.lt.s32.totalorder %s9, 3
    %p113 = pnand %p111, %p112
    %p114 = pneg %p113
    // Predicated region
    $region9: #{forward.13} parent=5 // pred_check
      _
    $region10: #{forward.13} parent=5 // pred_check_branch
      %116 = sbr.rel (%p113) target = $region12
    $region11: #{forward.13} parent=5 // pred_region
      %s117 = ssub.s32 %s9, 1
      // Predicated region
      $region13: #{forward.13} parent=11 // pred_check
        %p118 = pneg %p56
      $region14: #{forward.13} parent=11 // pred_check_branch
        %120 = sbr.rel (%p118) target = $region16
      $region15: #{forward.13} parent=11 // pred_region
        _
      $region16: #{forward.13} parent=11 // pred_fallthru
        _
      // Predicated region
      $region17: #{forward.13} parent=11 // pred_check
        %p121 = pneg %p77
      $region18: #{forward.13} parent=11 // pred_check_branch
        %123 = sbr.rel (%p121) target = $region20
      $region19: #{forward.13} parent=11 // pred_region
        _
      $region20: #{forward.13} parent=11 // pred_fallthru
        _
    $region12: #{forward.13} parent=5 // pred_fallthru
      _
    %p124 = scmp.lt.s32.totalorder %s9, 2
    // Predicated region
    $region21: #{forward.13} parent=5 // pred_check
      %p125 = pneg %p124
    $region22: #{forward.13} parent=5 // pred_check_branch
      %127 = sbr.rel (%p125) target = $region24
    $region23: #{forward.13} parent=5 // pred_region
      // Predicated region
      $region25: #{forward.13} parent=23 // pred_check
        %p128 = pneg %p29
      $region26: #{forward.13} parent=23 // pred_check_branch
        %130 = sbr.rel (%p128) target = $region28
      $region27: #{forward.13} parent=23 // pred_region
        %p131 = scmp.lt.s32.totalorder %s9, 1
        %s132 = scalar_select %p131, %s9, 1
        %s133 = smul.addr %s132, 16
        %s134 = smul.addr %s133, 8
        %s135 = scalar_lea.vmem %s0, %s134
      $region28: #{forward.13} parent=23 // pred_fallthru
        _
    $region24: #{forward.13} parent=5 // pred_fallthru
      _
    %p136 = scmp.le.s32.totalorder 1, %s9
    %p137 = scmp.lt.s32.totalorder %s9, 3
    %p138 = pnand %p136, %p137
    %p139 = pneg %p138
    // Predicated region
    $region29: #{forward.13} parent=5 // pred_check
      _
    $region30: #{forward.13} parent=5 // pred_check_branch
      %141 = sbr.rel (%p138) target = $region32
    $region31: #{forward.13} parent=5 // pred_region
      %s142 = ssub.s32 %s9, 1
      %p143 = scmp.lt.s32.totalorder %s14, 1
      %s144 = scalar_select %p143, %s14, 1
      %s145 = smul.addr %s144, 16
      %s146 = smul.addr %s145, 8
      %s147 = scalar_lea.vmem %s0, %s146
      %p148 = pneg %p35
      %p149 = pneg %p32
      %p150 = pneg %p56
      %p151 = pneg %p53
      %p152 = pneg %p77
      %p153 = pneg %p74
      %p154 = pneg %p103
      %p155 = pneg %p100
      %p156 = scmp.lt.s32.totalorder %s14, 1
      %s157 = scalar_select %p156, %s14, 1
      %s158 = smul.addr %s157, 13
      %s159 = smul.addr %s158, 8
      %s160 = scalar_lea.vmem %s3, %s159
      %p161 = scmp.lt.s32.totalorder %s14, 1
      %s162 = scalar_select %p161, %s14, 1
      %s163 = smul.addr %s162, 16
      %s164 = smul.addr %s163, 8
      %s165 = scalar_lea.vmem %s0, %s164
      %p166 = scmp.lt.s32.totalorder %s14, 1
      %s167 = scalar_select %p166, %s14, 1
      %s168 = smul.addr %s167, 13
      %s169 = smul.addr %s168, 8
      %s170 = scalar_lea.vmem %s3, %s169
      %v172 = vld [vmem:[%s165] sm:$0xff]
      %v173 = vld [vmem:[%s165 + $0x8] sm:$0xff]
      %v174 = vld [vmem:[%s165 + $0x10] sm:$0xff]
      %v175 = vld [vmem:[%s165 + $0x18] sm:$0xff]
      %v176 = vld [vmem:[%s165 + $0x20] sm:$0xff]
      %v177 = vld [vmem:[%s165 + $0x28] sm:$0xff]
      %v178 = vld [vmem:[%s165 + $0x30] sm:$0xff]
      %v179 = vld [vmem:[%s165 + $0x38] sm:$0xff]
      %v180 = vld [vmem:[%s165 + $0x40] sm:$0xff]
      %v181 = vld [vmem:[%s165 + $0x48] sm:$0xff]
      %v182 = vld [vmem:[%s165 + $0x50] sm:$0xff]
      %v183 = vld [vmem:[%s165 + $0x58] sm:$0xff]
      %v184 = vld [vmem:[%s165 + $0x60] sm:$0xf]
      %v185 = vpack.c.bf16 %v173, %v172
      %v186 = vpack.c.bf16 %v175, %v174
      %v187 = vpack.c.bf16 %v177, %v176
      %v188 = vpack.c.bf16 %v179, %v178
      %v189 = vpack.c.bf16 %v181, %v180
      %v190 = vpack.c.bf16 %v183, %v182
      %v191 = vpack.c.bf16 %v184, %v184
      %v192 = vld [vmem:[%s1] sm:$0xf]
      %v193 = vld [vmem:[%s1 + $0x4] sm:$0xf]
      %v194 = vld [vmem:[%s1 + $0x8] sm:$0xf]
      %v195 = vld [vmem:[%s165 + $0x1] sm:$0xff]
      %v196 = vld [vmem:[%s165 + $0x9] sm:$0xff]
      %v197 = vld [vmem:[%s165 + $0x11] sm:$0xff]
      %v198 = vld [vmem:[%s165 + $0x19] sm:$0xff]
      %v199 = vld [vmem:[%s165 + $0x21] sm:$0xff]
      %v200 = vld [vmem:[%s165 + $0x29] sm:$0xff]
      %v201 = vld [vmem:[%s165 + $0x31] sm:$0xff]
      %v202 = vld [vmem:[%s165 + $0x39] sm:$0xff]
      %v203 = vld [vmem:[%s165 + $0x41] sm:$0xff]
      %v204 = vld [vmem:[%s165 + $0x49] sm:$0xff]
      %v205 = vld [vmem:[%s165 + $0x51] sm:$0xff]
      %v206 = vld [vmem:[%s165 + $0x59] sm:$0xff]
      %v207 = vld [vmem:[%s165 + $0x61] sm:$0xf]
      %v208 = vpack.c.bf16 %v196, %v195
      %v209 = vpack.c.bf16 %v198, %v197
      %v210 = vpack.c.bf16 %v200, %v199
      %v211 = vpack.c.bf16 %v202, %v201
      %v212 = vpack.c.bf16 %v204, %v203
      %v213 = vpack.c.bf16 %v206, %v205
      %v214 = vpack.c.bf16 %v207, %v207
      %s215 = scalar_lea.vmem %s1, 12
      %v216 = vld [vmem:[%s215] sm:$0xf]
      %v217 = vld [vmem:[%s215 + $0x4] sm:$0xf]
      %v218 = vld [vmem:[%s215 + $0x8] sm:$0xf]
      %v222 = vunpack.c.l.b16 %v216
      %v223 = vunpack.c.l.b16 %v217
      %v224 = vunpack.c.l.b16 %v218
      %v225 = vpack.c.b16 %v223, %v222
      %v226 = vpack.c.b16 %v224, %v224
      %vm228 = vcmask 195584
      %v230 = vsel %vm228, %v208, 0
      %v233 = vsel %vm228, %v209, 0
      %v236 = vsel %vm228, %v210, 0
      %v239 = vsel %vm228, %v211, 0
      %v242 = vsel %vm228, %v212, 0
      %v245 = vsel %vm228, %v213, 0
      %v248 = vsel %vm228, %v214, 0
      %vm250 = vcmask 1043456
      %v252 = vsel %vm250, %v226, 0
      %254 = vmatprep.subr.bf16.mxu0 0
      %255 = vmatpush1.bf16.msra.mxu0 0
      %256 = vmatprep.subr.bf16.mxu0 0
      %257 = vmatpush1.bf16.msra.mxu0 0
      %258 = vmatprep.subr.bf16.mxu0 0
      %259 = vmatpush1.bf16.msra.mxu0 0
      %260 = vmatprep.subr.bf16.mxu0 0
      %261 = vmatpush1.bf16.msra.mxu0 0
      %262 = vmatprep.subr.bf16.mxu0 0
      %263 = vmatpush1.bf16.msra.mxu0 0
      %264 = vmatprep.subr.bf16.mxu0 0
      %265 = vmatpush1.bf16.msra.mxu0 0
      %266 = vmatprep.subr.bf16.mxu0 0
      %267 = vmatpush1.bf16.msra.mxu0 %v252
      %268 = vmatprep.subr.bf16.mxu0 0
      %269 = vmatpush1.bf16.msra.mxu0 %v225
      %270 = vmatprep.subr.bf16.mxu0 0
      %271 = vmatpush2.bf16.msra.mxu0 0
      %272 = vmatprep.subr.bf16.mxu0 0
      %273 = vmatpush2.bf16.msra.mxu0 0
      %274 = vmatprep.subr.bf16.mxu0 0
      %275 = vmatpush2.bf16.msra.mxu0 0
      %276 = vmatprep.subr.bf16.mxu0 0
      %277 = vmatpush2.bf16.msra.mxu0 0
      %278 = vmatprep.subr.bf16.mxu0 0
      %279 = vmatpush2.bf16.msra.mxu0 0
      %280 = vmatprep.subr.bf16.mxu0 0
      %281 = vmatpush2.bf16.msra.mxu0 0
      %282 = vmatprep.subr.bf16.mxu0 0
      %283 = vmatpush2.bf16.msra.mxu0 0
      %284 = vmatprep.subr.bf16.mxu0 0
      %285 = vmatpush2.bf16.msra.mxu0 0
      %286 = vmatprep.mubr.bf16.mxu0 0
      %287 = vmatmul.mubr.bf16.gmra.mxu0 %v230
      %v288 = vpop.f32.mrf.mxu0
      %v289 = vadd.f32 0.0, %v288
      %v290 = vpop.f32.mrf.mxu0
      %v291 = vpop.f32.mrf.mxu0
      %v292 = vadd.f32 0.0, %v291
      %v293 = vpop.f32.mrf.mxu0
      %294 = vmatprep.mubr.bf16.mxu0 0
      %295 = vmatmul.mubr.bf16.gmra.mxu0 %v233
      %v296 = vpop.f32.mrf.mxu0
      %v297 = vadd.f32 0.0, %v296
      %v298 = vpop.f32.mrf.mxu0
      %v299 = vpop.f32.mrf.mxu0
      %v300 = vadd.f32 0.0, %v299
      %v301 = vpop.f32.mrf.mxu0
      %302 = vmatprep.mubr.bf16.mxu0 0
      %303 = vmatmul.mubr.bf16.gmra.mxu0 %v236
      %v304 = vpop.f32.mrf.mxu0
      %v305 = vadd.f32 0.0, %v304
      %v306 = vpop.f32.mrf.mxu0
      %v307 = vpop.f32.mrf.mxu0
      %v308 = vadd.f32 0.0, %v307
      %v309 = vpop.f32.mrf.mxu0
      %310 = vmatprep.mubr.bf16.mxu0 0
      %311 = vmatmul.mubr.bf16.gmra.mxu0 %v239
      %v312 = vpop.f32.mrf.mxu0
      %v313 = vadd.f32 0.0, %v312
      %v314 = vpop.f32.mrf.mxu0
      %v315 = vpop.f32.mrf.mxu0
      %v316 = vadd.f32 0.0, %v315
      %v317 = vpop.f32.mrf.mxu0
      %318 = vmatprep.mubr.bf16.mxu0 0
      %319 = vmatmul.mubr.bf16.gmra.mxu0 %v242
      %v320 = vpop.f32.mrf.mxu0
      %v321 = vadd.f32 0.0, %v320
      %v322 = vpop.f32.mrf.mxu0
      %v323 = vpop.f32.mrf.mxu0
      %v324 = vadd.f32 0.0, %v323
      %v325 = vpop.f32.mrf.mxu0
      %326 = vmatprep.mubr.bf16.mxu0 0
      %327 = vmatmul.mubr.bf16.gmra.mxu0 %v245
      %v328 = vpop.f32.mrf.mxu0
      %v329 = vadd.f32 0.0, %v328
      %v330 = vpop.f32.mrf.mxu0
      %v331 = vpop.f32.mrf.mxu0
      %v332 = vadd.f32 0.0, %v331
      %v333 = vpop.f32.mrf.mxu0
      %334 = vmatprep.mubr.bf16.mxu0 0
      %335 = vmatmul.mubr.bf16.gmra.mxu0 %v248
      %v336 = vpop.f32.mrf.mxu0
      %v337 = vadd.f32 0.0, %v336
      %v338 = vpop.f32.mrf.mxu0
      %v339 = vpop.f32.mrf.mxu0
      %v340 = vpop.f32.mrf.mxu0
      %341 = vdwg.mxu0
      %v345 = vunpack.c.l.b16 %v192
      %v346 = vunpack.c.l.b16 %v193
      %v347 = vunpack.c.l.b16 %v194
      %v348 = vpack.c.b16 %v346, %v345
      %v349 = vpack.c.b16 %v347, %v347
      %v352 = vsel %vm228, %v185, 0
      %v355 = vsel %vm228, %v186, 0
      %v358 = vsel %vm228, %v187, 0
      %v361 = vsel %vm228, %v188, 0
      %v364 = vsel %vm228, %v189, 0
      %v367 = vsel %vm228, %v190, 0
      %v370 = vsel %vm228, %v191, 0
      %v373 = vsel %vm250, %v349, 0
      %375 = vmatprep.subr.bf16.mxu0 0
      %376 = vmatpush1.bf16.msra.mxu0 0
      %377 = vmatprep.subr.bf16.mxu0 0
      %378 = vmatpush1.bf16.msra.mxu0 0
      %379 = vmatprep.subr.bf16.mxu0 0
      %380 = vmatpush1.bf16.msra.mxu0 0
      %381 = vmatprep.subr.bf16.mxu0 0
      %382 = vmatpush1.bf16.msra.mxu0 0
      %383 = vmatprep.subr.bf16.mxu0 0
      %384 = vmatpush1.bf16.msra.mxu0 0
      %385 = vmatprep.subr.bf16.mxu0 0
      %386 = vmatpush1.bf16.msra.mxu0 0
      %387 = vmatprep.subr.bf16.mxu0 0
      %388 = vmatpush1.bf16.msra.mxu0 %v373
      %389 = vmatprep.subr.bf16.mxu0 0
      %390 = vmatpush1.bf16.msra.mxu0 %v348
      %391 = vmatprep.subr.bf16.mxu0 0
      %392 = vmatpush2.bf16.msra.mxu0 0
      %393 = vmatprep.subr.bf16.mxu0 0
      %394 = vmatpush2.bf16.msra.mxu0 0
      %395 = vmatprep.subr.bf16.mxu0 0
      %396 = vmatpush2.bf16.msra.mxu0 0
      %397 = vmatprep.subr.bf16.mxu0 0
      %398 = vmatpush2.bf16.msra.mxu0 0
      %399 = vmatprep.subr.bf16.mxu0 0
      %400 = vmatpush2.bf16.msra.mxu0 0
      %401 = vmatprep.subr.bf16.mxu0 0
      %402 = vmatpush2.bf16.msra.mxu0 0
      %403 = vmatprep.subr.bf16.mxu0 0
      %404 = vmatpush2.bf16.msra.mxu0 0
      %405 = vmatprep.subr.bf16.mxu0 0
      %406 = vmatpush2.bf16.msra.mxu0 0
      %407 = vmatprep.mubr.bf16.mxu0 0
      %408 = vmatmul.mubr.bf16.gmra.mxu0 %v352
      %v409 = vpop.f32.mrf.mxu0
      %v410 = vadd.f32 %v289, %v409
      %v411 = vpop.f32.mrf.mxu0
      %v412 = vpop.f32.mrf.mxu0
      %v413 = vadd.f32 %v292, %v412
      %v414 = vpop.f32.mrf.mxu0
      %415 = vmatprep.mubr.bf16.mxu0 0
      %416 = vmatmul.mubr.bf16.gmra.mxu0 %v355
      %v417 = vpop.f32.mrf.mxu0
      %v418 = vadd.f32 %v297, %v417
      %v419 = vpop.f32.mrf.mxu0
      %v420 = vpop.f32.mrf.mxu0
      %v421 = vadd.f32 %v300, %v420
      %v422 = vpop.f32.mrf.mxu0
      %423 = vmatprep.mubr.bf16.mxu0 0
      %424 = vmatmul.mubr.bf16.gmra.mxu0 %v358
      %v425 = vpop.f32.mrf.mxu0
      %v426 = vadd.f32 %v305, %v425
      %v427 = vpop.f32.mrf.mxu0
      %v428 = vpop.f32.mrf.mxu0
      %v429 = vadd.f32 %v308, %v428
      %v430 = vpop.f32.mrf.mxu0
      %431 = vmatprep.mubr.bf16.mxu0 0
      %432 = vmatmul.mubr.bf16.gmra.mxu0 %v361
      %v433 = vpop.f32.mrf.mxu0
      %v434 = vadd.f32 %v313, %v433
      %v435 = vpop.f32.mrf.mxu0
      %v436 = vpop.f32.mrf.mxu0
      %v437 = vadd.f32 %v316, %v436
      %v438 = vpop.f32.mrf.mxu0
      %439 = vmatprep.mubr.bf16.mxu0 0
      %440 = vmatmul.mubr.bf16.gmra.mxu0 %v364
      %v441 = vpop.f32.mrf.mxu0
      %v442 = vadd.f32 %v321, %v441
      %v443 = vpop.f32.mrf.mxu0
      %v444 = vpop.f32.mrf.mxu0
      %v445 = vadd.f32 %v324, %v444
      %v446 = vpop.f32.mrf.mxu0
      %447 = vmatprep.mubr.bf16.mxu0 0
      %448 = vmatmul.mubr.bf16.gmra.mxu0 %v367
      %v449 = vpop.f32.mrf.mxu0
      %v450 = vadd.f32 %v329, %v449
      %v451 = vpop.f32.mrf.mxu0
      %v452 = vpop.f32.mrf.mxu0
      %v453 = vadd.f32 %v332, %v452
      %v454 = vpop.f32.mrf.mxu0
      %455 = vmatprep.mubr.bf16.mxu0 0
      %456 = vmatmul.mubr.bf16.gmra.mxu0 %v370
      %v457 = vpop.f32.mrf.mxu0
      %v458 = vadd.f32 %v337, %v457
      %v459 = vpop.f32.mrf.mxu0
      %v460 = vpop.f32.mrf.mxu0
      %v461 = vpop.f32.mrf.mxu0
      %462 = vdwg.mxu0
      %v463 = vld [vmem:[%s165 + $0x2] sm:$0xff]
      %v464 = vld [vmem:[%s165 + $0xa] sm:$0xff]
      %v465 = vld [vmem:[%s165 + $0x12] sm:$0xff]
      %v466 = vld [vmem:[%s165 + $0x1a] sm:$0xff]
      %v467 = vld [vmem:[%s165 + $0x22] sm:$0xff]
      %v468 = vld [vmem:[%s165 + $0x2a] sm:$0xff]
      %v469 = vld [vmem:[%s165 + $0x32] sm:$0xff]
      %v470 = vld [vmem:[%s165 + $0x3a] sm:$0xff]
      %v471 = vld [vmem:[%s165 + $0x42] sm:$0xff]
      %v472 = vld [vmem:[%s165 + $0x4a] sm:$0xff]
      %v473 = vld [vmem:[%s165 + $0x52] sm:$0xff]
      %v474 = vld [vmem:[%s165 + $0x5a] sm:$0xff]
      %v475 = vld [vmem:[%s165 + $0x62] sm:$0xf]
      %v476 = vpack.c.bf16 %v464, %v463
      %v477 = vpack.c.bf16 %v466, %v465
      %v478 = vpack.c.bf16 %v468, %v467
      %v479 = vpack.c.bf16 %v470, %v469
      %v480 = vpack.c.bf16 %v472, %v471
      %v481 = vpack.c.bf16 %v474, %v473
      %v482 = vpack.c.bf16 %v475, %v475
      %s483 = scalar_lea.vmem %s1, 24
      %v484 = vld [vmem:[%s483] sm:$0xf]
      %v485 = vld [vmem:[%s483 + $0x4] sm:$0xf]
      %v486 = vld [vmem:[%s483 + $0x8] sm:$0xf]
      %v490 = vunpack.c.l.b16 %v484
      %v491 = vunpack.c.l.b16 %v485
      %v492 = vunpack.c.l.b16 %v486
      %v493 = vpack.c.b16 %v491, %v490
      %v494 = vpack.c.b16 %v492, %v492
      %v497 = vsel %vm228, %v476, 0
      %v500 = vsel %vm228, %v477, 0
      %v503 = vsel %vm228, %v478, 0
      %v506 = vsel %vm228, %v479, 0
      %v509 = vsel %vm228, %v480, 0
      %v512 = vsel %vm228, %v481, 0
      %v515 = vsel %vm228, %v482, 0
      %v518 = vsel %vm250, %v494, 0
      %520 = vmatprep.subr.bf16.mxu0 0
      %521 = vmatpush1.bf16.msra.mxu0 0
      %522 = vmatprep.subr.bf16.mxu0 0
      %523 = vmatpush1.bf16.msra.mxu0 0
      %524 = vmatprep.subr.bf16.mxu0 0
      %525 = vmatpush1.bf16.msra.mxu0 0
      %526 = vmatprep.subr.bf16.mxu0 0
      %527 = vmatpush1.bf16.msra.mxu0 0
      %528 = vmatprep.subr.bf16.mxu0 0
      %529 = vmatpush1.bf16.msra.mxu0 0
      %530 = vmatprep.subr.bf16.mxu0 0
      %531 = vmatpush1.bf16.msra.mxu0 0
      %532 = vmatprep.subr.bf16.mxu0 0
      %533 = vmatpush1.bf16.msra.mxu0 %v518
      %534 = vmatprep.subr.bf16.mxu0 0
      %535 = vmatpush1.bf16.msra.mxu0 %v493
      %536 = vmatprep.subr.bf16.mxu0 0
      %537 = vmatpush2.bf16.msra.mxu0 0
      %538 = vmatprep.subr.bf16.mxu0 0
      %539 = vmatpush2.bf16.msra.mxu0 0
      %540 = vmatprep.subr.bf16.mxu0 0
      %541 = vmatpush2.bf16.msra.mxu0 0
      %542 = vmatprep.subr.bf16.mxu0 0
      %543 = vmatpush2.bf16.msra.mxu0 0
      %544 = vmatprep.subr.bf16.mxu0 0
      %545 = vmatpush2.bf16.msra.mxu0 0
      %546 = vmatprep.subr.bf16.mxu0 0
      %547 = vmatpush2.bf16.msra.mxu0 0
      %548 = vmatprep.subr.bf16.mxu0 0
      %549 = vmatpush2.bf16.msra.mxu0 0
      %550 = vmatprep.subr.bf16.mxu0 0
      %551 = vmatpush2.bf16.msra.mxu0 0
      %552 = vmatprep.mubr.bf16.mxu0 0
      %553 = vmatmul.mubr.bf16.gmra.mxu0 %v497
      %v554 = vpop.f32.mrf.mxu0
      %v555 = vadd.f32 0.0, %v554
      %v556 = vpop.f32.mrf.mxu0
      %v557 = vpop.f32.mrf.mxu0
      %v558 = vadd.f32 0.0, %v557
      %v559 = vpop.f32.mrf.mxu0
      %560 = vmatprep.mubr.bf16.mxu0 0
      %561 = vmatmul.mubr.bf16.gmra.mxu0 %v500
      %v562 = vpop.f32.mrf.mxu0
      %v563 = vadd.f32 0.0, %v562
      %v564 = vpop.f32.mrf.mxu0
      %v565 = vpop.f32.mrf.mxu0
      %v566 = vadd.f32 0.0, %v565
      %v567 = vpop.f32.mrf.mxu0
      %568 = vmatprep.mubr.bf16.mxu0 0
      %569 = vmatmul.mubr.bf16.gmra.mxu0 %v503
      %v570 = vpop.f32.mrf.mxu0
      %v571 = vadd.f32 0.0, %v570
      %v572 = vpop.f32.mrf.mxu0
      %v573 = vpop.f32.mrf.mxu0
      %v574 = vadd.f32 0.0, %v573
      %v575 = vpop.f32.mrf.mxu0
      %576 = vmatprep.mubr.bf16.mxu0 0
      %577 = vmatmul.mubr.bf16.gmra.mxu0 %v506
      %v578 = vpop.f32.mrf.mxu0
      %v579 = vadd.f32 0.0, %v578
      %v580 = vpop.f32.mrf.mxu0
      %v581 = vpop.f32.mrf.mxu0
      %v582 = vadd.f32 0.0, %v581
      %v583 = vpop.f32.mrf.mxu0
      %584 = vmatprep.mubr.bf16.mxu0 0
      %585 = vmatmul.mubr.bf16.gmra.mxu0 %v509
      %v586 = vpop.f32.mrf.mxu0
      %v587 = vadd.f32 0.0, %v586
      %v588 = vpop.f32.mrf.mxu0
      %v589 = vpop.f32.mrf.mxu0
      %v590 = vadd.f32 0.0, %v589
      %v591 = vpop.f32.mrf.mxu0
      %592 = vmatprep.mubr.bf16.mxu0 0
      %593 = vmatmul.mubr.bf16.gmra.mxu0 %v512
      %v594 = vpop.f32.mrf.mxu0
      %v595 = vadd.f32 0.0, %v594
      %v596 = vpop.f32.mrf.mxu0
      %v597 = vpop.f32.mrf.mxu0
      %v598 = vadd.f32 0.0, %v597
      %v599 = vpop.f32.mrf.mxu0
      %600 = vmatprep.mubr.bf16.mxu0 0
      %601 = vmatmul.mubr.bf16.gmra.mxu0 %v515
      %v602 = vpop.f32.mrf.mxu0
      %v603 = vadd.f32 0.0, %v602
      %v604 = vpop.f32.mrf.mxu0
      %v605 = vpop.f32.mrf.mxu0
      %v606 = vpop.f32.mrf.mxu0
      %607 = vdwg.mxu0
      %v608 = vadd.f32 %v410, %v555
      %v609 = vadd.f32 %v413, %v558
      %v610 = vadd.f32 %v418, %v563
      %v611 = vadd.f32 %v421, %v566
      %v612 = vadd.f32 %v426, %v571
      %v613 = vadd.f32 %v429, %v574
      %v614 = vadd.f32 %v434, %v579
      %v615 = vadd.f32 %v437, %v582
      %v616 = vadd.f32 %v442, %v587
      %v617 = vadd.f32 %v445, %v590
      %v618 = vadd.f32 %v450, %v595
      %v619 = vadd.f32 %v453, %v598
      %v620 = vadd.f32 %v458, %v603
      %v621 = vld [vmem:[%s165 + $0xa] sm:$0xff]
      %v622 = vld [vmem:[%s165 + $0x12] sm:$0xff]
      %v623 = vld [vmem:[%s165 + $0x1a] sm:$0xff]
      %v624 = vld [vmem:[%s165 + $0x22] sm:$0xff]
      %v625 = vld [vmem:[%s165 + $0x2a] sm:$0xff]
      %v626 = vld [vmem:[%s165 + $0x32] sm:$0xff]
      %v627 = vld [vmem:[%s165 + $0x3a] sm:$0xff]
      %v628 = vld [vmem:[%s165 + $0x42] sm:$0xff]
      %v629 = vld [vmem:[%s165 + $0x4a] sm:$0xff]
      %v630 = vld [vmem:[%s165 + $0x52] sm:$0xff]
      %v631 = vld [vmem:[%s165 + $0x5a] sm:$0xff]
      %v632 = vld [vmem:[%s165 + $0x62] sm:$0xff]
      %v633 = vld [vmem:[%s165 + $0x6a] sm:$0xf]
      %v634 = vpack.c.bf16 %v622, %v621
      %v635 = vpack.c.bf16 %v624, %v623
      %v636 = vpack.c.bf16 %v626, %v625
      %v637 = vpack.c.bf16 %v628, %v627
      %v638 = vpack.c.bf16 %v630, %v629
      %v639 = vpack.c.bf16 %v632, %v631
      %v640 = vpack.c.bf16 %v633, %v633
      %s641 = scalar_lea.vmem %s1, 36
      %v642 = vld [vmem:[%s641] sm:$0xf]
      %v643 = vld [vmem:[%s641 + $0x4] sm:$0xf]
      %v644 = vld [vmem:[%s641 + $0x8] sm:$0xf]
      %v648 = vunpack.c.l.b16 %v642
      %v649 = vunpack.c.l.b16 %v643
      %v650 = vunpack.c.l.b16 %v644
      %v651 = vpack.c.b16 %v649, %v648
      %v652 = vpack.c.b16 %v650, %v650
      %v655 = vsel %vm228, %v634, 0
      %v658 = vsel %vm228, %v635, 0
      %v661 = vsel %vm228, %v636, 0
      %v664 = vsel %vm228, %v637, 0
      %v667 = vsel %vm228, %v638, 0
      %v670 = vsel %vm228, %v639, 0
      %v673 = vsel %vm228, %v640, 0
      %v676 = vsel %vm250, %v652, 0
      %678 = vmatprep.subr.bf16.mxu0 0
      %679 = vmatpush1.bf16.msra.mxu0 0
      %680 = vmatprep.subr.bf16.mxu0 0
      %681 = vmatpush1.bf16.msra.mxu0 0
      %682 = vmatprep.subr.bf16.mxu0 0
      %683 = vmatpush1.bf16.msra.mxu0 0
      %684 = vmatprep.subr.bf16.mxu0 0
      %685 = vmatpush1.bf16.msra.mxu0 0
      %686 = vmatprep.subr.bf16.mxu0 0
      %687 = vmatpush1.bf16.msra.mxu0 0
      %688 = vmatprep.subr.bf16.mxu0 0
      %689 = vmatpush1.bf16.msra.mxu0 0
      %690 = vmatprep.subr.bf16.mxu0 0
      %691 = vmatpush1.bf16.msra.mxu0 %v676
      %692 = vmatprep.subr.bf16.mxu0 0
      %693 = vmatpush1.bf16.msra.mxu0 %v651
      %694 = vmatprep.subr.bf16.mxu0 0
      %695 = vmatpush2.bf16.msra.mxu0 0
      %696 = vmatprep.subr.bf16.mxu0 0
      %697 = vmatpush2.bf16.msra.mxu0 0
      %698 = vmatprep.subr.bf16.mxu0 0
      %699 = vmatpush2.bf16.msra.mxu0 0
      %700 = vmatprep.subr.bf16.mxu0 0
      %701 = vmatpush2.bf16.msra.mxu0 0
      %702 = vmatprep.subr.bf16.mxu0 0
      %703 = vmatpush2.bf16.msra.mxu0 0
      %704 = vmatprep.subr.bf16.mxu0 0
      %705 = vmatpush2.bf16.msra.mxu0 0
      %706 = vmatprep.subr.bf16.mxu0 0
      %707 = vmatpush2.bf16.msra.mxu0 0
      %708 = vmatprep.subr.bf16.mxu0 0
      %709 = vmatpush2.bf16.msra.mxu0 0
      %710 = vmatprep.mubr.bf16.mxu0 0
      %711 = vmatmul.mubr.bf16.gmra.mxu0 %v655
      %v712 = vpop.f32.mrf.mxu0
      %v713 = vadd.f32 0.0, %v712
      %v714 = vpop.f32.mrf.mxu0
      %v715 = vpop.f32.mrf.mxu0
      %v716 = vadd.f32 0.0, %v715
      %v717 = vpop.f32.mrf.mxu0
      %718 = vmatprep.mubr.bf16.mxu0 0
      %719 = vmatmul.mubr.bf16.gmra.mxu0 %v658
      %v720 = vpop.f32.mrf.mxu0
      %v721 = vadd.f32 0.0, %v720
      %v722 = vpop.f32.mrf.mxu0
      %v723 = vpop.f32.mrf.mxu0
      %v724 = vadd.f32 0.0, %v723
      %v725 = vpop.f32.mrf.mxu0
      %726 = vmatprep.mubr.bf16.mxu0 0
      %727 = vmatmul.mubr.bf16.gmra.mxu0 %v661
      %v728 = vpop.f32.mrf.mxu0
      %v729 = vadd.f32 0.0, %v728
      %v730 = vpop.f32.mrf.mxu0
      %v731 = vpop.f32.mrf.mxu0
      %v732 = vadd.f32 0.0, %v731
      %v733 = vpop.f32.mrf.mxu0
      %734 = vmatprep.mubr.bf16.mxu0 0
      %735 = vmatmul.mubr.bf16.gmra.mxu0 %v664
      %v736 = vpop.f32.mrf.mxu0
      %v737 = vadd.f32 0.0, %v736
      %v738 = vpop.f32.mrf.mxu0
      %v739 = vpop.f32.mrf.mxu0
      %v740 = vadd.f32 0.0, %v739
      %v741 = vpop.f32.mrf.mxu0
      %742 = vmatprep.mubr.bf16.mxu0 0
      %743 = vmatmul.mubr.bf16.gmra.mxu0 %v667
      %v744 = vpop.f32.mrf.mxu0
      %v745 = vadd.f32 0.0, %v744
      %v746 = vpop.f32.mrf.mxu0
      %v747 = vpop.f32.mrf.mxu0
      %v748 = vadd.f32 0.0, %v747
      %v749 = vpop.f32.mrf.mxu0
      %750 = vmatprep.mubr.bf16.mxu0 0
      %751 = vmatmul.mubr.bf16.gmra.mxu0 %v670
      %v752 = vpop.f32.mrf.mxu0
      %v753 = vadd.f32 0.0, %v752
      %v754 = vpop.f32.mrf.mxu0
      %v755 = vpop.f32.mrf.mxu0
      %v756 = vadd.f32 0.0, %v755
      %v757 = vpop.f32.mrf.mxu0
      %758 = vmatprep.mubr.bf16.mxu0 0
      %759 = vmatmul.mubr.bf16.gmra.mxu0 %v673
      %v760 = vpop.f32.mrf.mxu0
      %v761 = vadd.f32 0.0, %v760
      %v762 = vpop.f32.mrf.mxu0
      %v763 = vpop.f32.mrf.mxu0
      %v764 = vpop.f32.mrf.mxu0
      %765 = vdwg.mxu0
      %v766 = vadd.f32 %v608, %v713
      %v767 = vadd.f32 %v609, %v716
      %v768 = vadd.f32 %v610, %v721
      %v769 = vadd.f32 %v611, %v724
      %v770 = vadd.f32 %v612, %v729
      %v771 = vadd.f32 %v613, %v732
      %v772 = vadd.f32 %v614, %v737
      %v773 = vadd.f32 %v615, %v740
      %v774 = vadd.f32 %v616, %v745
      %v775 = vadd.f32 %v617, %v748
      %v776 = vadd.f32 %v618, %v753
      %v777 = vadd.f32 %v619, %v756
      %v778 = vadd.f32 %v620, %v761
      %v779 = vld [vmem:[%s165 + $0xb] sm:$0xff]
      %v780 = vld [vmem:[%s165 + $0x13] sm:$0xff]
      %v781 = vld [vmem:[%s165 + $0x1b] sm:$0xff]
      %v782 = vld [vmem:[%s165 + $0x23] sm:$0xff]
      %v783 = vld [vmem:[%s165 + $0x2b] sm:$0xff]
      %v784 = vld [vmem:[%s165 + $0x33] sm:$0xff]
      %v785 = vld [vmem:[%s165 + $0x3b] sm:$0xff]
      %v786 = vld [vmem:[%s165 + $0x43] sm:$0xff]
      %v787 = vld [vmem:[%s165 + $0x4b] sm:$0xff]
      %v788 = vld [vmem:[%s165 + $0x53] sm:$0xff]
      %v789 = vld [vmem:[%s165 + $0x5b] sm:$0xff]
      %v790 = vld [vmem:[%s165 + $0x63] sm:$0xff]
      %v791 = vld [vmem:[%s165 + $0x6b] sm:$0xf]
      %v792 = vpack.c.bf16 %v780, %v779
      %v793 = vpack.c.bf16 %v782, %v781
      %v794 = vpack.c.bf16 %v784, %v783
      %v795 = vpack.c.bf16 %v786, %v785
      %v796 = vpack.c.bf16 %v788, %v787
      %v797 = vpack.c.bf16 %v790, %v789
      %v798 = vpack.c.bf16 %v791, %v791
      %s799 = scalar_lea.vmem %s1, 48
      %v800 = vld [vmem:[%s799] sm:$0xf]
      %v801 = vld [vmem:[%s799 + $0x4] sm:$0xf]
      %v802 = vld [vmem:[%s799 + $0x8] sm:$0xf]
      %v806 = vunpack.c.l.b16 %v800
      %v807 = vunpack.c.l.b16 %v801
      %v808 = vunpack.c.l.b16 %v802
      %v809 = vpack.c.b16 %v807, %v806
      %v810 = vpack.c.b16 %v808, %v808
      %v813 = vsel %vm228, %v792, 0
      %v816 = vsel %vm228, %v793, 0
      %v819 = vsel %vm228, %v794, 0
      %v822 = vsel %vm228, %v795, 0
      %v825 = vsel %vm228, %v796, 0
      %v828 = vsel %vm228, %v797, 0
      %v831 = vsel %vm228, %v798, 0
      %v834 = vsel %vm250, %v810, 0
      %836 = vmatprep.subr.bf16.mxu0 0
      %837 = vmatpush1.bf16.msra.mxu0 0
      %838 = vmatprep.subr.bf16.mxu0 0
      %839 = vmatpush1.bf16.msra.mxu0 0
      %840 = vmatprep.subr.bf16.mxu0 0
      %841 = vmatpush1.bf16.msra.mxu0 0
      %842 = vmatprep.subr.bf16.mxu0 0
      %843 = vmatpush1.bf16.msra.mxu0 0
      %844 = vmatprep.subr.bf16.mxu0 0
      %845 = vmatpush1.bf16.msra.mxu0 0
      %846 = vmatprep.subr.bf16.mxu0 0
      %847 = vmatpush1.bf16.msra.mxu0 0
      %848 = vmatprep.subr.bf16.mxu0 0
      %849 = vmatpush1.bf16.msra.mxu0 %v834
      %850 = vmatprep.subr.bf16.mxu0 0
      %851 = vmatpush1.bf16.msra.mxu0 %v809
      %852 = vmatprep.subr.bf16.mxu0 0
      %853 = vmatpush2.bf16.msra.mxu0 0
      %854 = vmatprep.subr.bf16.mxu0 0
      %855 = vmatpush2.bf16.msra.mxu0 0
      %856 = vmatprep.subr.bf16.mxu0 0
      %857 = vmatpush2.bf16.msra.mxu0 0
      %858 = vmatprep.subr.bf16.mxu0 0
      %859 = vmatpush2.bf16.msra.mxu0 0
      %860 = vmatprep.subr.bf16.mxu0 0
      %861 = vmatpush2.bf16.msra.mxu0 0
      %862 = vmatprep.subr.bf16.mxu0 0
      %863 = vmatpush2.bf16.msra.mxu0 0
      %864 = vmatprep.subr.bf16.mxu0 0
      %865 = vmatpush2.bf16.msra.mxu0 0
      %866 = vmatprep.subr.bf16.mxu0 0
      %867 = vmatpush2.bf16.msra.mxu0 0
      %868 = vmatprep.mubr.bf16.mxu0 0
      %869 = vmatmul.mubr.bf16.gmra.mxu0 %v813
      %v870 = vpop.f32.mrf.mxu0
      %v871 = vadd.f32 0.0, %v870
      %v872 = vpop.f32.mrf.mxu0
      %v873 = vpop.f32.mrf.mxu0
      %v874 = vadd.f32 0.0, %v873
      %v875 = vpop.f32.mrf.mxu0
      %876 = vmatprep.mubr.bf16.mxu0 0
      %877 = vmatmul.mubr.bf16.gmra.mxu0 %v816
      %v878 = vpop.f32.mrf.mxu0
      %v879 = vadd.f32 0.0, %v878
      %v880 = vpop.f32.mrf.mxu0
      %v881 = vpop.f32.mrf.mxu0
      %v882 = vadd.f32 0.0, %v881
      %v883 = vpop.f32.mrf.mxu0
      %884 = vmatprep.mubr.bf16.mxu0 0
      %885 = vmatmul.mubr.bf16.gmra.mxu0 %v819
      %v886 = vpop.f32.mrf.mxu0
      %v887 = vadd.f32 0.0, %v886
      %v888 = vpop.f32.mrf.mxu0
      %v889 = vpop.f32.mrf.mxu0
      %v890 = vadd.f32 0.0, %v889
      %v891 = vpop.f32.mrf.mxu0
      %892 = vmatprep.mubr.bf16.mxu0 0
      %893 = vmatmul.mubr.bf16.gmra.mxu0 %v822
      %v894 = vpop.f32.mrf.mxu0
      %v895 = vadd.f32 0.0, %v894
      %v896 = vpop.f32.mrf.mxu0
      %v897 = vpop.f32.mrf.mxu0
      %v898 = vadd.f32 0.0, %v897
      %v899 = vpop.f32.mrf.mxu0
      %900 = vmatprep.mubr.bf16.mxu0 0
      %901 = vmatmul.mubr.bf16.gmra.mxu0 %v825
      %v902 = vpop.f32.mrf.mxu0
      %v903 = vadd.f32 0.0, %v902
      %v904 = vpop.f32.mrf.mxu0
      %v905 = vpop.f32.mrf.mxu0
      %v906 = vadd.f32 0.0, %v905
      %v907 = vpop.f32.mrf.mxu0
      %908 = vmatprep.mubr.bf16.mxu0 0
      %909 = vmatmul.mubr.bf16.gmra.mxu0 %v828
      %v910 = vpop.f32.mrf.mxu0
      %v911 = vadd.f32 0.0, %v910
      %v912 = vpop.f32.mrf.mxu0
      %v913 = vpop.f32.mrf.mxu0
      %v914 = vadd.f32 0.0, %v913
      %v915 = vpop.f32.mrf.mxu0
      %916 = vmatprep.mubr.bf16.mxu0 0
      %917 = vmatmul.mubr.bf16.gmra.mxu0 %v831
      %v918 = vpop.f32.mrf.mxu0
      %v919 = vadd.f32 0.0, %v918
      %v920 = vpop.f32.mrf.mxu0
      %v921 = vpop.f32.mrf.mxu0
      %v922 = vpop.f32.mrf.mxu0
      %923 = vdwg.mxu0
      %v924 = vadd.f32 %v766, %v871
      %v925 = vadd.f32 %v767, %v874
      %v926 = vadd.f32 %v768, %v879
      %v927 = vadd.f32 %v769, %v882
      %v928 = vadd.f32 %v770, %v887
      %v929 = vadd.f32 %v771, %v890
      %v930 = vadd.f32 %v772, %v895
      %v931 = vadd.f32 %v773, %v898
      %v932 = vadd.f32 %v774, %v903
      %v933 = vadd.f32 %v775, %v906
      %v934 = vadd.f32 %v776, %v911
      %v935 = vadd.f32 %v777, %v914
      %v936 = vadd.f32 %v778, %v919
      %v937 = vld [vmem:[%s165 + $0xc] sm:$0xff]
      %v938 = vld [vmem:[%s165 + $0x14] sm:$0xff]
      %v939 = vld [vmem:[%s165 + $0x1c] sm:$0xff]
      %v940 = vld [vmem:[%s165 + $0x24] sm:$0xff]
      %v941 = vld [vmem:[%s165 + $0x2c] sm:$0xff]
      %v942 = vld [vmem:[%s165 + $0x34] sm:$0xff]
      %v943 = vld [vmem:[%s165 + $0x3c] sm:$0xff]
      %v944 = vld [vmem:[%s165 + $0x44] sm:$0xff]
      %v945 = vld [vmem:[%s165 + $0x4c] sm:$0xff]
      %v946 = vld [vmem:[%s165 + $0x54] sm:$0xff]
      %v947 = vld [vmem:[%s165 + $0x5c] sm:$0xff]
      %v948 = vld [vmem:[%s165 + $0x64] sm:$0xff]
      %v949 = vld [vmem:[%s165 + $0x6c] sm:$0xf]
      %v950 = vpack.c.bf16 %v938, %v937
      %v951 = vpack.c.bf16 %v940, %v939
      %v952 = vpack.c.bf16 %v942, %v941
      %v953 = vpack.c.bf16 %v944, %v943
      %v954 = vpack.c.bf16 %v946, %v945
      %v955 = vpack.c.bf16 %v948, %v947
      %v956 = vpack.c.bf16 %v949, %v949
      %s957 = scalar_lea.vmem %s1, 60
      %v958 = vld [vmem:[%s957] sm:$0xf]
      %v959 = vld [vmem:[%s957 + $0x4] sm:$0xf]
      %v960 = vld [vmem:[%s957 + $0x8] sm:$0xf]
      %v964 = vunpack.c.l.b16 %v958
      %v965 = vunpack.c.l.b16 %v959
      %v966 = vunpack.c.l.b16 %v960
      %v967 = vpack.c.b16 %v965, %v964
      %v968 = vpack.c.b16 %v966, %v966
      %v971 = vsel %vm228, %v950, 0
      %v974 = vsel %vm228, %v951, 0
      %v977 = vsel %vm228, %v952, 0
      %v980 = vsel %vm228, %v953, 0
      %v983 = vsel %vm228, %v954, 0
      %v986 = vsel %vm228, %v955, 0
      %v989 = vsel %vm228, %v956, 0
      %v992 = vsel %vm250, %v968, 0
      %994 = vmatprep.subr.bf16.mxu0 0
      %995 = vmatpush1.bf16.msra.mxu0 0
      %996 = vmatprep.subr.bf16.mxu0 0
      %997 = vmatpush1.bf16.msra.mxu0 0
      %998 = vmatprep.subr.bf16.mxu0 0
      %999 = vmatpush1.bf16.msra.mxu0 0
      %1000 = vmatprep.subr.bf16.mxu0 0
      %1001 = vmatpush1.bf16.msra.mxu0 0
      %1002 = vmatprep.subr.bf16.mxu0 0
      %1003 = vmatpush1.bf16.msra.mxu0 0
      %1004 = vmatprep.subr.bf16.mxu0 0
      %1005 = vmatpush1.bf16.msra.mxu0 0
      %1006 = vmatprep.subr.bf16.mxu0 0
      %1007 = vmatpush1.bf16.msra.mxu0 %v992
      %1008 = vmatprep.subr.bf16.mxu0 0
      %1009 = vmatpush1.bf16.msra.mxu0 %v967
      %1010 = vmatprep.subr.bf16.mxu0 0
      %1011 = vmatpush2.bf16.msra.mxu0 0
      %1012 = vmatprep.subr.bf16.mxu0 0
      %1013 = vmatpush2.bf16.msra.mxu0 0
      %1014 = vmatprep.subr.bf16.mxu0 0
      %1015 = vmatpush2.bf16.msra.mxu0 0
      %1016 = vmatprep.subr.bf16.mxu0 0
      %1017 = vmatpush2.bf16.msra.mxu0 0
      %1018 = vmatprep.subr.bf16.mxu0 0
      %1019 = vmatpush2.bf16.msra.mxu0 0
      %1020 = vmatprep.subr.bf16.mxu0 0
      %1021 = vmatpush2.bf16.msra.mxu0 0
      %1022 = vmatprep.subr.bf16.mxu0 0
      %1023 = vmatpush2.bf16.msra.mxu0 0
      %1024 = vmatprep.subr.bf16.mxu0 0
      %1025 = vmatpush2.bf16.msra.mxu0 0
      %1026 = vmatprep.mubr.bf16.mxu0 0
      %1027 = vmatmul.mubr.bf16.gmra.mxu0 %v971
      %v1028 = vpop.f32.mrf.mxu0
      %v1029 = vadd.f32 0.0, %v1028
      %v1030 = vpop.f32.mrf.mxu0
      %v1031 = vpop.f32.mrf.mxu0
      %v1032 = vadd.f32 0.0, %v1031
      %v1033 = vpop.f32.mrf.mxu0
      %1034 = vmatprep.mubr.bf16.mxu0 0
      %1035 = vmatmul.mubr.bf16.gmra.mxu0 %v974
      %v1036 = vpop.f32.mrf.mxu0
      %v1037 = vadd.f32 0.0, %v1036
      %v1038 = vpop.f32.mrf.mxu0
      %v1039 = vpop.f32.mrf.mxu0
      %v1040 = vadd.f32 0.0, %v1039
      %v1041 = vpop.f32.mrf.mxu0
      %1042 = vmatprep.mubr.bf16.mxu0 0
      %1043 = vmatmul.mubr.bf16.gmra.mxu0 %v977
      %v1044 = vpop.f32.mrf.mxu0
      %v1045 = vadd.f32 0.0, %v1044
      %v1046 = vpop.f32.mrf.mxu0
      %v1047 = vpop.f32.mrf.mxu0
      %v1048 = vadd.f32 0.0, %v1047
      %v1049 = vpop.f32.mrf.mxu0
      %1050 = vmatprep.mubr.bf16.mxu0 0
      %1051 = vmatmul.mubr.bf16.gmra.mxu0 %v980
      %v1052 = vpop.f32.mrf.mxu0
      %v1053 = vadd.f32 0.0, %v1052
      %v1054 = vpop.f32.mrf.mxu0
      %v1055 = vpop.f32.mrf.mxu0
      %v1056 = vadd.f32 0.0, %v1055
      %v1057 = vpop.f32.mrf.mxu0
      %1058 = vmatprep.mubr.bf16.mxu0 0
      %1059 = vmatmul.mubr.bf16.gmra.mxu0 %v983
      %v1060 = vpop.f32.mrf.mxu0
      %v1061 = vadd.f32 0.0, %v1060
      %v1062 = vpop.f32.mrf.mxu0
      %v1063 = vpop.f32.mrf.mxu0
      %v1064 = vadd.f32 0.0, %v1063
      %v1065 = vpop.f32.mrf.mxu0
      %1066 = vmatprep.mubr.bf16.mxu0 0
      %1067 = vmatmul.mubr.bf16.gmra.mxu0 %v986
      %v1068 = vpop.f32.mrf.mxu0
      %v1069 = vadd.f32 0.0, %v1068
      %v1070 = vpop.f32.mrf.mxu0
      %v1071 = vpop.f32.mrf.mxu0
      %v1072 = vadd.f32 0.0, %v1071
      %v1073 = vpop.f32.mrf.mxu0
      %1074 = vmatprep.mubr.bf16.mxu0 0
      %1075 = vmatmul.mubr.bf16.gmra.mxu0 %v989
      %v1076 = vpop.f32.mrf.mxu0
      %v1077 = vadd.f32 0.0, %v1076
      %v1078 = vpop.f32.mrf.mxu0
      %v1079 = vpop.f32.mrf.mxu0
      %v1080 = vpop.f32.mrf.mxu0
      %1081 = vdwg.mxu0
      %v1082 = vadd.f32 %v924, %v1029
      %v1083 = vadd.f32 %v925, %v1032
      %v1084 = vadd.f32 %v926, %v1037
      %v1085 = vadd.f32 %v927, %v1040
      %v1086 = vadd.f32 %v928, %v1045
      %v1087 = vadd.f32 %v929, %v1048
      %v1088 = vadd.f32 %v930, %v1053
      %v1089 = vadd.f32 %v931, %v1056
      %v1090 = vadd.f32 %v932, %v1061
      %v1091 = vadd.f32 %v933, %v1064
      %v1092 = vadd.f32 %v934, %v1069
      %v1093 = vadd.f32 %v935, %v1072
      %v1094 = vadd.f32 %v936, %v1077
      %v1095 = vld [vmem:[%s165 + $0x14] sm:$0xff]
      %v1096 = vld [vmem:[%s165 + $0x1c] sm:$0xff]
      %v1097 = vld [vmem:[%s165 + $0x24] sm:$0xff]
      %v1098 = vld [vmem:[%s165 + $0x2c] sm:$0xff]
      %v1099 = vld [vmem:[%s165 + $0x34] sm:$0xff]
      %v1100 = vld [vmem:[%s165 + $0x3c] sm:$0xff]
      %v1101 = vld [vmem:[%s165 + $0x44] sm:$0xff]
      %v1102 = vld [vmem:[%s165 + $0x4c] sm:$0xff]
      %v1103 = vld [vmem:[%s165 + $0x54] sm:$0xff]
      %v1104 = vld [vmem:[%s165 + $0x5c] sm:$0xff]
      %v1105 = vld [vmem:[%s165 + $0x64] sm:$0xff]
      %v1106 = vld [vmem:[%s165 + $0x6c] sm:$0xff]
      %v1107 = vld [vmem:[%s165 + $0x74] sm:$0xf]
      %v1108 = vpack.c.bf16 %v1096, %v1095
      %v1109 = vpack.c.bf16 %v1098, %v1097
      %v1110 = vpack.c.bf16 %v1100, %v1099
      %v1111 = vpack.c.bf16 %v1102, %v1101
      %v1112 = vpack.c.bf16 %v1104, %v1103
      %v1113 = vpack.c.bf16 %v1106, %v1105
      %v1114 = vpack.c.bf16 %v1107, %v1107
      %s1115 = scalar_lea.vmem %s1, 72
      %v1116 = vld [vmem:[%s1115] sm:$0xf]
      %v1117 = vld [vmem:[%s1115 + $0x4] sm:$0xf]
      %v1118 = vld [vmem:[%s1115 + $0x8] sm:$0xf]
      %v1122 = vunpack.c.l.b16 %v1116
      %v1123 = vunpack.c.l.b16 %v1117
      %v1124 = vunpack.c.l.b16 %v1118
      %v1125 = vpack.c.b16 %v1123, %v1122
      %v1126 = vpack.c.b16 %v1124, %v1124
      %v1129 = vsel %vm228, %v1108, 0
      %v1132 = vsel %vm228, %v1109, 0
      %v1135 = vsel %vm228, %v1110, 0
      %v1138 = vsel %vm228, %v1111, 0
      %v1141 = vsel %vm228, %v1112, 0
      %v1144 = vsel %vm228, %v1113, 0
      %v1147 = vsel %vm228, %v1114, 0
      %v1150 = vsel %vm250, %v1126, 0
      %1152 = vmatprep.subr.bf16.mxu0 0
      %1153 = vmatpush1.bf16.msra.mxu0 0
      %1154 = vmatprep.subr.bf16.mxu0 0
      %1155 = vmatpush1.bf16.msra.mxu0 0
      %1156 = vmatprep.subr.bf16.mxu0 0
      %1157 = vmatpush1.bf16.msra.mxu0 0
      %1158 = vmatprep.subr.bf16.mxu0 0
      %1159 = vmatpush1.bf16.msra.mxu0 0
      %1160 = vmatprep.subr.bf16.mxu0 0
      %1161 = vmatpush1.bf16.msra.mxu0 0
      %1162 = vmatprep.subr.bf16.mxu0 0
      %1163 = vmatpush1.bf16.msra.mxu0 0
      %1164 = vmatprep.subr.bf16.mxu0 0
      %1165 = vmatpush1.bf16.msra.mxu0 %v1150
      %1166 = vmatprep.subr.bf16.mxu0 0
      %1167 = vmatpush1.bf16.msra.mxu0 %v1125
      %1168 = vmatprep.subr.bf16.mxu0 0
      %1169 = vmatpush2.bf16.msra.mxu0 0
      %1170 = vmatprep.subr.bf16.mxu0 0
      %1171 = vmatpush2.bf16.msra.mxu0 0
      %1172 = vmatprep.subr.bf16.mxu0 0
      %1173 = vmatpush2.bf16.msra.mxu0 0
      %1174 = vmatprep.subr.bf16.mxu0 0
      %1175 = vmatpush2.bf16.msra.mxu0 0
      %1176 = vmatprep.subr.bf16.mxu0 0
      %1177 = vmatpush2.bf16.msra.mxu0 0
      %1178 = vmatprep.subr.bf16.mxu0 0
      %1179 = vmatpush2.bf16.msra.mxu0 0
      %1180 = vmatprep.subr.bf16.mxu0 0
      %1181 = vmatpush2.bf16.msra.mxu0 0
      %1182 = vmatprep.subr.bf16.mxu0 0
      %1183 = vmatpush2.bf16.msra.mxu0 0
      %1184 = vmatprep.mubr.bf16.mxu0 0
      %1185 = vmatmul.mubr.bf16.gmra.mxu0 %v1129
      %v1186 = vpop.f32.mrf.mxu0
      %v1187 = vadd.f32 0.0, %v1186
      %v1188 = vpop.f32.mrf.mxu0
      %v1189 = vpop.f32.mrf.mxu0
      %v1190 = vadd.f32 0.0, %v1189
      %v1191 = vpop.f32.mrf.mxu0
      %1192 = vmatprep.mubr.bf16.mxu0 0
      %1193 = vmatmul.mubr.bf16.gmra.mxu0 %v1132
      %v1194 = vpop.f32.mrf.mxu0
      %v1195 = vadd.f32 0.0, %v1194
      %v1196 = vpop.f32.mrf.mxu0
      %v1197 = vpop.f32.mrf.mxu0
      %v1198 = vadd.f32 0.0, %v1197
      %v1199 = vpop.f32.mrf.mxu0
      %1200 = vmatprep.mubr.bf16.mxu0 0
      %1201 = vmatmul.mubr.bf16.gmra.mxu0 %v1135
      %v1202 = vpop.f32.mrf.mxu0
      %v1203 = vadd.f32 0.0, %v1202
      %v1204 = vpop.f32.mrf.mxu0
      %v1205 = vpop.f32.mrf.mxu0
      %v1206 = vadd.f32 0.0, %v1205
      %v1207 = vpop.f32.mrf.mxu0
      %1208 = vmatprep.mubr.bf16.mxu0 0
      %1209 = vmatmul.mubr.bf16.gmra.mxu0 %v1138
      %v1210 = vpop.f32.mrf.mxu0
      %v1211 = vadd.f32 0.0, %v1210
      %v1212 = vpop.f32.mrf.mxu0
      %v1213 = vpop.f32.mrf.mxu0
      %v1214 = vadd.f32 0.0, %v1213
      %v1215 = vpop.f32.mrf.mxu0
      %1216 = vmatprep.mubr.bf16.mxu0 0
      %1217 = vmatmul.mubr.bf16.gmra.mxu0 %v1141
      %v1218 = vpop.f32.mrf.mxu0
      %v1219 = vadd.f32 0.0, %v1218
      %v1220 = vpop.f32.mrf.mxu0
      %v1221 = vpop.f32.mrf.mxu0
      %v1222 = vadd.f32 0.0, %v1221
      %v1223 = vpop.f32.mrf.mxu0
      %1224 = vmatprep.mubr.bf16.mxu0 0
      %1225 = vmatmul.mubr.bf16.gmra.mxu0 %v1144
      %v1226 = vpop.f32.mrf.mxu0
      %v1227 = vadd.f32 0.0, %v1226
      %v1228 = vpop.f32.mrf.mxu0
      %v1229 = vpop.f32.mrf.mxu0
      %v1230 = vadd.f32 0.0, %v1229
      %v1231 = vpop.f32.mrf.mxu0
      %1232 = vmatprep.mubr.bf16.mxu0 0
      %1233 = vmatmul.mubr.bf16.gmra.mxu0 %v1147
      %v1234 = vpop.f32.mrf.mxu0
      %v1235 = vadd.f32 0.0, %v1234
      %v1236 = vpop.f32.mrf.mxu0
      %v1237 = vpop.f32.mrf.mxu0
      %v1238 = vpop.f32.mrf.mxu0
      %1239 = vdwg.mxu0
      %v1240 = vadd.f32 %v1082, %v1187
      %v1241 = vadd.f32 %v1083, %v1190
      %v1242 = vadd.f32 %v1084, %v1195
      %v1243 = vadd.f32 %v1085, %v1198
      %v1244 = vadd.f32 %v1086, %v1203
      %v1245 = vadd.f32 %v1087, %v1206
      %v1246 = vadd.f32 %v1088, %v1211
      %v1247 = vadd.f32 %v1089, %v1214
      %v1248 = vadd.f32 %v1090, %v1219
      %v1249 = vadd.f32 %v1091, %v1222
      %v1250 = vadd.f32 %v1092, %v1227
      %v1251 = vadd.f32 %v1093, %v1230
      %v1252 = vadd.f32 %v1094, %v1235
      %v1253 = vld [vmem:[%s165 + $0x15] sm:$0xff]
      %v1254 = vld [vmem:[%s165 + $0x1d] sm:$0xff]
      %v1255 = vld [vmem:[%s165 + $0x25] sm:$0xff]
      %v1256 = vld [vmem:[%s165 + $0x2d] sm:$0xff]
      %v1257 = vld [vmem:[%s165 + $0x35] sm:$0xff]
      %v1258 = vld [vmem:[%s165 + $0x3d] sm:$0xff]
      %v1259 = vld [vmem:[%s165 + $0x45] sm:$0xff]
      %v1260 = vld [vmem:[%s165 + $0x4d] sm:$0xff]
      %v1261 = vld [vmem:[%s165 + $0x55] sm:$0xff]
      %v1262 = vld [vmem:[%s165 + $0x5d] sm:$0xff]
      %v1263 = vld [vmem:[%s165 + $0x65] sm:$0xff]
      %v1264 = vld [vmem:[%s165 + $0x6d] sm:$0xff]
      %v1265 = vld [vmem:[%s165 + $0x75] sm:$0xf]
      %v1266 = vpack.c.bf16 %v1254, %v1253
      %v1267 = vpack.c.bf16 %v1256, %v1255
      %v1268 = vpack.c.bf16 %v1258, %v1257
      %v1269 = vpack.c.bf16 %v1260, %v1259
      %v1270 = vpack.c.bf16 %v1262, %v1261
      %v1271 = vpack.c.bf16 %v1264, %v1263
      %v1272 = vpack.c.bf16 %v1265, %v1265
      %s1273 = scalar_lea.vmem %s1, 84
      %v1274 = vld [vmem:[%s1273] sm:$0xf]
      %v1275 = vld [vmem:[%s1273 + $0x4] sm:$0xf]
      %v1276 = vld [vmem:[%s1273 + $0x8] sm:$0xf]
      %v1280 = vunpack.c.l.b16 %v1274
      %v1281 = vunpack.c.l.b16 %v1275
      %v1282 = vunpack.c.l.b16 %v1276
      %v1283 = vpack.c.b16 %v1281, %v1280
      %v1284 = vpack.c.b16 %v1282, %v1282
      %v1287 = vsel %vm228, %v1266, 0
      %v1290 = vsel %vm228, %v1267, 0
      %v1293 = vsel %vm228, %v1268, 0
      %v1296 = vsel %vm228, %v1269, 0
      %v1299 = vsel %vm228, %v1270, 0
      %v1302 = vsel %vm228, %v1271, 0
      %v1305 = vsel %vm228, %v1272, 0
      %v1308 = vsel %vm250, %v1284, 0
      %1310 = vmatprep.subr.bf16.mxu0 0
      %1311 = vmatpush1.bf16.msra.mxu0 0
      %1312 = vmatprep.subr.bf16.mxu0 0
      %1313 = vmatpush1.bf16.msra.mxu0 0
      %1314 = vmatprep.subr.bf16.mxu0 0
      %1315 = vmatpush1.bf16.msra.mxu0 0
      %1316 = vmatprep.subr.bf16.mxu0 0
      %1317 = vmatpush1.bf16.msra.mxu0 0
      %1318 = vmatprep.subr.bf16.mxu0 0
      %1319 = vmatpush1.bf16.msra.mxu0 0
      %1320 = vmatprep.subr.bf16.mxu0 0
      %1321 = vmatpush1.bf16.msra.mxu0 0
      %1322 = vmatprep.subr.bf16.mxu0 0
      %1323 = vmatpush1.bf16.msra.mxu0 %v1308
      %1324 = vmatprep.subr.bf16.mxu0 0
      %1325 = vmatpush1.bf16.msra.mxu0 %v1283
      %1326 = vmatprep.subr.bf16.mxu0 0
      %1327 = vmatpush2.bf16.msra.mxu0 0
      %1328 = vmatprep.subr.bf16.mxu0 0
      %1329 = vmatpush2.bf16.msra.mxu0 0
      %1330 = vmatprep.subr.bf16.mxu0 0
      %1331 = vmatpush2.bf16.msra.mxu0 0
      %1332 = vmatprep.subr.bf16.mxu0 0
      %1333 = vmatpush2.bf16.msra.mxu0 0
      %1334 = vmatprep.subr.bf16.mxu0 0
      %1335 = vmatpush2.bf16.msra.mxu0 0
      %1336 = vmatprep.subr.bf16.mxu0 0
      %1337 = vmatpush2.bf16.msra.mxu0 0
      %1338 = vmatprep.subr.bf16.mxu0 0
      %1339 = vmatpush2.bf16.msra.mxu0 0
      %1340 = vmatprep.subr.bf16.mxu0 0
      %1341 = vmatpush2.bf16.msra.mxu0 0
      %1342 = vmatprep.mubr.bf16.mxu0 0
      %1343 = vmatmul.mubr.bf16.gmra.mxu0 %v1287
      %v1344 = vpop.f32.mrf.mxu0
      %v1345 = vadd.f32 0.0, %v1344
      %v1346 = vpop.f32.mrf.mxu0
      %v1347 = vpop.f32.mrf.mxu0
      %v1348 = vadd.f32 0.0, %v1347
      %v1349 = vpop.f32.mrf.mxu0
      %1350 = vmatprep.mubr.bf16.mxu0 0
      %1351 = vmatmul.mubr.bf16.gmra.mxu0 %v1290
      %v1352 = vpop.f32.mrf.mxu0
      %v1353 = vadd.f32 0.0, %v1352
      %v1354 = vpop.f32.mrf.mxu0
      %v1355 = vpop.f32.mrf.mxu0
      %v1356 = vadd.f32 0.0, %v1355
      %v1357 = vpop.f32.mrf.mxu0
      %1358 = vmatprep.mubr.bf16.mxu0 0
      %1359 = vmatmul.mubr.bf16.gmra.mxu0 %v1293
      %v1360 = vpop.f32.mrf.mxu0
      %v1361 = vadd.f32 0.0, %v1360
      %v1362 = vpop.f32.mrf.mxu0
      %v1363 = vpop.f32.mrf.mxu0
      %v1364 = vadd.f32 0.0, %v1363
      %v1365 = vpop.f32.mrf.mxu0
      %1366 = vmatprep.mubr.bf16.mxu0 0
      %1367 = vmatmul.mubr.bf16.gmra.mxu0 %v1296
      %v1368 = vpop.f32.mrf.mxu0
      %v1369 = vadd.f32 0.0, %v1368
      %v1370 = vpop.f32.mrf.mxu0
      %v1371 = vpop.f32.mrf.mxu0
      %v1372 = vadd.f32 0.0, %v1371
      %v1373 = vpop.f32.mrf.mxu0
      %1374 = vmatprep.mubr.bf16.mxu0 0
      %1375 = vmatmul.mubr.bf16.gmra.mxu0 %v1299
      %v1376 = vpop.f32.mrf.mxu0
      %v1377 = vadd.f32 0.0, %v1376
      %v1378 = vpop.f32.mrf.mxu0
      %v1379 = vpop.f32.mrf.mxu0
      %v1380 = vadd.f32 0.0, %v1379
      %v1381 = vpop.f32.mrf.mxu0
      %1382 = vmatprep.mubr.bf16.mxu0 0
      %1383 = vmatmul.mubr.bf16.gmra.mxu0 %v1302
      %v1384 = vpop.f32.mrf.mxu0
      %v1385 = vadd.f32 0.0, %v1384
      %v1386 = vpop.f32.mrf.mxu0
      %v1387 = vpop.f32.mrf.mxu0
      %v1388 = vadd.f32 0.0, %v1387
      %v1389 = vpop.f32.mrf.mxu0
      %1390 = vmatprep.mubr.bf16.mxu0 0
      %1391 = vmatmul.mubr.bf16.gmra.mxu0 %v1305
      %v1392 = vpop.f32.mrf.mxu0
      %v1393 = vadd.f32 0.0, %v1392
      %v1394 = vpop.f32.mrf.mxu0
      %v1395 = vpop.f32.mrf.mxu0
      %v1396 = vpop.f32.mrf.mxu0
      %1397 = vdwg.mxu0
      %v1398 = vadd.f32 %v1240, %v1345
      %v1399 = vadd.f32 %v1241, %v1348
      %v1400 = vadd.f32 %v1242, %v1353
      %v1401 = vadd.f32 %v1243, %v1356
      %v1402 = vadd.f32 %v1244, %v1361
      %v1403 = vadd.f32 %v1245, %v1364
      %v1404 = vadd.f32 %v1246, %v1369
      %v1405 = vadd.f32 %v1247, %v1372
      %v1406 = vadd.f32 %v1248, %v1377
      %v1407 = vadd.f32 %v1249, %v1380
      %v1408 = vadd.f32 %v1250, %v1385
      %v1409 = vadd.f32 %v1251, %v1388
      %v1410 = vadd.f32 %v1252, %v1393
      %v1411 = vld [vmem:[%s165 + $0x16] sm:$0xff]
      %v1412 = vld [vmem:[%s165 + $0x1e] sm:$0xff]
      %v1413 = vld [vmem:[%s165 + $0x26] sm:$0xff]
      %v1414 = vld [vmem:[%s165 + $0x2e] sm:$0xff]
      %v1415 = vld [vmem:[%s165 + $0x36] sm:$0xff]
      %v1416 = vld [vmem:[%s165 + $0x3e] sm:$0xff]
      %v1417 = vld [vmem:[%s165 + $0x46] sm:$0xff]
      %v1418 = vld [vmem:[%s165 + $0x4e] sm:$0xff]
      %v1419 = vld [vmem:[%s165 + $0x56] sm:$0xff]
      %v1420 = vld [vmem:[%s165 + $0x5e] sm:$0xff]
      %v1421 = vld [vmem:[%s165 + $0x66] sm:$0xff]
      %v1422 = vld [vmem:[%s165 + $0x6e] sm:$0xff]
      %v1423 = vld [vmem:[%s165 + $0x76] sm:$0xf]
      %v1424 = vpack.c.bf16 %v1412, %v1411
      %v1425 = vpack.c.bf16 %v1414, %v1413
      %v1426 = vpack.c.bf16 %v1416, %v1415
      %v1427 = vpack.c.bf16 %v1418, %v1417
      %v1428 = vpack.c.bf16 %v1420, %v1419
      %v1429 = vpack.c.bf16 %v1422, %v1421
      %v1430 = vpack.c.bf16 %v1423, %v1423
      %s1431 = scalar_lea.vmem %s1, 96
      %v1432 = vld [vmem:[%s1431] sm:$0xf]
      %v1433 = vld [vmem:[%s1431 + $0x4] sm:$0xf]
      %v1434 = vld [vmem:[%s1431 + $0x8] sm:$0xf]
      %v1438 = vunpack.c.l.b16 %v1432
      %v1439 = vunpack.c.l.b16 %v1433
      %v1440 = vunpack.c.l.b16 %v1434
      %v1441 = vpack.c.b16 %v1439, %v1438
      %v1442 = vpack.c.b16 %v1440, %v1440
      %v1445 = vsel %vm228, %v1424, 0
      %v1448 = vsel %vm228, %v1425, 0
      %v1451 = vsel %vm228, %v1426, 0
      %v1454 = vsel %vm228, %v1427, 0
      %v1457 = vsel %vm228, %v1428, 0
      %v1460 = vsel %vm228, %v1429, 0
      %v1463 = vsel %vm228, %v1430, 0
      %v1466 = vsel %vm250, %v1442, 0
      %1468 = vmatprep.subr.bf16.mxu0 0
      %1469 = vmatpush1.bf16.msra.mxu0 0
      %1470 = vmatprep.subr.bf16.mxu0 0
      %1471 = vmatpush1.bf16.msra.mxu0 0
      %1472 = vmatprep.subr.bf16.mxu0 0
      %1473 = vmatpush1.bf16.msra.mxu0 0
      %1474 = vmatprep.subr.bf16.mxu0 0
      %1475 = vmatpush1.bf16.msra.mxu0 0
      %1476 = vmatprep.subr.bf16.mxu0 0
      %1477 = vmatpush1.bf16.msra.mxu0 0
      %1478 = vmatprep.subr.bf16.mxu0 0
      %1479 = vmatpush1.bf16.msra.mxu0 0
      %1480 = vmatprep.subr.bf16.mxu0 0
      %1481 = vmatpush1.bf16.msra.mxu0 %v1466
      %1482 = vmatprep.subr.bf16.mxu0 0
      %1483 = vmatpush1.bf16.msra.mxu0 %v1441
      %1484 = vmatprep.subr.bf16.mxu0 0
      %1485 = vmatpush2.bf16.msra.mxu0 0
      %1486 = vmatprep.subr.bf16.mxu0 0
      %1487 = vmatpush2.bf16.msra.mxu0 0
      %1488 = vmatprep.subr.bf16.mxu0 0
      %1489 = vmatpush2.bf16.msra.mxu0 0
      %1490 = vmatprep.subr.bf16.mxu0 0
      %1491 = vmatpush2.bf16.msra.mxu0 0
      %1492 = vmatprep.subr.bf16.mxu0 0
      %1493 = vmatpush2.bf16.msra.mxu0 0
      %1494 = vmatprep.subr.bf16.mxu0 0
      %1495 = vmatpush2.bf16.msra.mxu0 0
      %1496 = vmatprep.subr.bf16.mxu0 0
      %1497 = vmatpush2.bf16.msra.mxu0 0
      %1498 = vmatprep.subr.bf16.mxu0 0
      %1499 = vmatpush2.bf16.msra.mxu0 0
      %1500 = vmatprep.mubr.bf16.mxu0 0
      %1501 = vmatmul.mubr.bf16.gmra.mxu0 %v1445
      %v1502 = vpop.f32.mrf.mxu0
      %v1503 = vadd.f32 0.0, %v1502
      %v1504 = vpop.f32.mrf.mxu0
      %v1505 = vpop.f32.mrf.mxu0
      %v1506 = vadd.f32 0.0, %v1505
      %v1507 = vpop.f32.mrf.mxu0
      %1508 = vmatprep.mubr.bf16.mxu0 0
      %1509 = vmatmul.mubr.bf16.gmra.mxu0 %v1448
      %v1510 = vpop.f32.mrf.mxu0
      %v1511 = vadd.f32 0.0, %v1510
      %v1512 = vpop.f32.mrf.mxu0
      %v1513 = vpop.f32.mrf.mxu0
      %v1514 = vadd.f32 0.0, %v1513
      %v1515 = vpop.f32.mrf.mxu0
      %1516 = vmatprep.mubr.bf16.mxu0 0
      %1517 = vmatmul.mubr.bf16.gmra.mxu0 %v1451
      %v1518 = vpop.f32.mrf.mxu0
      %v1519 = vadd.f32 0.0, %v1518
      %v1520 = vpop.f32.mrf.mxu0
      %v1521 = vpop.f32.mrf.mxu0
      %v1522 = vadd.f32 0.0, %v1521
      %v1523 = vpop.f32.mrf.mxu0
      %1524 = vmatprep.mubr.bf16.mxu0 0
      %1525 = vmatmul.mubr.bf16.gmra.mxu0 %v1454
      %v1526 = vpop.f32.mrf.mxu0
      %v1527 = vadd.f32 0.0, %v1526
      %v1528 = vpop.f32.mrf.mxu0
      %v1529 = vpop.f32.mrf.mxu0
      %v1530 = vadd.f32 0.0, %v1529
      %v1531 = vpop.f32.mrf.mxu0
      %1532 = vmatprep.mubr.bf16.mxu0 0
      %1533 = vmatmul.mubr.bf16.gmra.mxu0 %v1457
      %v1534 = vpop.f32.mrf.mxu0
      %v1535 = vadd.f32 0.0, %v1534
      %v1536 = vpop.f32.mrf.mxu0
      %v1537 = vpop.f32.mrf.mxu0
      %v1538 = vadd.f32 0.0, %v1537
      %v1539 = vpop.f32.mrf.mxu0
      %1540 = vmatprep.mubr.bf16.mxu0 0
      %1541 = vmatmul.mubr.bf16.gmra.mxu0 %v1460
      %v1542 = vpop.f32.mrf.mxu0
      %v1543 = vadd.f32 0.0, %v1542
      %v1544 = vpop.f32.mrf.mxu0
      %v1545 = vpop.f32.mrf.mxu0
      %v1546 = vadd.f32 0.0, %v1545
      %v1547 = vpop.f32.mrf.mxu0
      %1548 = vmatprep.mubr.bf16.mxu0 0
      %1549 = vmatmul.mubr.bf16.gmra.mxu0 %v1463
      %v1550 = vpop.f32.mrf.mxu0
      %v1551 = vadd.f32 0.0, %v1550
      %v1552 = vpop.f32.mrf.mxu0
      %v1553 = vpop.f32.mrf.mxu0
      %v1554 = vpop.f32.mrf.mxu0
      %1555 = vdwg.mxu0
      %v1556 = vadd.f32 %v1398, %v1503
      %v1557 = vadd.f32 %v1399, %v1506
      %v1558 = vadd.f32 %v1400, %v1511
      %v1559 = vadd.f32 %v1401, %v1514
      %v1560 = vadd.f32 %v1402, %v1519
      %v1561 = vadd.f32 %v1403, %v1522
      %v1562 = vadd.f32 %v1404, %v1527
      %v1563 = vadd.f32 %v1405, %v1530
      %v1564 = vadd.f32 %v1406, %v1535
      %v1565 = vadd.f32 %v1407, %v1538
      %v1566 = vadd.f32 %v1408, %v1543
      %v1567 = vadd.f32 %v1409, %v1546
      %v1568 = vadd.f32 %v1410, %v1551
      %v1569 = vld [vmem:[%s2] sm:$0x1]
      %v1571 = vlaneseq
      %v1572 = vshrl.u32 %v1571, 7
      %v1573 = vsub.s32 0, %v1572
      %v1574 = vrot.slane %v1569, %v1573
      %v1576 = vadd.f32 %v1556, %v1574
      %v1577 = vadd.f32 %v1557, %v1574
      %v1578 = vadd.f32 %v1558, %v1574
      %v1579 = vadd.f32 %v1559, %v1574
      %v1580 = vadd.f32 %v1560, %v1574
      %v1581 = vadd.f32 %v1561, %v1574
      %v1582 = vadd.f32 %v1562, %v1574
      %v1583 = vadd.f32 %v1563, %v1574
      %v1584 = vadd.f32 %v1564, %v1574
      %v1585 = vadd.f32 %v1565, %v1574
      %v1586 = vadd.f32 %v1566, %v1574
      %v1587 = vadd.f32 %v1567, %v1574
      %v1588 = vadd.f32 %v1568, %v1574
      %1589 = vst [vmem:[%s170] sm:$0xff] %v1576
      %1590 = vst [vmem:[%s170 + $0x8] sm:$0xff] %v1577
      %1591 = vst [vmem:[%s170 + $0x10] sm:$0xff] %v1578
      %1592 = vst [vmem:[%s170 + $0x18] sm:$0xff] %v1579
      %1593 = vst [vmem:[%s170 + $0x20] sm:$0xff] %v1580
      %1594 = vst [vmem:[%s170 + $0x28] sm:$0xff] %v1581
      %1595 = vst [vmem:[%s170 + $0x30] sm:$0xff] %v1582
      %1596 = vst [vmem:[%s170 + $0x38] sm:$0xff] %v1583
      %1597 = vst [vmem:[%s170 + $0x40] sm:$0xff] %v1584
      %1598 = vst [vmem:[%s170 + $0x48] sm:$0xff] %v1585
      %1599 = vst [vmem:[%s170 + $0x50] sm:$0xff] %v1586
      %1600 = vst [vmem:[%s170 + $0x58] sm:$0xff] %v1587
      %1601 = vst [vmem:[%s170 + $0x60] sm:$0xf] %v1588
      %p1602 = scmp.lt.s32.totalorder %s14, 1
      %s1603 = scalar_select %p1602, %s14, 1
      %s1604 = smul.addr %s1603, 13
      %s1605 = smul.addr %s1604, 8
      %s1606 = scalar_lea.vmem %s3, %s1605
      // Predicated region
      $region33: #{forward.13} parent=31 // pred_check
        %p1607 = pneg %p100
      $region34: #{forward.13} parent=31 // pred_check_branch
        %1609 = sbr.rel (%p1607) target = $region36
      $region35: #{forward.13} parent=31 // pred_region
        _
      $region36: #{forward.13} parent=31 // pred_fallthru
        _
    $region32: #{forward.13} parent=5 // pred_fallthru
      _
    %p1610 = scmp.le.s32.totalorder 2, %s9
    // Predicated region
    $region37: #{forward.13} parent=5 // pred_check
      %p1611 = pneg %p1610
    $region38: #{forward.13} parent=5 // pred_check_branch
      %1613 = sbr.rel (%p1611) target = $region40
    $region39: #{forward.13} parent=5 // pred_region
      %s1614 = ssub.s32 %s9, 2
      // Predicated region
      $region41: #{forward.13} parent=39 // pred_check
        %p1615 = pneg %p106
      $region42: #{forward.13} parent=39 // pred_check_branch
        %1617 = sbr.rel (%p1615) target = $region44
      $region43: #{forward.13} parent=39 // pred_region
        %p1618 = scmp.lt.s32.totalorder %s15, 1
        %s1619 = scalar_select %p1618, %s15, 1
        %s1620 = smul.addr %s1619, 13
        %s1621 = smul.addr %s1620, 8
        %s1622 = scalar_lea.vmem %s3, %s1621
      $region44: #{forward.13} parent=39 // pred_fallthru
        _
    $region40: #{forward.13} parent=5 // pred_fallthru
      _
  $region6: #{forward.13} parent=0 // loop_footer
    %s13 = sadd.s32 1, %s9
  $region7: #{forward.13} parent=0 // loop_footer_branch
    %8 = sbr.rel target = $region3
  $region8: #{forward.13} parent=0 // loop_exit
    _

</llo_original>
